<compile_context>
chip_gen: v6e
topology: v6e:2x2x1
jax: 0.10.0
libtpu: 0.0.40
codegen_flags: <defaults>
</compile_context>

<pallas_src>
import math

import jax
import jax.numpy as jnp
from jax.experimental import pallas as pl
from jax.experimental.pallas import tpu as pltpu

NEG_SLOPE = 0.2
BN_EPS = 1e-5


def _leaky_relu(x):
    return jnp.where(x > 0, x, NEG_SLOPE * x)


def _bytes(shape, dtype):
    return math.prod(shape) * jnp.dtype(dtype).itemsize


def _vmem_cap_bytes():
    """Generation-aware VMEM budget (~75% of capacity); 48 MiB fallback is safe
    on v7x's 64 MiB and conservative on v5e/v6e's 128 MiB."""
    try:
        info = pltpu.get_tpu_info()
        cap = getattr(info, "vmem_capacity_bytes", None)
        if cap:
            return int(cap * 3 // 4)
    except Exception:
        pass
    return 48 << 20


def _tile_and_pad(dim, pref, align):
    """Pick a tile <= pref. Returns (tile, padded_dim). If no aligned divisor of
    dim exists, the dimension is padded up to a multiple of the preferred tile
    instead of falling back to one giant tile (which could blow VMEM on v7x)."""
    if dim <= pref:
        return dim, dim
    t = (pref // align) * align
    while t >= align:
        if dim % t == 0:
            return t, dim
        t -= align
    t = (pref // align) * align
    padded = ((dim + t - 1) // t) * t
    return t, padded


# ---------------------------------------------------------------------------
# Generic tiled matmul kernel (used for the two convs, as im2col matmuls).
# ---------------------------------------------------------------------------
def _make_matmul_kernel(epilogue, with_stats, tm, m_true, m_pad):
    def kernel(*refs):
        if with_stats:
            x_ref, w_ref, b_ref, y_ref, stats_ref, acc_ref = refs
        else:
            x_ref, w_ref, b_ref, y_ref, acc_ref = refs

        k = pl.program_id(2)

        @pl.when(k == 0)
        def _init():
            acc_ref[...] = jnp.zeros_like(acc_ref)

        acc_ref[...] += jnp.dot(x_ref[...], w_ref[...],
                                preferred_element_type=jnp.float32)

        @pl.when(k == pl.num_programs(2) - 1)
        def _finalize():
            y = acc_ref[...] + b_ref[...]
            if with_stats:
                # Per-tile per-column sum / sum-of-squares written directly to
                # rows 0/1 of the 8-row stats block (rows 2..7 unused); the
                # tiny cross-tile reduction happens outside the kernel.
                if m_pad != m_true:
                    row = (jax.lax.broadcasted_iota(jnp.int32, y.shape, 0)
                           + pl.program_id(0) * tm)
                    yv = jnp.where(row < m_true, y, 0.0)
                else:
                    yv = y
                stats_ref[0:1, :] = jnp.sum(yv, axis=0, keepdims=True)
                stats_ref[1:2, :] = jnp.sum(yv * yv, axis=0, keepdims=True)
            if epilogue == "lrelu":
                y = _leaky_relu(y)
            y_ref[...] = y.astype(y_ref.dtype)

    return kernel


def fused_matmul(x, w, b, *, epilogue=None, with_stats=False,
                 out_dtype=jnp.bfloat16, tm_pref=512, tn_pref=512, tk_pref=1024):
    """y = epilogue(x @ w + b): bf16 MXU operands, f32 accumulation in VMEM
    scratch; optionally emits per-M-tile per-column sum/sum-of-squares."""
    M, K = x.shape
    Kw, N = w.shape
    assert K == Kw

    tm, Mp = _tile_and_pad(M, tm_pref, 8)
    tn, Np = _tile_and_pad(N, tn_pref, 128)
    tk, Kp = _tile_and_pad(K, tk_pref, 128)

    if (Mp, Kp) != (M, K):
        x = jnp.pad(x, ((0, Mp - M), (0, Kp - K)))
    if (Kp, Np) != (K, N):
        w = jnp.pad(w, ((0, Kp - K), (0, Np - N)))
    b2 = b.reshape(1, -1).astype(jnp.float32)
    if Np != N:
        b2 = jnp.pad(b2, ((0, 0), (0, Np - N)))

    gm, gn, gk = Mp // tm, Np // tn, Kp // tk

    in_specs = [pl.BlockSpec((tm, tk), lambda i, j, k: (i, k)),
                pl.BlockSpec((tk, tn), lambda i, j, k: (k, j)),
                pl.BlockSpec((1, tn), lambda i, j, k: (0, j))]
    out_shapes = [jax.ShapeDtypeStruct((Mp, Np), out_dtype)]
    out_specs = [pl.BlockSpec((tm, tn), lambda i, j, k: (i, j))]
    if with_stats:
        out_shapes.append(jax.ShapeDtypeStruct((gm * 8, Np), jnp.float32))
        out_specs.append(pl.BlockSpec((8, tn), lambda i, j, k: (i, j)))

    # VMEM budget from the actual tile working set (double-buffered in/out +
    # f32 accumulator scratch), capped by the generation-aware limit.
    work = (2 * _bytes((tm, tk), x.dtype) + 2 * _bytes((tk, tn), w.dtype)
            + 2 * _bytes((1, tn), jnp.float32) + 2 * _bytes((tm, tn), out_dtype)
            + _bytes((tm, tn), jnp.float32))
    if with_stats:
        work += 2 * _bytes((8, tn), jnp.float32)
    vmem_limit = int(min(max(4 * work, 32 << 20), _vmem_cap_bytes()))

    res = pl.pallas_call(
        _make_matmul_kernel(epilogue, with_stats, tm, M, Mp),
        out_shape=tuple(out_shapes),
        grid_spec=pltpu.PrefetchScalarGridSpec(
            num_scalar_prefetch=0,
            grid=(gm, gn, gk),
            in_specs=in_specs,
            out_specs=tuple(out_specs),
            scratch_shapes=[pltpu.VMEM((tm, tn), jnp.float32)]),
        compiler_params=pltpu.CompilerParams(
            dimension_semantics=("parallel", "parallel", "arbitrary"),
            vmem_limit_bytes=vmem_limit),
    )(x, w, b2)

    y = res[0]
    if Mp != M or Np != N:
        y = y[:M, :N]
    if with_stats:
        stats = res[1]
        if Np != N:
            stats = stats[:, :N]
        return y, stats
    return y


# ---------------------------------------------------------------------------
# Fused FC head: BN2-affine + lrelu -> fc1 -> BN1d -> lrelu -> fc2 -> sigmoid,
# all in one pallas_call (the whole batch is a single resident M tile).
# ---------------------------------------------------------------------------
def _fc_head_kernel(x_ref, scale_ref, shift_ref, w1_ref, b1_ref, g1_ref,
                    beta1_ref, w2_ref, b2_ref, o_ref, acc_ref):
    k = pl.program_id(0)

    @pl.when(k == 0)
    def _init():
        acc_ref[...] = jnp.zeros_like(acc_ref)

    # Fused prologue: conv2's BatchNorm2d (precomputed scale/shift) + LeakyReLU.
    x = x_ref[...].astype(jnp.float32) * scale_ref[...] + shift_ref[...]
    x = _leaky_relu(x).astype(jnp.bfloat16)
    acc_ref[...] += jnp.dot(x, w1_ref[...], preferred_element_type=jnp.float32)

    @pl.when(k == pl.num_programs(0) - 1)
    def _finalize():
        h = acc_ref[...] + b1_ref[...]                          # fc1 pre-BN (f32)
        # BatchNorm1d with train-mode (biased) batch statistics, in-kernel.
        mean = jnp.mean(h, axis=0, keepdims=True)
        var = jnp.maximum(jnp.mean(h * h, axis=0, keepdims=True) - mean * mean,
                          0.0)
        inv = jax.lax.rsqrt(var + BN_EPS)
        hn = _leaky_relu((h - mean) * (g1_ref[...] * inv) + beta1_ref[...])
        y = jnp.dot(hn.astype(jnp.bfloat16), w2_ref[...],
                    preferred_element_type=jnp.float32) + b2_ref[...]
        o_ref[...] = (1.0 / (1.0 + jnp.exp(-y))).astype(o_ref.dtype)  # sigmoid


def fused_fc_head(x, scale, shift, w1, b1, g1, beta1, w2, b2, *, tk_pref=2048):
    M, K = x.shape
    H = w1.shape[1]      # 1024
    Np = w2.shape[1]     # lane-padded output width (>=128)

    tk, Kp = _tile_and_pad(K, tk_pref, 128)
    if Kp != K:
        x = jnp.pad(x, ((0, 0), (0, Kp - K)))
        w1 = jnp.pad(w1, ((0, Kp - K), (0, 0)))
        scale = jnp.pad(scale, ((0, Kp - K),))
        shift = jnp.pad(shift, ((0, Kp - K),))
    gk = Kp // tk

    work = (2 * _bytes((M, tk), x.dtype)
            + 4 * _bytes((1, tk), jnp.float32)
            + 2 * _bytes((tk, H), w1.dtype)
            + 2 * _bytes((H, Np), w2.dtype)
            + 8 * _bytes((1, max(H, Np)), jnp.float32)
            + 2 * _bytes((M, Np), jnp.float32)
            + _bytes((M, H), jnp.float32))
    vmem_limit = int(min(max(4 * work, 32 << 20), _vmem_cap_bytes()))

    return pl.pallas_call(
        _fc_head_kernel,
        out_shape=jax.ShapeDtypeStruct((M, Np), jnp.float32),
        grid_spec=pltpu.PrefetchScalarGridSpec(
            num_scalar_prefetch=0,
            grid=(gk,),
            in_specs=[
                pl.BlockSpec((M, tk), lambda k: (0, k)),
                pl.BlockSpec((1, tk), lambda k: (0, k)),
                pl.BlockSpec((1, tk), lambda k: (0, k)),
                pl.BlockSpec((tk, H), lambda k: (k, 0)),
                pl.BlockSpec((1, H), lambda k: (0, 0)),
                pl.BlockSpec((1, H), lambda k: (0, 0)),
                pl.BlockSpec((1, H), lambda k: (0, 0)),
                pl.BlockSpec((H, Np), lambda k: (0, 0)),
                pl.BlockSpec((1, Np), lambda k: (0, 0)),
            ],
            out_specs=pl.BlockSpec((M, Np), lambda k: (0, 0)),
            scratch_shapes=[pltpu.VMEM((M, H), jnp.float32)]),
        compiler_params=pltpu.CompilerParams(
            dimension_semantics=("arbitrary",),
            vmem_limit_bytes=vmem_limit),
    )(x,
      scale.reshape(1, -1).astype(jnp.float32),
      shift.reshape(1, -1).astype(jnp.float32),
      w1,
      b1.reshape(1, -1).astype(jnp.float32),
      g1.reshape(1, -1).astype(jnp.float32),
      beta1.reshape(1, -1).astype(jnp.float32),
      w2,
      b2.reshape(1, -1).astype(jnp.float32))


# ---------------------------------------------------------------------------
# BatchNorm statistics finalization (tiny, outside the hot kernels).
# ---------------------------------------------------------------------------
def _bn_scale_shift(stats, count, gamma, beta):
    n_feat = stats.shape[-1]
    s = stats.reshape(-1, 8, n_feat)
    colsum = s[:, 0, :].sum(axis=0)
    colsumsq = s[:, 1, :].sum(axis=0)
    mean = colsum / count
    var = jnp.maximum(colsumsq / count - mean * mean, 0.0)  # clamp f32 cancellation
    inv = jax.lax.rsqrt(var + BN_EPS)
    scale = gamma * inv
    shift = beta - mean * scale
    return scale, shift


# ---------------------------------------------------------------------------
# Glue: im2col patch extraction (plain JAX, no compute).
# ---------------------------------------------------------------------------
def im2col(x_nhwc, k, stride, pad):
    """x: [N,H,W,C] -> rows ordered (n,ho,wo), cols ordered (kh,kw,cin)."""
    N, H, W, C = x_nhwc.shape
    xp = jnp.pad(x_nhwc, ((0, 0), (pad, pad), (pad, pad), (0, 0)))
    Ho = (H + 2 * pad - k) // stride + 1
    Wo = (W + 2 * pad - k) // stride + 1
    cols = []
    for kh in range(k):
        for kw in range(k):
            cols.append(xp[:, kh:kh + stride * Ho:stride,
                           kw:kw + stride * Wo:stride, :])
    patches = jnp.stack(cols, axis=3)                      # [N,Ho,Wo,k*k,C]
    return patches.reshape(N * Ho * Wo, k * k * C), Ho, Wo


def conv_weight_to_matmul(w_oihw):
    # [outC,inC,kh,kw] -> [(kh,kw,inC), outC] to match im2col column order
    out_c = w_oihw.shape[0]
    return jnp.transpose(w_oihw, (2, 3, 1, 0)).reshape(-1, out_c)


# ---------------------------------------------------------------------------
# Parameters (deterministic synthetic init) + one-time layout preparation.
# ---------------------------------------------------------------------------
def init_params(key, in_c, in_size, out_dim):
    ks = jax.random.split(key, 8)
    flat = 128 * (in_size // 4) * (in_size // 4)
    return {
        "w1": jax.random.normal(ks[0], (64, in_c, 4, 4), jnp.float32) * 0.05,
        "b1": jax.random.normal(ks[1], (64,), jnp.float32) * 0.05,
        "w2": jax.random.normal(ks[2], (128, 64, 4, 4), jnp.float32) * 0.05,
        "b2": jax.random.normal(ks[3], (128,), jnp.float32) * 0.05,
        "g2": jnp.ones((128,), jnp.float32),
        "beta2": jnp.zeros((128,), jnp.float32),
        "wfc1": jax.random.normal(ks[4], (flat, 1024), jnp.float32) * 0.02,
        "bfc1": jax.random.normal(ks[5], (1024,), jnp.float32) * 0.02,
        "gfc1": jnp.ones((1024,), jnp.float32),
        "betafc1": jnp.zeros((1024,), jnp.float32),
        "wfc2": jax.random.normal(ks[6], (1024, out_dim), jnp.float32) * 0.02,
        "bfc2": jax.random.normal(ks[7], (out_dim,), jnp.float32) * 0.02,
    }


def prepare_params(p, in_size, out_dim):
    """One-time layout plumbing: bf16 weights, conv->matmul layout, fc1 row
    permutation (NCHW-flatten -> NHWC-flatten), fc2 lane padding to >=128."""
    H2 = in_size // 4
    prep = {
        "w1m": conv_weight_to_matmul(p["w1"]).astype(jnp.bfloat16),
        "b1": p["b1"],
        "w2m": conv_weight_to_matmul(p["w2"]).astype(jnp.bfloat16),
        "b2": p["b2"],
        "g2": p["g2"], "beta2": p["beta2"],
        "bfc1": p["bfc1"],
        "gfc1": p["gfc1"], "betafc1": p["betafc1"],
    }
    # fc1 weight rows are indexed by PyTorch NCHW-flatten order c*H2*W2 + h*W2 + w;
    # permute once so x can be flattened in NHWC order with identical numerics.
    wfc1 = p["wfc1"].reshape(128, H2, H2, 1024)
    prep["wfc1m"] = jnp.transpose(wfc1, (1, 2, 0, 3)) \
                       .reshape(H2 * H2 * 128, 1024).astype(jnp.bfloat16)
    # fc2: pad output lanes to a multiple of 128 (lane-dense stores); slice outside.
    n_pad = max(128, ((out_dim + 127) // 128) * 128)
    wfc2p = jnp.zeros((1024, n_pad), jnp.float32).at[:, :out_dim].set(p["wfc2"])
    bfc2p = jnp.zeros((n_pad,), jnp.float32).at[:out_dim].set(p["bfc2"])
    prep["wfc2m"] = wfc2p.astype(jnp.bfloat16)
    prep["bfc2p"] = bfc2p
    return prep


# ---------------------------------------------------------------------------
# Forward pass.
# ---------------------------------------------------------------------------
def discriminator_forward(x_nchw, params, out_dim):
    N = x_nchw.shape[0]
    x = jnp.transpose(x_nchw, (0, 2, 3, 1)).astype(jnp.bfloat16)  # NHWC, bf16

    # conv1 + LeakyReLU (tiled matmul with fused bias+lrelu epilogue, bf16 out).
    # TODO(synk): in-kernel shifted-window accumulation over the 16 (kh,kw) taps
    # instead of materializing im2col patches in HBM at large image sizes.
    p1, H1, W1 = im2col(x, 4, 2, 1)
    y1 = fused_matmul(p1, params["w1m"], params["b1"],
                      epilogue="lrelu", out_dtype=jnp.bfloat16)
    y1 = y1.reshape(N, H1, W1, 64)

    # conv2 (matmul + bias, pre-BN, bf16 output) with in-kernel per-channel
    # batch sum / sum-of-squares (computed from the f32 accumulator).
    p2, H2, W2 = im2col(y1, 4, 2, 1)
    y2_pre, stats2 = fused_matmul(p2, params["w2m"], params["b2"],
                                  with_stats=True, out_dtype=jnp.bfloat16)
    scale2, shift2 = _bn_scale_shift(stats2, p2.shape[0],
                                     params["g2"], params["beta2"])

    # NHWC-flatten + permuted fc1 weight reproduces PyTorch's NCHW .view().
    flat_pre = y2_pre.reshape(N, H2 * W2 * 128)
    scale2_flat = jnp.tile(scale2, H2 * W2)
    shift2_flat = jnp.tile(shift2, H2 * W2)

    # Fully fused FC head: BN2d-affine + lrelu -> fc1 -> BN1d (in-kernel batch
    # stats) -> lrelu -> fc2 -> sigmoid, single pallas_call, 128-lane output.
    y4 = fused_fc_head(flat_pre, scale2_flat, shift2_flat,
                       params["wfc1m"], params["bfc1"],
                       params["gfc1"], params["betafc1"],
                       params["wfc2m"], params["bfc2p"])
    return y4[:, :out_dim]


if __name__ == "__main__":
    # img_shape = (C=4, H=16, W=16), output_dim = 1, batch = 2
    N, C, H, W = 2, 4, 16, 16
    OUT_DIM = 1

    key = jax.random.PRNGKey(0)
    k_x, k_p = jax.random.split(key)
    x = jax.random.normal(k_x, (N, C, H, W), jnp.float32)
    raw_params = init_params(k_p, C, H, OUT_DIM)
    params = prepare_params(raw_params, H, OUT_DIM)

    fwd = jax.jit(discriminator_forward, static_argnums=(2,))
    out = fwd(x, params, OUT_DIM)
    out = jax.block_until_ready(out)

    assert out.shape == (N, OUT_DIM)
    assert bool(jnp.all((out >= 0.0) & (out <= 1.0)))
    assert bool(jnp.all(jnp.isfinite(out)))
    print("KERNEL_OK")
</pallas_src>

<mosaic_0001>
module attributes {stable_mosaic.version = 11 : i64} {
  func.func @kernel(%arg0: i32, %arg1: i32, %arg2: i32, %arg3: memref<128x64xbf16, #tpu.memory_space<vmem>>, %arg4: memref<64x64xbf16, #tpu.memory_space<vmem>>, %arg5: memref<1x64xf32, #tpu.memory_space<vmem>>, %arg6: memref<128x64xbf16, #tpu.memory_space<vmem>>, %arg7: memref<128x64xf32, #tpu.memory_space<vmem>>) attributes {dimension_semantics = [#tpu.dimension_semantics<parallel>, #tpu.dimension_semantics<parallel>, #tpu.dimension_semantics<arbitrary>], iteration_bounds = array<i64: 1, 1, 1>, scalar_prefetch = 0 : i64, scratch_operands = 1 : i64, tpu.core_type = #tpu.core_type<tc>, window_params = [{transform_indices = @transform_0, window_bounds = array<i64: 128, 64>}, {transform_indices = @transform_1, window_bounds = array<i64: 64, 64>}, {transform_indices = @transform_2, window_bounds = array<i64: 1, 64>}, {transform_indices = @transform_3, window_bounds = array<i64: 128, 64>}]} {
    %c0_i32 = arith.constant 0 : i32
    %0 = arith.cmpi eq, %arg2, %c0_i32 : i32
    %1 = arith.extui %0 : i1 to i32
    %c0_i32_0 = arith.constant 0 : i32
    %2 = arith.cmpi ne, %1, %c0_i32_0 : i32
    scf.if %2 {
      %cst_10 = arith.constant 0.000000e+00 : f32
      %12 = vector.broadcast %cst_10 : f32 to vector<128x64xf32>
      %c0_11 = arith.constant 0 : index
      %c0_12 = arith.constant 0 : index
      %13 = vector.load %arg7[%c0_11, %c0_12] : memref<128x64xf32, #tpu.memory_space<vmem>>, vector<128x64xf32>
      tpu.vector_store %arg7[%c0_11, %c0_12], %12 {strides = array<i32>} : memref<128x64xf32, #tpu.memory_space<vmem>>, vector<128x64xf32>,
    } else {
    }
    %c0 = arith.constant 0 : index
    %c0_1 = arith.constant 0 : index
    %3 = vector.load %arg7[%c0, %c0_1] : memref<128x64xf32, #tpu.memory_space<vmem>>, vector<128x64xf32>
    %c0_2 = arith.constant 0 : index
    %c0_3 = arith.constant 0 : index
    %4 = vector.load %arg3[%c0_2, %c0_3] : memref<128x64xbf16, #tpu.memory_space<vmem>>, vector<128x64xbf16>
    %c0_4 = arith.constant 0 : index
    %c0_5 = arith.constant 0 : index
    %5 = vector.load %arg4[%c0_4, %c0_5] : memref<64x64xbf16, #tpu.memory_space<vmem>>, vector<64x64xbf16>
    %cst = arith.constant dense<0.000000e+00> : vector<128x64xf32>
    %6 = tpu.matmul %4, %5, %cst {dimension_numbers = #tpu.dot_dimension_numbers<[1], [0], [0], [1], [0, 0, 1, 1], [], []>} : vector<128x64xbf16>, vector<64x64xbf16>, vector<128x64xf32> -> vector<128x64xf32>
    %7 = arith.addf %3, %6 : vector<128x64xf32>
    %c0_6 = arith.constant 0 : index
    %c0_7 = arith.constant 0 : index
    %8 = vector.load %arg7[%c0_6, %c0_7] : memref<128x64xf32, #tpu.memory_space<vmem>>, vector<128x64xf32>
    tpu.vector_store %arg7[%c0_6, %c0_7], %7 {strides = array<i32>} : memref<128x64xf32, #tpu.memory_space<vmem>>, vector<128x64xf32>,
    %c0_i32_8 = arith.constant 0 : i32
    %9 = arith.cmpi eq, %arg2, %c0_i32_8 : i32
    %10 = arith.extui %9 : i1 to i32
    %c0_i32_9 = arith.constant 0 : i32
    %11 = arith.cmpi ne, %10, %c0_i32_9 : i32
    scf.if %11 {
      %c0_10 = arith.constant 0 : index
      %c0_11 = arith.constant 0 : index
      %12 = vector.load %arg7[%c0_10, %c0_11] : memref<128x64xf32, #tpu.memory_space<vmem>>, vector<128x64xf32>
      %c0_12 = arith.constant 0 : index
      %c0_13 = arith.constant 0 : index
      %13 = vector.load %arg5[%c0_12, %c0_13] : memref<1x64xf32, #tpu.memory_space<vmem>>, vector<1x64xf32>
      %14 = vector.broadcast %13 : vector<1x64xf32> to vector<128x64xf32>
      %15 = arith.addf %12, %14 : vector<128x64xf32>
      %cst_14 = arith.constant 0.000000e+00 : f32
      %16 = vector.broadcast %cst_14 : f32 to vector<128x64xf32>
      %17 = arith.cmpf ogt, %15, %16 : vector<128x64xf32>
      %cst_15 = arith.constant 2.000000e-01 : f32
      %18 = vector.broadcast %cst_15 : f32 to vector<128x64xf32>
      %19 = arith.mulf %18, %15 : vector<128x64xf32>
      %20 = arith.select %17, %15, %19 : vector<128x64xi1>, vector<128x64xf32>
      %21 = arith.truncf %20 : vector<128x64xf32> to vector<128x64xbf16>
      %c0_16 = arith.constant 0 : index
      %c0_17 = arith.constant 0 : index
      %22 = vector.load %arg6[%c0_16, %c0_17] : memref<128x64xbf16, #tpu.memory_space<vmem>>, vector<128x64xbf16>
      tpu.vector_store %arg6[%c0_16, %c0_17], %21 {strides = array<i32>} : memref<128x64xbf16, #tpu.memory_space<vmem>>, vector<128x64xbf16>,
    } else {
    }
    return
  }
  func.func @transform_0(%arg0: i32, %arg1: i32, %arg2: i32) -> (i32, i32) {
    %c0_i32 = arith.constant 0 : i32
    return %arg0, %arg2 : i32, i32
  }
  func.func @transform_1(%arg0: i32, %arg1: i32, %arg2: i32) -> (i32, i32) {
    %c0_i32 = arith.constant 0 : i32
    return %arg2, %arg1 : i32, i32
  }
  func.func @transform_2(%arg0: i32, %arg1: i32, %arg2: i32) -> (i32, i32) {
    %c0_i32 = arith.constant 0 : i32
    %c0_i32_0 = arith.constant 0 : i32
    return %c0_i32, %arg1 : i32, i32
  }
  func.func @transform_3(%arg0: i32, %arg1: i32, %arg2: i32) -> (i32, i32) {
    %c0_i32 = arith.constant 0 : i32
    return %arg0, %arg1 : i32, i32
  }
}

module attributes {stable_mosaic.version = 11 : i64} {
  func.func @kernel(%arg0: i32, %arg1: i32, %arg2: i32, %arg3: memref<32x1024xbf16, #tpu.memory_space<vmem>>, %arg4: memref<1024x128xbf16, #tpu.memory_space<vmem>>, %arg5: memref<1x128xf32, #tpu.memory_space<vmem>>, %arg6: memref<32x128xbf16, #tpu.memory_space<vmem>>, %arg7: memref<8x128xf32, #tpu.memory_space<vmem>>, %arg8: memref<32x128xf32, #tpu.memory_space<vmem>>) attributes {dimension_semantics = [#tpu.dimension_semantics<parallel>, #tpu.dimension_semantics<parallel>, #tpu.dimension_semantics<arbitrary>], iteration_bounds = array<i64: 1, 1, 1>, scalar_prefetch = 0 : i64, scratch_operands = 1 : i64, tpu.core_type = #tpu.core_type<tc>, window_params = [{transform_indices = @transform_0, window_bounds = array<i64: 32, 1024>}, {transform_indices = @transform_1, window_bounds = array<i64: 1024, 128>}, {transform_indices = @transform_2, window_bounds = array<i64: 1, 128>}, {transform_indices = @transform_3, window_bounds = array<i64: 32, 128>}, {transform_indices = @transform_4, window_bounds = array<i64: 8, 128>}]} {
    %c0_i32 = arith.constant 0 : i32
    %0 = arith.cmpi eq, %arg2, %c0_i32 : i32
    %1 = arith.extui %0 : i1 to i32
    %c0_i32_0 = arith.constant 0 : i32
    %2 = arith.cmpi ne, %1, %c0_i32_0 : i32
    scf.if %2 {
      %cst_10 = arith.constant 0.000000e+00 : f32
      %12 = vector.broadcast %cst_10 : f32 to vector<32x128xf32>
      %c0_11 = arith.constant 0 : index
      %c0_12 = arith.constant 0 : index
      %13 = vector.load %arg8[%c0_11, %c0_12] : memref<32x128xf32, #tpu.memory_space<vmem>>, vector<32x128xf32>
      tpu.vector_store %arg8[%c0_11, %c0_12], %12 {strides = array<i32>} : memref<32x128xf32, #tpu.memory_space<vmem>>, vector<32x128xf32>,
    } else {
    }
    %c0 = arith.constant 0 : index
    %c0_1 = arith.constant 0 : index
    %3 = vector.load %arg8[%c0, %c0_1] : memref<32x128xf32, #tpu.memory_space<vmem>>, vector<32x128xf32>
    %c0_2 = arith.constant 0 : index
    %c0_3 = arith.constant 0 : index
    %4 = vector.load %arg3[%c0_2, %c0_3] : memref<32x1024xbf16, #tpu.memory_space<vmem>>, vector<32x1024xbf16>
    %c0_4 = arith.constant 0 : index
    %c0_5 = arith.constant 0 : index
    %5 = vector.load %arg4[%c0_4, %c0_5] : memref<1024x128xbf16, #tpu.memory_space<vmem>>, vector<1024x128xbf16>
    %cst = arith.constant dense<0.000000e+00> : vector<32x128xf32>
    %6 = tpu.matmul %4, %5, %cst {dimension_numbers = #tpu.dot_dimension_numbers<[1], [0], [0], [1], [0, 0, 1, 1], [], []>} : vector<32x1024xbf16>, vector<1024x128xbf16>, vector<32x128xf32> -> vector<32x128xf32>
    %7 = arith.addf %3, %6 : vector<32x128xf32>
    %c0_6 = arith.constant 0 : index
    %c0_7 = arith.constant 0 : index
    %8 = vector.load %arg8[%c0_6, %c0_7] : memref<32x128xf32, #tpu.memory_space<vmem>>, vector<32x128xf32>
    tpu.vector_store %arg8[%c0_6, %c0_7], %7 {strides = array<i32>} : memref<32x128xf32, #tpu.memory_space<vmem>>, vector<32x128xf32>,
    %c0_i32_8 = arith.constant 0 : i32
    %9 = arith.cmpi eq, %arg2, %c0_i32_8 : i32
    %10 = arith.extui %9 : i1 to i32
    %c0_i32_9 = arith.constant 0 : i32
    %11 = arith.cmpi ne, %10, %c0_i32_9 : i32
    scf.if %11 {
      %c0_10 = arith.constant 0 : index
      %c0_11 = arith.constant 0 : index
      %12 = vector.load %arg8[%c0_10, %c0_11] : memref<32x128xf32, #tpu.memory_space<vmem>>, vector<32x128xf32>
      %c0_12 = arith.constant 0 : index
      %c0_13 = arith.constant 0 : index
      %13 = vector.load %arg5[%c0_12, %c0_13] : memref<1x128xf32, #tpu.memory_space<vmem>>, vector<1x128xf32>
      %14 = vector.broadcast %13 : vector<1x128xf32> to vector<32x128xf32>
      %15 = arith.addf %12, %14 : vector<32x128xf32>
      %cst_14 = arith.constant dense<0.000000e+00> : vector<128xf32>
      %16 = vector.multi_reduction <add>, %15, %cst_14 [0] : vector<32x128xf32> to vector<128xf32>
      %17 = vector.shape_cast %16 : vector<128xf32> to vector<1x128xf32>
      %c0_15 = arith.constant 0 : index
      %c0_16 = arith.constant 0 : index
      %18 = vector.load %arg7[%c0_15, %c0_16] : memref<8x128xf32, #tpu.memory_space<vmem>>, vector<1x128xf32>
      tpu.vector_store %arg7[%c0_15, %c0_16], %17 {strides = array<i32>} : memref<8x128xf32, #tpu.memory_space<vmem>>, vector<1x128xf32>,
      %19 = arith.mulf %15, %15 : vector<32x128xf32>
      %cst_17 = arith.constant dense<0.000000e+00> : vector<128xf32>
      %20 = vector.multi_reduction <add>, %19, %cst_17 [0] : vector<32x128xf32> to vector<128xf32>
      %21 = vector.shape_cast %20 : vector<128xf32> to vector<1x128xf32>
      %c1 = arith.constant 1 : index
      %c0_18 = arith.constant 0 : index
      %22 = vector.load %arg7[%c1, %c0_18] : memref<8x128xf32, #tpu.memory_space<vmem>>, vector<1x128xf32>
      tpu.vector_store %arg7[%c1, %c0_18], %21 {strides = array<i32>} : memref<8x128xf32, #tpu.memory_space<vmem>>, vector<1x128xf32>,
      %23 = arith.truncf %15 : vector<32x128xf32> to vector<32x128xbf16>
      %c0_19 = arith.constant 0 : index
      %c0_20 = arith.constant 0 : index
      %24 = vector.load %arg6[%c0_19, %c0_20] : memref<32x128xbf16, #tpu.memory_space<vmem>>, vector<32x128xbf16>
      tpu.vector_store %arg6[%c0_19, %c0_20], %23 {strides = array<i32>} : memref<32x128xbf16, #tpu.memory_space<vmem>>, vector<32x128xbf16>,
    } else {
    }
    return
  }
  func.func @transform_0(%arg0: i32, %arg1: i32, %arg2: i32) -> (i32, i32) {
    %c0_i32 = arith.constant 0 : i32
    return %arg0, %arg2 : i32, i32
  }
  func.func @transform_1(%arg0: i32, %arg1: i32, %arg2: i32) -> (i32, i32) {
    %c0_i32 = arith.constant 0 : i32
    return %arg2, %arg1 : i32, i32
  }
  func.func @transform_2(%arg0: i32, %arg1: i32, %arg2: i32) -> (i32, i32) {
    %c0_i32 = arith.constant 0 : i32
    %c0_i32_0 = arith.constant 0 : i32
    return %c0_i32, %arg1 : i32, i32
  }
  func.func @transform_3(%arg0: i32, %arg1: i32, %arg2: i32) -> (i32, i32) {
    %c0_i32 = arith.constant 0 : i32
    return %arg0, %arg1 : i32, i32
  }
  func.func @transform_4(%arg0: i32, %arg1: i32, %arg2: i32) -> (i32, i32) {
    %c0_i32 = arith.constant 0 : i32
    return %arg0, %arg1 : i32, i32
  }
}

module attributes {stable_mosaic.version = 11 : i64} {
  func.func @_fc_head_kernel(%arg0: i32, %arg1: memref<2x2048xbf16, #tpu.memory_space<vmem>>, %arg2: memref<1x2048xf32, #tpu.memory_space<vmem>>, %arg3: memref<1x2048xf32, #tpu.memory_space<vmem>>, %arg4: memref<2048x1024xbf16, #tpu.memory_space<vmem>>, %arg5: memref<1x1024xf32, #tpu.memory_space<vmem>>, %arg6: memref<1x1024xf32, #tpu.memory_space<vmem>>, %arg7: memref<1x1024xf32, #tpu.memory_space<vmem>>, %arg8: memref<1024x128xbf16, #tpu.memory_space<vmem>>, %arg9: memref<1x128xf32, #tpu.memory_space<vmem>>, %arg10: memref<2x128xf32, #tpu.memory_space<vmem>>, %arg11: memref<2x1024xf32, #tpu.memory_space<vmem>>) attributes {dimension_semantics = [#tpu.dimension_semantics<arbitrary>], iteration_bounds = array<i64: 1>, scalar_prefetch = 0 : i64, scratch_operands = 1 : i64, tpu.core_type = #tpu.core_type<tc>, window_params = [{transform_indices = @transform_0, window_bounds = array<i64: 2, 2048>}, {transform_indices = @transform_1, window_bounds = array<i64: 1, 2048>}, {transform_indices = @transform_2, window_bounds = array<i64: 1, 2048>}, {transform_indices = @transform_3, window_bounds = array<i64: 2048, 1024>}, {pipeline_mode = #tpu.pipeline_mode<synchronous>, transform_indices = @transform_4, window_bounds = array<i64: 1, 1024>}, {pipeline_mode = #tpu.pipeline_mode<synchronous>, transform_indices = @transform_5, window_bounds = array<i64: 1, 1024>}, {pipeline_mode = #tpu.pipeline_mode<synchronous>, transform_indices = @transform_6, window_bounds = array<i64: 1, 1024>}, {pipeline_mode = #tpu.pipeline_mode<synchronous>, transform_indices = @transform_7, window_bounds = array<i64: 1024, 128>}, {pipeline_mode = #tpu.pipeline_mode<synchronous>, transform_indices = @transform_8, window_bounds = array<i64: 1, 128>}, {pipeline_mode = #tpu.pipeline_mode<synchronous>, transform_indices = @transform_9, window_bounds = array<i64: 2, 128>}]} {
    %c0_i32 = arith.constant 0 : i32
    %0 = arith.cmpi eq, %arg0, %c0_i32 : i32
    %1 = arith.extui %0 : i1 to i32
    %c0_i32_0 = arith.constant 0 : i32
    %2 = arith.cmpi ne, %1, %c0_i32_0 : i32
    scf.if %2 {
      %cst_16 = arith.constant 0.000000e+00 : f32
      %25 = vector.broadcast %cst_16 : f32 to vector<2x1024xf32>
      %c0_17 = arith.constant 0 : index
      %c0_18 = arith.constant 0 : index
      %26 = vector.load %arg11[%c0_17, %c0_18] : memref<2x1024xf32, #tpu.memory_space<vmem>>, vector<2x1024xf32>
      tpu.vector_store %arg11[%c0_17, %c0_18], %25 {strides = array<i32>} : memref<2x1024xf32, #tpu.memory_space<vmem>>, vector<2x1024xf32>,
    } else {
    }
    %c0 = arith.constant 0 : index
    %c0_1 = arith.constant 0 : index
    %3 = vector.load %arg1[%c0, %c0_1] : memref<2x2048xbf16, #tpu.memory_space<vmem>>, vector<2x2048xbf16>
    %4 = arith.extf %3 : vector<2x2048xbf16> to vector<2x2048xf32>
    %c0_2 = arith.constant 0 : index
    %c0_3 = arith.constant 0 : index
    %5 = vector.load %arg2[%c0_2, %c0_3] : memref<1x2048xf32, #tpu.memory_space<vmem>>, vector<1x2048xf32>
    %6 = vector.broadcast %5 : vector<1x2048xf32> to vector<2x2048xf32>
    %7 = arith.mulf %4, %6 : vector<2x2048xf32>
    %c0_4 = arith.constant 0 : index
    %c0_5 = arith.constant 0 : index
    %8 = vector.load %arg3[%c0_4, %c0_5] : memref<1x2048xf32, #tpu.memory_space<vmem>>, vector<1x2048xf32>
    %9 = vector.broadcast %8 : vector<1x2048xf32> to vector<2x2048xf32>
    %10 = arith.addf %7, %9 : vector<2x2048xf32>
    %cst = arith.constant 0.000000e+00 : f32
    %11 = vector.broadcast %cst : f32 to vector<2x2048xf32>
    %12 = arith.cmpf ogt, %10, %11 : vector<2x2048xf32>
    %cst_6 = arith.constant 2.000000e-01 : f32
    %13 = vector.broadcast %cst_6 : f32 to vector<2x2048xf32>
    %14 = arith.mulf %13, %10 : vector<2x2048xf32>
    %15 = arith.select %12, %10, %14 : vector<2x2048xi1>, vector<2x2048xf32>
    %16 = arith.truncf %15 : vector<2x2048xf32> to vector<2x2048xbf16>
    %c0_7 = arith.constant 0 : index
    %c0_8 = arith.constant 0 : index
    %17 = vector.load %arg11[%c0_7, %c0_8] : memref<2x1024xf32, #tpu.memory_space<vmem>>, vector<2x1024xf32>
    %c0_9 = arith.constant 0 : index
    %c0_10 = arith.constant 0 : index
    %18 = vector.load %arg4[%c0_9, %c0_10] : memref<2048x1024xbf16, #tpu.memory_space<vmem>>, vector<2048x1024xbf16>
    %cst_11 = arith.constant dense<0.000000e+00> : vector<2x1024xf32>
    %19 = tpu.matmul %16, %18, %cst_11 {dimension_numbers = #tpu.dot_dimension_numbers<[1], [0], [0], [1], [0, 0, 1, 1], [], []>} : vector<2x2048xbf16>, vector<2048x1024xbf16>, vector<2x1024xf32> -> vector<2x1024xf32>
    %20 = arith.addf %17, %19 : vector<2x1024xf32>
    %c0_12 = arith.constant 0 : index
    %c0_13 = arith.constant 0 : index
    %21 = vector.load %arg11[%c0_12, %c0_13] : memref<2x1024xf32, #tpu.memory_space<vmem>>, vector<2x1024xf32>
    tpu.vector_store %arg11[%c0_12, %c0_13], %20 {strides = array<i32>} : memref<2x1024xf32, #tpu.memory_space<vmem>>, vector<2x1024xf32>,
    %c0_i32_14 = arith.constant 0 : i32
    %22 = arith.cmpi eq, %arg0, %c0_i32_14 : i32
    %23 = arith.extui %22 : i1 to i32
    %c0_i32_15 = arith.constant 0 : i32
    %24 = arith.cmpi ne, %23, %c0_i32_15 : i32
    scf.if %24 {
      %c0_16 = arith.constant 0 : index
      %c0_17 = arith.constant 0 : index
      %25 = vector.load %arg11[%c0_16, %c0_17] : memref<2x1024xf32, #tpu.memory_space<vmem>>, vector<2x1024xf32>
      %c0_18 = arith.constant 0 : index
      %c0_19 = arith.constant 0 : index
      %26 = vector.load %arg5[%c0_18, %c0_19] : memref<1x1024xf32, #tpu.memory_space<vmem>>, vector<1x1024xf32>
      %27 = vector.broadcast %26 : vector<1x1024xf32> to vector<2x1024xf32>
      %28 = arith.addf %25, %27 : vector<2x1024xf32>
      %cst_20 = arith.constant dense<0.000000e+00> : vector<1024xf32>
      %29 = vector.multi_reduction <add>, %28, %cst_20 [0] : vector<2x1024xf32> to vector<1024xf32>
      %30 = vector.shape_cast %29 : vector<1024xf32> to vector<1x1024xf32>
      %cst_21 = arith.constant 2.000000e+00 : f32
      %31 = vector.broadcast %cst_21 : f32 to vector<1x1024xf32>
      %32 = arith.divf %30, %31 : vector<1x1024xf32>
      %33 = arith.mulf %28, %28 : vector<2x1024xf32>
      %cst_22 = arith.constant dense<0.000000e+00> : vector<1024xf32>
      %34 = vector.multi_reduction <add>, %33, %cst_22 [0] : vector<2x1024xf32> to vector<1024xf32>
      %35 = vector.shape_cast %34 : vector<1024xf32> to vector<1x1024xf32>
      %cst_23 = arith.constant 2.000000e+00 : f32
      %36 = vector.broadcast %cst_23 : f32 to vector<1x1024xf32>
      %37 = arith.divf %35, %36 : vector<1x1024xf32>
      %38 = arith.mulf %32, %32 : vector<1x1024xf32>
      %39 = arith.subf %37, %38 : vector<1x1024xf32>
      %cst_24 = arith.constant 0.000000e+00 : f32
      %40 = vector.broadcast %cst_24 : f32 to vector<1x1024xf32>
      %41 = arith.maximumf %39, %40 : vector<1x1024xf32>
      %cst_25 = arith.constant 9.99999974E-6 : f32
      %42 = vector.broadcast %cst_25 : f32 to vector<1x1024xf32>
      %43 = arith.addf %41, %42 : vector<1x1024xf32>
      %44 = math.rsqrt %43 : vector<1x1024xf32>
      %45 = vector.broadcast %32 : vector<1x1024xf32> to vector<2x1024xf32>
      %46 = arith.subf %28, %45 : vector<2x1024xf32>
      %c0_26 = arith.constant 0 : index
      %c0_27 = arith.constant 0 : index
      %47 = vector.load %arg6[%c0_26, %c0_27] : memref<1x1024xf32, #tpu.memory_space<vmem>>, vector<1x1024xf32>
      %48 = arith.mulf %47, %44 : vector<1x1024xf32>
      %49 = vector.broadcast %48 : vector<1x1024xf32> to vector<2x1024xf32>
      %50 = arith.mulf %46, %49 : vector<2x1024xf32>
      %c0_28 = arith.constant 0 : index
      %c0_29 = arith.constant 0 : index
      %51 = vector.load %arg7[%c0_28, %c0_29] : memref<1x1024xf32, #tpu.memory_space<vmem>>, vector<1x1024xf32>
      %52 = vector.broadcast %51 : vector<1x1024xf32> to vector<2x1024xf32>
      %53 = arith.addf %50, %52 : vector<2x1024xf32>
      %cst_30 = arith.constant 0.000000e+00 : f32
      %54 = vector.broadcast %cst_30 : f32 to vector<2x1024xf32>
      %55 = arith.cmpf ogt, %53, %54 : vector<2x1024xf32>
      %cst_31 = arith.constant 2.000000e-01 : f32
      %56 = vector.broadcast %cst_31 : f32 to vector<2x1024xf32>
      %57 = arith.mulf %56, %53 : vector<2x1024xf32>
      %58 = arith.select %55, %53, %57 : vector<2x1024xi1>, vector<2x1024xf32>
      %59 = arith.truncf %58 : vector<2x1024xf32> to vector<2x1024xbf16>
      %c0_32 = arith.constant 0 : index
      %c0_33 = arith.constant 0 : index
      %60 = vector.load %arg8[%c0_32, %c0_33] : memref<1024x128xbf16, #tpu.memory_space<vmem>>, vector<1024x128xbf16>
      %cst_34 = arith.constant dense<0.000000e+00> : vector<2x128xf32>
      %61 = tpu.matmul %59, %60, %cst_34 {dimension_numbers = #tpu.dot_dimension_numbers<[1], [0], [0], [1], [0, 0, 1, 1], [], []>} : vector<2x1024xbf16>, vector<1024x128xbf16>, vector<2x128xf32> -> vector<2x128xf32>
      %c0_35 = arith.constant 0 : index
      %c0_36 = arith.constant 0 : index
      %62 = vector.load %arg9[%c0_35, %c0_36] : memref<1x128xf32, #tpu.memory_space<vmem>>, vector<1x128xf32>
      %63 = vector.broadcast %62 : vector<1x128xf32> to vector<2x128xf32>
      %64 = arith.addf %61, %63 : vector<2x128xf32>
      %cst_37 = arith.constant 0.000000e+00 : f32
      %65 = vector.broadcast %cst_37 : f32 to vector<2x128xf32>
      %66 = arith.subf %65, %64 : vector<2x128xf32>
      %67 = math.exp %66 : vector<2x128xf32>
      %cst_38 = arith.constant 1.000000e+00 : f32
      %68 = vector.broadcast %cst_38 : f32 to vector<2x128xf32>
      %69 = arith.addf %68, %67 : vector<2x128xf32>
      %cst_39 = arith.constant 1.000000e+00 : f32
      %70 = vector.broadcast %cst_39 : f32 to vector<2x128xf32>
      %71 = arith.divf %70, %69 : vector<2x128xf32>
      %c0_40 = arith.constant 0 : index
      %c0_41 = arith.constant 0 : index
      %72 = vector.load %arg10[%c0_40, %c0_41] : memref<2x128xf32, #tpu.memory_space<vmem>>, vector<2x128xf32>
      tpu.vector_store %arg10[%c0_40, %c0_41], %71 {strides = array<i32>} : memref<2x128xf32, #tpu.memory_space<vmem>>, vector<2x128xf32>,
    } else {
    }
    return
  }
  func.func @transform_0(%arg0: i32) -> (i32, i32) {
    %c0_i32 = arith.constant 0 : i32
    %c0_i32_0 = arith.constant 0 : i32
    return %c0_i32, %arg0 : i32, i32
  }
  func.func @transform_1(%arg0: i32) -> (i32, i32) {
    %c0_i32 = arith.constant 0 : i32
    %c0_i32_0 = arith.constant 0 : i32
    return %c0_i32, %arg0 : i32, i32
  }
  func.func @transform_2(%arg0: i32) -> (i32, i32) {
    %c0_i32 = arith.constant 0 : i32
    %c0_i32_0 = arith.constant 0 : i32
    return %c0_i32, %arg0 : i32, i32
  }
  func.func @transform_3(%arg0: i32) -> (i32, i32) {
    %c0_i32 = arith.constant 0 : i32
    %c0_i32_0 = arith.constant 0 : i32
    return %arg0, %c0_i32 : i32, i32
  }
  func.func @transform_4(%arg0: i32) -> (i32, i32) {
    %c0_i32 = arith.constant 0 : i32
    %c0_i32_0 = arith.constant 0 : i32
    %c0_i32_1 = arith.constant 0 : i32
    return %c0_i32, %c0_i32_0 : i32, i32
  }
  func.func @transform_5(%arg0: i32) -> (i32, i32) {
    %c0_i32 = arith.constant 0 : i32
    %c0_i32_0 = arith.constant 0 : i32
    %c0_i32_1 = arith.constant 0 : i32
    return %c0_i32, %c0_i32_0 : i32, i32
  }
  func.func @transform_6(%arg0: i32) -> (i32, i32) {
    %c0_i32 = arith.constant 0 : i32
    %c0_i32_0 = arith.constant 0 : i32
    %c0_i32_1 = arith.constant 0 : i32
    return %c0_i32, %c0_i32_0 : i32, i32
  }
  func.func @transform_7(%arg0: i32) -> (i32, i32) {
    %c0_i32 = arith.constant 0 : i32
    %c0_i32_0 = arith.constant 0 : i32
    %c0_i32_1 = arith.constant 0 : i32
    return %c0_i32, %c0_i32_0 : i32, i32
  }
  func.func @transform_8(%arg0: i32) -> (i32, i32) {
    %c0_i32 = arith.constant 0 : i32
    %c0_i32_0 = arith.constant 0 : i32
    %c0_i32_1 = arith.constant 0 : i32
    return %c0_i32, %c0_i32_0 : i32, i32
  }
  func.func @transform_9(%arg0: i32) -> (i32, i32) {
    %c0_i32 = arith.constant 0 : i32
    %c0_i32_0 = arith.constant 0 : i32
    %c0_i32_1 = arith.constant 0 : i32
    return %c0_i32, %c0_i32_0 : i32, i32
  }
}

</mosaic_0001>

<llo_original>
// kernel: tile.13
$region0: #{tile.13}
  #allocation0 [shape = 's32[1]{0}', space=sflag, size = 0x4, scoped, tag = 'scoped memory for tile.13']
  %s0 = inlined_call_operand.vmem [shape: f32[128], index: 0, kind: input, shape index: {}]
  %s1 = inlined_call_operand.vmem [shape: f32[16,128], index: 1, kind: output, shape index: {}]
  // Predicated region
  $region2: #{tile.13} parent=0 // pred_check
    _
  $region3: #{tile.13} parent=0 // pred_check_branch
    %3 = sbr.rel (0) target = $region5
  $region4: #{tile.13} parent=0 // pred_region
    _
  $region5: #{tile.13} parent=0 // pred_fallthru
    _
  %v4 = vld [vmem:[%s0] ss:$0 sm:$0xff]
  %5 = vst [vmem:[%s1] sm:$0xff] %v4
  %s6 = scalar_lea.vmem %s1, 8
  %7 = vst [vmem:[%s6] sm:$0xff] %v4

// kernel: discriminator_forward.3
$region0: #{discriminator_forward.3}
  #allocation0 [shape = 'u32[]', space=smem, size = 0x4, offset = 0x4, fixed_abs, tag = 'smem constant byte address 0x4 - core index']
  #allocation1 [shape = 'u32[144,128]{1,0:T(1,128)}', space=vmem, size = 0x12000, scoped, tag = 'internal scratch']
  #allocation2 [shape = 'f32[128,64]{1,0:T(8,128)}', space=vmem, size = 0x10000, scoped, tag = 'scratch operand']
  %s0 = inlined_call_operand.vmem [shape: bf16[128,64], index: 0, kind: input, shape index: {}]
  %s1 = inlined_call_operand.hbm [shape: bf16[64,64], index: 1, kind: input, shape index: {}]
  %s2 = inlined_call_operand.hbm [shape: f32[1,64], index: 2, kind: input, shape index: {}]
  %s3 = inlined_call_operand.vmem [shape: bf16[128,64], index: 3, kind: output, shape index: {}]
  %s4 = sld [smem:[#allocation0]]
  $region38: #{discriminator_forward.3} parent=0
    _
  %s6 = ssub.s32 1, %s4
  %s7 = scalar_select 0, %s6, %s4
  $region1: #{discriminator_forward.3} parent=0
    #allocation3 [shape = 'u8[16384]{0}', space=vmem, size = 0x4000, scoped, tag = 'input window, operand 1, single buffered']
    #allocation4 [shape = 's32[1]{0}', space=sflag, size = 0x4, scoped, tag = 'scoped memory for discriminator_forward.3']
    #allocation5 [shape = 'u8[512]{0}', space=vmem, size = 0x400, scoped, tag = 'input window, operand 2, single buffered']
    #allocation6 [shape = 's32[1]{0}', space=sflag, size = 0x4, scoped, tag = 'scoped memory for discriminator_forward.3']
    %8 = vsyncpa [#allocation4], 0
    %9 = vsyncpa [#allocation6], 0
    // Predicated region
    $region2: #{discriminator_forward.3} parent=1 // pred_check
      _
    $region3: #{discriminator_forward.3} parent=1 // pred_check_branch
      %11 = sbr.rel (0) target = $region5
    $region4: #{discriminator_forward.3} parent=1 // pred_region
      _
    $region5: #{discriminator_forward.3} parent=1 // pred_fallthru
      _
    // Predicated region
    $region6: #{discriminator_forward.3} parent=1 // pred_check
      _
    $region7: #{discriminator_forward.3} parent=1 // pred_check_branch
      %13 = sbr.rel (0) target = $region9
    $region8: #{discriminator_forward.3} parent=1 // pred_region
      %s15 = ssub.s32 512, 512
      %16 = vsyncadd [#allocation4], %s15
      %s17 = sshll.u32 [#allocation3], 4
      %s18 = int_to_ptr.vmem [resolvable:$true] %s17
      %23 = dma.hbm_to_vmem [thread:$0]  %s1, 512, %s18, [#allocation4], 64, 64, 4
    $region9: #{discriminator_forward.3} parent=1 // pred_fallthru
      _
    // Predicated region
    $region10: #{discriminator_forward.3} parent=1 // pred_check
      _
    $region11: #{discriminator_forward.3} parent=1 // pred_check_branch
      %25 = sbr.rel (0) target = $region13
    $region12: #{discriminator_forward.3} parent=1 // pred_region
      %s27 = ssub.s32 16, 16
      %28 = vsyncadd [#allocation6], %s27
      %s30 = sshll.u32 [#allocation5], 4
      %s31 = int_to_ptr.vmem [resolvable:$true] %s30
      %33 = dma.hbm_to_vmem [thread:$0]  %s2, 16, %s31, [#allocation6]
    $region13: #{discriminator_forward.3} parent=1 // pred_fallthru
      _
    // Predicated region
    $region14: #{discriminator_forward.3} parent=1 // pred_check
      _
    $region15: #{discriminator_forward.3} parent=1 // pred_check_branch
      %35 = sbr.rel (0) target = $region17
    $region16: #{discriminator_forward.3} parent=1 // pred_region
      %36 = dma.done [#allocation4], 512
    $region17: #{discriminator_forward.3} parent=1 // pred_fallthru
      _
    // Predicated region
    $region18: #{discriminator_forward.3} parent=1 // pred_check
      _
    $region19: #{discriminator_forward.3} parent=1 // pred_check_branch
      %38 = sbr.rel (0) target = $region21
    $region20: #{discriminator_forward.3} parent=1 // pred_region
      %39 = dma.done [#allocation6], 16
    $region21: #{discriminator_forward.3} parent=1 // pred_fallthru
      _
    %p41 = scmp.eq.s32.totalorder 0, 0
    // Predicated region
    $region22: #{discriminator_forward.3} parent=1 // pred_check
      %p42 = pneg %p41
    $region23: #{discriminator_forward.3} parent=1 // pred_check_branch
      %44 = sbr.rel (%p42) target = $region25
    $region24: #{discriminator_forward.3} parent=1 // pred_region
      %vm45 = vcmask 523264
      %46 = vst.msk [vmem:[#allocation2] sm:$0xff] %vm45, 0.0
      %47 = vst.msk [vmem:[#allocation2 + $0x8] sm:$0xff] %vm45, 0.0
      %48 = vst.msk [vmem:[#allocation2 + $0x10] sm:$0xff] %vm45, 0.0
      %49 = vst.msk [vmem:[#allocation2 + $0x18] sm:$0xff] %vm45, 0.0
      %50 = vst.msk [vmem:[#allocation2 + $0x20] sm:$0xff] %vm45, 0.0
      %51 = vst.msk [vmem:[#allocation2 + $0x28] sm:$0xff] %vm45, 0.0
      %52 = vst.msk [vmem:[#allocation2 + $0x30] sm:$0xff] %vm45, 0.0
      %53 = vst.msk [vmem:[#allocation2 + $0x38] sm:$0xff] %vm45, 0.0
      %54 = vst.msk [vmem:[#allocation2 + $0x40] sm:$0xff] %vm45, 0.0
      %55 = vst.msk [vmem:[#allocation2 + $0x48] sm:$0xff] %vm45, 0.0
      %56 = vst.msk [vmem:[#allocation2 + $0x50] sm:$0xff] %vm45, 0.0
      %57 = vst.msk [vmem:[#allocation2 + $0x58] sm:$0xff] %vm45, 0.0
      %58 = vst.msk [vmem:[#allocation2 + $0x60] sm:$0xff] %vm45, 0.0
      %59 = vst.msk [vmem:[#allocation2 + $0x68] sm:$0xff] %vm45, 0.0
      %60 = vst.msk [vmem:[#allocation2 + $0x70] sm:$0xff] %vm45, 0.0
      %61 = vst.msk [vmem:[#allocation2 + $0x78] sm:$0xff] %vm45, 0.0
    $region25: #{discriminator_forward.3} parent=1 // pred_fallthru
      _
    %v62 = vld [vmem:[#allocation2] sm:$0xff]
    %v63 = vld [vmem:[#allocation2 + $0x8] sm:$0xff]
    %v64 = vld [vmem:[#allocation2 + $0x10] sm:$0xff]
    %v65 = vld [vmem:[#allocation2 + $0x18] sm:$0xff]
    %v66 = vld [vmem:[#allocation2 + $0x20] sm:$0xff]
    %v67 = vld [vmem:[#allocation2 + $0x28] sm:$0xff]
    %v68 = vld [vmem:[#allocation2 + $0x30] sm:$0xff]
    %v69 = vld [vmem:[#allocation2 + $0x38] sm:$0xff]
    %v70 = vld [vmem:[#allocation2 + $0x40] sm:$0xff]
    %v71 = vld [vmem:[#allocation2 + $0x48] sm:$0xff]
    %v72 = vld [vmem:[#allocation2 + $0x50] sm:$0xff]
    %v73 = vld [vmem:[#allocation2 + $0x58] sm:$0xff]
    %v74 = vld [vmem:[#allocation2 + $0x60] sm:$0xff]
    %v75 = vld [vmem:[#allocation2 + $0x68] sm:$0xff]
    %v76 = vld [vmem:[#allocation2 + $0x70] sm:$0xff]
    %v77 = vld [vmem:[#allocation2 + $0x78] sm:$0xff]
    %v78 = vld [vmem:[%s0] sm:$0xf]
    %v79 = vld [vmem:[%s0 + $0x4] sm:$0xf]
    %v80 = vld [vmem:[%s0 + $0x8] sm:$0xf]
    %v81 = vld [vmem:[%s0 + $0xc] sm:$0xf]
    %v82 = vld [vmem:[%s0 + $0x10] sm:$0xf]
    %v83 = vld [vmem:[%s0 + $0x14] sm:$0xf]
    %v84 = vld [vmem:[%s0 + $0x18] sm:$0xf]
    %v85 = vld [vmem:[%s0 + $0x1c] sm:$0xf]
    %v86 = vld [vmem:[%s0 + $0x20] sm:$0xf]
    %v87 = vld [vmem:[%s0 + $0x24] sm:$0xf]
    %v88 = vld [vmem:[%s0 + $0x28] sm:$0xf]
    %v89 = vld [vmem:[%s0 + $0x2c] sm:$0xf]
    %v90 = vld [vmem:[%s0 + $0x30] sm:$0xf]
    %v91 = vld [vmem:[%s0 + $0x34] sm:$0xf]
    %v92 = vld [vmem:[%s0 + $0x38] sm:$0xf]
    %v93 = vld [vmem:[%s0 + $0x3c] sm:$0xf]
    %v94 = vld [vmem:[#allocation3] sm:$0xf]
    %v95 = vld [vmem:[#allocation3 + $0x4] sm:$0xf]
    %v96 = vld [vmem:[#allocation3 + $0x8] sm:$0xf]
    %v97 = vld [vmem:[#allocation3 + $0xc] sm:$0xf]
    %v98 = vld [vmem:[#allocation3 + $0x10] sm:$0xf]
    %v99 = vld [vmem:[#allocation3 + $0x14] sm:$0xf]
    %v100 = vld [vmem:[#allocation3 + $0x18] sm:$0xf]
    %v101 = vld [vmem:[#allocation3 + $0x1c] sm:$0xf]
    %v118 = vunpack.c.l.b16 %v78
    %v119 = vunpack.c.l.b16 %v79
    %v120 = vunpack.c.l.b16 %v80
    %v121 = vunpack.c.l.b16 %v81
    %v122 = vunpack.c.l.b16 %v82
    %v123 = vunpack.c.l.b16 %v83
    %v124 = vunpack.c.l.b16 %v84
    %v125 = vunpack.c.l.b16 %v85
    %v126 = vunpack.c.l.b16 %v86
    %v127 = vunpack.c.l.b16 %v87
    %v128 = vunpack.c.l.b16 %v88
    %v129 = vunpack.c.l.b16 %v89
    %v130 = vunpack.c.l.b16 %v90
    %v131 = vunpack.c.l.b16 %v91
    %v132 = vunpack.c.l.b16 %v92
    %v133 = vunpack.c.l.b16 %v93
    %v134 = vpack.c.b16 %v119, %v118
    %v135 = vpack.c.b16 %v121, %v120
    %v136 = vpack.c.b16 %v123, %v122
    %v137 = vpack.c.b16 %v125, %v124
    %v138 = vpack.c.b16 %v127, %v126
    %v139 = vpack.c.b16 %v129, %v128
    %v140 = vpack.c.b16 %v131, %v130
    %v141 = vpack.c.b16 %v133, %v132
    %v150 = vunpack.c.l.b16 %v94
    %v151 = vunpack.c.l.b16 %v95
    %v152 = vunpack.c.l.b16 %v96
    %v153 = vunpack.c.l.b16 %v97
    %v154 = vunpack.c.l.b16 %v98
    %v155 = vunpack.c.l.b16 %v99
    %v156 = vunpack.c.l.b16 %v100
    %v157 = vunpack.c.l.b16 %v101
    %v158 = vpack.c.b16 %v151, %v150
    %v159 = vpack.c.b16 %v153, %v152
    %v160 = vpack.c.b16 %v155, %v154
    %v161 = vpack.c.b16 %v157, %v156
    %vm166 = vcmask 523264
    %v168 = vsel %vm166, %v134, 0
    %v171 = vsel %vm166, %v135, 0
    %v174 = vsel %vm166, %v136, 0
    %v177 = vsel %vm166, %v137, 0
    %v180 = vsel %vm166, %v138, 0
    %v183 = vsel %vm166, %v139, 0
    %v186 = vsel %vm166, %v140, 0
    %v189 = vsel %vm166, %v141, 0
    %191 = vmatprep.subr.bf16.mxu0 0
    %192 = vmatpush1.bf16.msra.mxu0 0
    %193 = vmatprep.subr.bf16.mxu0 0
    %194 = vmatpush1.bf16.msra.mxu0 0
    %195 = vmatprep.subr.bf16.mxu0 0
    %196 = vmatpush1.bf16.msra.mxu0 0
    %197 = vmatprep.subr.bf16.mxu0 0
    %198 = vmatpush1.bf16.msra.mxu0 0
    %199 = vmatprep.subr.bf16.mxu0 0
    %200 = vmatpush1.bf16.msra.mxu0 %v161
    %201 = vmatprep.subr.bf16.mxu0 0
    %202 = vmatpush1.bf16.msra.mxu0 %v160
    %203 = vmatprep.subr.bf16.mxu0 0
    %204 = vmatpush1.bf16.msra.mxu0 %v159
    %205 = vmatprep.subr.bf16.mxu0 0
    %206 = vmatpush1.bf16.msra.mxu0 %v158
    %207 = vmatprep.subr.bf16.mxu0 0
    %208 = vmatpush2.bf16.msra.mxu0 0
    %209 = vmatprep.subr.bf16.mxu0 0
    %210 = vmatpush2.bf16.msra.mxu0 0
    %211 = vmatprep.subr.bf16.mxu0 0
    %212 = vmatpush2.bf16.msra.mxu0 0
    %213 = vmatprep.subr.bf16.mxu0 0
    %214 = vmatpush2.bf16.msra.mxu0 0
    %215 = vmatprep.subr.bf16.mxu0 0
    %216 = vmatpush2.bf16.msra.mxu0 0
    %217 = vmatprep.subr.bf16.mxu0 0
    %218 = vmatpush2.bf16.msra.mxu0 0
    %219 = vmatprep.subr.bf16.mxu0 0
    %220 = vmatpush2.bf16.msra.mxu0 0
    %221 = vmatprep.subr.bf16.mxu0 0
    %222 = vmatpush2.bf16.msra.mxu0 0
    %223 = vmatprep.mubr.bf16.mxu0 0
    %224 = vmatmul.mubr.bf16.gmra.mxu0 %v168
    %v225 = vpop.f32.mrf.mxu0
    %v226 = vadd.f32 0.0, %v225
    %v227 = vpop.f32.mrf.mxu0
    %v228 = vpop.f32.mrf.mxu0
    %v229 = vadd.f32 0.0, %v228
    %v230 = vpop.f32.mrf.mxu0
    %231 = vmatprep.mubr.bf16.mxu0 0
    %232 = vmatmul.mubr.bf16.gmra.mxu0 %v171
    %v233 = vpop.f32.mrf.mxu0
    %v234 = vadd.f32 0.0, %v233
    %v235 = vpop.f32.mrf.mxu0
    %v236 = vpop.f32.mrf.mxu0
    %v237 = vadd.f32 0.0, %v236
    %v238 = vpop.f32.mrf.mxu0
    %239 = vmatprep.mubr.bf16.mxu0 0
    %240 = vmatmul.mubr.bf16.gmra.mxu0 %v174
    %v241 = vpop.f32.mrf.mxu0
    %v242 = vadd.f32 0.0, %v241
    %v243 = vpop.f32.mrf.mxu0
    %v244 = vpop.f32.mrf.mxu0
    %v245 = vadd.f32 0.0, %v244
    %v246 = vpop.f32.mrf.mxu0
    %247 = vmatprep.mubr.bf16.mxu0 0
    %248 = vmatmul.mubr.bf16.gmra.mxu0 %v177
    %v249 = vpop.f32.mrf.mxu0
    %v250 = vadd.f32 0.0, %v249
    %v251 = vpop.f32.mrf.mxu0
    %v252 = vpop.f32.mrf.mxu0
    %v253 = vadd.f32 0.0, %v252
    %v254 = vpop.f32.mrf.mxu0
    %255 = vmatprep.mubr.bf16.mxu0 0
    %256 = vmatmul.mubr.bf16.gmra.mxu0 %v180
    %v257 = vpop.f32.mrf.mxu0
    %v258 = vadd.f32 0.0, %v257
    %v259 = vpop.f32.mrf.mxu0
    %v260 = vpop.f32.mrf.mxu0
    %v261 = vadd.f32 0.0, %v260
    %v262 = vpop.f32.mrf.mxu0
    %263 = vmatprep.mubr.bf16.mxu0 0
    %264 = vmatmul.mubr.bf16.gmra.mxu0 %v183
    %v265 = vpop.f32.mrf.mxu0
    %v266 = vadd.f32 0.0, %v265
    %v267 = vpop.f32.mrf.mxu0
    %v268 = vpop.f32.mrf.mxu0
    %v269 = vadd.f32 0.0, %v268
    %v270 = vpop.f32.mrf.mxu0
    %271 = vmatprep.mubr.bf16.mxu0 0
    %272 = vmatmul.mubr.bf16.gmra.mxu0 %v186
    %v273 = vpop.f32.mrf.mxu0
    %v274 = vadd.f32 0.0, %v273
    %v275 = vpop.f32.mrf.mxu0
    %v276 = vpop.f32.mrf.mxu0
    %v277 = vadd.f32 0.0, %v276
    %v278 = vpop.f32.mrf.mxu0
    %279 = vmatprep.mubr.bf16.mxu0 0
    %280 = vmatmul.mubr.bf16.gmra.mxu0 %v189
    %v281 = vpop.f32.mrf.mxu0
    %v282 = vadd.f32 0.0, %v281
    %v283 = vpop.f32.mrf.mxu0
    %v284 = vpop.f32.mrf.mxu0
    %v285 = vadd.f32 0.0, %v284
    %v286 = vpop.f32.mrf.mxu0
    %287 = vdwg.mxu0
    %v288 = vadd.f32 %v62, %v226
    %v289 = vadd.f32 %v63, %v229
    %v290 = vadd.f32 %v64, %v234
    %v291 = vadd.f32 %v65, %v237
    %v292 = vadd.f32 %v66, %v242
    %v293 = vadd.f32 %v67, %v245
    %v294 = vadd.f32 %v68, %v250
    %v295 = vadd.f32 %v69, %v253
    %v296 = vadd.f32 %v70, %v258
    %v297 = vadd.f32 %v71, %v261
    %v298 = vadd.f32 %v72, %v266
    %v299 = vadd.f32 %v73, %v269
    %v300 = vadd.f32 %v74, %v274
    %v301 = vadd.f32 %v75, %v277
    %v302 = vadd.f32 %v76, %v282
    %v303 = vadd.f32 %v77, %v285
    %304 = vst.msk [vmem:[#allocation2] sm:$0xff] %vm166, %v288
    %305 = vst.msk [vmem:[#allocation2 + $0x8] sm:$0xff] %vm166, %v289
    %306 = vst.msk [vmem:[#allocation2 + $0x10] sm:$0xff] %vm166, %v290
    %307 = vst.msk [vmem:[#allocation2 + $0x18] sm:$0xff] %vm166, %v291
    %308 = vst.msk [vmem:[#allocation2 + $0x20] sm:$0xff] %vm166, %v292
    %309 = vst.msk [vmem:[#allocation2 + $0x28] sm:$0xff] %vm166, %v293
    %310 = vst.msk [vmem:[#allocation2 + $0x30] sm:$0xff] %vm166, %v294
    %311 = vst.msk [vmem:[#allocation2 + $0x38] sm:$0xff] %vm166, %v295
    %312 = vst.msk [vmem:[#allocation2 + $0x40] sm:$0xff] %vm166, %v296
    %313 = vst.msk [vmem:[#allocation2 + $0x48] sm:$0xff] %vm166, %v297
    %314 = vst.msk [vmem:[#allocation2 + $0x50] sm:$0xff] %vm166, %v298
    %315 = vst.msk [vmem:[#allocation2 + $0x58] sm:$0xff] %vm166, %v299
    %316 = vst.msk [vmem:[#allocation2 + $0x60] sm:$0xff] %vm166, %v300
    %317 = vst.msk [vmem:[#allocation2 + $0x68] sm:$0xff] %vm166, %v301
    %318 = vst.msk [vmem:[#allocation2 + $0x70] sm:$0xff] %vm166, %v302
    %319 = vst.msk [vmem:[#allocation2 + $0x78] sm:$0xff] %vm166, %v303
    // Predicated region
    $region26: #{discriminator_forward.3} parent=1 // pred_check
      %p320 = pneg %p41
    $region27: #{discriminator_forward.3} parent=1 // pred_check_branch
      %322 = sbr.rel (%p320) target = $region29
    $region28: #{discriminator_forward.3} parent=1 // pred_region
      %v323 = vld [vmem:[#allocation2] sm:$0xff]
      %v324 = vld [vmem:[#allocation2 + $0x8] sm:$0xff]
      %v325 = vld [vmem:[#allocation2 + $0x10] sm:$0xff]
      %v326 = vld [vmem:[#allocation2 + $0x18] sm:$0xff]
      %v327 = vld [vmem:[#allocation2 + $0x20] sm:$0xff]
      %v328 = vld [vmem:[#allocation2 + $0x28] sm:$0xff]
      %v329 = vld [vmem:[#allocation2 + $0x30] sm:$0xff]
      %v330 = vld [vmem:[#allocation2 + $0x38] sm:$0xff]
      %v331 = vld [vmem:[#allocation2 + $0x40] sm:$0xff]
      %v332 = vld [vmem:[#allocation2 + $0x48] sm:$0xff]
      %v333 = vld [vmem:[#allocation2 + $0x50] sm:$0xff]
      %v334 = vld [vmem:[#allocation2 + $0x58] sm:$0xff]
      %v335 = vld [vmem:[#allocation2 + $0x60] sm:$0xff]
      %v336 = vld [vmem:[#allocation2 + $0x68] sm:$0xff]
      %v337 = vld [vmem:[#allocation2 + $0x70] sm:$0xff]
      %v338 = vld [vmem:[#allocation2 + $0x78] sm:$0xff]
      %v339 = vld [vmem:[#allocation5] sm:$0x1]
      %v341 = vlaneseq
      %v342 = vshrl.u32 %v341, 7
      %v343 = vsub.s32 0, %v342
      %v344 = vrot.slane %v339, %v343
      %v346 = vadd.f32 %v323, %v344
      %v347 = vadd.f32 %v324, %v344
      %v348 = vadd.f32 %v325, %v344
      %v349 = vadd.f32 %v326, %v344
      %v350 = vadd.f32 %v327, %v344
      %v351 = vadd.f32 %v328, %v344
      %v352 = vadd.f32 %v329, %v344
      %v353 = vadd.f32 %v330, %v344
      %v354 = vadd.f32 %v331, %v344
      %v355 = vadd.f32 %v332, %v344
      %v356 = vadd.f32 %v333, %v344
      %v357 = vadd.f32 %v334, %v344
      %v358 = vadd.f32 %v335, %v344
      %v359 = vadd.f32 %v336, %v344
      %v360 = vadd.f32 %v337, %v344
      %v361 = vadd.f32 %v338, %v344
      %vm362 = vcmp.gt.f32.partialorder %v346, 0.0
      %vm363 = vcmp.gt.f32.partialorder %v347, 0.0
      %vm364 = vcmp.gt.f32.partialorder %v348, 0.0
      %vm365 = vcmp.gt.f32.partialorder %v349, 0.0
      %vm366 = vcmp.gt.f32.partialorder %v350, 0.0
      %vm367 = vcmp.gt.f32.partialorder %v351, 0.0
      %vm368 = vcmp.gt.f32.partialorder %v352, 0.0
      %vm369 = vcmp.gt.f32.partialorder %v353, 0.0
      %vm370 = vcmp.gt.f32.partialorder %v354, 0.0
      %vm371 = vcmp.gt.f32.partialorder %v355, 0.0
      %vm372 = vcmp.gt.f32.partialorder %v356, 0.0
      %vm373 = vcmp.gt.f32.partialorder %v357, 0.0
      %vm374 = vcmp.gt.f32.partialorder %v358, 0.0
      %vm375 = vcmp.gt.f32.partialorder %v359, 0.0
      %vm376 = vcmp.gt.f32.partialorder %v360, 0.0
      %vm377 = vcmp.gt.f32.partialorder %v361, 0.0
      %v378 = vmul.f32 %v346, 0.2
      %v379 = vmul.f32 %v347, 0.2
      %v380 = vmul.f32 %v348, 0.2
      %v381 = vmul.f32 %v349, 0.2
      %v382 = vmul.f32 %v350, 0.2
      %v383 = vmul.f32 %v351, 0.2
      %v384 = vmul.f32 %v352, 0.2
      %v385 = vmul.f32 %v353, 0.2
      %v386 = vmul.f32 %v354, 0.2
      %v387 = vmul.f32 %v355, 0.2
      %v388 = vmul.f32 %v356, 0.2
      %v389 = vmul.f32 %v357, 0.2
      %v390 = vmul.f32 %v358, 0.2
      %v391 = vmul.f32 %v359, 0.2
      %v392 = vmul.f32 %v360, 0.2
      %v393 = vmul.f32 %v361, 0.2
      %v394 = vsel %vm362, %v346, %v378
      %v395 = vsel %vm363, %v347, %v379
      %v396 = vsel %vm364, %v348, %v380
      %v397 = vsel %vm365, %v349, %v381
      %v398 = vsel %vm366, %v350, %v382
      %v399 = vsel %vm367, %v351, %v383
      %v400 = vsel %vm368, %v352, %v384
      %v401 = vsel %vm369, %v353, %v385
      %v402 = vsel %vm370, %v354, %v386
      %v403 = vsel %vm371, %v355, %v387
      %v404 = vsel %vm372, %v356, %v388
      %v405 = vsel %vm373, %v357, %v389
      %v406 = vsel %vm374, %v358, %v390
      %v407 = vsel %vm375, %v359, %v391
      %v408 = vsel %vm376, %v360, %v392
      %v409 = vsel %vm377, %v361, %v393
      %v410 = vpack.c.bf16 %v395, %v394
      %v411 = vpack.c.bf16 %v397, %v396
      %v412 = vpack.c.bf16 %v399, %v398
      %v413 = vpack.c.bf16 %v401, %v400
      %v414 = vpack.c.bf16 %v403, %v402
      %v415 = vpack.c.bf16 %v405, %v404
      %v416 = vpack.c.bf16 %v407, %v406
      %v417 = vpack.c.bf16 %v409, %v408
      %v426 = vunpack.c.l.b16 %v410
      %v427 = vunpack.c.h.b16 %v410
      %v428 = vunpack.c.l.b16 %v411
      %v429 = vunpack.c.h.b16 %v411
      %v430 = vunpack.c.l.b16 %v412
      %v431 = vunpack.c.h.b16 %v412
      %v432 = vunpack.c.l.b16 %v413
      %v433 = vunpack.c.h.b16 %v413
      %v434 = vunpack.c.l.b16 %v414
      %v435 = vunpack.c.h.b16 %v414
      %v436 = vunpack.c.l.b16 %v415
      %v437 = vunpack.c.h.b16 %v415
      %v438 = vunpack.c.l.b16 %v416
      %v439 = vunpack.c.h.b16 %v416
      %v440 = vunpack.c.l.b16 %v417
      %v441 = vunpack.c.h.b16 %v417
      %v442 = vpack.c.b16 %v426, %v426
      %v443 = vpack.c.b16 %v427, %v427
      %v444 = vpack.c.b16 %v428, %v428
      %v445 = vpack.c.b16 %v429, %v429
      %v446 = vpack.c.b16 %v430, %v430
      %v447 = vpack.c.b16 %v431, %v431
      %v448 = vpack.c.b16 %v432, %v432
      %v449 = vpack.c.b16 %v433, %v433
      %v450 = vpack.c.b16 %v434, %v434
      %v451 = vpack.c.b16 %v435, %v435
      %v452 = vpack.c.b16 %v436, %v436
      %v453 = vpack.c.b16 %v437, %v437
      %v454 = vpack.c.b16 %v438, %v438
      %v455 = vpack.c.b16 %v439, %v439
      %v456 = vpack.c.b16 %v440, %v440
      %v457 = vpack.c.b16 %v441, %v441
      %vm474 = vcmask 519168
      %475 = vst.msk [vmem:[%s3] sm:$0xf] %vm474, %v442
      %476 = vst.msk [vmem:[%s3 + $0x4] sm:$0xf] %vm474, %v443
      %477 = vst.msk [vmem:[%s3 + $0x8] sm:$0xf] %vm474, %v444
      %478 = vst.msk [vmem:[%s3 + $0xc] sm:$0xf] %vm474, %v445
      %479 = vst.msk [vmem:[%s3 + $0x10] sm:$0xf] %vm474, %v446
      %480 = vst.msk [vmem:[%s3 + $0x14] sm:$0xf] %vm474, %v447
      %481 = vst.msk [vmem:[%s3 + $0x18] sm:$0xf] %vm474, %v448
      %482 = vst.msk [vmem:[%s3 + $0x1c] sm:$0xf] %vm474, %v449
      %483 = vst.msk [vmem:[%s3 + $0x20] sm:$0xf] %vm474, %v450
      %484 = vst.msk [vmem:[%s3 + $0x24] sm:$0xf] %vm474, %v451
      %485 = vst.msk [vmem:[%s3 + $0x28] sm:$0xf] %vm474, %v452
      %486 = vst.msk [vmem:[%s3 + $0x2c] sm:$0xf] %vm474, %v453
      %487 = vst.msk [vmem:[%s3 + $0x30] sm:$0xf] %vm474, %v454
      %488 = vst.msk [vmem:[%s3 + $0x34] sm:$0xf] %vm474, %v455
      %489 = vst.msk [vmem:[%s3 + $0x38] sm:$0xf] %vm474, %v456
      %490 = vst.msk [vmem:[%s3 + $0x3c] sm:$0xf] %vm474, %v457
    $region29: #{discriminator_forward.3} parent=1 // pred_fallthru
      _
    // Predicated region
    $region30: #{discriminator_forward.3} parent=1 // pred_check
      _
    $region31: #{discriminator_forward.3} parent=1 // pred_check_branch
      %492 = sbr.rel (0) target = $region33
    $region32: #{discriminator_forward.3} parent=1 // pred_region
      _
    $region33: #{discriminator_forward.3} parent=1 // pred_fallthru
      _
    // Predicated region
    $region34: #{discriminator_forward.3} parent=1 // pred_check
      _
    $region35: #{discriminator_forward.3} parent=1 // pred_check_branch
      %494 = sbr.rel (0) target = $region37
    $region36: #{discriminator_forward.3} parent=1 // pred_region
      _
    $region37: #{discriminator_forward.3} parent=1 // pred_fallthru
      _
    %495 = vsyncpa [#allocation4], 1
    %496 = vsyncpa [#allocation6], 1

// kernel: discriminator_forward.4
$region0: #{discriminator_forward.4}
  #allocation0 [shape = 'u32[]', space=smem, size = 0x4, offset = 0x4, fixed_abs, tag = 'smem constant byte address 0x4 - core index']
  #allocation1 [shape = 'u32[144,128]{1,0:T(1,128)}', space=vmem, size = 0x12000, scoped, tag = 'internal scratch']
  #allocation2 [shape = 'f32[32,128]{1,0:T(8,128)}', space=vmem, size = 0x4000, scoped, tag = 'scratch operand']
  %s0 = inlined_call_operand.vmem [shape: bf16[32,1024], index: 0, kind: input, shape index: {}]
  %s1 = inlined_call_operand.hbm [shape: bf16[1024,128], index: 1, kind: input, shape index: {}]
  %s2 = inlined_call_operand.hbm [shape: f32[1,128], index: 2, kind: input, shape index: {}]
  %s3 = inlined_call_operand.vmem [shape: bf16[32,128], index: 3, kind: output, shape index: {0}]
  %s4 = inlined_call_operand.vmem [shape: f32[8,128], index: 4, kind: output, shape index: {1}]
  %5 = xla_tuple %s3, %s4
  %s6 = sld [smem:[#allocation0]]
  $region46: #{discriminator_forward.4} parent=0
    _
  %s8 = ssub.s32 1, %s6
  %s9 = scalar_select 0, %s8, %s6
  $region1: #{discriminator_forward.4} parent=0
    #allocation3 [shape = 'u8[262144]{0}', space=vmem, size = 0x40000, scoped, tag = 'input window, operand 1, single buffered']
    #allocation4 [shape = 's32[1]{0}', space=sflag, size = 0x4, scoped, tag = 'scoped memory for discriminator_forward.4']
    #allocation5 [shape = 'u8[512]{0}', space=vmem, size = 0x400, scoped, tag = 'input window, operand 2, single buffered']
    #allocation6 [shape = 's32[1]{0}', space=sflag, size = 0x4, scoped, tag = 'scoped memory for discriminator_forward.4']
    %10 = vsyncpa [#allocation4], 0
    %11 = vsyncpa [#allocation6], 0
    // Predicated region
    $region2: #{discriminator_forward.4} parent=1 // pred_check
      _
    $region3: #{discriminator_forward.4} parent=1 // pred_check_branch
      %13 = sbr.rel (0) target = $region5
    $region4: #{discriminator_forward.4} parent=1 // pred_region
      _
    $region5: #{discriminator_forward.4} parent=1 // pred_fallthru
      _
    // Predicated region
    $region6: #{discriminator_forward.4} parent=1 // pred_check
      _
    $region7: #{discriminator_forward.4} parent=1 // pred_check_branch
      %15 = sbr.rel (0) target = $region9
    $region8: #{discriminator_forward.4} parent=1 // pred_region
      %s17 = ssub.s32 8192, 8192
      %18 = vsyncadd [#allocation4], %s17
      %s19 = sshll.u32 [#allocation3], 4
      %s20 = int_to_ptr.vmem [resolvable:$true] %s19
      %25 = dma.hbm_to_vmem [thread:$0]  %s1, 8192, %s20, [#allocation4], 64, 64, 4
    $region9: #{discriminator_forward.4} parent=1 // pred_fallthru
      _
    // Predicated region
    $region10: #{discriminator_forward.4} parent=1 // pred_check
      _
    $region11: #{discriminator_forward.4} parent=1 // pred_check_branch
      %27 = sbr.rel (0) target = $region13
    $region12: #{discriminator_forward.4} parent=1 // pred_region
      %s29 = ssub.s32 16, 16
      %30 = vsyncadd [#allocation6], %s29
      %s32 = sshll.u32 [#allocation5], 4
      %s33 = int_to_ptr.vmem [resolvable:$true] %s32
      %35 = dma.hbm_to_vmem [thread:$0]  %s2, 16, %s33, [#allocation6]
    $region13: #{discriminator_forward.4} parent=1 // pred_fallthru
      _
    // Predicated region
    $region14: #{discriminator_forward.4} parent=1 // pred_check
      _
    $region15: #{discriminator_forward.4} parent=1 // pred_check_branch
      %37 = sbr.rel (0) target = $region17
    $region16: #{discriminator_forward.4} parent=1 // pred_region
      %38 = dma.done [#allocation4], 8192
    $region17: #{discriminator_forward.4} parent=1 // pred_fallthru
      _
    // Predicated region
    $region18: #{discriminator_forward.4} parent=1 // pred_check
      _
    $region19: #{discriminator_forward.4} parent=1 // pred_check_branch
      %40 = sbr.rel (0) target = $region21
    $region20: #{discriminator_forward.4} parent=1 // pred_region
      %41 = dma.done [#allocation6], 16
    $region21: #{discriminator_forward.4} parent=1 // pred_fallthru
      _
    %p43 = scmp.eq.s32.totalorder 0, 0
    // Predicated region
    $region22: #{discriminator_forward.4} parent=1 // pred_check
      %p44 = pneg %p43
    $region23: #{discriminator_forward.4} parent=1 // pred_check_branch
      %46 = sbr.rel (%p44) target = $region25
    $region24: #{discriminator_forward.4} parent=1 // pred_region
      %47 = vst [vmem:[#allocation2] sm:$0xff] 0.0
      %48 = vst [vmem:[#allocation2 + $0x8] sm:$0xff] 0.0
      %49 = vst [vmem:[#allocation2 + $0x10] sm:$0xff] 0.0
      %50 = vst [vmem:[#allocation2 + $0x18] sm:$0xff] 0.0
    $region25: #{discriminator_forward.4} parent=1 // pred_fallthru
      _
    %v51 = vld [vmem:[#allocation2] sm:$0xff]
    %v52 = vld [vmem:[#allocation2 + $0x8] sm:$0xff]
    %v53 = vld [vmem:[#allocation2 + $0x10] sm:$0xff]
    %v54 = vld [vmem:[#allocation2 + $0x18] sm:$0xff]
    %v55 = vld [vmem:[%s0] sm:$0xff]
    %v56 = vld [vmem:[%s0 + $0x8] sm:$0xff]
    %v57 = vld [vmem:[%s0 + $0x10] sm:$0xff]
    %v58 = vld [vmem:[%s0 + $0x18] sm:$0xff]
    %v59 = vld [vmem:[%s0 + $0x20] sm:$0xff]
    %v60 = vld [vmem:[%s0 + $0x28] sm:$0xff]
    %v61 = vld [vmem:[%s0 + $0x30] sm:$0xff]
    %v62 = vld [vmem:[%s0 + $0x38] sm:$0xff]
    %v63 = vld [vmem:[%s0 + $0x40] sm:$0xff]
    %v64 = vld [vmem:[%s0 + $0x48] sm:$0xff]
    %v65 = vld [vmem:[%s0 + $0x50] sm:$0xff]
    %v66 = vld [vmem:[%s0 + $0x58] sm:$0xff]
    %v67 = vld [vmem:[%s0 + $0x60] sm:$0xff]
    %v68 = vld [vmem:[%s0 + $0x68] sm:$0xff]
    %v69 = vld [vmem:[%s0 + $0x70] sm:$0xff]
    %v70 = vld [vmem:[%s0 + $0x78] sm:$0xff]
    %v71 = vld [vmem:[#allocation3] sm:$0xf]
    %v72 = vld [vmem:[#allocation3 + $0x4] sm:$0xf]
    %v73 = vld [vmem:[#allocation3 + $0x8] sm:$0xf]
    %v74 = vld [vmem:[#allocation3 + $0xc] sm:$0xf]
    %v75 = vld [vmem:[#allocation3 + $0x10] sm:$0xf]
    %v76 = vld [vmem:[#allocation3 + $0x14] sm:$0xf]
    %v77 = vld [vmem:[#allocation3 + $0x18] sm:$0xf]
    %v78 = vld [vmem:[#allocation3 + $0x1c] sm:$0xf]
    %v79 = vld [vmem:[#allocation3 + $0x20] sm:$0xf]
    %v80 = vld [vmem:[#allocation3 + $0x24] sm:$0xf]
    %v81 = vld [vmem:[#allocation3 + $0x28] sm:$0xf]
    %v82 = vld [vmem:[#allocation3 + $0x2c] sm:$0xf]
    %v83 = vld [vmem:[#allocation3 + $0x30] sm:$0xf]
    %v84 = vld [vmem:[#allocation3 + $0x34] sm:$0xf]
    %v85 = vld [vmem:[#allocation3 + $0x38] sm:$0xf]
    %v86 = vld [vmem:[#allocation3 + $0x3c] sm:$0xf]
    %v87 = vld [vmem:[#allocation3 + $0x40] sm:$0xf]
    %v88 = vld [vmem:[#allocation3 + $0x44] sm:$0xf]
    %v89 = vld [vmem:[#allocation3 + $0x48] sm:$0xf]
    %v90 = vld [vmem:[#allocation3 + $0x4c] sm:$0xf]
    %v91 = vld [vmem:[#allocation3 + $0x50] sm:$0xf]
    %v92 = vld [vmem:[#allocation3 + $0x54] sm:$0xf]
    %v93 = vld [vmem:[#allocation3 + $0x58] sm:$0xf]
    %v94 = vld [vmem:[#allocation3 + $0x5c] sm:$0xf]
    %v95 = vld [vmem:[#allocation3 + $0x60] sm:$0xf]
    %v96 = vld [vmem:[#allocation3 + $0x64] sm:$0xf]
    %v97 = vld [vmem:[#allocation3 + $0x68] sm:$0xf]
    %v98 = vld [vmem:[#allocation3 + $0x6c] sm:$0xf]
    %v99 = vld [vmem:[#allocation3 + $0x70] sm:$0xf]
    %v100 = vld [vmem:[#allocation3 + $0x74] sm:$0xf]
    %v101 = vld [vmem:[#allocation3 + $0x78] sm:$0xf]
    %v102 = vld [vmem:[#allocation3 + $0x7c] sm:$0xf]
    %v103 = vld [vmem:[#allocation3 + $0x80] sm:$0xf]
    %v104 = vld [vmem:[#allocation3 + $0x84] sm:$0xf]
    %v105 = vld [vmem:[#allocation3 + $0x88] sm:$0xf]
    %v106 = vld [vmem:[#allocation3 + $0x8c] sm:$0xf]
    %v107 = vld [vmem:[#allocation3 + $0x90] sm:$0xf]
    %v108 = vld [vmem:[#allocation3 + $0x94] sm:$0xf]
    %v109 = vld [vmem:[#allocation3 + $0x98] sm:$0xf]
    %v110 = vld [vmem:[#allocation3 + $0x9c] sm:$0xf]
    %v111 = vld [vmem:[#allocation3 + $0xa0] sm:$0xf]
    %v112 = vld [vmem:[#allocation3 + $0xa4] sm:$0xf]
    %v113 = vld [vmem:[#allocation3 + $0xa8] sm:$0xf]
    %v114 = vld [vmem:[#allocation3 + $0xac] sm:$0xf]
    %v115 = vld [vmem:[#allocation3 + $0xb0] sm:$0xf]
    %v116 = vld [vmem:[#allocation3 + $0xb4] sm:$0xf]
    %v117 = vld [vmem:[#allocation3 + $0xb8] sm:$0xf]
    %v118 = vld [vmem:[#allocation3 + $0xbc] sm:$0xf]
    %v119 = vld [vmem:[#allocation3 + $0xc0] sm:$0xf]
    %v120 = vld [vmem:[#allocation3 + $0xc4] sm:$0xf]
    %v121 = vld [vmem:[#allocation3 + $0xc8] sm:$0xf]
    %v122 = vld [vmem:[#allocation3 + $0xcc] sm:$0xf]
    %v123 = vld [vmem:[#allocation3 + $0xd0] sm:$0xf]
    %v124 = vld [vmem:[#allocation3 + $0xd4] sm:$0xf]
    %v125 = vld [vmem:[#allocation3 + $0xd8] sm:$0xf]
    %v126 = vld [vmem:[#allocation3 + $0xdc] sm:$0xf]
    %v127 = vld [vmem:[#allocation3 + $0xe0] sm:$0xf]
    %v128 = vld [vmem:[#allocation3 + $0xe4] sm:$0xf]
    %v129 = vld [vmem:[#allocation3 + $0xe8] sm:$0xf]
    %v130 = vld [vmem:[#allocation3 + $0xec] sm:$0xf]
    %v131 = vld [vmem:[#allocation3 + $0xf0] sm:$0xf]
    %v132 = vld [vmem:[#allocation3 + $0xf4] sm:$0xf]
    %v133 = vld [vmem:[#allocation3 + $0xf8] sm:$0xf]
    %v134 = vld [vmem:[#allocation3 + $0xfc] sm:$0xf]
    %v135 = vld [vmem:[#allocation3 + $0x100] sm:$0xf]
    %v136 = vld [vmem:[#allocation3 + $0x104] sm:$0xf]
    %v137 = vld [vmem:[#allocation3 + $0x108] sm:$0xf]
    %v138 = vld [vmem:[#allocation3 + $0x10c] sm:$0xf]
    %v139 = vld [vmem:[#allocation3 + $0x110] sm:$0xf]
    %v140 = vld [vmem:[#allocation3 + $0x114] sm:$0xf]
    %v141 = vld [vmem:[#allocation3 + $0x118] sm:$0xf]
    %v142 = vld [vmem:[#allocation3 + $0x11c] sm:$0xf]
    %v143 = vld [vmem:[#allocation3 + $0x120] sm:$0xf]
    %v144 = vld [vmem:[#allocation3 + $0x124] sm:$0xf]
    %v145 = vld [vmem:[#allocation3 + $0x128] sm:$0xf]
    %v146 = vld [vmem:[#allocation3 + $0x12c] sm:$0xf]
    %v147 = vld [vmem:[#allocation3 + $0x130] sm:$0xf]
    %v148 = vld [vmem:[#allocation3 + $0x134] sm:$0xf]
    %v149 = vld [vmem:[#allocation3 + $0x138] sm:$0xf]
    %v150 = vld [vmem:[#allocation3 + $0x13c] sm:$0xf]
    %v151 = vld [vmem:[#allocation3 + $0x140] sm:$0xf]
    %v152 = vld [vmem:[#allocation3 + $0x144] sm:$0xf]
    %v153 = vld [vmem:[#allocation3 + $0x148] sm:$0xf]
    %v154 = vld [vmem:[#allocation3 + $0x14c] sm:$0xf]
    %v155 = vld [vmem:[#allocation3 + $0x150] sm:$0xf]
    %v156 = vld [vmem:[#allocation3 + $0x154] sm:$0xf]
    %v157 = vld [vmem:[#allocation3 + $0x158] sm:$0xf]
    %v158 = vld [vmem:[#allocation3 + $0x15c] sm:$0xf]
    %v159 = vld [vmem:[#allocation3 + $0x160] sm:$0xf]
    %v160 = vld [vmem:[#allocation3 + $0x164] sm:$0xf]
    %v161 = vld [vmem:[#allocation3 + $0x168] sm:$0xf]
    %v162 = vld [vmem:[#allocation3 + $0x16c] sm:$0xf]
    %v163 = vld [vmem:[#allocation3 + $0x170] sm:$0xf]
    %v164 = vld [vmem:[#allocation3 + $0x174] sm:$0xf]
    %v165 = vld [vmem:[#allocation3 + $0x178] sm:$0xf]
    %v166 = vld [vmem:[#allocation3 + $0x17c] sm:$0xf]
    %v167 = vld [vmem:[#allocation3 + $0x180] sm:$0xf]
    %v168 = vld [vmem:[#allocation3 + $0x184] sm:$0xf]
    %v169 = vld [vmem:[#allocation3 + $0x188] sm:$0xf]
    %v170 = vld [vmem:[#allocation3 + $0x18c] sm:$0xf]
    %v171 = vld [vmem:[#allocation3 + $0x190] sm:$0xf]
    %v172 = vld [vmem:[#allocation3 + $0x194] sm:$0xf]
    %v173 = vld [vmem:[#allocation3 + $0x198] sm:$0xf]
    %v174 = vld [vmem:[#allocation3 + $0x19c] sm:$0xf]
    %v175 = vld [vmem:[#allocation3 + $0x1a0] sm:$0xf]
    %v176 = vld [vmem:[#allocation3 + $0x1a4] sm:$0xf]
    %v177 = vld [vmem:[#allocation3 + $0x1a8] sm:$0xf]
    %v178 = vld [vmem:[#allocation3 + $0x1ac] sm:$0xf]
    %v179 = vld [vmem:[#allocation3 + $0x1b0] sm:$0xf]
    %v180 = vld [vmem:[#allocation3 + $0x1b4] sm:$0xf]
    %v181 = vld [vmem:[#allocation3 + $0x1b8] sm:$0xf]
    %v182 = vld [vmem:[#allocation3 + $0x1bc] sm:$0xf]
    %v183 = vld [vmem:[#allocation3 + $0x1c0] sm:$0xf]
    %v184 = vld [vmem:[#allocation3 + $0x1c4] sm:$0xf]
    %v185 = vld [vmem:[#allocation3 + $0x1c8] sm:$0xf]
    %v186 = vld [vmem:[#allocation3 + $0x1cc] sm:$0xf]
    %v187 = vld [vmem:[#allocation3 + $0x1d0] sm:$0xf]
    %v188 = vld [vmem:[#allocation3 + $0x1d4] sm:$0xf]
    %v189 = vld [vmem:[#allocation3 + $0x1d8] sm:$0xf]
    %v190 = vld [vmem:[#allocation3 + $0x1dc] sm:$0xf]
    %v191 = vld [vmem:[#allocation3 + $0x1e0] sm:$0xf]
    %v192 = vld [vmem:[#allocation3 + $0x1e4] sm:$0xf]
    %v193 = vld [vmem:[#allocation3 + $0x1e8] sm:$0xf]
    %v194 = vld [vmem:[#allocation3 + $0x1ec] sm:$0xf]
    %v195 = vld [vmem:[#allocation3 + $0x1f0] sm:$0xf]
    %v196 = vld [vmem:[#allocation3 + $0x1f4] sm:$0xf]
    %v197 = vld [vmem:[#allocation3 + $0x1f8] sm:$0xf]
    %v198 = vld [vmem:[#allocation3 + $0x1fc] sm:$0xf]
    %v215 = vunpack.c.l.b16 %v55
    %v216 = vunpack.c.h.b16 %v55
    %v217 = vunpack.c.l.b16 %v56
    %v218 = vunpack.c.h.b16 %v56
    %v219 = vunpack.c.l.b16 %v57
    %v220 = vunpack.c.h.b16 %v57
    %v221 = vunpack.c.l.b16 %v58
    %v222 = vunpack.c.h.b16 %v58
    %v223 = vunpack.c.l.b16 %v59
    %v224 = vunpack.c.h.b16 %v59
    %v225 = vunpack.c.l.b16 %v60
    %v226 = vunpack.c.h.b16 %v60
    %v227 = vunpack.c.l.b16 %v61
    %v228 = vunpack.c.h.b16 %v61
    %v229 = vunpack.c.l.b16 %v62
    %v230 = vunpack.c.h.b16 %v62
    %v231 = vunpack.c.l.b16 %v63
    %v232 = vunpack.c.h.b16 %v63
    %v233 = vunpack.c.l.b16 %v64
    %v234 = vunpack.c.h.b16 %v64
    %v235 = vunpack.c.l.b16 %v65
    %v236 = vunpack.c.h.b16 %v65
    %v237 = vunpack.c.l.b16 %v66
    %v238 = vunpack.c.h.b16 %v66
    %v239 = vunpack.c.l.b16 %v67
    %v240 = vunpack.c.h.b16 %v67
    %v241 = vunpack.c.l.b16 %v68
    %v242 = vunpack.c.h.b16 %v68
    %v243 = vunpack.c.l.b16 %v69
    %v244 = vunpack.c.h.b16 %v69
    %v245 = vunpack.c.l.b16 %v70
    %v246 = vunpack.c.h.b16 %v70
    %v247 = vpack.c.b16 %v223, %v215
    %v248 = vpack.c.b16 %v224, %v216
    %v249 = vpack.c.b16 %v225, %v217
    %v250 = vpack.c.b16 %v226, %v218
    %v251 = vpack.c.b16 %v227, %v219
    %v252 = vpack.c.b16 %v228, %v220
    %v253 = vpack.c.b16 %v229, %v221
    %v254 = vpack.c.b16 %v230, %v222
    %v255 = vpack.c.b16 %v239, %v231
    %v256 = vpack.c.b16 %v240, %v232
    %v257 = vpack.c.b16 %v241, %v233
    %v258 = vpack.c.b16 %v242, %v234
    %v259 = vpack.c.b16 %v243, %v235
    %v260 = vpack.c.b16 %v244, %v236
    %v261 = vpack.c.b16 %v245, %v237
    %v262 = vpack.c.b16 %v246, %v238
    %v407 = vunpack.c.l.b16 %v71
    %v408 = vunpack.c.l.b16 %v72
    %v409 = vunpack.c.l.b16 %v73
    %v410 = vunpack.c.l.b16 %v74
    %v411 = vunpack.c.l.b16 %v75
    %v412 = vunpack.c.l.b16 %v76
    %v413 = vunpack.c.l.b16 %v77
    %v414 = vunpack.c.l.b16 %v78
    %v415 = vunpack.c.l.b16 %v79
    %v416 = vunpack.c.l.b16 %v80
    %v417 = vunpack.c.l.b16 %v81
    %v418 = vunpack.c.l.b16 %v82
    %v419 = vunpack.c.l.b16 %v83
    %v420 = vunpack.c.l.b16 %v84
    %v421 = vunpack.c.l.b16 %v85
    %v422 = vunpack.c.l.b16 %v86
    %v423 = vunpack.c.l.b16 %v87
    %v424 = vunpack.c.l.b16 %v88
    %v425 = vunpack.c.l.b16 %v89
    %v426 = vunpack.c.l.b16 %v90
    %v427 = vunpack.c.l.b16 %v91
    %v428 = vunpack.c.l.b16 %v92
    %v429 = vunpack.c.l.b16 %v93
    %v430 = vunpack.c.l.b16 %v94
    %v431 = vunpack.c.l.b16 %v95
    %v432 = vunpack.c.l.b16 %v96
    %v433 = vunpack.c.l.b16 %v97
    %v434 = vunpack.c.l.b16 %v98
    %v435 = vunpack.c.l.b16 %v99
    %v436 = vunpack.c.l.b16 %v100
    %v437 = vunpack.c.l.b16 %v101
    %v438 = vunpack.c.l.b16 %v102
    %v439 = vunpack.c.l.b16 %v103
    %v440 = vunpack.c.l.b16 %v104
    %v441 = vunpack.c.l.b16 %v105
    %v442 = vunpack.c.l.b16 %v106
    %v443 = vunpack.c.l.b16 %v107
    %v444 = vunpack.c.l.b16 %v108
    %v445 = vunpack.c.l.b16 %v109
    %v446 = vunpack.c.l.b16 %v110
    %v447 = vunpack.c.l.b16 %v111
    %v448 = vunpack.c.l.b16 %v112
    %v449 = vunpack.c.l.b16 %v113
    %v450 = vunpack.c.l.b16 %v114
    %v451 = vunpack.c.l.b16 %v115
    %v452 = vunpack.c.l.b16 %v116
    %v453 = vunpack.c.l.b16 %v117
    %v454 = vunpack.c.l.b16 %v118
    %v455 = vunpack.c.l.b16 %v119
    %v456 = vunpack.c.l.b16 %v120
    %v457 = vunpack.c.l.b16 %v121
    %v458 = vunpack.c.l.b16 %v122
    %v459 = vunpack.c.l.b16 %v123
    %v460 = vunpack.c.l.b16 %v124
    %v461 = vunpack.c.l.b16 %v125
    %v462 = vunpack.c.l.b16 %v126
    %v463 = vunpack.c.l.b16 %v127
    %v464 = vunpack.c.l.b16 %v128
    %v465 = vunpack.c.l.b16 %v129
    %v466 = vunpack.c.l.b16 %v130
    %v467 = vunpack.c.l.b16 %v131
    %v468 = vunpack.c.l.b16 %v132
    %v469 = vunpack.c.l.b16 %v133
    %v470 = vunpack.c.l.b16 %v134
    %v471 = vunpack.c.l.b16 %v135
    %v472 = vunpack.c.l.b16 %v136
    %v473 = vunpack.c.l.b16 %v137
    %v474 = vunpack.c.l.b16 %v138
    %v475 = vunpack.c.l.b16 %v139
    %v476 = vunpack.c.l.b16 %v140
    %v477 = vunpack.c.l.b16 %v141
    %v478 = vunpack.c.l.b16 %v142
    %v479 = vunpack.c.l.b16 %v143
    %v480 = vunpack.c.l.b16 %v144
    %v481 = vunpack.c.l.b16 %v145
    %v482 = vunpack.c.l.b16 %v146
    %v483 = vunpack.c.l.b16 %v147
    %v484 = vunpack.c.l.b16 %v148
    %v485 = vunpack.c.l.b16 %v149
    %v486 = vunpack.c.l.b16 %v150
    %v487 = vunpack.c.l.b16 %v151
    %v488 = vunpack.c.l.b16 %v152
    %v489 = vunpack.c.l.b16 %v153
    %v490 = vunpack.c.l.b16 %v154
    %v491 = vunpack.c.l.b16 %v155
    %v492 = vunpack.c.l.b16 %v156
    %v493 = vunpack.c.l.b16 %v157
    %v494 = vunpack.c.l.b16 %v158
    %v495 = vunpack.c.l.b16 %v159
    %v496 = vunpack.c.l.b16 %v160
    %v497 = vunpack.c.l.b16 %v161
    %v498 = vunpack.c.l.b16 %v162
    %v499 = vunpack.c.l.b16 %v163
    %v500 = vunpack.c.l.b16 %v164
    %v501 = vunpack.c.l.b16 %v165
    %v502 = vunpack.c.l.b16 %v166
    %v503 = vunpack.c.l.b16 %v167
    %v504 = vunpack.c.l.b16 %v168
    %v505 = vunpack.c.l.b16 %v169
    %v506 = vunpack.c.l.b16 %v170
    %v507 = vunpack.c.l.b16 %v171
    %v508 = vunpack.c.l.b16 %v172
    %v509 = vunpack.c.l.b16 %v173
    %v510 = vunpack.c.l.b16 %v174
    %v511 = vunpack.c.l.b16 %v175
    %v512 = vunpack.c.l.b16 %v176
    %v513 = vunpack.c.l.b16 %v177
    %v514 = vunpack.c.l.b16 %v178
    %v515 = vunpack.c.l.b16 %v179
    %v516 = vunpack.c.l.b16 %v180
    %v517 = vunpack.c.l.b16 %v181
    %v518 = vunpack.c.l.b16 %v182
    %v519 = vunpack.c.l.b16 %v183
    %v520 = vunpack.c.l.b16 %v184
    %v521 = vunpack.c.l.b16 %v185
    %v522 = vunpack.c.l.b16 %v186
    %v523 = vunpack.c.l.b16 %v187
    %v524 = vunpack.c.l.b16 %v188
    %v525 = vunpack.c.l.b16 %v189
    %v526 = vunpack.c.l.b16 %v190
    %v527 = vunpack.c.l.b16 %v191
    %v528 = vunpack.c.l.b16 %v192
    %v529 = vunpack.c.l.b16 %v193
    %v530 = vunpack.c.l.b16 %v194
    %v531 = vunpack.c.l.b16 %v195
    %v532 = vunpack.c.l.b16 %v196
    %v533 = vunpack.c.l.b16 %v197
    %v534 = vunpack.c.l.b16 %v198
    %v535 = vpack.c.b16 %v408, %v407
    %v536 = vpack.c.b16 %v410, %v409
    %v537 = vpack.c.b16 %v412, %v411
    %v538 = vpack.c.b16 %v414, %v413
    %v539 = vpack.c.b16 %v416, %v415
    %v540 = vpack.c.b16 %v418, %v417
    %v541 = vpack.c.b16 %v420, %v419
    %v542 = vpack.c.b16 %v422, %v421
    %v543 = vpack.c.b16 %v424, %v423
    %v544 = vpack.c.b16 %v426, %v425
    %v545 = vpack.c.b16 %v428, %v427
    %v546 = vpack.c.b16 %v430, %v429
    %v547 = vpack.c.b16 %v432, %v431
    %v548 = vpack.c.b16 %v434, %v433
    %v549 = vpack.c.b16 %v436, %v435
    %v550 = vpack.c.b16 %v438, %v437
    %v551 = vpack.c.b16 %v440, %v439
    %v552 = vpack.c.b16 %v442, %v441
    %v553 = vpack.c.b16 %v444, %v443
    %v554 = vpack.c.b16 %v446, %v445
    %v555 = vpack.c.b16 %v448, %v447
    %v556 = vpack.c.b16 %v450, %v449
    %v557 = vpack.c.b16 %v452, %v451
    %v558 = vpack.c.b16 %v454, %v453
    %v559 = vpack.c.b16 %v456, %v455
    %v560 = vpack.c.b16 %v458, %v457
    %v561 = vpack.c.b16 %v460, %v459
    %v562 = vpack.c.b16 %v462, %v461
    %v563 = vpack.c.b16 %v464, %v463
    %v564 = vpack.c.b16 %v466, %v465
    %v565 = vpack.c.b16 %v468, %v467
    %v566 = vpack.c.b16 %v470, %v469
    %v567 = vpack.c.b16 %v472, %v471
    %v568 = vpack.c.b16 %v474, %v473
    %v569 = vpack.c.b16 %v476, %v475
    %v570 = vpack.c.b16 %v478, %v477
    %v571 = vpack.c.b16 %v480, %v479
    %v572 = vpack.c.b16 %v482, %v481
    %v573 = vpack.c.b16 %v484, %v483
    %v574 = vpack.c.b16 %v486, %v485
    %v575 = vpack.c.b16 %v488, %v487
    %v576 = vpack.c.b16 %v490, %v489
    %v577 = vpack.c.b16 %v492, %v491
    %v578 = vpack.c.b16 %v494, %v493
    %v579 = vpack.c.b16 %v496, %v495
    %v580 = vpack.c.b16 %v498, %v497
    %v581 = vpack.c.b16 %v500, %v499
    %v582 = vpack.c.b16 %v502, %v501
    %v583 = vpack.c.b16 %v504, %v503
    %v584 = vpack.c.b16 %v506, %v505
    %v585 = vpack.c.b16 %v508, %v507
    %v586 = vpack.c.b16 %v510, %v509
    %v587 = vpack.c.b16 %v512, %v511
    %v588 = vpack.c.b16 %v514, %v513
    %v589 = vpack.c.b16 %v516, %v515
    %v590 = vpack.c.b16 %v518, %v517
    %v591 = vpack.c.b16 %v520, %v519
    %v592 = vpack.c.b16 %v522, %v521
    %v593 = vpack.c.b16 %v524, %v523
    %v594 = vpack.c.b16 %v526, %v525
    %v595 = vpack.c.b16 %v528, %v527
    %v596 = vpack.c.b16 %v530, %v529
    %v597 = vpack.c.b16 %v532, %v531
    %v598 = vpack.c.b16 %v534, %v533
    %663 = vmatprep.subr.bf16.mxu0 0
    %664 = vmatpush1.bf16.msra.mxu0 %v542
    %665 = vmatprep.subr.bf16.mxu0 0
    %666 = vmatpush1.bf16.msra.mxu0 %v541
    %667 = vmatprep.subr.bf16.mxu0 0
    %668 = vmatpush1.bf16.msra.mxu0 %v540
    %669 = vmatprep.subr.bf16.mxu0 0
    %670 = vmatpush1.bf16.msra.mxu0 %v539
    %671 = vmatprep.subr.bf16.mxu0 0
    %672 = vmatpush1.bf16.msra.mxu0 %v538
    %673 = vmatprep.subr.bf16.mxu0 0
    %674 = vmatpush1.bf16.msra.mxu0 %v537
    %675 = vmatprep.subr.bf16.mxu0 0
    %676 = vmatpush1.bf16.msra.mxu0 %v536
    %677 = vmatprep.subr.bf16.mxu0 0
    %678 = vmatpush1.bf16.msra.mxu0 %v535
    %679 = vmatprep.subr.bf16.mxu0 0
    %680 = vmatpush2.bf16.msra.mxu0 %v550
    %681 = vmatprep.subr.bf16.mxu0 0
    %682 = vmatpush2.bf16.msra.mxu0 %v549
    %683 = vmatprep.subr.bf16.mxu0 0
    %684 = vmatpush2.bf16.msra.mxu0 %v548
    %685 = vmatprep.subr.bf16.mxu0 0
    %686 = vmatpush2.bf16.msra.mxu0 %v547
    %687 = vmatprep.subr.bf16.mxu0 0
    %688 = vmatpush2.bf16.msra.mxu0 %v546
    %689 = vmatprep.subr.bf16.mxu0 0
    %690 = vmatpush2.bf16.msra.mxu0 %v545
    %691 = vmatprep.subr.bf16.mxu0 0
    %692 = vmatpush2.bf16.msra.mxu0 %v544
    %693 = vmatprep.subr.bf16.mxu0 0
    %694 = vmatpush2.bf16.msra.mxu0 %v543
    %695 = vmatprep.mubr.bf16.mxu0 %v248
    %696 = vmatmul.mubr.bf16.gmra.mxu0 %v247
    %v697 = vpop.f32.mrf.mxu0
    %v698 = vadd.f32 0.0, %v697
    %v699 = vpop.f32.mrf.mxu0
    %v700 = vpop.f32.mrf.mxu0
    %v701 = vadd.f32 0.0, %v700
    %v702 = vpop.f32.mrf.mxu0
    %703 = vmatprep.mubr.bf16.mxu0 %v256
    %704 = vmatmul.mubr.bf16.gmra.mxu0 %v255
    %v705 = vpop.f32.mrf.mxu0
    %v706 = vadd.f32 0.0, %v705
    %v707 = vpop.f32.mrf.mxu0
    %v708 = vpop.f32.mrf.mxu0
    %v709 = vadd.f32 0.0, %v708
    %v710 = vpop.f32.mrf.mxu0
    %711 = vdwg.mxu0
    %712 = vmatprep.subr.bf16.mxu0 0
    %713 = vmatpush1.bf16.msra.mxu0 %v558
    %714 = vmatprep.subr.bf16.mxu0 0
    %715 = vmatpush1.bf16.msra.mxu0 %v557
    %716 = vmatprep.subr.bf16.mxu0 0
    %717 = vmatpush1.bf16.msra.mxu0 %v556
    %718 = vmatprep.subr.bf16.mxu0 0
    %719 = vmatpush1.bf16.msra.mxu0 %v555
    %720 = vmatprep.subr.bf16.mxu0 0
    %721 = vmatpush1.bf16.msra.mxu0 %v554
    %722 = vmatprep.subr.bf16.mxu0 0
    %723 = vmatpush1.bf16.msra.mxu0 %v553
    %724 = vmatprep.subr.bf16.mxu0 0
    %725 = vmatpush1.bf16.msra.mxu0 %v552
    %726 = vmatprep.subr.bf16.mxu0 0
    %727 = vmatpush1.bf16.msra.mxu0 %v551
    %728 = vmatprep.subr.bf16.mxu0 0
    %729 = vmatpush2.bf16.msra.mxu0 %v566
    %730 = vmatprep.subr.bf16.mxu0 0
    %731 = vmatpush2.bf16.msra.mxu0 %v565
    %732 = vmatprep.subr.bf16.mxu0 0
    %733 = vmatpush2.bf16.msra.mxu0 %v564
    %734 = vmatprep.subr.bf16.mxu0 0
    %735 = vmatpush2.bf16.msra.mxu0 %v563
    %736 = vmatprep.subr.bf16.mxu0 0
    %737 = vmatpush2.bf16.msra.mxu0 %v562
    %738 = vmatprep.subr.bf16.mxu0 0
    %739 = vmatpush2.bf16.msra.mxu0 %v561
    %740 = vmatprep.subr.bf16.mxu0 0
    %741 = vmatpush2.bf16.msra.mxu0 %v560
    %742 = vmatprep.subr.bf16.mxu0 0
    %743 = vmatpush2.bf16.msra.mxu0 %v559
    %744 = vmatprep.mubr.bf16.mxu0 %v250
    %745 = vmatmul.mubr.bf16.gmra.mxu0 %v249
    %v746 = vpop.f32.mrf.mxu0
    %v747 = vadd.f32 %v698, %v746
    %v748 = vpop.f32.mrf.mxu0
    %v749 = vpop.f32.mrf.mxu0
    %v750 = vadd.f32 %v701, %v749
    %v751 = vpop.f32.mrf.mxu0
    %752 = vmatprep.mubr.bf16.mxu0 %v258
    %753 = vmatmul.mubr.bf16.gmra.mxu0 %v257
    %v754 = vpop.f32.mrf.mxu0
    %v755 = vadd.f32 %v706, %v754
    %v756 = vpop.f32.mrf.mxu0
    %v757 = vpop.f32.mrf.mxu0
    %v758 = vadd.f32 %v709, %v757
    %v759 = vpop.f32.mrf.mxu0
    %760 = vdwg.mxu0
    %761 = vmatprep.subr.bf16.mxu0 0
    %762 = vmatpush1.bf16.msra.mxu0 %v574
    %763 = vmatprep.subr.bf16.mxu0 0
    %764 = vmatpush1.bf16.msra.mxu0 %v573
    %765 = vmatprep.subr.bf16.mxu0 0
    %766 = vmatpush1.bf16.msra.mxu0 %v572
    %767 = vmatprep.subr.bf16.mxu0 0
    %768 = vmatpush1.bf16.msra.mxu0 %v571
    %769 = vmatprep.subr.bf16.mxu0 0
    %770 = vmatpush1.bf16.msra.mxu0 %v570
    %771 = vmatprep.subr.bf16.mxu0 0
    %772 = vmatpush1.bf16.msra.mxu0 %v569
    %773 = vmatprep.subr.bf16.mxu0 0
    %774 = vmatpush1.bf16.msra.mxu0 %v568
    %775 = vmatprep.subr.bf16.mxu0 0
    %776 = vmatpush1.bf16.msra.mxu0 %v567
    %777 = vmatprep.subr.bf16.mxu0 0
    %778 = vmatpush2.bf16.msra.mxu0 %v582
    %779 = vmatprep.subr.bf16.mxu0 0
    %780 = vmatpush2.bf16.msra.mxu0 %v581
    %781 = vmatprep.subr.bf16.mxu0 0
    %782 = vmatpush2.bf16.msra.mxu0 %v580
    %783 = vmatprep.subr.bf16.mxu0 0
    %784 = vmatpush2.bf16.msra.mxu0 %v579
    %785 = vmatprep.subr.bf16.mxu0 0
    %786 = vmatpush2.bf16.msra.mxu0 %v578
    %787 = vmatprep.subr.bf16.mxu0 0
    %788 = vmatpush2.bf16.msra.mxu0 %v577
    %789 = vmatprep.subr.bf16.mxu0 0
    %790 = vmatpush2.bf16.msra.mxu0 %v576
    %791 = vmatprep.subr.bf16.mxu0 0
    %792 = vmatpush2.bf16.msra.mxu0 %v575
    %793 = vmatprep.mubr.bf16.mxu0 %v252
    %794 = vmatmul.mubr.bf16.gmra.mxu0 %v251
    %v795 = vpop.f32.mrf.mxu0
    %v796 = vadd.f32 %v747, %v795
    %v797 = vpop.f32.mrf.mxu0
    %v798 = vpop.f32.mrf.mxu0
    %v799 = vadd.f32 %v750, %v798
    %v800 = vpop.f32.mrf.mxu0
    %801 = vmatprep.mubr.bf16.mxu0 %v260
    %802 = vmatmul.mubr.bf16.gmra.mxu0 %v259
    %v803 = vpop.f32.mrf.mxu0
    %v804 = vadd.f32 %v755, %v803
    %v805 = vpop.f32.mrf.mxu0
    %v806 = vpop.f32.mrf.mxu0
    %v807 = vadd.f32 %v758, %v806
    %v808 = vpop.f32.mrf.mxu0
    %809 = vdwg.mxu0
    %810 = vmatprep.subr.bf16.mxu0 0
    %811 = vmatpush1.bf16.msra.mxu0 %v590
    %812 = vmatprep.subr.bf16.mxu0 0
    %813 = vmatpush1.bf16.msra.mxu0 %v589
    %814 = vmatprep.subr.bf16.mxu0 0
    %815 = vmatpush1.bf16.msra.mxu0 %v588
    %816 = vmatprep.subr.bf16.mxu0 0
    %817 = vmatpush1.bf16.msra.mxu0 %v587
    %818 = vmatprep.subr.bf16.mxu0 0
    %819 = vmatpush1.bf16.msra.mxu0 %v586
    %820 = vmatprep.subr.bf16.mxu0 0
    %821 = vmatpush1.bf16.msra.mxu0 %v585
    %822 = vmatprep.subr.bf16.mxu0 0
    %823 = vmatpush1.bf16.msra.mxu0 %v584
    %824 = vmatprep.subr.bf16.mxu0 0
    %825 = vmatpush1.bf16.msra.mxu0 %v583
    %826 = vmatprep.subr.bf16.mxu0 0
    %827 = vmatpush2.bf16.msra.mxu0 %v598
    %828 = vmatprep.subr.bf16.mxu0 0
    %829 = vmatpush2.bf16.msra.mxu0 %v597
    %830 = vmatprep.subr.bf16.mxu0 0
    %831 = vmatpush2.bf16.msra.mxu0 %v596
    %832 = vmatprep.subr.bf16.mxu0 0
    %833 = vmatpush2.bf16.msra.mxu0 %v595
    %834 = vmatprep.subr.bf16.mxu0 0
    %835 = vmatpush2.bf16.msra.mxu0 %v594
    %836 = vmatprep.subr.bf16.mxu0 0
    %837 = vmatpush2.bf16.msra.mxu0 %v593
    %838 = vmatprep.subr.bf16.mxu0 0
    %839 = vmatpush2.bf16.msra.mxu0 %v592
    %840 = vmatprep.subr.bf16.mxu0 0
    %841 = vmatpush2.bf16.msra.mxu0 %v591
    %842 = vmatprep.mubr.bf16.mxu0 %v254
    %843 = vmatmul.mubr.bf16.gmra.mxu0 %v253
    %v844 = vpop.f32.mrf.mxu0
    %v845 = vadd.f32 %v796, %v844
    %v846 = vpop.f32.mrf.mxu0
    %v847 = vpop.f32.mrf.mxu0
    %v848 = vadd.f32 %v799, %v847
    %v849 = vpop.f32.mrf.mxu0
    %850 = vmatprep.mubr.bf16.mxu0 %v262
    %851 = vmatmul.mubr.bf16.gmra.mxu0 %v261
    %v852 = vpop.f32.mrf.mxu0
    %v853 = vadd.f32 %v804, %v852
    %v854 = vpop.f32.mrf.mxu0
    %v855 = vpop.f32.mrf.mxu0
    %v856 = vadd.f32 %v807, %v855
    %v857 = vpop.f32.mrf.mxu0
    %858 = vdwg.mxu0
    %v859 = vadd.f32 %v51, %v845
    %v860 = vadd.f32 %v52, %v848
    %v861 = vadd.f32 %v53, %v853
    %v862 = vadd.f32 %v54, %v856
    %863 = vst [vmem:[#allocation2] sm:$0xff] %v859
    %864 = vst [vmem:[#allocation2 + $0x8] sm:$0xff] %v860
    %865 = vst [vmem:[#allocation2 + $0x10] sm:$0xff] %v861
    %866 = vst [vmem:[#allocation2 + $0x18] sm:$0xff] %v862
    // Predicated region
    $region26: #{discriminator_forward.4} parent=1 // pred_check
      %p867 = pneg %p43
    $region27: #{discriminator_forward.4} parent=1 // pred_check_branch
      %869 = sbr.rel (%p867) target = $region29
    $region28: #{discriminator_forward.4} parent=1 // pred_region
      %v870 = vld [vmem:[#allocation2] sm:$0xff]
      %v871 = vld [vmem:[#allocation2 + $0x8] sm:$0xff]
      %v872 = vld [vmem:[#allocation2 + $0x10] sm:$0xff]
      %v873 = vld [vmem:[#allocation2 + $0x18] sm:$0xff]
      %v874 = vld [vmem:[#allocation5] sm:$0x1]
      %v876 = vlaneseq
      %v877 = vshrl.u32 %v876, 7
      %v878 = vsub.s32 0, %v877
      %v879 = vrot.slane %v874, %v878
      %v881 = vadd.f32 %v870, %v879
      %v882 = vadd.f32 %v871, %v879
      %v883 = vadd.f32 %v872, %v879
      %v884 = vadd.f32 %v873, %v879
      %v885 = vadd.f32 %v881, %v882
      %v886 = vadd.f32 %v885, %v883
      %v887 = vadd.f32 %v886, %v884
      %v888 = vrot.slane %v887, 4
      %v889 = vadd.f32 %v887, %v888
      %v890 = vrot.slane %v889, 2
      %v891 = vadd.f32 %v889, %v890
      %v892 = vrot.slane %v891, 1
      %v893 = vadd.f32 %v891, %v892
      %894 = vst [vmem:[%s4] sm:$0x1] %v893
      %v895 = vmul.f32 %v881, %v881
      %v896 = vmul.f32 %v882, %v882
      %v897 = vmul.f32 %v883, %v883
      %v898 = vmul.f32 %v884, %v884
      %v899 = vadd.f32 %v895, %v896
      %v900 = vadd.f32 %v899, %v897
      %v901 = vadd.f32 %v900, %v898
      %v902 = vrot.slane %v901, 4
      %v903 = vadd.f32 %v901, %v902
      %v904 = vrot.slane %v903, 2
      %v905 = vadd.f32 %v903, %v904
      %v906 = vrot.slane %v905, 1
      %v907 = vadd.f32 %v905, %v906
      %908 = vst [vmem:[%s4 + $0x1] sm:$0x1] %v907
      %v909 = vpack.c.bf16 %v882, %v881
      %v910 = vpack.c.bf16 %v884, %v883
      %v913 = vunpack.c.l.b16 %v909
      %v914 = vunpack.c.h.b16 %v909
      %v915 = vunpack.c.l.b16 %v910
      %v916 = vunpack.c.h.b16 %v910
      %v917 = vpack.c.b16 %v913, %v913
      %v918 = vpack.c.b16 %v914, %v914
      %v919 = vpack.c.b16 %v915, %v915
      %v920 = vpack.c.b16 %v916, %v916
      %925 = vst [vmem:[%s3] sm:$0xf] %v917
      %926 = vst [vmem:[%s3 + $0x4] sm:$0xf] %v918
      %927 = vst [vmem:[%s3 + $0x8] sm:$0xf] %v919
      %928 = vst [vmem:[%s3 + $0xc] sm:$0xf] %v920
    $region29: #{discriminator_forward.4} parent=1 // pred_fallthru
      _
    // Predicated region
    $region30: #{discriminator_forward.4} parent=1 // pred_check
      _
    $region31: #{discriminator_forward.4} parent=1 // pred_check_branch
      %930 = sbr.rel (0) target = $region33
    $region32: #{discriminator_forward.4} parent=1 // pred_region
      _
    $region33: #{discriminator_forward.4} parent=1 // pred_fallthru
      _
    // Predicated region
    $region34: #{discriminator_forward.4} parent=1 // pred_check
      _
    $region35: #{discriminator_forward.4} parent=1 // pred_check_branch
      %932 = sbr.rel (0) target = $region37
    $region36: #{discriminator_forward.4} parent=1 // pred_region
      _
    $region37: #{discriminator_forward.4} parent=1 // pred_fallthru
      _
    // Predicated region
    $region38: #{discriminator_forward.4} parent=1 // pred_check
      _
    $region39: #{discriminator_forward.4} parent=1 // pred_check_branch
      %934 = sbr.rel (0) target = $region41
    $region40: #{discriminator_forward.4} parent=1 // pred_region
      _
    $region41: #{discriminator_forward.4} parent=1 // pred_fallthru
      _
    // Predicated region
    $region42: #{discriminator_forward.4} parent=1 // pred_check
      _
    $region43: #{discriminator_forward.4} parent=1 // pred_check_branch
      %936 = sbr.rel (0) target = $region45
    $region44: #{discriminator_forward.4} parent=1 // pred_region
      _
    $region45: #{discriminator_forward.4} parent=1 // pred_fallthru
      _
    %937 = vsyncpa [#allocation4], 1
    %938 = vsyncpa [#allocation6], 1

// kernel: discriminator_forward.5
$region0: #{discriminator_forward.5}
  #allocation0 [shape = 'u32[]', space=smem, size = 0x4, offset = 0x4, fixed_abs, tag = 'smem constant byte address 0x4 - core index']
  #allocation1 [shape = 'u32[144,128]{1,0:T(1,128)}', space=vmem, size = 0x12000, scoped, tag = 'internal scratch']
  #allocation2 [shape = 'f32[2,1024]{1,0:T(2,128)}', space=vmem, size = 0x2000, scoped, tag = 'scratch operand']
  %s0 = inlined_call_operand.vmem [shape: bf16[2,2048], index: 0, kind: input, shape index: {}]
  %s1 = inlined_call_operand.vmem [shape: f32[1,2048], index: 1, kind: input, shape index: {}]
  %s2 = inlined_call_operand.vmem [shape: f32[1,2048], index: 2, kind: input, shape index: {}]
  %s3 = inlined_call_operand.hbm [shape: bf16[2048,1024], index: 3, kind: input, shape index: {}]
  %s4 = inlined_call_operand.hbm [shape: f32[1,1024], index: 4, kind: input, shape index: {}]
  %s5 = inlined_call_operand.hbm [shape: f32[1,1024], index: 5, kind: input, shape index: {}]
  %s6 = inlined_call_operand.hbm [shape: f32[1,1024], index: 6, kind: input, shape index: {}]
  %s7 = inlined_call_operand.hbm [shape: bf16[1024,128], index: 7, kind: input, shape index: {}]
  %s8 = inlined_call_operand.hbm [shape: f32[1,128], index: 8, kind: input, shape index: {}]
  %s9 = inlined_call_operand.vmem [shape: f32[2,128], index: 9, kind: output, shape index: {}]
  %s10 = sld [smem:[#allocation0]]
  $region78: #{discriminator_forward.5} parent=0
    _
  %s12 = ssub.s32 1, %s10
  %s13 = scalar_select 0, %s12, %s10
  $region1: #{discriminator_forward.5} parent=0
    #allocation3 [shape = 'u8[4194304]{0}', space=vmem, size = 0x400000, scoped, tag = 'input window, operand 3, single buffered']
    #allocation4 [shape = 's32[1]{0}', space=sflag, size = 0x4, scoped, tag = 'scoped memory for discriminator_forward.5']
    #allocation5 [shape = 'u8[4096]{0}', space=vmem, size = 0x1000, scoped, tag = 'input window, operand 4, single buffered']
    #allocation6 [shape = 's32[1]{0}', space=sflag, size = 0x4, scoped, tag = 'scoped memory for discriminator_forward.5']
    #allocation7 [shape = 'u8[4096]{0}', space=vmem, size = 0x1000, scoped, tag = 'input window, operand 5, single buffered']
    #allocation8 [shape = 'u8[4096]{0}', space=vmem, size = 0x1000, scoped, tag = 'input window, operand 6, single buffered']
    #allocation9 [shape = 's32[1]{0}', space=sflag, size = 0x4, scoped, tag = 'scoped memory for discriminator_forward.5']
    #allocation10 [shape = 'u8[262144]{0}', space=vmem, size = 0x40000, scoped, tag = 'input window, operand 7, single buffered']
    #allocation11 [shape = 'u8[512]{0}', space=vmem, size = 0x400, scoped, tag = 'input window, operand 8, single buffered']
    #allocation12 [shape = 's32[1]{0}', space=sflag, size = 0x4, scoped, tag = 'scoped memory for discriminator_forward.5']
    %14 = vsyncpa [#allocation4], 0
    %15 = vsyncpa [#allocation6], 0
    %16 = vsyncpa [#allocation9], 0
    %17 = vsyncpa [#allocation12], 0
    // Predicated region
    $region2: #{discriminator_forward.5} parent=1 // pred_check
      _
    $region3: #{discriminator_forward.5} parent=1 // pred_check_branch
      %19 = sbr.rel (0) target = $region5
    $region4: #{discriminator_forward.5} parent=1 // pred_region
      _
    $region5: #{discriminator_forward.5} parent=1 // pred_fallthru
      _
    // Predicated region
    $region6: #{discriminator_forward.5} parent=1 // pred_check
      _
    $region7: #{discriminator_forward.5} parent=1 // pred_check_branch
      %21 = sbr.rel (0) target = $region9
    $region8: #{discriminator_forward.5} parent=1 // pred_region
      _
    $region9: #{discriminator_forward.5} parent=1 // pred_fallthru
      _
    // Predicated region
    $region10: #{discriminator_forward.5} parent=1 // pred_check
      _
    $region11: #{discriminator_forward.5} parent=1 // pred_check_branch
      %23 = sbr.rel (0) target = $region13
    $region12: #{discriminator_forward.5} parent=1 // pred_region
      _
    $region13: #{discriminator_forward.5} parent=1 // pred_fallthru
      _
    // Predicated region
    $region14: #{discriminator_forward.5} parent=1 // pred_check
      _
    $region15: #{discriminator_forward.5} parent=1 // pred_check_branch
      %25 = sbr.rel (0) target = $region17
    $region16: #{discriminator_forward.5} parent=1 // pred_region
      %s27 = ssub.s32 131072, 131072
      %28 = vsyncadd [#allocation4], %s27
      %s29 = sshll.u32 [#allocation3], 4
      %s30 = int_to_ptr.vmem [resolvable:$true] %s29
      %35 = dma.hbm_to_vmem [thread:$0]  %s3, 131072, %s30, [#allocation4], 512, 512, 32
    $region17: #{discriminator_forward.5} parent=1 // pred_fallthru
      _
    // Predicated region
    $region18: #{discriminator_forward.5} parent=1 // pred_check
      _
    $region19: #{discriminator_forward.5} parent=1 // pred_check_branch
      %37 = sbr.rel (0) target = $region21
    $region20: #{discriminator_forward.5} parent=1 // pred_region
      %s39 = ssub.s32 128, 128
      %40 = vsyncadd [#allocation6], %s39
      %s42 = sshll.u32 [#allocation5], 4
      %s43 = int_to_ptr.vmem [resolvable:$true] %s42
      %45 = dma.hbm_to_vmem [thread:$0]  %s4, 128, %s43, [#allocation6]
    $region21: #{discriminator_forward.5} parent=1 // pred_fallthru
      _
    // Predicated region
    $region22: #{discriminator_forward.5} parent=1 // pred_check
      _
    $region23: #{discriminator_forward.5} parent=1 // pred_check_branch
      %47 = sbr.rel (0) target = $region25
    $region24: #{discriminator_forward.5} parent=1 // pred_region
      %s49 = ssub.s32 128, 128
      %50 = vsyncadd [#allocation6], %s49
      %s52 = sshll.u32 [#allocation7], 4
      %s53 = int_to_ptr.vmem [resolvable:$true] %s52
      %55 = dma.hbm_to_vmem [thread:$0]  %s5, 128, %s53, [#allocation6]
    $region25: #{discriminator_forward.5} parent=1 // pred_fallthru
      _
    // Predicated region
    $region26: #{discriminator_forward.5} parent=1 // pred_check
      _
    $region27: #{discriminator_forward.5} parent=1 // pred_check_branch
      %57 = sbr.rel (0) target = $region29
    $region28: #{discriminator_forward.5} parent=1 // pred_region
      %s59 = ssub.s32 128, 128
      %60 = vsyncadd [#allocation9], %s59
      %s62 = sshll.u32 [#allocation8], 4
      %s63 = int_to_ptr.vmem [resolvable:$true] %s62
      %65 = dma.hbm_to_vmem [thread:$0]  %s6, 128, %s63, [#allocation9]
    $region29: #{discriminator_forward.5} parent=1 // pred_fallthru
      _
    // Predicated region
    $region30: #{discriminator_forward.5} parent=1 // pred_check
      _
    $region31: #{discriminator_forward.5} parent=1 // pred_check_branch
      %67 = sbr.rel (0) target = $region33
    $region32: #{discriminator_forward.5} parent=1 // pred_region
      %s69 = ssub.s32 8192, 8192
      %70 = vsyncadd [#allocation9], %s69
      %s71 = sshll.u32 [#allocation10], 4
      %s72 = int_to_ptr.vmem [resolvable:$true] %s71
      %77 = dma.hbm_to_vmem [thread:$0]  %s7, 8192, %s72, [#allocation9], 64, 64, 4
    $region33: #{discriminator_forward.5} parent=1 // pred_fallthru
      _
    // Predicated region
    $region34: #{discriminator_forward.5} parent=1 // pred_check
      _
    $region35: #{discriminator_forward.5} parent=1 // pred_check_branch
      %79 = sbr.rel (0) target = $region37
    $region36: #{discriminator_forward.5} parent=1 // pred_region
      %s81 = ssub.s32 16, 16
      %82 = vsyncadd [#allocation12], %s81
      %s84 = sshll.u32 [#allocation11], 4
      %s85 = int_to_ptr.vmem [resolvable:$true] %s84
      %87 = dma.hbm_to_vmem [thread:$0]  %s8, 16, %s85, [#allocation12]
    $region37: #{discriminator_forward.5} parent=1 // pred_fallthru
      _
    // Predicated region
    $region38: #{discriminator_forward.5} parent=1 // pred_check
      _
    $region39: #{discriminator_forward.5} parent=1 // pred_check_branch
      %89 = sbr.rel (0) target = $region41
    $region40: #{discriminator_forward.5} parent=1 // pred_region
      %90 = dma.done [#allocation4], 131072
    $region41: #{discriminator_forward.5} parent=1 // pred_fallthru
      _
    // Predicated region
    $region42: #{discriminator_forward.5} parent=1 // pred_check
      _
    $region43: #{discriminator_forward.5} parent=1 // pred_check_branch
      %92 = sbr.rel (0) target = $region45
    $region44: #{discriminator_forward.5} parent=1 // pred_region
      %93 = dma.done [#allocation6], 128
    $region45: #{discriminator_forward.5} parent=1 // pred_fallthru
      _
    // Predicated region
    $region46: #{discriminator_forward.5} parent=1 // pred_check
      _
    $region47: #{discriminator_forward.5} parent=1 // pred_check_branch
      %95 = sbr.rel (0) target = $region49
    $region48: #{discriminator_forward.5} parent=1 // pred_region
      %96 = dma.done [#allocation6], 128
    $region49: #{discriminator_forward.5} parent=1 // pred_fallthru
      _
    // Predicated region
    $region50: #{discriminator_forward.5} parent=1 // pred_check
      _
    $region51: #{discriminator_forward.5} parent=1 // pred_check_branch
      %98 = sbr.rel (0) target = $region53
    $region52: #{discriminator_forward.5} parent=1 // pred_region
      %99 = dma.done [#allocation9], 128
    $region53: #{discriminator_forward.5} parent=1 // pred_fallthru
      _
    // Predicated region
    $region54: #{discriminator_forward.5} parent=1 // pred_check
      _
    $region55: #{discriminator_forward.5} parent=1 // pred_check_branch
      %101 = sbr.rel (0) target = $region57
    $region56: #{discriminator_forward.5} parent=1 // pred_region
      %102 = dma.done [#allocation9], 8192
    $region57: #{discriminator_forward.5} parent=1 // pred_fallthru
      _
    // Predicated region
    $region58: #{discriminator_forward.5} parent=1 // pred_check
      _
    $region59: #{discriminator_forward.5} parent=1 // pred_check_branch
      %104 = sbr.rel (0) target = $region61
    $region60: #{discriminator_forward.5} parent=1 // pred_region
      %105 = dma.done [#allocation12], 16
    $region61: #{discriminator_forward.5} parent=1 // pred_fallthru
      _
    %p107 = scmp.eq.s32.totalorder 0, 0
    // Predicated region
    $region62: #{discriminator_forward.5} parent=1 // pred_check
      %p108 = pneg %p107
    $region63: #{discriminator_forward.5} parent=1 // pred_check_branch
      %110 = sbr.rel (%p108) target = $region65
    $region64: #{discriminator_forward.5} parent=1 // pred_region
      %111 = vst [vmem:[#allocation2] sm:$0xff] 0.0
      %112 = vst [vmem:[#allocation2 + $0x8] sm:$0xff] 0.0
    $region65: #{discriminator_forward.5} parent=1 // pred_fallthru
      _
    %v113 = vld [vmem:[%s0] sm:$0xff]
    %v114 = vld [vmem:[%s0 + $0x8] sm:$0xff]
    %v115 = vunpack.c.l.bf16 %v113
    %v116 = vunpack.c.h.bf16 %v113
    %v117 = vunpack.c.l.bf16 %v114
    %v118 = vunpack.c.h.bf16 %v114
    %v119 = vld [vmem:[%s1] sm:$0xff]
    %v120 = vld [vmem:[%s1 + $0x8] sm:$0xff]
    %v123 = vlaneseq
    %v124 = vshrl.u32 %v123, 7
    %v125 = vsub.s32 0, %v124
    %v126 = vrot.slane %v119, %v125
    %v127 = vlaneseq
    %v128 = vshrl.u32 %v127, 7
    %v129 = vsub.s32 1, %v128
    %v130 = vrot.slane %v119, %v129
    %v131 = vlaneseq
    %v132 = vshrl.u32 %v131, 7
    %v133 = vsub.s32 2, %v132
    %v134 = vrot.slane %v119, %v133
    %v135 = vlaneseq
    %v136 = vshrl.u32 %v135, 7
    %v137 = vsub.s32 3, %v136
    %v138 = vrot.slane %v119, %v137
    %v139 = vlaneseq
    %v140 = vshrl.u32 %v139, 7
    %v141 = vsub.s32 4, %v140
    %v142 = vrot.slane %v119, %v141
    %v143 = vlaneseq
    %v144 = vshrl.u32 %v143, 7
    %v145 = vsub.s32 5, %v144
    %v146 = vrot.slane %v119, %v145
    %v147 = vlaneseq
    %v148 = vshrl.u32 %v147, 7
    %v149 = vsub.s32 6, %v148
    %v150 = vrot.slane %v119, %v149
    %v151 = vlaneseq
    %v152 = vshrl.u32 %v151, 7
    %v153 = vsub.s32 7, %v152
    %v154 = vrot.slane %v119, %v153
    %v155 = vlaneseq
    %v156 = vshrl.u32 %v155, 7
    %v157 = vsub.s32 0, %v156
    %v158 = vrot.slane %v120, %v157
    %v159 = vlaneseq
    %v160 = vshrl.u32 %v159, 7
    %v161 = vsub.s32 1, %v160
    %v162 = vrot.slane %v120, %v161
    %v163 = vlaneseq
    %v164 = vshrl.u32 %v163, 7
    %v165 = vsub.s32 2, %v164
    %v166 = vrot.slane %v120, %v165
    %v167 = vlaneseq
    %v168 = vshrl.u32 %v167, 7
    %v169 = vsub.s32 3, %v168
    %v170 = vrot.slane %v120, %v169
    %v171 = vlaneseq
    %v172 = vshrl.u32 %v171, 7
    %v173 = vsub.s32 4, %v172
    %v174 = vrot.slane %v120, %v173
    %v175 = vlaneseq
    %v176 = vshrl.u32 %v175, 7
    %v177 = vsub.s32 5, %v176
    %v178 = vrot.slane %v120, %v177
    %v179 = vlaneseq
    %v180 = vshrl.u32 %v179, 7
    %v181 = vsub.s32 6, %v180
    %v182 = vrot.slane %v120, %v181
    %v183 = vlaneseq
    %v184 = vshrl.u32 %v183, 7
    %v185 = vsub.s32 7, %v184
    %v186 = vrot.slane %v120, %v185
    %v187 = vcombine.low %v126, %v130
    %v188 = vcombine.low %v134, %v138
    %v190 = vunpack.c.l.s4 1983009808
    %v191 = vunpack.c.0.s8 %v190
    %v192 = vlaneseq
    %v193 = vshrl.u32 %v192, 7
    %v194 = vsub.s32 %v191, %v193
    %v195 = vrot.slane %v187, %v194
    %v197 = vunpack.c.l.s4 1983009808
    %v198 = vunpack.c.0.s8 %v197
    %v199 = vlaneseq
    %v200 = vshrl.u32 %v199, 7
    %v201 = vsub.s32 %v198, %v200
    %v202 = vrot.slane %v188, %v201
    %v203 = vcombine.low %v195, %v202
    %v204 = vcombine.low %v142, %v146
    %v205 = vcombine.low %v150, %v154
    %v207 = vunpack.c.l.s4 1983009808
    %v208 = vunpack.c.0.s8 %v207
    %v209 = vlaneseq
    %v210 = vshrl.u32 %v209, 7
    %v211 = vsub.s32 %v208, %v210
    %v212 = vrot.slane %v204, %v211
    %v214 = vunpack.c.l.s4 1983009808
    %v215 = vunpack.c.0.s8 %v214
    %v216 = vlaneseq
    %v217 = vshrl.u32 %v216, 7
    %v218 = vsub.s32 %v215, %v217
    %v219 = vrot.slane %v205, %v218
    %v220 = vcombine.low %v212, %v219
    %v221 = vcombine.low %v158, %v162
    %v222 = vcombine.low %v166, %v170
    %v224 = vunpack.c.l.s4 1983009808
    %v225 = vunpack.c.0.s8 %v224
    %v226 = vlaneseq
    %v227 = vshrl.u32 %v226, 7
    %v228 = vsub.s32 %v225, %v227
    %v229 = vrot.slane %v221, %v228
    %v231 = vunpack.c.l.s4 1983009808
    %v232 = vunpack.c.0.s8 %v231
    %v233 = vlaneseq
    %v234 = vshrl.u32 %v233, 7
    %v235 = vsub.s32 %v232, %v234
    %v236 = vrot.slane %v222, %v235
    %v237 = vcombine.low %v229, %v236
    %v238 = vcombine.low %v174, %v178
    %v239 = vcombine.low %v182, %v186
    %v241 = vunpack.c.l.s4 1983009808
    %v242 = vunpack.c.0.s8 %v241
    %v243 = vlaneseq
    %v244 = vshrl.u32 %v243, 7
    %v245 = vsub.s32 %v242, %v244
    %v246 = vrot.slane %v238, %v245
    %v248 = vunpack.c.l.s4 1983009808
    %v249 = vunpack.c.0.s8 %v248
    %v250 = vlaneseq
    %v251 = vshrl.u32 %v250, 7
    %v252 = vsub.s32 %v249, %v251
    %v253 = vrot.slane %v239, %v252
    %v254 = vcombine.low %v246, %v253
    %v259 = vmul.f32 %v115, %v203
    %v260 = vmul.f32 %v116, %v220
    %v261 = vmul.f32 %v117, %v237
    %v262 = vmul.f32 %v118, %v254
    %v263 = vld [vmem:[%s2] sm:$0xff]
    %v264 = vld [vmem:[%s2 + $0x8] sm:$0xff]
    %v267 = vlaneseq
    %v268 = vshrl.u32 %v267, 7
    %v269 = vsub.s32 0, %v268
    %v270 = vrot.slane %v263, %v269
    %v271 = vlaneseq
    %v272 = vshrl.u32 %v271, 7
    %v273 = vsub.s32 1, %v272
    %v274 = vrot.slane %v263, %v273
    %v275 = vlaneseq
    %v276 = vshrl.u32 %v275, 7
    %v277 = vsub.s32 2, %v276
    %v278 = vrot.slane %v263, %v277
    %v279 = vlaneseq
    %v280 = vshrl.u32 %v279, 7
    %v281 = vsub.s32 3, %v280
    %v282 = vrot.slane %v263, %v281
    %v283 = vlaneseq
    %v284 = vshrl.u32 %v283, 7
    %v285 = vsub.s32 4, %v284
    %v286 = vrot.slane %v263, %v285
    %v287 = vlaneseq
    %v288 = vshrl.u32 %v287, 7
    %v289 = vsub.s32 5, %v288
    %v290 = vrot.slane %v263, %v289
    %v291 = vlaneseq
    %v292 = vshrl.u32 %v291, 7
    %v293 = vsub.s32 6, %v292
    %v294 = vrot.slane %v263, %v293
    %v295 = vlaneseq
    %v296 = vshrl.u32 %v295, 7
    %v297 = vsub.s32 7, %v296
    %v298 = vrot.slane %v263, %v297
    %v299 = vlaneseq
    %v300 = vshrl.u32 %v299, 7
    %v301 = vsub.s32 0, %v300
    %v302 = vrot.slane %v264, %v301
    %v303 = vlaneseq
    %v304 = vshrl.u32 %v303, 7
    %v305 = vsub.s32 1, %v304
    %v306 = vrot.slane %v264, %v305
    %v307 = vlaneseq
    %v308 = vshrl.u32 %v307, 7
    %v309 = vsub.s32 2, %v308
    %v310 = vrot.slane %v264, %v309
    %v311 = vlaneseq
    %v312 = vshrl.u32 %v311, 7
    %v313 = vsub.s32 3, %v312
    %v314 = vrot.slane %v264, %v313
    %v315 = vlaneseq
    %v316 = vshrl.u32 %v315, 7
    %v317 = vsub.s32 4, %v316
    %v318 = vrot.slane %v264, %v317
    %v319 = vlaneseq
    %v320 = vshrl.u32 %v319, 7
    %v321 = vsub.s32 5, %v320
    %v322 = vrot.slane %v264, %v321
    %v323 = vlaneseq
    %v324 = vshrl.u32 %v323, 7
    %v325 = vsub.s32 6, %v324
    %v326 = vrot.slane %v264, %v325
    %v327 = vlaneseq
    %v328 = vshrl.u32 %v327, 7
    %v329 = vsub.s32 7, %v328
    %v330 = vrot.slane %v264, %v329
    %v331 = vcombine.low %v270, %v274
    %v332 = vcombine.low %v278, %v282
    %v334 = vunpack.c.l.s4 1983009808
    %v335 = vunpack.c.0.s8 %v334
    %v336 = vlaneseq
    %v337 = vshrl.u32 %v336, 7
    %v338 = vsub.s32 %v335, %v337
    %v339 = vrot.slane %v331, %v338
    %v341 = vunpack.c.l.s4 1983009808
    %v342 = vunpack.c.0.s8 %v341
    %v343 = vlaneseq
    %v344 = vshrl.u32 %v343, 7
    %v345 = vsub.s32 %v342, %v344
    %v346 = vrot.slane %v332, %v345
    %v347 = vcombine.low %v339, %v346
    %v348 = vcombine.low %v286, %v290
    %v349 = vcombine.low %v294, %v298
    %v351 = vunpack.c.l.s4 1983009808
    %v352 = vunpack.c.0.s8 %v351
    %v353 = vlaneseq
    %v354 = vshrl.u32 %v353, 7
    %v355 = vsub.s32 %v352, %v354
    %v356 = vrot.slane %v348, %v355
    %v358 = vunpack.c.l.s4 1983009808
    %v359 = vunpack.c.0.s8 %v358
    %v360 = vlaneseq
    %v361 = vshrl.u32 %v360, 7
    %v362 = vsub.s32 %v359, %v361
    %v363 = vrot.slane %v349, %v362
    %v364 = vcombine.low %v356, %v363
    %v365 = vcombine.low %v302, %v306
    %v366 = vcombine.low %v310, %v314
    %v368 = vunpack.c.l.s4 1983009808
    %v369 = vunpack.c.0.s8 %v368
    %v370 = vlaneseq
    %v371 = vshrl.u32 %v370, 7
    %v372 = vsub.s32 %v369, %v371
    %v373 = vrot.slane %v365, %v372
    %v375 = vunpack.c.l.s4 1983009808
    %v376 = vunpack.c.0.s8 %v375
    %v377 = vlaneseq
    %v378 = vshrl.u32 %v377, 7
    %v379 = vsub.s32 %v376, %v378
    %v380 = vrot.slane %v366, %v379
    %v381 = vcombine.low %v373, %v380
    %v382 = vcombine.low %v318, %v322
    %v383 = vcombine.low %v326, %v330
    %v385 = vunpack.c.l.s4 1983009808
    %v386 = vunpack.c.0.s8 %v385
    %v387 = vlaneseq
    %v388 = vshrl.u32 %v387, 7
    %v389 = vsub.s32 %v386, %v388
    %v390 = vrot.slane %v382, %v389
    %v392 = vunpack.c.l.s4 1983009808
    %v393 = vunpack.c.0.s8 %v392
    %v394 = vlaneseq
    %v395 = vshrl.u32 %v394, 7
    %v396 = vsub.s32 %v393, %v395
    %v397 = vrot.slane %v383, %v396
    %v398 = vcombine.low %v390, %v397
    %v403 = vadd.f32 %v259, %v347
    %v404 = vadd.f32 %v260, %v364
    %v405 = vadd.f32 %v261, %v381
    %v406 = vadd.f32 %v262, %v398
    %vm407 = vcmp.gt.f32.partialorder %v403, 0.0
    %vm408 = vcmp.gt.f32.partialorder %v404, 0.0
    %vm409 = vcmp.gt.f32.partialorder %v405, 0.0
    %vm410 = vcmp.gt.f32.partialorder %v406, 0.0
    %v411 = vmul.f32 %v403, 0.2
    %v412 = vmul.f32 %v404, 0.2
    %v413 = vmul.f32 %v405, 0.2
    %v414 = vmul.f32 %v406, 0.2
    %v415 = vsel %vm407, %v403, %v411
    %v416 = vsel %vm408, %v404, %v412
    %v417 = vsel %vm409, %v405, %v413
    %v418 = vsel %vm410, %v406, %v414
    %v423 = vcombine.high %v415, %v415
    %v425 = vunpack.c.l.s4 1983009808
    %v426 = vunpack.c.0.s8 %v425
    %v427 = vlaneseq
    %v428 = vshrl.u32 %v427, 7
    %v429 = vsub.s32 %v426, %v428
    %v430 = vrot.slane %v415, %v429
    %v432 = vunpack.c.l.s4 1983009808
    %v433 = vunpack.c.0.s8 %v432
    %v434 = vlaneseq
    %v435 = vshrl.u32 %v434, 7
    %v436 = vsub.s32 %v433, %v435
    %v437 = vrot.slane %v423, %v436
    %v438 = vcombine.high %v430, %v430
    %v439 = vcombine.high %v437, %v437
    %v440 = vcombine.high %v416, %v416
    %v442 = vunpack.c.l.s4 1983009808
    %v443 = vunpack.c.0.s8 %v442
    %v444 = vlaneseq
    %v445 = vshrl.u32 %v444, 7
    %v446 = vsub.s32 %v443, %v445
    %v447 = vrot.slane %v416, %v446
    %v449 = vunpack.c.l.s4 1983009808
    %v450 = vunpack.c.0.s8 %v449
    %v451 = vlaneseq
    %v452 = vshrl.u32 %v451, 7
    %v453 = vsub.s32 %v450, %v452
    %v454 = vrot.slane %v440, %v453
    %v455 = vcombine.high %v447, %v447
    %v456 = vcombine.high %v454, %v454
    %v457 = vcombine.high %v417, %v417
    %v459 = vunpack.c.l.s4 1983009808
    %v460 = vunpack.c.0.s8 %v459
    %v461 = vlaneseq
    %v462 = vshrl.u32 %v461, 7
    %v463 = vsub.s32 %v460, %v462
    %v464 = vrot.slane %v417, %v463
    %v466 = vunpack.c.l.s4 1983009808
    %v467 = vunpack.c.0.s8 %v466
    %v468 = vlaneseq
    %v469 = vshrl.u32 %v468, 7
    %v470 = vsub.s32 %v467, %v469
    %v471 = vrot.slane %v457, %v470
    %v472 = vcombine.high %v464, %v464
    %v473 = vcombine.high %v471, %v471
    %v474 = vcombine.high %v418, %v418
    %v476 = vunpack.c.l.s4 1983009808
    %v477 = vunpack.c.0.s8 %v476
    %v478 = vlaneseq
    %v479 = vshrl.u32 %v478, 7
    %v480 = vsub.s32 %v477, %v479
    %v481 = vrot.slane %v418, %v480
    %v483 = vunpack.c.l.s4 1983009808
    %v484 = vunpack.c.0.s8 %v483
    %v485 = vlaneseq
    %v486 = vshrl.u32 %v485, 7
    %v487 = vsub.s32 %v484, %v486
    %v488 = vrot.slane %v474, %v487
    %v489 = vcombine.high %v481, %v481
    %v490 = vcombine.high %v488, %v488
    %v507 = vpack.c.bf16 %v430, %v430
    %v508 = vpack.c.bf16 %v438, %v438
    %v509 = vpack.c.bf16 %v437, %v437
    %v510 = vpack.c.bf16 %v439, %v439
    %v511 = vpack.c.bf16 %v447, %v447
    %v512 = vpack.c.bf16 %v455, %v455
    %v513 = vpack.c.bf16 %v454, %v454
    %v514 = vpack.c.bf16 %v456, %v456
    %v515 = vpack.c.bf16 %v464, %v464
    %v516 = vpack.c.bf16 %v472, %v472
    %v517 = vpack.c.bf16 %v471, %v471
    %v518 = vpack.c.bf16 %v473, %v473
    %v519 = vpack.c.bf16 %v481, %v481
    %v520 = vpack.c.bf16 %v489, %v489
    %v521 = vpack.c.bf16 %v488, %v488
    %v522 = vpack.c.bf16 %v490, %v490
    %v523 = vld [vmem:[#allocation2] sm:$0xff]
    %v524 = vld [vmem:[#allocation2 + $0x8] sm:$0xff]
    %v525 = vld [vmem:[#allocation3] sm:$0xff]
    %v526 = vld [vmem:[#allocation3 + $0x8] sm:$0xff]
    %v527 = vld [vmem:[#allocation3 + $0x10] sm:$0xff]
    %v528 = vld [vmem:[#allocation3 + $0x18] sm:$0xff]
    %v529 = vld [vmem:[#allocation3 + $0x20] sm:$0xff]
    %v530 = vld [vmem:[#allocation3 + $0x28] sm:$0xff]
    %v531 = vld [vmem:[#allocation3 + $0x30] sm:$0xff]
    %v532 = vld [vmem:[#allocation3 + $0x38] sm:$0xff]
    %v533 = vld [vmem:[#allocation3 + $0x40] sm:$0xff]
    %v534 = vld [vmem:[#allocation3 + $0x48] sm:$0xff]
    %v535 = vld [vmem:[#allocation3 + $0x50] sm:$0xff]
    %v536 = vld [vmem:[#allocation3 + $0x58] sm:$0xff]
    %v537 = vld [vmem:[#allocation3 + $0x60] sm:$0xff]
    %v538 = vld [vmem:[#allocation3 + $0x68] sm:$0xff]
    %v539 = vld [vmem:[#allocation3 + $0x70] sm:$0xff]
    %v540 = vld [vmem:[#allocation3 + $0x78] sm:$0xff]
    %v541 = vld [vmem:[#allocation3 + $0x80] sm:$0xff]
    %v542 = vld [vmem:[#allocation3 + $0x88] sm:$0xff]
    %v543 = vld [vmem:[#allocation3 + $0x90] sm:$0xff]
    %v544 = vld [vmem:[#allocation3 + $0x98] sm:$0xff]
    %v545 = vld [vmem:[#allocation3 + $0xa0] sm:$0xff]
    %v546 = vld [vmem:[#allocation3 + $0xa8] sm:$0xff]
    %v547 = vld [vmem:[#allocation3 + $0xb0] sm:$0xff]
    %v548 = vld [vmem:[#allocation3 + $0xb8] sm:$0xff]
    %v549 = vld [vmem:[#allocation3 + $0xc0] sm:$0xff]
    %v550 = vld [vmem:[#allocation3 + $0xc8] sm:$0xff]
    %v551 = vld [vmem:[#allocation3 + $0xd0] sm:$0xff]
    %v552 = vld [vmem:[#allocation3 + $0xd8] sm:$0xff]
    %v553 = vld [vmem:[#allocation3 + $0xe0] sm:$0xff]
    %v554 = vld [vmem:[#allocation3 + $0xe8] sm:$0xff]
    %v555 = vld [vmem:[#allocation3 + $0xf0] sm:$0xff]
    %v556 = vld [vmem:[#allocation3 + $0xf8] sm:$0xff]
    %v557 = vld [vmem:[#allocation3 + $0x100] sm:$0xff]
    %v558 = vld [vmem:[#allocation3 + $0x108] sm:$0xff]
    %v559 = vld [vmem:[#allocation3 + $0x110] sm:$0xff]
    %v560 = vld [vmem:[#allocation3 + $0x118] sm:$0xff]
    %v561 = vld [vmem:[#allocation3 + $0x120] sm:$0xff]
    %v562 = vld [vmem:[#allocation3 + $0x128] sm:$0xff]
    %v563 = vld [vmem:[#allocation3 + $0x130] sm:$0xff]
    %v564 = vld [vmem:[#allocation3 + $0x138] sm:$0xff]
    %v565 = vld [vmem:[#allocation3 + $0x140] sm:$0xff]
    %v566 = vld [vmem:[#allocation3 + $0x148] sm:$0xff]
    %v567 = vld [vmem:[#allocation3 + $0x150] sm:$0xff]
    %v568 = vld [vmem:[#allocation3 + $0x158] sm:$0xff]
    %v569 = vld [vmem:[#allocation3 + $0x160] sm:$0xff]
    %v570 = vld [vmem:[#allocation3 + $0x168] sm:$0xff]
    %v571 = vld [vmem:[#allocation3 + $0x170] sm:$0xff]
    %v572 = vld [vmem:[#allocation3 + $0x178] sm:$0xff]
    %v573 = vld [vmem:[#allocation3 + $0x180] sm:$0xff]
    %v574 = vld [vmem:[#allocation3 + $0x188] sm:$0xff]
    %v575 = vld [vmem:[#allocation3 + $0x190] sm:$0xff]
    %v576 = vld [vmem:[#allocation3 + $0x198] sm:$0xff]
    %v577 = vld [vmem:[#allocation3 + $0x1a0] sm:$0xff]
    %v578 = vld [vmem:[#allocation3 + $0x1a8] sm:$0xff]
    %v579 = vld [vmem:[#allocation3 + $0x1b0] sm:$0xff]
    %v580 = vld [vmem:[#allocation3 + $0x1b8] sm:$0xff]
    %v581 = vld [vmem:[#allocation3 + $0x1c0] sm:$0xff]
    %v582 = vld [vmem:[#allocation3 + $0x1c8] sm:$0xff]
    %v583 = vld [vmem:[#allocation3 + $0x1d0] sm:$0xff]
    %v584 = vld [vmem:[#allocation3 + $0x1d8] sm:$0xff]
    %v585 = vld [vmem:[#allocation3 + $0x1e0] sm:$0xff]
    %v586 = vld [vmem:[#allocation3 + $0x1e8] sm:$0xff]
    %v587 = vld [vmem:[#allocation3 + $0x1f0] sm:$0xff]
    %v588 = vld [vmem:[#allocation3 + $0x1f8] sm:$0xff]
    %v589 = vld [vmem:[#allocation3 + $0x200] sm:$0xff]
    %v590 = vld [vmem:[#allocation3 + $0x208] sm:$0xff]
    %v591 = vld [vmem:[#allocation3 + $0x210] sm:$0xff]
    %v592 = vld [vmem:[#allocation3 + $0x218] sm:$0xff]
    %v593 = vld [vmem:[#allocation3 + $0x220] sm:$0xff]
    %v594 = vld [vmem:[#allocation3 + $0x228] sm:$0xff]
    %v595 = vld [vmem:[#allocation3 + $0x230] sm:$0xff]
    %v596 = vld [vmem:[#allocation3 + $0x238] sm:$0xff]
    %v597 = vld [vmem:[#allocation3 + $0x240] sm:$0xff]
    %v598 = vld [vmem:[#allocation3 + $0x248] sm:$0xff]
    %v599 = vld [vmem:[#allocation3 + $0x250] sm:$0xff]
    %v600 = vld [vmem:[#allocation3 + $0x258] sm:$0xff]
    %v601 = vld [vmem:[#allocation3 + $0x260] sm:$0xff]
    %v602 = vld [vmem:[#allocation3 + $0x268] sm:$0xff]
    %v603 = vld [vmem:[#allocation3 + $0x270] sm:$0xff]
    %v604 = vld [vmem:[#allocation3 + $0x278] sm:$0xff]
    %v605 = vld [vmem:[#allocation3 + $0x280] sm:$0xff]
    %v606 = vld [vmem:[#allocation3 + $0x288] sm:$0xff]
    %v607 = vld [vmem:[#allocation3 + $0x290] sm:$0xff]
    %v608 = vld [vmem:[#allocation3 + $0x298] sm:$0xff]
    %v609 = vld [vmem:[#allocation3 + $0x2a0] sm:$0xff]
    %v610 = vld [vmem:[#allocation3 + $0x2a8] sm:$0xff]
    %v611 = vld [vmem:[#allocation3 + $0x2b0] sm:$0xff]
    %v612 = vld [vmem:[#allocation3 + $0x2b8] sm:$0xff]
    %v613 = vld [vmem:[#allocation3 + $0x2c0] sm:$0xff]
    %v614 = vld [vmem:[#allocation3 + $0x2c8] sm:$0xff]
    %v615 = vld [vmem:[#allocation3 + $0x2d0] sm:$0xff]
    %v616 = vld [vmem:[#allocation3 + $0x2d8] sm:$0xff]
    %v617 = vld [vmem:[#allocation3 + $0x2e0] sm:$0xff]
    %v618 = vld [vmem:[#allocation3 + $0x2e8] sm:$0xff]
    %v619 = vld [vmem:[#allocation3 + $0x2f0] sm:$0xff]
    %v620 = vld [vmem:[#allocation3 + $0x2f8] sm:$0xff]
    %v621 = vld [vmem:[#allocation3 + $0x300] sm:$0xff]
    %v622 = vld [vmem:[#allocation3 + $0x308] sm:$0xff]
    %v623 = vld [vmem:[#allocation3 + $0x310] sm:$0xff]
    %v624 = vld [vmem:[#allocation3 + $0x318] sm:$0xff]
    %v625 = vld [vmem:[#allocation3 + $0x320] sm:$0xff]
    %v626 = vld [vmem:[#allocation3 + $0x328] sm:$0xff]
    %v627 = vld [vmem:[#allocation3 + $0x330] sm:$0xff]
    %v628 = vld [vmem:[#allocation3 + $0x338] sm:$0xff]
    %v629 = vld [vmem:[#allocation3 + $0x340] sm:$0xff]
    %v630 = vld [vmem:[#allocation3 + $0x348] sm:$0xff]
    %v631 = vld [vmem:[#allocation3 + $0x350] sm:$0xff]
    %v632 = vld [vmem:[#allocation3 + $0x358] sm:$0xff]
    %v633 = vld [vmem:[#allocation3 + $0x360] sm:$0xff]
    %v634 = vld [vmem:[#allocation3 + $0x368] sm:$0xff]
    %v635 = vld [vmem:[#allocation3 + $0x370] sm:$0xff]
    %v636 = vld [vmem:[#allocation3 + $0x378] sm:$0xff]
    %v637 = vld [vmem:[#allocation3 + $0x380] sm:$0xff]
    %v638 = vld [vmem:[#allocation3 + $0x388] sm:$0xff]
    %v639 = vld [vmem:[#allocation3 + $0x390] sm:$0xff]
    %v640 = vld [vmem:[#allocation3 + $0x398] sm:$0xff]
    %v641 = vld [vmem:[#allocation3 + $0x3a0] sm:$0xff]
    %v642 = vld [vmem:[#allocation3 + $0x3a8] sm:$0xff]
    %v643 = vld [vmem:[#allocation3 + $0x3b0] sm:$0xff]
    %v644 = vld [vmem:[#allocation3 + $0x3b8] sm:$0xff]
    %v645 = vld [vmem:[#allocation3 + $0x3c0] sm:$0xff]
    %v646 = vld [vmem:[#allocation3 + $0x3c8] sm:$0xff]
    %v647 = vld [vmem:[#allocation3 + $0x3d0] sm:$0xff]
    %v648 = vld [vmem:[#allocation3 + $0x3d8] sm:$0xff]
    %v649 = vld [vmem:[#allocation3 + $0x3e0] sm:$0xff]
    %v650 = vld [vmem:[#allocation3 + $0x3e8] sm:$0xff]
    %v651 = vld [vmem:[#allocation3 + $0x3f0] sm:$0xff]
    %v652 = vld [vmem:[#allocation3 + $0x3f8] sm:$0xff]
    %v653 = vld [vmem:[#allocation3 + $0x400] sm:$0xff]
    %v654 = vld [vmem:[#allocation3 + $0x408] sm:$0xff]
    %v655 = vld [vmem:[#allocation3 + $0x410] sm:$0xff]
    %v656 = vld [vmem:[#allocation3 + $0x418] sm:$0xff]
    %v657 = vld [vmem:[#allocation3 + $0x420] sm:$0xff]
    %v658 = vld [vmem:[#allocation3 + $0x428] sm:$0xff]
    %v659 = vld [vmem:[#allocation3 + $0x430] sm:$0xff]
    %v660 = vld [vmem:[#allocation3 + $0x438] sm:$0xff]
    %v661 = vld [vmem:[#allocation3 + $0x440] sm:$0xff]
    %v662 = vld [vmem:[#allocation3 + $0x448] sm:$0xff]
    %v663 = vld [vmem:[#allocation3 + $0x450] sm:$0xff]
    %v664 = vld [vmem:[#allocation3 + $0x458] sm:$0xff]
    %v665 = vld [vmem:[#allocation3 + $0x460] sm:$0xff]
    %v666 = vld [vmem:[#allocation3 + $0x468] sm:$0xff]
    %v667 = vld [vmem:[#allocation3 + $0x470] sm:$0xff]
    %v668 = vld [vmem:[#allocation3 + $0x478] sm:$0xff]
    %v669 = vld [vmem:[#allocation3 + $0x480] sm:$0xff]
    %v670 = vld [vmem:[#allocation3 + $0x488] sm:$0xff]
    %v671 = vld [vmem:[#allocation3 + $0x490] sm:$0xff]
    %v672 = vld [vmem:[#allocation3 + $0x498] sm:$0xff]
    %v673 = vld [vmem:[#allocation3 + $0x4a0] sm:$0xff]
    %v674 = vld [vmem:[#allocation3 + $0x4a8] sm:$0xff]
    %v675 = vld [vmem:[#allocation3 + $0x4b0] sm:$0xff]
    %v676 = vld [vmem:[#allocation3 + $0x4b8] sm:$0xff]
    %v677 = vld [vmem:[#allocation3 + $0x4c0] sm:$0xff]
    %v678 = vld [vmem:[#allocation3 + $0x4c8] sm:$0xff]
    %v679 = vld [vmem:[#allocation3 + $0x4d0] sm:$0xff]
    %v680 = vld [vmem:[#allocation3 + $0x4d8] sm:$0xff]
    %v681 = vld [vmem:[#allocation3 + $0x4e0] sm:$0xff]
    %v682 = vld [vmem:[#allocation3 + $0x4e8] sm:$0xff]
    %v683 = vld [vmem:[#allocation3 + $0x4f0] sm:$0xff]
    %v684 = vld [vmem:[#allocation3 + $0x4f8] sm:$0xff]
    %v685 = vld [vmem:[#allocation3 + $0x500] sm:$0xff]
    %v686 = vld [vmem:[#allocation3 + $0x508] sm:$0xff]
    %v687 = vld [vmem:[#allocation3 + $0x510] sm:$0xff]
    %v688 = vld [vmem:[#allocation3 + $0x518] sm:$0xff]
    %v689 = vld [vmem:[#allocation3 + $0x520] sm:$0xff]
    %v690 = vld [vmem:[#allocation3 + $0x528] sm:$0xff]
    %v691 = vld [vmem:[#allocation3 + $0x530] sm:$0xff]
    %v692 = vld [vmem:[#allocation3 + $0x538] sm:$0xff]
    %v693 = vld [vmem:[#allocation3 + $0x540] sm:$0xff]
    %v694 = vld [vmem:[#allocation3 + $0x548] sm:$0xff]
    %v695 = vld [vmem:[#allocation3 + $0x550] sm:$0xff]
    %v696 = vld [vmem:[#allocation3 + $0x558] sm:$0xff]
    %v697 = vld [vmem:[#allocation3 + $0x560] sm:$0xff]
    %v698 = vld [vmem:[#allocation3 + $0x568] sm:$0xff]
    %v699 = vld [vmem:[#allocation3 + $0x570] sm:$0xff]
    %v700 = vld [vmem:[#allocation3 + $0x578] sm:$0xff]
    %v701 = vld [vmem:[#allocation3 + $0x580] sm:$0xff]
    %v702 = vld [vmem:[#allocation3 + $0x588] sm:$0xff]
    %v703 = vld [vmem:[#allocation3 + $0x590] sm:$0xff]
    %v704 = vld [vmem:[#allocation3 + $0x598] sm:$0xff]
    %v705 = vld [vmem:[#allocation3 + $0x5a0] sm:$0xff]
    %v706 = vld [vmem:[#allocation3 + $0x5a8] sm:$0xff]
    %v707 = vld [vmem:[#allocation3 + $0x5b0] sm:$0xff]
    %v708 = vld [vmem:[#allocation3 + $0x5b8] sm:$0xff]
    %v709 = vld [vmem:[#allocation3 + $0x5c0] sm:$0xff]
    %v710 = vld [vmem:[#allocation3 + $0x5c8] sm:$0xff]
    %v711 = vld [vmem:[#allocation3 + $0x5d0] sm:$0xff]
    %v712 = vld [vmem:[#allocation3 + $0x5d8] sm:$0xff]
    %v713 = vld [vmem:[#allocation3 + $0x5e0] sm:$0xff]
    %v714 = vld [vmem:[#allocation3 + $0x5e8] sm:$0xff]
    %v715 = vld [vmem:[#allocation3 + $0x5f0] sm:$0xff]
    %v716 = vld [vmem:[#allocation3 + $0x5f8] sm:$0xff]
    %v717 = vld [vmem:[#allocation3 + $0x600] sm:$0xff]
    %v718 = vld [vmem:[#allocation3 + $0x608] sm:$0xff]
    %v719 = vld [vmem:[#allocation3 + $0x610] sm:$0xff]
    %v720 = vld [vmem:[#allocation3 + $0x618] sm:$0xff]
    %v721 = vld [vmem:[#allocation3 + $0x620] sm:$0xff]
    %v722 = vld [vmem:[#allocation3 + $0x628] sm:$0xff]
    %v723 = vld [vmem:[#allocation3 + $0x630] sm:$0xff]
    %v724 = vld [vmem:[#allocation3 + $0x638] sm:$0xff]
    %v725 = vld [vmem:[#allocation3 + $0x640] sm:$0xff]
    %v726 = vld [vmem:[#allocation3 + $0x648] sm:$0xff]
    %v727 = vld [vmem:[#allocation3 + $0x650] sm:$0xff]
    %v728 = vld [vmem:[#allocation3 + $0x658] sm:$0xff]
    %v729 = vld [vmem:[#allocation3 + $0x660] sm:$0xff]
    %v730 = vld [vmem:[#allocation3 + $0x668] sm:$0xff]
    %v731 = vld [vmem:[#allocation3 + $0x670] sm:$0xff]
    %v732 = vld [vmem:[#allocation3 + $0x678] sm:$0xff]
    %v733 = vld [vmem:[#allocation3 + $0x680] sm:$0xff]
    %v734 = vld [vmem:[#allocation3 + $0x688] sm:$0xff]
    %v735 = vld [vmem:[#allocation3 + $0x690] sm:$0xff]
    %v736 = vld [vmem:[#allocation3 + $0x698] sm:$0xff]
    %v737 = vld [vmem:[#allocation3 + $0x6a0] sm:$0xff]
    %v738 = vld [vmem:[#allocation3 + $0x6a8] sm:$0xff]
    %v739 = vld [vmem:[#allocation3 + $0x6b0] sm:$0xff]
    %v740 = vld [vmem:[#allocation3 + $0x6b8] sm:$0xff]
    %v741 = vld [vmem:[#allocation3 + $0x6c0] sm:$0xff]
    %v742 = vld [vmem:[#allocation3 + $0x6c8] sm:$0xff]
    %v743 = vld [vmem:[#allocation3 + $0x6d0] sm:$0xff]
    %v744 = vld [vmem:[#allocation3 + $0x6d8] sm:$0xff]
    %v745 = vld [vmem:[#allocation3 + $0x6e0] sm:$0xff]
    %v746 = vld [vmem:[#allocation3 + $0x6e8] sm:$0xff]
    %v747 = vld [vmem:[#allocation3 + $0x6f0] sm:$0xff]
    %v748 = vld [vmem:[#allocation3 + $0x6f8] sm:$0xff]
    %v749 = vld [vmem:[#allocation3 + $0x700] sm:$0xff]
    %v750 = vld [vmem:[#allocation3 + $0x708] sm:$0xff]
    %v751 = vld [vmem:[#allocation3 + $0x710] sm:$0xff]
    %v752 = vld [vmem:[#allocation3 + $0x718] sm:$0xff]
    %v753 = vld [vmem:[#allocation3 + $0x720] sm:$0xff]
    %v754 = vld [vmem:[#allocation3 + $0x728] sm:$0xff]
    %v755 = vld [vmem:[#allocation3 + $0x730] sm:$0xff]
    %v756 = vld [vmem:[#allocation3 + $0x738] sm:$0xff]
    %v757 = vld [vmem:[#allocation3 + $0x740] sm:$0xff]
    %v758 = vld [vmem:[#allocation3 + $0x748] sm:$0xff]
    %v759 = vld [vmem:[#allocation3 + $0x750] sm:$0xff]
    %v760 = vld [vmem:[#allocation3 + $0x758] sm:$0xff]
    %v761 = vld [vmem:[#allocation3 + $0x760] sm:$0xff]
    %v762 = vld [vmem:[#allocation3 + $0x768] sm:$0xff]
    %v763 = vld [vmem:[#allocation3 + $0x770] sm:$0xff]
    %v764 = vld [vmem:[#allocation3 + $0x778] sm:$0xff]
    %v765 = vld [vmem:[#allocation3 + $0x780] sm:$0xff]
    %v766 = vld [vmem:[#allocation3 + $0x788] sm:$0xff]
    %v767 = vld [vmem:[#allocation3 + $0x790] sm:$0xff]
    %v768 = vld [vmem:[#allocation3 + $0x798] sm:$0xff]
    %v769 = vld [vmem:[#allocation3 + $0x7a0] sm:$0xff]
    %v770 = vld [vmem:[#allocation3 + $0x7a8] sm:$0xff]
    %v771 = vld [vmem:[#allocation3 + $0x7b0] sm:$0xff]
    %v772 = vld [vmem:[#allocation3 + $0x7b8] sm:$0xff]
    %v773 = vld [vmem:[#allocation3 + $0x7c0] sm:$0xff]
    %v774 = vld [vmem:[#allocation3 + $0x7c8] sm:$0xff]
    %v775 = vld [vmem:[#allocation3 + $0x7d0] sm:$0xff]
    %v776 = vld [vmem:[#allocation3 + $0x7d8] sm:$0xff]
    %v777 = vld [vmem:[#allocation3 + $0x7e0] sm:$0xff]
    %v778 = vld [vmem:[#allocation3 + $0x7e8] sm:$0xff]
    %v779 = vld [vmem:[#allocation3 + $0x7f0] sm:$0xff]
    %v780 = vld [vmem:[#allocation3 + $0x7f8] sm:$0xff]
    %v781 = vld [vmem:[#allocation3 + $0x800] sm:$0xff]
    %v782 = vld [vmem:[#allocation3 + $0x808] sm:$0xff]
    %v783 = vld [vmem:[#allocation3 + $0x810] sm:$0xff]
    %v784 = vld [vmem:[#allocation3 + $0x818] sm:$0xff]
    %v785 = vld [vmem:[#allocation3 + $0x820] sm:$0xff]
    %v786 = vld [vmem:[#allocation3 + $0x828] sm:$0xff]
    %v787 = vld [vmem:[#allocation3 + $0x830] sm:$0xff]
    %v788 = vld [vmem:[#allocation3 + $0x838] sm:$0xff]
    %v789 = vld [vmem:[#allocation3 + $0x840] sm:$0xff]
    %v790 = vld [vmem:[#allocation3 + $0x848] sm:$0xff]
    %v791 = vld [vmem:[#allocation3 + $0x850] sm:$0xff]
    %v792 = vld [vmem:[#allocation3 + $0x858] sm:$0xff]
    %v793 = vld [vmem:[#allocation3 + $0x860] sm:$0xff]
    %v794 = vld [vmem:[#allocation3 + $0x868] sm:$0xff]
    %v795 = vld [vmem:[#allocation3 + $0x870] sm:$0xff]
    %v796 = vld [vmem:[#allocation3 + $0x878] sm:$0xff]
    %v797 = vld [vmem:[#allocation3 + $0x880] sm:$0xff]
    %v798 = vld [vmem:[#allocation3 + $0x888] sm:$0xff]
    %v799 = vld [vmem:[#allocation3 + $0x890] sm:$0xff]
    %v800 = vld [vmem:[#allocation3 + $0x898] sm:$0xff]
    %v801 = vld [vmem:[#allocation3 + $0x8a0] sm:$0xff]
    %v802 = vld [vmem:[#allocation3 + $0x8a8] sm:$0xff]
    %v803 = vld [vmem:[#allocation3 + $0x8b0] sm:$0xff]
    %v804 = vld [vmem:[#allocation3 + $0x8b8] sm:$0xff]
    %v805 = vld [vmem:[#allocation3 + $0x8c0] sm:$0xff]
    %v806 = vld [vmem:[#allocation3 + $0x8c8] sm:$0xff]
    %v807 = vld [vmem:[#allocation3 + $0x8d0] sm:$0xff]
    %v808 = vld [vmem:[#allocation3 + $0x8d8] sm:$0xff]
    %v809 = vld [vmem:[#allocation3 + $0x8e0] sm:$0xff]
    %v810 = vld [vmem:[#allocation3 + $0x8e8] sm:$0xff]
    %v811 = vld [vmem:[#allocation3 + $0x8f0] sm:$0xff]
    %v812 = vld [vmem:[#allocation3 + $0x8f8] sm:$0xff]
    %v813 = vld [vmem:[#allocation3 + $0x900] sm:$0xff]
    %v814 = vld [vmem:[#allocation3 + $0x908] sm:$0xff]
    %v815 = vld [vmem:[#allocation3 + $0x910] sm:$0xff]
    %v816 = vld [vmem:[#allocation3 + $0x918] sm:$0xff]
    %v817 = vld [vmem:[#allocation3 + $0x920] sm:$0xff]
    %v818 = vld [vmem:[#allocation3 + $0x928] sm:$0xff]
    %v819 = vld [vmem:[#allocation3 + $0x930] sm:$0xff]
    %v820 = vld [vmem:[#allocation3 + $0x938] sm:$0xff]
    %v821 = vld [vmem:[#allocation3 + $0x940] sm:$0xff]
    %v822 = vld [vmem:[#allocation3 + $0x948] sm:$0xff]
    %v823 = vld [vmem:[#allocation3 + $0x950] sm:$0xff]
    %v824 = vld [vmem:[#allocation3 + $0x958] sm:$0xff]
    %v825 = vld [vmem:[#allocation3 + $0x960] sm:$0xff]
    %v826 = vld [vmem:[#allocation3 + $0x968] sm:$0xff]
    %v827 = vld [vmem:[#allocation3 + $0x970] sm:$0xff]
    %v828 = vld [vmem:[#allocation3 + $0x978] sm:$0xff]
    %v829 = vld [vmem:[#allocation3 + $0x980] sm:$0xff]
    %v830 = vld [vmem:[#allocation3 + $0x988] sm:$0xff]
    %v831 = vld [vmem:[#allocation3 + $0x990] sm:$0xff]
    %v832 = vld [vmem:[#allocation3 + $0x998] sm:$0xff]
    %v833 = vld [vmem:[#allocation3 + $0x9a0] sm:$0xff]
    %v834 = vld [vmem:[#allocation3 + $0x9a8] sm:$0xff]
    %v835 = vld [vmem:[#allocation3 + $0x9b0] sm:$0xff]
    %v836 = vld [vmem:[#allocation3 + $0x9b8] sm:$0xff]
    %v837 = vld [vmem:[#allocation3 + $0x9c0] sm:$0xff]
    %v838 = vld [vmem:[#allocation3 + $0x9c8] sm:$0xff]
    %v839 = vld [vmem:[#allocation3 + $0x9d0] sm:$0xff]
    %v840 = vld [vmem:[#allocation3 + $0x9d8] sm:$0xff]
    %v841 = vld [vmem:[#allocation3 + $0x9e0] sm:$0xff]
    %v842 = vld [vmem:[#allocation3 + $0x9e8] sm:$0xff]
    %v843 = vld [vmem:[#allocation3 + $0x9f0] sm:$0xff]
    %v844 = vld [vmem:[#allocation3 + $0x9f8] sm:$0xff]
    %v845 = vld [vmem:[#allocation3 + $0xa00] sm:$0xff]
    %v846 = vld [vmem:[#allocation3 + $0xa08] sm:$0xff]
    %v847 = vld [vmem:[#allocation3 + $0xa10] sm:$0xff]
    %v848 = vld [vmem:[#allocation3 + $0xa18] sm:$0xff]
    %v849 = vld [vmem:[#allocation3 + $0xa20] sm:$0xff]
    %v850 = vld [vmem:[#allocation3 + $0xa28] sm:$0xff]
    %v851 = vld [vmem:[#allocation3 + $0xa30] sm:$0xff]
    %v852 = vld [vmem:[#allocation3 + $0xa38] sm:$0xff]
    %v853 = vld [vmem:[#allocation3 + $0xa40] sm:$0xff]
    %v854 = vld [vmem:[#allocation3 + $0xa48] sm:$0xff]
    %v855 = vld [vmem:[#allocation3 + $0xa50] sm:$0xff]
    %v856 = vld [vmem:[#allocation3 + $0xa58] sm:$0xff]
    %v857 = vld [vmem:[#allocation3 + $0xa60] sm:$0xff]
    %v858 = vld [vmem:[#allocation3 + $0xa68] sm:$0xff]
    %v859 = vld [vmem:[#allocation3 + $0xa70] sm:$0xff]
    %v860 = vld [vmem:[#allocation3 + $0xa78] sm:$0xff]
    %v861 = vld [vmem:[#allocation3 + $0xa80] sm:$0xff]
    %v862 = vld [vmem:[#allocation3 + $0xa88] sm:$0xff]
    %v863 = vld [vmem:[#allocation3 + $0xa90] sm:$0xff]
    %v864 = vld [vmem:[#allocation3 + $0xa98] sm:$0xff]
    %v865 = vld [vmem:[#allocation3 + $0xaa0] sm:$0xff]
    %v866 = vld [vmem:[#allocation3 + $0xaa8] sm:$0xff]
    %v867 = vld [vmem:[#allocation3 + $0xab0] sm:$0xff]
    %v868 = vld [vmem:[#allocation3 + $0xab8] sm:$0xff]
    %v869 = vld [vmem:[#allocation3 + $0xac0] sm:$0xff]
    %v870 = vld [vmem:[#allocation3 + $0xac8] sm:$0xff]
    %v871 = vld [vmem:[#allocation3 + $0xad0] sm:$0xff]
    %v872 = vld [vmem:[#allocation3 + $0xad8] sm:$0xff]
    %v873 = vld [vmem:[#allocation3 + $0xae0] sm:$0xff]
    %v874 = vld [vmem:[#allocation3 + $0xae8] sm:$0xff]
    %v875 = vld [vmem:[#allocation3 + $0xaf0] sm:$0xff]
    %v876 = vld [vmem:[#allocation3 + $0xaf8] sm:$0xff]
    %v877 = vld [vmem:[#allocation3 + $0xb00] sm:$0xff]
    %v878 = vld [vmem:[#allocation3 + $0xb08] sm:$0xff]
    %v879 = vld [vmem:[#allocation3 + $0xb10] sm:$0xff]
    %v880 = vld [vmem:[#allocation3 + $0xb18] sm:$0xff]
    %v881 = vld [vmem:[#allocation3 + $0xb20] sm:$0xff]
    %v882 = vld [vmem:[#allocation3 + $0xb28] sm:$0xff]
    %v883 = vld [vmem:[#allocation3 + $0xb30] sm:$0xff]
    %v884 = vld [vmem:[#allocation3 + $0xb38] sm:$0xff]
    %v885 = vld [vmem:[#allocation3 + $0xb40] sm:$0xff]
    %v886 = vld [vmem:[#allocation3 + $0xb48] sm:$0xff]
    %v887 = vld [vmem:[#allocation3 + $0xb50] sm:$0xff]
    %v888 = vld [vmem:[#allocation3 + $0xb58] sm:$0xff]
    %v889 = vld [vmem:[#allocation3 + $0xb60] sm:$0xff]
    %v890 = vld [vmem:[#allocation3 + $0xb68] sm:$0xff]
    %v891 = vld [vmem:[#allocation3 + $0xb70] sm:$0xff]
    %v892 = vld [vmem:[#allocation3 + $0xb78] sm:$0xff]
    %v893 = vld [vmem:[#allocation3 + $0xb80] sm:$0xff]
    %v894 = vld [vmem:[#allocation3 + $0xb88] sm:$0xff]
    %v895 = vld [vmem:[#allocation3 + $0xb90] sm:$0xff]
    %v896 = vld [vmem:[#allocation3 + $0xb98] sm:$0xff]
    %v897 = vld [vmem:[#allocation3 + $0xba0] sm:$0xff]
    %v898 = vld [vmem:[#allocation3 + $0xba8] sm:$0xff]
    %v899 = vld [vmem:[#allocation3 + $0xbb0] sm:$0xff]
    %v900 = vld [vmem:[#allocation3 + $0xbb8] sm:$0xff]
    %v901 = vld [vmem:[#allocation3 + $0xbc0] sm:$0xff]
    %v902 = vld [vmem:[#allocation3 + $0xbc8] sm:$0xff]
    %v903 = vld [vmem:[#allocation3 + $0xbd0] sm:$0xff]
    %v904 = vld [vmem:[#allocation3 + $0xbd8] sm:$0xff]
    %v905 = vld [vmem:[#allocation3 + $0xbe0] sm:$0xff]
    %v906 = vld [vmem:[#allocation3 + $0xbe8] sm:$0xff]
    %v907 = vld [vmem:[#allocation3 + $0xbf0] sm:$0xff]
    %v908 = vld [vmem:[#allocation3 + $0xbf8] sm:$0xff]
    %v909 = vld [vmem:[#allocation3 + $0xc00] sm:$0xff]
    %v910 = vld [vmem:[#allocation3 + $0xc08] sm:$0xff]
    %v911 = vld [vmem:[#allocation3 + $0xc10] sm:$0xff]
    %v912 = vld [vmem:[#allocation3 + $0xc18] sm:$0xff]
    %v913 = vld [vmem:[#allocation3 + $0xc20] sm:$0xff]
    %v914 = vld [vmem:[#allocation3 + $0xc28] sm:$0xff]
    %v915 = vld [vmem:[#allocation3 + $0xc30] sm:$0xff]
    %v916 = vld [vmem:[#allocation3 + $0xc38] sm:$0xff]
    %v917 = vld [vmem:[#allocation3 + $0xc40] sm:$0xff]
    %v918 = vld [vmem:[#allocation3 + $0xc48] sm:$0xff]
    %v919 = vld [vmem:[#allocation3 + $0xc50] sm:$0xff]
    %v920 = vld [vmem:[#allocation3 + $0xc58] sm:$0xff]
    %v921 = vld [vmem:[#allocation3 + $0xc60] sm:$0xff]
    %v922 = vld [vmem:[#allocation3 + $0xc68] sm:$0xff]
    %v923 = vld [vmem:[#allocation3 + $0xc70] sm:$0xff]
    %v924 = vld [vmem:[#allocation3 + $0xc78] sm:$0xff]
    %v925 = vld [vmem:[#allocation3 + $0xc80] sm:$0xff]
    %v926 = vld [vmem:[#allocation3 + $0xc88] sm:$0xff]
    %v927 = vld [vmem:[#allocation3 + $0xc90] sm:$0xff]
    %v928 = vld [vmem:[#allocation3 + $0xc98] sm:$0xff]
    %v929 = vld [vmem:[#allocation3 + $0xca0] sm:$0xff]
    %v930 = vld [vmem:[#allocation3 + $0xca8] sm:$0xff]
    %v931 = vld [vmem:[#allocation3 + $0xcb0] sm:$0xff]
    %v932 = vld [vmem:[#allocation3 + $0xcb8] sm:$0xff]
    %v933 = vld [vmem:[#allocation3 + $0xcc0] sm:$0xff]
    %v934 = vld [vmem:[#allocation3 + $0xcc8] sm:$0xff]
    %v935 = vld [vmem:[#allocation3 + $0xcd0] sm:$0xff]
    %v936 = vld [vmem:[#allocation3 + $0xcd8] sm:$0xff]
    %v937 = vld [vmem:[#allocation3 + $0xce0] sm:$0xff]
    %v938 = vld [vmem:[#allocation3 + $0xce8] sm:$0xff]
    %v939 = vld [vmem:[#allocation3 + $0xcf0] sm:$0xff]
    %v940 = vld [vmem:[#allocation3 + $0xcf8] sm:$0xff]
    %v941 = vld [vmem:[#allocation3 + $0xd00] sm:$0xff]
    %v942 = vld [vmem:[#allocation3 + $0xd08] sm:$0xff]
    %v943 = vld [vmem:[#allocation3 + $0xd10] sm:$0xff]
    %v944 = vld [vmem:[#allocation3 + $0xd18] sm:$0xff]
    %v945 = vld [vmem:[#allocation3 + $0xd20] sm:$0xff]
    %v946 = vld [vmem:[#allocation3 + $0xd28] sm:$0xff]
    %v947 = vld [vmem:[#allocation3 + $0xd30] sm:$0xff]
    %v948 = vld [vmem:[#allocation3 + $0xd38] sm:$0xff]
    %v949 = vld [vmem:[#allocation3 + $0xd40] sm:$0xff]
    %v950 = vld [vmem:[#allocation3 + $0xd48] sm:$0xff]
    %v951 = vld [vmem:[#allocation3 + $0xd50] sm:$0xff]
    %v952 = vld [vmem:[#allocation3 + $0xd58] sm:$0xff]
    %v953 = vld [vmem:[#allocation3 + $0xd60] sm:$0xff]
    %v954 = vld [vmem:[#allocation3 + $0xd68] sm:$0xff]
    %v955 = vld [vmem:[#allocation3 + $0xd70] sm:$0xff]
    %v956 = vld [vmem:[#allocation3 + $0xd78] sm:$0xff]
    %v957 = vld [vmem:[#allocation3 + $0xd80] sm:$0xff]
    %v958 = vld [vmem:[#allocation3 + $0xd88] sm:$0xff]
    %v959 = vld [vmem:[#allocation3 + $0xd90] sm:$0xff]
    %v960 = vld [vmem:[#allocation3 + $0xd98] sm:$0xff]
    %v961 = vld [vmem:[#allocation3 + $0xda0] sm:$0xff]
    %v962 = vld [vmem:[#allocation3 + $0xda8] sm:$0xff]
    %v963 = vld [vmem:[#allocation3 + $0xdb0] sm:$0xff]
    %v964 = vld [vmem:[#allocation3 + $0xdb8] sm:$0xff]
    %v965 = vld [vmem:[#allocation3 + $0xdc0] sm:$0xff]
    %v966 = vld [vmem:[#allocation3 + $0xdc8] sm:$0xff]
    %v967 = vld [vmem:[#allocation3 + $0xdd0] sm:$0xff]
    %v968 = vld [vmem:[#allocation3 + $0xdd8] sm:$0xff]
    %v969 = vld [vmem:[#allocation3 + $0xde0] sm:$0xff]
    %v970 = vld [vmem:[#allocation3 + $0xde8] sm:$0xff]
    %v971 = vld [vmem:[#allocation3 + $0xdf0] sm:$0xff]
    %v972 = vld [vmem:[#allocation3 + $0xdf8] sm:$0xff]
    %v973 = vld [vmem:[#allocation3 + $0xe00] sm:$0xff]
    %v974 = vld [vmem:[#allocation3 + $0xe08] sm:$0xff]
    %v975 = vld [vmem:[#allocation3 + $0xe10] sm:$0xff]
    %v976 = vld [vmem:[#allocation3 + $0xe18] sm:$0xff]
    %v977 = vld [vmem:[#allocation3 + $0xe20] sm:$0xff]
    %v978 = vld [vmem:[#allocation3 + $0xe28] sm:$0xff]
    %v979 = vld [vmem:[#allocation3 + $0xe30] sm:$0xff]
    %v980 = vld [vmem:[#allocation3 + $0xe38] sm:$0xff]
    %v981 = vld [vmem:[#allocation3 + $0xe40] sm:$0xff]
    %v982 = vld [vmem:[#allocation3 + $0xe48] sm:$0xff]
    %v983 = vld [vmem:[#allocation3 + $0xe50] sm:$0xff]
    %v984 = vld [vmem:[#allocation3 + $0xe58] sm:$0xff]
    %v985 = vld [vmem:[#allocation3 + $0xe60] sm:$0xff]
    %v986 = vld [vmem:[#allocation3 + $0xe68] sm:$0xff]
    %v987 = vld [vmem:[#allocation3 + $0xe70] sm:$0xff]
    %v988 = vld [vmem:[#allocation3 + $0xe78] sm:$0xff]
    %v989 = vld [vmem:[#allocation3 + $0xe80] sm:$0xff]
    %v990 = vld [vmem:[#allocation3 + $0xe88] sm:$0xff]
    %v991 = vld [vmem:[#allocation3 + $0xe90] sm:$0xff]
    %v992 = vld [vmem:[#allocation3 + $0xe98] sm:$0xff]
    %v993 = vld [vmem:[#allocation3 + $0xea0] sm:$0xff]
    %v994 = vld [vmem:[#allocation3 + $0xea8] sm:$0xff]
    %v995 = vld [vmem:[#allocation3 + $0xeb0] sm:$0xff]
    %v996 = vld [vmem:[#allocation3 + $0xeb8] sm:$0xff]
    %v997 = vld [vmem:[#allocation3 + $0xec0] sm:$0xff]
    %v998 = vld [vmem:[#allocation3 + $0xec8] sm:$0xff]
    %v999 = vld [vmem:[#allocation3 + $0xed0] sm:$0xff]
    %v1000 = vld [vmem:[#allocation3 + $0xed8] sm:$0xff]
    %v1001 = vld [vmem:[#allocation3 + $0xee0] sm:$0xff]
    %v1002 = vld [vmem:[#allocation3 + $0xee8] sm:$0xff]
    %v1003 = vld [vmem:[#allocation3 + $0xef0] sm:$0xff]
    %v1004 = vld [vmem:[#allocation3 + $0xef8] sm:$0xff]
    %v1005 = vld [vmem:[#allocation3 + $0xf00] sm:$0xff]
    %v1006 = vld [vmem:[#allocation3 + $0xf08] sm:$0xff]
    %v1007 = vld [vmem:[#allocation3 + $0xf10] sm:$0xff]
    %v1008 = vld [vmem:[#allocation3 + $0xf18] sm:$0xff]
    %v1009 = vld [vmem:[#allocation3 + $0xf20] sm:$0xff]
    %v1010 = vld [vmem:[#allocation3 + $0xf28] sm:$0xff]
    %v1011 = vld [vmem:[#allocation3 + $0xf30] sm:$0xff]
    %v1012 = vld [vmem:[#allocation3 + $0xf38] sm:$0xff]
    %v1013 = vld [vmem:[#allocation3 + $0xf40] sm:$0xff]
    %v1014 = vld [vmem:[#allocation3 + $0xf48] sm:$0xff]
    %v1015 = vld [vmem:[#allocation3 + $0xf50] sm:$0xff]
    %v1016 = vld [vmem:[#allocation3 + $0xf58] sm:$0xff]
    %v1017 = vld [vmem:[#allocation3 + $0xf60] sm:$0xff]
    %v1018 = vld [vmem:[#allocation3 + $0xf68] sm:$0xff]
    %v1019 = vld [vmem:[#allocation3 + $0xf70] sm:$0xff]
    %v1020 = vld [vmem:[#allocation3 + $0xf78] sm:$0xff]
    %v1021 = vld [vmem:[#allocation3 + $0xf80] sm:$0xff]
    %v1022 = vld [vmem:[#allocation3 + $0xf88] sm:$0xff]
    %v1023 = vld [vmem:[#allocation3 + $0xf90] sm:$0xff]
    %v1024 = vld [vmem:[#allocation3 + $0xf98] sm:$0xff]
    %v1025 = vld [vmem:[#allocation3 + $0xfa0] sm:$0xff]
    %v1026 = vld [vmem:[#allocation3 + $0xfa8] sm:$0xff]
    %v1027 = vld [vmem:[#allocation3 + $0xfb0] sm:$0xff]
    %v1028 = vld [vmem:[#allocation3 + $0xfb8] sm:$0xff]
    %v1029 = vld [vmem:[#allocation3 + $0xfc0] sm:$0xff]
    %v1030 = vld [vmem:[#allocation3 + $0xfc8] sm:$0xff]
    %v1031 = vld [vmem:[#allocation3 + $0xfd0] sm:$0xff]
    %v1032 = vld [vmem:[#allocation3 + $0xfd8] sm:$0xff]
    %v1033 = vld [vmem:[#allocation3 + $0xfe0] sm:$0xff]
    %v1034 = vld [vmem:[#allocation3 + $0xfe8] sm:$0xff]
    %v1035 = vld [vmem:[#allocation3 + $0xff0] sm:$0xff]
    %v1036 = vld [vmem:[#allocation3 + $0xff8] sm:$0xff]
    %v1037 = vld [vmem:[#allocation3 + $0x1000] sm:$0xff]
    %v1038 = vld [vmem:[#allocation3 + $0x1008] sm:$0xff]
    %v1039 = vld [vmem:[#allocation3 + $0x1010] sm:$0xff]
    %v1040 = vld [vmem:[#allocation3 + $0x1018] sm:$0xff]
    %v1041 = vld [vmem:[#allocation3 + $0x1020] sm:$0xff]
    %v1042 = vld [vmem:[#allocation3 + $0x1028] sm:$0xff]
    %v1043 = vld [vmem:[#allocation3 + $0x1030] sm:$0xff]
    %v1044 = vld [vmem:[#allocation3 + $0x1038] sm:$0xff]
    %v1045 = vld [vmem:[#allocation3 + $0x1040] sm:$0xff]
    %v1046 = vld [vmem:[#allocation3 + $0x1048] sm:$0xff]
    %v1047 = vld [vmem:[#allocation3 + $0x1050] sm:$0xff]
    %v1048 = vld [vmem:[#allocation3 + $0x1058] sm:$0xff]
    %v1049 = vld [vmem:[#allocation3 + $0x1060] sm:$0xff]
    %v1050 = vld [vmem:[#allocation3 + $0x1068] sm:$0xff]
    %v1051 = vld [vmem:[#allocation3 + $0x1070] sm:$0xff]
    %v1052 = vld [vmem:[#allocation3 + $0x1078] sm:$0xff]
    %v1053 = vld [vmem:[#allocation3 + $0x1080] sm:$0xff]
    %v1054 = vld [vmem:[#allocation3 + $0x1088] sm:$0xff]
    %v1055 = vld [vmem:[#allocation3 + $0x1090] sm:$0xff]
    %v1056 = vld [vmem:[#allocation3 + $0x1098] sm:$0xff]
    %v1057 = vld [vmem:[#allocation3 + $0x10a0] sm:$0xff]
    %v1058 = vld [vmem:[#allocation3 + $0x10a8] sm:$0xff]
    %v1059 = vld [vmem:[#allocation3 + $0x10b0] sm:$0xff]
    %v1060 = vld [vmem:[#allocation3 + $0x10b8] sm:$0xff]
    %v1061 = vld [vmem:[#allocation3 + $0x10c0] sm:$0xff]
    %v1062 = vld [vmem:[#allocation3 + $0x10c8] sm:$0xff]
    %v1063 = vld [vmem:[#allocation3 + $0x10d0] sm:$0xff]
    %v1064 = vld [vmem:[#allocation3 + $0x10d8] sm:$0xff]
    %v1065 = vld [vmem:[#allocation3 + $0x10e0] sm:$0xff]
    %v1066 = vld [vmem:[#allocation3 + $0x10e8] sm:$0xff]
    %v1067 = vld [vmem:[#allocation3 + $0x10f0] sm:$0xff]
    %v1068 = vld [vmem:[#allocation3 + $0x10f8] sm:$0xff]
    %v1069 = vld [vmem:[#allocation3 + $0x1100] sm:$0xff]
    %v1070 = vld [vmem:[#allocation3 + $0x1108] sm:$0xff]
    %v1071 = vld [vmem:[#allocation3 + $0x1110] sm:$0xff]
    %v1072 = vld [vmem:[#allocation3 + $0x1118] sm:$0xff]
    %v1073 = vld [vmem:[#allocation3 + $0x1120] sm:$0xff]
    %v1074 = vld [vmem:[#allocation3 + $0x1128] sm:$0xff]
    %v1075 = vld [vmem:[#allocation3 + $0x1130] sm:$0xff]
    %v1076 = vld [vmem:[#allocation3 + $0x1138] sm:$0xff]
    %v1077 = vld [vmem:[#allocation3 + $0x1140] sm:$0xff]
    %v1078 = vld [vmem:[#allocation3 + $0x1148] sm:$0xff]
    %v1079 = vld [vmem:[#allocation3 + $0x1150] sm:$0xff]
    %v1080 = vld [vmem:[#allocation3 + $0x1158] sm:$0xff]
    %v1081 = vld [vmem:[#allocation3 + $0x1160] sm:$0xff]
    %v1082 = vld [vmem:[#allocation3 + $0x1168] sm:$0xff]
    %v1083 = vld [vmem:[#allocation3 + $0x1170] sm:$0xff]
    %v1084 = vld [vmem:[#allocation3 + $0x1178] sm:$0xff]
    %v1085 = vld [vmem:[#allocation3 + $0x1180] sm:$0xff]
    %v1086 = vld [vmem:[#allocation3 + $0x1188] sm:$0xff]
    %v1087 = vld [vmem:[#allocation3 + $0x1190] sm:$0xff]
    %v1088 = vld [vmem:[#allocation3 + $0x1198] sm:$0xff]
    %v1089 = vld [vmem:[#allocation3 + $0x11a0] sm:$0xff]
    %v1090 = vld [vmem:[#allocation3 + $0x11a8] sm:$0xff]
    %v1091 = vld [vmem:[#allocation3 + $0x11b0] sm:$0xff]
    %v1092 = vld [vmem:[#allocation3 + $0x11b8] sm:$0xff]
    %v1093 = vld [vmem:[#allocation3 + $0x11c0] sm:$0xff]
    %v1094 = vld [vmem:[#allocation3 + $0x11c8] sm:$0xff]
    %v1095 = vld [vmem:[#allocation3 + $0x11d0] sm:$0xff]
    %v1096 = vld [vmem:[#allocation3 + $0x11d8] sm:$0xff]
    %v1097 = vld [vmem:[#allocation3 + $0x11e0] sm:$0xff]
    %v1098 = vld [vmem:[#allocation3 + $0x11e8] sm:$0xff]
    %v1099 = vld [vmem:[#allocation3 + $0x11f0] sm:$0xff]
    %v1100 = vld [vmem:[#allocation3 + $0x11f8] sm:$0xff]
    %v1101 = vld [vmem:[#allocation3 + $0x1200] sm:$0xff]
    %v1102 = vld [vmem:[#allocation3 + $0x1208] sm:$0xff]
    %v1103 = vld [vmem:[#allocation3 + $0x1210] sm:$0xff]
    %v1104 = vld [vmem:[#allocation3 + $0x1218] sm:$0xff]
    %v1105 = vld [vmem:[#allocation3 + $0x1220] sm:$0xff]
    %v1106 = vld [vmem:[#allocation3 + $0x1228] sm:$0xff]
    %v1107 = vld [vmem:[#allocation3 + $0x1230] sm:$0xff]
    %v1108 = vld [vmem:[#allocation3 + $0x1238] sm:$0xff]
    %v1109 = vld [vmem:[#allocation3 + $0x1240] sm:$0xff]
    %v1110 = vld [vmem:[#allocation3 + $0x1248] sm:$0xff]
    %v1111 = vld [vmem:[#allocation3 + $0x1250] sm:$0xff]
    %v1112 = vld [vmem:[#allocation3 + $0x1258] sm:$0xff]
    %v1113 = vld [vmem:[#allocation3 + $0x1260] sm:$0xff]
    %v1114 = vld [vmem:[#allocation3 + $0x1268] sm:$0xff]
    %v1115 = vld [vmem:[#allocation3 + $0x1270] sm:$0xff]
    %v1116 = vld [vmem:[#allocation3 + $0x1278] sm:$0xff]
    %v1117 = vld [vmem:[#allocation3 + $0x1280] sm:$0xff]
    %v1118 = vld [vmem:[#allocation3 + $0x1288] sm:$0xff]
    %v1119 = vld [vmem:[#allocation3 + $0x1290] sm:$0xff]
    %v1120 = vld [vmem:[#allocation3 + $0x1298] sm:$0xff]
    %v1121 = vld [vmem:[#allocation3 + $0x12a0] sm:$0xff]
    %v1122 = vld [vmem:[#allocation3 + $0x12a8] sm:$0xff]
    %v1123 = vld [vmem:[#allocation3 + $0x12b0] sm:$0xff]
    %v1124 = vld [vmem:[#allocation3 + $0x12b8] sm:$0xff]
    %v1125 = vld [vmem:[#allocation3 + $0x12c0] sm:$0xff]
    %v1126 = vld [vmem:[#allocation3 + $0x12c8] sm:$0xff]
    %v1127 = vld [vmem:[#allocation3 + $0x12d0] sm:$0xff]
    %v1128 = vld [vmem:[#allocation3 + $0x12d8] sm:$0xff]
    %v1129 = vld [vmem:[#allocation3 + $0x12e0] sm:$0xff]
    %v1130 = vld [vmem:[#allocation3 + $0x12e8] sm:$0xff]
    %v1131 = vld [vmem:[#allocation3 + $0x12f0] sm:$0xff]
    %v1132 = vld [vmem:[#allocation3 + $0x12f8] sm:$0xff]
    %v1133 = vld [vmem:[#allocation3 + $0x1300] sm:$0xff]
    %v1134 = vld [vmem:[#allocation3 + $0x1308] sm:$0xff]
    %v1135 = vld [vmem:[#allocation3 + $0x1310] sm:$0xff]
    %v1136 = vld [vmem:[#allocation3 + $0x1318] sm:$0xff]
    %v1137 = vld [vmem:[#allocation3 + $0x1320] sm:$0xff]
    %v1138 = vld [vmem:[#allocation3 + $0x1328] sm:$0xff]
    %v1139 = vld [vmem:[#allocation3 + $0x1330] sm:$0xff]
    %v1140 = vld [vmem:[#allocation3 + $0x1338] sm:$0xff]
    %v1141 = vld [vmem:[#allocation3 + $0x1340] sm:$0xff]
    %v1142 = vld [vmem:[#allocation3 + $0x1348] sm:$0xff]
    %v1143 = vld [vmem:[#allocation3 + $0x1350] sm:$0xff]
    %v1144 = vld [vmem:[#allocation3 + $0x1358] sm:$0xff]
    %v1145 = vld [vmem:[#allocation3 + $0x1360] sm:$0xff]
    %v1146 = vld [vmem:[#allocation3 + $0x1368] sm:$0xff]
    %v1147 = vld [vmem:[#allocation3 + $0x1370] sm:$0xff]
    %v1148 = vld [vmem:[#allocation3 + $0x1378] sm:$0xff]
    %v1149 = vld [vmem:[#allocation3 + $0x1380] sm:$0xff]
    %v1150 = vld [vmem:[#allocation3 + $0x1388] sm:$0xff]
    %v1151 = vld [vmem:[#allocation3 + $0x1390] sm:$0xff]
    %v1152 = vld [vmem:[#allocation3 + $0x1398] sm:$0xff]
    %v1153 = vld [vmem:[#allocation3 + $0x13a0] sm:$0xff]
    %v1154 = vld [vmem:[#allocation3 + $0x13a8] sm:$0xff]
    %v1155 = vld [vmem:[#allocation3 + $0x13b0] sm:$0xff]
    %v1156 = vld [vmem:[#allocation3 + $0x13b8] sm:$0xff]
    %v1157 = vld [vmem:[#allocation3 + $0x13c0] sm:$0xff]
    %v1158 = vld [vmem:[#allocation3 + $0x13c8] sm:$0xff]
    %v1159 = vld [vmem:[#allocation3 + $0x13d0] sm:$0xff]
    %v1160 = vld [vmem:[#allocation3 + $0x13d8] sm:$0xff]
    %v1161 = vld [vmem:[#allocation3 + $0x13e0] sm:$0xff]
    %v1162 = vld [vmem:[#allocation3 + $0x13e8] sm:$0xff]
    %v1163 = vld [vmem:[#allocation3 + $0x13f0] sm:$0xff]
    %v1164 = vld [vmem:[#allocation3 + $0x13f8] sm:$0xff]
    %v1165 = vld [vmem:[#allocation3 + $0x1400] sm:$0xff]
    %v1166 = vld [vmem:[#allocation3 + $0x1408] sm:$0xff]
    %v1167 = vld [vmem:[#allocation3 + $0x1410] sm:$0xff]
    %v1168 = vld [vmem:[#allocation3 + $0x1418] sm:$0xff]
    %v1169 = vld [vmem:[#allocation3 + $0x1420] sm:$0xff]
    %v1170 = vld [vmem:[#allocation3 + $0x1428] sm:$0xff]
    %v1171 = vld [vmem:[#allocation3 + $0x1430] sm:$0xff]
    %v1172 = vld [vmem:[#allocation3 + $0x1438] sm:$0xff]
    %v1173 = vld [vmem:[#allocation3 + $0x1440] sm:$0xff]
    %v1174 = vld [vmem:[#allocation3 + $0x1448] sm:$0xff]
    %v1175 = vld [vmem:[#allocation3 + $0x1450] sm:$0xff]
    %v1176 = vld [vmem:[#allocation3 + $0x1458] sm:$0xff]
    %v1177 = vld [vmem:[#allocation3 + $0x1460] sm:$0xff]
    %v1178 = vld [vmem:[#allocation3 + $0x1468] sm:$0xff]
    %v1179 = vld [vmem:[#allocation3 + $0x1470] sm:$0xff]
    %v1180 = vld [vmem:[#allocation3 + $0x1478] sm:$0xff]
    %v1181 = vld [vmem:[#allocation3 + $0x1480] sm:$0xff]
    %v1182 = vld [vmem:[#allocation3 + $0x1488] sm:$0xff]
    %v1183 = vld [vmem:[#allocation3 + $0x1490] sm:$0xff]
    %v1184 = vld [vmem:[#allocation3 + $0x1498] sm:$0xff]
    %v1185 = vld [vmem:[#allocation3 + $0x14a0] sm:$0xff]
    %v1186 = vld [vmem:[#allocation3 + $0x14a8] sm:$0xff]
    %v1187 = vld [vmem:[#allocation3 + $0x14b0] sm:$0xff]
    %v1188 = vld [vmem:[#allocation3 + $0x14b8] sm:$0xff]
    %v1189 = vld [vmem:[#allocation3 + $0x14c0] sm:$0xff]
    %v1190 = vld [vmem:[#allocation3 + $0x14c8] sm:$0xff]
    %v1191 = vld [vmem:[#allocation3 + $0x14d0] sm:$0xff]
    %v1192 = vld [vmem:[#allocation3 + $0x14d8] sm:$0xff]
    %v1193 = vld [vmem:[#allocation3 + $0x14e0] sm:$0xff]
    %v1194 = vld [vmem:[#allocation3 + $0x14e8] sm:$0xff]
    %v1195 = vld [vmem:[#allocation3 + $0x14f0] sm:$0xff]
    %v1196 = vld [vmem:[#allocation3 + $0x14f8] sm:$0xff]
    %v1197 = vld [vmem:[#allocation3 + $0x1500] sm:$0xff]
    %v1198 = vld [vmem:[#allocation3 + $0x1508] sm:$0xff]
    %v1199 = vld [vmem:[#allocation3 + $0x1510] sm:$0xff]
    %v1200 = vld [vmem:[#allocation3 + $0x1518] sm:$0xff]
    %v1201 = vld [vmem:[#allocation3 + $0x1520] sm:$0xff]
    %v1202 = vld [vmem:[#allocation3 + $0x1528] sm:$0xff]
    %v1203 = vld [vmem:[#allocation3 + $0x1530] sm:$0xff]
    %v1204 = vld [vmem:[#allocation3 + $0x1538] sm:$0xff]
    %v1205 = vld [vmem:[#allocation3 + $0x1540] sm:$0xff]
    %v1206 = vld [vmem:[#allocation3 + $0x1548] sm:$0xff]
    %v1207 = vld [vmem:[#allocation3 + $0x1550] sm:$0xff]
    %v1208 = vld [vmem:[#allocation3 + $0x1558] sm:$0xff]
    %v1209 = vld [vmem:[#allocation3 + $0x1560] sm:$0xff]
    %v1210 = vld [vmem:[#allocation3 + $0x1568] sm:$0xff]
    %v1211 = vld [vmem:[#allocation3 + $0x1570] sm:$0xff]
    %v1212 = vld [vmem:[#allocation3 + $0x1578] sm:$0xff]
    %v1213 = vld [vmem:[#allocation3 + $0x1580] sm:$0xff]
    %v1214 = vld [vmem:[#allocation3 + $0x1588] sm:$0xff]
    %v1215 = vld [vmem:[#allocation3 + $0x1590] sm:$0xff]
    %v1216 = vld [vmem:[#allocation3 + $0x1598] sm:$0xff]
    %v1217 = vld [vmem:[#allocation3 + $0x15a0] sm:$0xff]
    %v1218 = vld [vmem:[#allocation3 + $0x15a8] sm:$0xff]
    %v1219 = vld [vmem:[#allocation3 + $0x15b0] sm:$0xff]
    %v1220 = vld [vmem:[#allocation3 + $0x15b8] sm:$0xff]
    %v1221 = vld [vmem:[#allocation3 + $0x15c0] sm:$0xff]
    %v1222 = vld [vmem:[#allocation3 + $0x15c8] sm:$0xff]
    %v1223 = vld [vmem:[#allocation3 + $0x15d0] sm:$0xff]
    %v1224 = vld [vmem:[#allocation3 + $0x15d8] sm:$0xff]
    %v1225 = vld [vmem:[#allocation3 + $0x15e0] sm:$0xff]
    %v1226 = vld [vmem:[#allocation3 + $0x15e8] sm:$0xff]
    %v1227 = vld [vmem:[#allocation3 + $0x15f0] sm:$0xff]
    %v1228 = vld [vmem:[#allocation3 + $0x15f8] sm:$0xff]
    %v1229 = vld [vmem:[#allocation3 + $0x1600] sm:$0xff]
    %v1230 = vld [vmem:[#allocation3 + $0x1608] sm:$0xff]
    %v1231 = vld [vmem:[#allocation3 + $0x1610] sm:$0xff]
    %v1232 = vld [vmem:[#allocation3 + $0x1618] sm:$0xff]
    %v1233 = vld [vmem:[#allocation3 + $0x1620] sm:$0xff]
    %v1234 = vld [vmem:[#allocation3 + $0x1628] sm:$0xff]
    %v1235 = vld [vmem:[#allocation3 + $0x1630] sm:$0xff]
    %v1236 = vld [vmem:[#allocation3 + $0x1638] sm:$0xff]
    %v1237 = vld [vmem:[#allocation3 + $0x1640] sm:$0xff]
    %v1238 = vld [vmem:[#allocation3 + $0x1648] sm:$0xff]
    %v1239 = vld [vmem:[#allocation3 + $0x1650] sm:$0xff]
    %v1240 = vld [vmem:[#allocation3 + $0x1658] sm:$0xff]
    %v1241 = vld [vmem:[#allocation3 + $0x1660] sm:$0xff]
    %v1242 = vld [vmem:[#allocation3 + $0x1668] sm:$0xff]
    %v1243 = vld [vmem:[#allocation3 + $0x1670] sm:$0xff]
    %v1244 = vld [vmem:[#allocation3 + $0x1678] sm:$0xff]
    %v1245 = vld [vmem:[#allocation3 + $0x1680] sm:$0xff]
    %v1246 = vld [vmem:[#allocation3 + $0x1688] sm:$0xff]
    %v1247 = vld [vmem:[#allocation3 + $0x1690] sm:$0xff]
    %v1248 = vld [vmem:[#allocation3 + $0x1698] sm:$0xff]
    %v1249 = vld [vmem:[#allocation3 + $0x16a0] sm:$0xff]
    %v1250 = vld [vmem:[#allocation3 + $0x16a8] sm:$0xff]
    %v1251 = vld [vmem:[#allocation3 + $0x16b0] sm:$0xff]
    %v1252 = vld [vmem:[#allocation3 + $0x16b8] sm:$0xff]
    %v1253 = vld [vmem:[#allocation3 + $0x16c0] sm:$0xff]
    %v1254 = vld [vmem:[#allocation3 + $0x16c8] sm:$0xff]
    %v1255 = vld [vmem:[#allocation3 + $0x16d0] sm:$0xff]
    %v1256 = vld [vmem:[#allocation3 + $0x16d8] sm:$0xff]
    %v1257 = vld [vmem:[#allocation3 + $0x16e0] sm:$0xff]
    %v1258 = vld [vmem:[#allocation3 + $0x16e8] sm:$0xff]
    %v1259 = vld [vmem:[#allocation3 + $0x16f0] sm:$0xff]
    %v1260 = vld [vmem:[#allocation3 + $0x16f8] sm:$0xff]
    %v1261 = vld [vmem:[#allocation3 + $0x1700] sm:$0xff]
    %v1262 = vld [vmem:[#allocation3 + $0x1708] sm:$0xff]
    %v1263 = vld [vmem:[#allocation3 + $0x1710] sm:$0xff]
    %v1264 = vld [vmem:[#allocation3 + $0x1718] sm:$0xff]
    %v1265 = vld [vmem:[#allocation3 + $0x1720] sm:$0xff]
    %v1266 = vld [vmem:[#allocation3 + $0x1728] sm:$0xff]
    %v1267 = vld [vmem:[#allocation3 + $0x1730] sm:$0xff]
    %v1268 = vld [vmem:[#allocation3 + $0x1738] sm:$0xff]
    %v1269 = vld [vmem:[#allocation3 + $0x1740] sm:$0xff]
    %v1270 = vld [vmem:[#allocation3 + $0x1748] sm:$0xff]
    %v1271 = vld [vmem:[#allocation3 + $0x1750] sm:$0xff]
    %v1272 = vld [vmem:[#allocation3 + $0x1758] sm:$0xff]
    %v1273 = vld [vmem:[#allocation3 + $0x1760] sm:$0xff]
    %v1274 = vld [vmem:[#allocation3 + $0x1768] sm:$0xff]
    %v1275 = vld [vmem:[#allocation3 + $0x1770] sm:$0xff]
    %v1276 = vld [vmem:[#allocation3 + $0x1778] sm:$0xff]
    %v1277 = vld [vmem:[#allocation3 + $0x1780] sm:$0xff]
    %v1278 = vld [vmem:[#allocation3 + $0x1788] sm:$0xff]
    %v1279 = vld [vmem:[#allocation3 + $0x1790] sm:$0xff]
    %v1280 = vld [vmem:[#allocation3 + $0x1798] sm:$0xff]
    %v1281 = vld [vmem:[#allocation3 + $0x17a0] sm:$0xff]
    %v1282 = vld [vmem:[#allocation3 + $0x17a8] sm:$0xff]
    %v1283 = vld [vmem:[#allocation3 + $0x17b0] sm:$0xff]
    %v1284 = vld [vmem:[#allocation3 + $0x17b8] sm:$0xff]
    %v1285 = vld [vmem:[#allocation3 + $0x17c0] sm:$0xff]
    %v1286 = vld [vmem:[#allocation3 + $0x17c8] sm:$0xff]
    %v1287 = vld [vmem:[#allocation3 + $0x17d0] sm:$0xff]
    %v1288 = vld [vmem:[#allocation3 + $0x17d8] sm:$0xff]
    %v1289 = vld [vmem:[#allocation3 + $0x17e0] sm:$0xff]
    %v1290 = vld [vmem:[#allocation3 + $0x17e8] sm:$0xff]
    %v1291 = vld [vmem:[#allocation3 + $0x17f0] sm:$0xff]
    %v1292 = vld [vmem:[#allocation3 + $0x17f8] sm:$0xff]
    %v1293 = vld [vmem:[#allocation3 + $0x1800] sm:$0xff]
    %v1294 = vld [vmem:[#allocation3 + $0x1808] sm:$0xff]
    %v1295 = vld [vmem:[#allocation3 + $0x1810] sm:$0xff]
    %v1296 = vld [vmem:[#allocation3 + $0x1818] sm:$0xff]
    %v1297 = vld [vmem:[#allocation3 + $0x1820] sm:$0xff]
    %v1298 = vld [vmem:[#allocation3 + $0x1828] sm:$0xff]
    %v1299 = vld [vmem:[#allocation3 + $0x1830] sm:$0xff]
    %v1300 = vld [vmem:[#allocation3 + $0x1838] sm:$0xff]
    %v1301 = vld [vmem:[#allocation3 + $0x1840] sm:$0xff]
    %v1302 = vld [vmem:[#allocation3 + $0x1848] sm:$0xff]
    %v1303 = vld [vmem:[#allocation3 + $0x1850] sm:$0xff]
    %v1304 = vld [vmem:[#allocation3 + $0x1858] sm:$0xff]
    %v1305 = vld [vmem:[#allocation3 + $0x1860] sm:$0xff]
    %v1306 = vld [vmem:[#allocation3 + $0x1868] sm:$0xff]
    %v1307 = vld [vmem:[#allocation3 + $0x1870] sm:$0xff]
    %v1308 = vld [vmem:[#allocation3 + $0x1878] sm:$0xff]
    %v1309 = vld [vmem:[#allocation3 + $0x1880] sm:$0xff]
    %v1310 = vld [vmem:[#allocation3 + $0x1888] sm:$0xff]
    %v1311 = vld [vmem:[#allocation3 + $0x1890] sm:$0xff]
    %v1312 = vld [vmem:[#allocation3 + $0x1898] sm:$0xff]
    %v1313 = vld [vmem:[#allocation3 + $0x18a0] sm:$0xff]
    %v1314 = vld [vmem:[#allocation3 + $0x18a8] sm:$0xff]
    %v1315 = vld [vmem:[#allocation3 + $0x18b0] sm:$0xff]
    %v1316 = vld [vmem:[#allocation3 + $0x18b8] sm:$0xff]
    %v1317 = vld [vmem:[#allocation3 + $0x18c0] sm:$0xff]
    %v1318 = vld [vmem:[#allocation3 + $0x18c8] sm:$0xff]
    %v1319 = vld [vmem:[#allocation3 + $0x18d0] sm:$0xff]
    %v1320 = vld [vmem:[#allocation3 + $0x18d8] sm:$0xff]
    %v1321 = vld [vmem:[#allocation3 + $0x18e0] sm:$0xff]
    %v1322 = vld [vmem:[#allocation3 + $0x18e8] sm:$0xff]
    %v1323 = vld [vmem:[#allocation3 + $0x18f0] sm:$0xff]
    %v1324 = vld [vmem:[#allocation3 + $0x18f8] sm:$0xff]
    %v1325 = vld [vmem:[#allocation3 + $0x1900] sm:$0xff]
    %v1326 = vld [vmem:[#allocation3 + $0x1908] sm:$0xff]
    %v1327 = vld [vmem:[#allocation3 + $0x1910] sm:$0xff]
    %v1328 = vld [vmem:[#allocation3 + $0x1918] sm:$0xff]
    %v1329 = vld [vmem:[#allocation3 + $0x1920] sm:$0xff]
    %v1330 = vld [vmem:[#allocation3 + $0x1928] sm:$0xff]
    %v1331 = vld [vmem:[#allocation3 + $0x1930] sm:$0xff]
    %v1332 = vld [vmem:[#allocation3 + $0x1938] sm:$0xff]
    %v1333 = vld [vmem:[#allocation3 + $0x1940] sm:$0xff]
    %v1334 = vld [vmem:[#allocation3 + $0x1948] sm:$0xff]
    %v1335 = vld [vmem:[#allocation3 + $0x1950] sm:$0xff]
    %v1336 = vld [vmem:[#allocation3 + $0x1958] sm:$0xff]
    %v1337 = vld [vmem:[#allocation3 + $0x1960] sm:$0xff]
    %v1338 = vld [vmem:[#allocation3 + $0x1968] sm:$0xff]
    %v1339 = vld [vmem:[#allocation3 + $0x1970] sm:$0xff]
    %v1340 = vld [vmem:[#allocation3 + $0x1978] sm:$0xff]
    %v1341 = vld [vmem:[#allocation3 + $0x1980] sm:$0xff]
    %v1342 = vld [vmem:[#allocation3 + $0x1988] sm:$0xff]
    %v1343 = vld [vmem:[#allocation3 + $0x1990] sm:$0xff]
    %v1344 = vld [vmem:[#allocation3 + $0x1998] sm:$0xff]
    %v1345 = vld [vmem:[#allocation3 + $0x19a0] sm:$0xff]
    %v1346 = vld [vmem:[#allocation3 + $0x19a8] sm:$0xff]
    %v1347 = vld [vmem:[#allocation3 + $0x19b0] sm:$0xff]
    %v1348 = vld [vmem:[#allocation3 + $0x19b8] sm:$0xff]
    %v1349 = vld [vmem:[#allocation3 + $0x19c0] sm:$0xff]
    %v1350 = vld [vmem:[#allocation3 + $0x19c8] sm:$0xff]
    %v1351 = vld [vmem:[#allocation3 + $0x19d0] sm:$0xff]
    %v1352 = vld [vmem:[#allocation3 + $0x19d8] sm:$0xff]
    %v1353 = vld [vmem:[#allocation3 + $0x19e0] sm:$0xff]
    %v1354 = vld [vmem:[#allocation3 + $0x19e8] sm:$0xff]
    %v1355 = vld [vmem:[#allocation3 + $0x19f0] sm:$0xff]
    %v1356 = vld [vmem:[#allocation3 + $0x19f8] sm:$0xff]
    %v1357 = vld [vmem:[#allocation3 + $0x1a00] sm:$0xff]
    %v1358 = vld [vmem:[#allocation3 + $0x1a08] sm:$0xff]
    %v1359 = vld [vmem:[#allocation3 + $0x1a10] sm:$0xff]
    %v1360 = vld [vmem:[#allocation3 + $0x1a18] sm:$0xff]
    %v1361 = vld [vmem:[#allocation3 + $0x1a20] sm:$0xff]
    %v1362 = vld [vmem:[#allocation3 + $0x1a28] sm:$0xff]
    %v1363 = vld [vmem:[#allocation3 + $0x1a30] sm:$0xff]
    %v1364 = vld [vmem:[#allocation3 + $0x1a38] sm:$0xff]
    %v1365 = vld [vmem:[#allocation3 + $0x1a40] sm:$0xff]
    %v1366 = vld [vmem:[#allocation3 + $0x1a48] sm:$0xff]
    %v1367 = vld [vmem:[#allocation3 + $0x1a50] sm:$0xff]
    %v1368 = vld [vmem:[#allocation3 + $0x1a58] sm:$0xff]
    %v1369 = vld [vmem:[#allocation3 + $0x1a60] sm:$0xff]
    %v1370 = vld [vmem:[#allocation3 + $0x1a68] sm:$0xff]
    %v1371 = vld [vmem:[#allocation3 + $0x1a70] sm:$0xff]
    %v1372 = vld [vmem:[#allocation3 + $0x1a78] sm:$0xff]
    %v1373 = vld [vmem:[#allocation3 + $0x1a80] sm:$0xff]
    %v1374 = vld [vmem:[#allocation3 + $0x1a88] sm:$0xff]
    %v1375 = vld [vmem:[#allocation3 + $0x1a90] sm:$0xff]
    %v1376 = vld [vmem:[#allocation3 + $0x1a98] sm:$0xff]
    %v1377 = vld [vmem:[#allocation3 + $0x1aa0] sm:$0xff]
    %v1378 = vld [vmem:[#allocation3 + $0x1aa8] sm:$0xff]
    %v1379 = vld [vmem:[#allocation3 + $0x1ab0] sm:$0xff]
    %v1380 = vld [vmem:[#allocation3 + $0x1ab8] sm:$0xff]
    %v1381 = vld [vmem:[#allocation3 + $0x1ac0] sm:$0xff]
    %v1382 = vld [vmem:[#allocation3 + $0x1ac8] sm:$0xff]
    %v1383 = vld [vmem:[#allocation3 + $0x1ad0] sm:$0xff]
    %v1384 = vld [vmem:[#allocation3 + $0x1ad8] sm:$0xff]
    %v1385 = vld [vmem:[#allocation3 + $0x1ae0] sm:$0xff]
    %v1386 = vld [vmem:[#allocation3 + $0x1ae8] sm:$0xff]
    %v1387 = vld [vmem:[#allocation3 + $0x1af0] sm:$0xff]
    %v1388 = vld [vmem:[#allocation3 + $0x1af8] sm:$0xff]
    %v1389 = vld [vmem:[#allocation3 + $0x1b00] sm:$0xff]
    %v1390 = vld [vmem:[#allocation3 + $0x1b08] sm:$0xff]
    %v1391 = vld [vmem:[#allocation3 + $0x1b10] sm:$0xff]
    %v1392 = vld [vmem:[#allocation3 + $0x1b18] sm:$0xff]
    %v1393 = vld [vmem:[#allocation3 + $0x1b20] sm:$0xff]
    %v1394 = vld [vmem:[#allocation3 + $0x1b28] sm:$0xff]
    %v1395 = vld [vmem:[#allocation3 + $0x1b30] sm:$0xff]
    %v1396 = vld [vmem:[#allocation3 + $0x1b38] sm:$0xff]
    %v1397 = vld [vmem:[#allocation3 + $0x1b40] sm:$0xff]
    %v1398 = vld [vmem:[#allocation3 + $0x1b48] sm:$0xff]
    %v1399 = vld [vmem:[#allocation3 + $0x1b50] sm:$0xff]
    %v1400 = vld [vmem:[#allocation3 + $0x1b58] sm:$0xff]
    %v1401 = vld [vmem:[#allocation3 + $0x1b60] sm:$0xff]
    %v1402 = vld [vmem:[#allocation3 + $0x1b68] sm:$0xff]
    %v1403 = vld [vmem:[#allocation3 + $0x1b70] sm:$0xff]
    %v1404 = vld [vmem:[#allocation3 + $0x1b78] sm:$0xff]
    %v1405 = vld [vmem:[#allocation3 + $0x1b80] sm:$0xff]
    %v1406 = vld [vmem:[#allocation3 + $0x1b88] sm:$0xff]
    %v1407 = vld [vmem:[#allocation3 + $0x1b90] sm:$0xff]
    %v1408 = vld [vmem:[#allocation3 + $0x1b98] sm:$0xff]
    %v1409 = vld [vmem:[#allocation3 + $0x1ba0] sm:$0xff]
    %v1410 = vld [vmem:[#allocation3 + $0x1ba8] sm:$0xff]
    %v1411 = vld [vmem:[#allocation3 + $0x1bb0] sm:$0xff]
    %v1412 = vld [vmem:[#allocation3 + $0x1bb8] sm:$0xff]
    %v1413 = vld [vmem:[#allocation3 + $0x1bc0] sm:$0xff]
    %v1414 = vld [vmem:[#allocation3 + $0x1bc8] sm:$0xff]
    %v1415 = vld [vmem:[#allocation3 + $0x1bd0] sm:$0xff]
    %v1416 = vld [vmem:[#allocation3 + $0x1bd8] sm:$0xff]
    %v1417 = vld [vmem:[#allocation3 + $0x1be0] sm:$0xff]
    %v1418 = vld [vmem:[#allocation3 + $0x1be8] sm:$0xff]
    %v1419 = vld [vmem:[#allocation3 + $0x1bf0] sm:$0xff]
    %v1420 = vld [vmem:[#allocation3 + $0x1bf8] sm:$0xff]
    %v1421 = vld [vmem:[#allocation3 + $0x1c00] sm:$0xff]
    %v1422 = vld [vmem:[#allocation3 + $0x1c08] sm:$0xff]
    %v1423 = vld [vmem:[#allocation3 + $0x1c10] sm:$0xff]
    %v1424 = vld [vmem:[#allocation3 + $0x1c18] sm:$0xff]
    %v1425 = vld [vmem:[#allocation3 + $0x1c20] sm:$0xff]
    %v1426 = vld [vmem:[#allocation3 + $0x1c28] sm:$0xff]
    %v1427 = vld [vmem:[#allocation3 + $0x1c30] sm:$0xff]
    %v1428 = vld [vmem:[#allocation3 + $0x1c38] sm:$0xff]
    %v1429 = vld [vmem:[#allocation3 + $0x1c40] sm:$0xff]
    %v1430 = vld [vmem:[#allocation3 + $0x1c48] sm:$0xff]
    %v1431 = vld [vmem:[#allocation3 + $0x1c50] sm:$0xff]
    %v1432 = vld [vmem:[#allocation3 + $0x1c58] sm:$0xff]
    %v1433 = vld [vmem:[#allocation3 + $0x1c60] sm:$0xff]
    %v1434 = vld [vmem:[#allocation3 + $0x1c68] sm:$0xff]
    %v1435 = vld [vmem:[#allocation3 + $0x1c70] sm:$0xff]
    %v1436 = vld [vmem:[#allocation3 + $0x1c78] sm:$0xff]
    %v1437 = vld [vmem:[#allocation3 + $0x1c80] sm:$0xff]
    %v1438 = vld [vmem:[#allocation3 + $0x1c88] sm:$0xff]
    %v1439 = vld [vmem:[#allocation3 + $0x1c90] sm:$0xff]
    %v1440 = vld [vmem:[#allocation3 + $0x1c98] sm:$0xff]
    %v1441 = vld [vmem:[#allocation3 + $0x1ca0] sm:$0xff]
    %v1442 = vld [vmem:[#allocation3 + $0x1ca8] sm:$0xff]
    %v1443 = vld [vmem:[#allocation3 + $0x1cb0] sm:$0xff]
    %v1444 = vld [vmem:[#allocation3 + $0x1cb8] sm:$0xff]
    %v1445 = vld [vmem:[#allocation3 + $0x1cc0] sm:$0xff]
    %v1446 = vld [vmem:[#allocation3 + $0x1cc8] sm:$0xff]
    %v1447 = vld [vmem:[#allocation3 + $0x1cd0] sm:$0xff]
    %v1448 = vld [vmem:[#allocation3 + $0x1cd8] sm:$0xff]
    %v1449 = vld [vmem:[#allocation3 + $0x1ce0] sm:$0xff]
    %v1450 = vld [vmem:[#allocation3 + $0x1ce8] sm:$0xff]
    %v1451 = vld [vmem:[#allocation3 + $0x1cf0] sm:$0xff]
    %v1452 = vld [vmem:[#allocation3 + $0x1cf8] sm:$0xff]
    %v1453 = vld [vmem:[#allocation3 + $0x1d00] sm:$0xff]
    %v1454 = vld [vmem:[#allocation3 + $0x1d08] sm:$0xff]
    %v1455 = vld [vmem:[#allocation3 + $0x1d10] sm:$0xff]
    %v1456 = vld [vmem:[#allocation3 + $0x1d18] sm:$0xff]
    %v1457 = vld [vmem:[#allocation3 + $0x1d20] sm:$0xff]
    %v1458 = vld [vmem:[#allocation3 + $0x1d28] sm:$0xff]
    %v1459 = vld [vmem:[#allocation3 + $0x1d30] sm:$0xff]
    %v1460 = vld [vmem:[#allocation3 + $0x1d38] sm:$0xff]
    %v1461 = vld [vmem:[#allocation3 + $0x1d40] sm:$0xff]
    %v1462 = vld [vmem:[#allocation3 + $0x1d48] sm:$0xff]
    %v1463 = vld [vmem:[#allocation3 + $0x1d50] sm:$0xff]
    %v1464 = vld [vmem:[#allocation3 + $0x1d58] sm:$0xff]
    %v1465 = vld [vmem:[#allocation3 + $0x1d60] sm:$0xff]
    %v1466 = vld [vmem:[#allocation3 + $0x1d68] sm:$0xff]
    %v1467 = vld [vmem:[#allocation3 + $0x1d70] sm:$0xff]
    %v1468 = vld [vmem:[#allocation3 + $0x1d78] sm:$0xff]
    %v1469 = vld [vmem:[#allocation3 + $0x1d80] sm:$0xff]
    %v1470 = vld [vmem:[#allocation3 + $0x1d88] sm:$0xff]
    %v1471 = vld [vmem:[#allocation3 + $0x1d90] sm:$0xff]
    %v1472 = vld [vmem:[#allocation3 + $0x1d98] sm:$0xff]
    %v1473 = vld [vmem:[#allocation3 + $0x1da0] sm:$0xff]
    %v1474 = vld [vmem:[#allocation3 + $0x1da8] sm:$0xff]
    %v1475 = vld [vmem:[#allocation3 + $0x1db0] sm:$0xff]
    %v1476 = vld [vmem:[#allocation3 + $0x1db8] sm:$0xff]
    %v1477 = vld [vmem:[#allocation3 + $0x1dc0] sm:$0xff]
    %v1478 = vld [vmem:[#allocation3 + $0x1dc8] sm:$0xff]
    %v1479 = vld [vmem:[#allocation3 + $0x1dd0] sm:$0xff]
    %v1480 = vld [vmem:[#allocation3 + $0x1dd8] sm:$0xff]
    %v1481 = vld [vmem:[#allocation3 + $0x1de0] sm:$0xff]
    %v1482 = vld [vmem:[#allocation3 + $0x1de8] sm:$0xff]
    %v1483 = vld [vmem:[#allocation3 + $0x1df0] sm:$0xff]
    %v1484 = vld [vmem:[#allocation3 + $0x1df8] sm:$0xff]
    %v1485 = vld [vmem:[#allocation3 + $0x1e00] sm:$0xff]
    %v1486 = vld [vmem:[#allocation3 + $0x1e08] sm:$0xff]
    %v1487 = vld [vmem:[#allocation3 + $0x1e10] sm:$0xff]
    %v1488 = vld [vmem:[#allocation3 + $0x1e18] sm:$0xff]
    %v1489 = vld [vmem:[#allocation3 + $0x1e20] sm:$0xff]
    %v1490 = vld [vmem:[#allocation3 + $0x1e28] sm:$0xff]
    %v1491 = vld [vmem:[#allocation3 + $0x1e30] sm:$0xff]
    %v1492 = vld [vmem:[#allocation3 + $0x1e38] sm:$0xff]
    %v1493 = vld [vmem:[#allocation3 + $0x1e40] sm:$0xff]
    %v1494 = vld [vmem:[#allocation3 + $0x1e48] sm:$0xff]
    %v1495 = vld [vmem:[#allocation3 + $0x1e50] sm:$0xff]
    %v1496 = vld [vmem:[#allocation3 + $0x1e58] sm:$0xff]
    %v1497 = vld [vmem:[#allocation3 + $0x1e60] sm:$0xff]
    %v1498 = vld [vmem:[#allocation3 + $0x1e68] sm:$0xff]
    %v1499 = vld [vmem:[#allocation3 + $0x1e70] sm:$0xff]
    %v1500 = vld [vmem:[#allocation3 + $0x1e78] sm:$0xff]
    %v1501 = vld [vmem:[#allocation3 + $0x1e80] sm:$0xff]
    %v1502 = vld [vmem:[#allocation3 + $0x1e88] sm:$0xff]
    %v1503 = vld [vmem:[#allocation3 + $0x1e90] sm:$0xff]
    %v1504 = vld [vmem:[#allocation3 + $0x1e98] sm:$0xff]
    %v1505 = vld [vmem:[#allocation3 + $0x1ea0] sm:$0xff]
    %v1506 = vld [vmem:[#allocation3 + $0x1ea8] sm:$0xff]
    %v1507 = vld [vmem:[#allocation3 + $0x1eb0] sm:$0xff]
    %v1508 = vld [vmem:[#allocation3 + $0x1eb8] sm:$0xff]
    %v1509 = vld [vmem:[#allocation3 + $0x1ec0] sm:$0xff]
    %v1510 = vld [vmem:[#allocation3 + $0x1ec8] sm:$0xff]
    %v1511 = vld [vmem:[#allocation3 + $0x1ed0] sm:$0xff]
    %v1512 = vld [vmem:[#allocation3 + $0x1ed8] sm:$0xff]
    %v1513 = vld [vmem:[#allocation3 + $0x1ee0] sm:$0xff]
    %v1514 = vld [vmem:[#allocation3 + $0x1ee8] sm:$0xff]
    %v1515 = vld [vmem:[#allocation3 + $0x1ef0] sm:$0xff]
    %v1516 = vld [vmem:[#allocation3 + $0x1ef8] sm:$0xff]
    %v1517 = vld [vmem:[#allocation3 + $0x1f00] sm:$0xff]
    %v1518 = vld [vmem:[#allocation3 + $0x1f08] sm:$0xff]
    %v1519 = vld [vmem:[#allocation3 + $0x1f10] sm:$0xff]
    %v1520 = vld [vmem:[#allocation3 + $0x1f18] sm:$0xff]
    %v1521 = vld [vmem:[#allocation3 + $0x1f20] sm:$0xff]
    %v1522 = vld [vmem:[#allocation3 + $0x1f28] sm:$0xff]
    %v1523 = vld [vmem:[#allocation3 + $0x1f30] sm:$0xff]
    %v1524 = vld [vmem:[#allocation3 + $0x1f38] sm:$0xff]
    %v1525 = vld [vmem:[#allocation3 + $0x1f40] sm:$0xff]
    %v1526 = vld [vmem:[#allocation3 + $0x1f48] sm:$0xff]
    %v1527 = vld [vmem:[#allocation3 + $0x1f50] sm:$0xff]
    %v1528 = vld [vmem:[#allocation3 + $0x1f58] sm:$0xff]
    %v1529 = vld [vmem:[#allocation3 + $0x1f60] sm:$0xff]
    %v1530 = vld [vmem:[#allocation3 + $0x1f68] sm:$0xff]
    %v1531 = vld [vmem:[#allocation3 + $0x1f70] sm:$0xff]
    %v1532 = vld [vmem:[#allocation3 + $0x1f78] sm:$0xff]
    %v1533 = vld [vmem:[#allocation3 + $0x1f80] sm:$0xff]
    %v1534 = vld [vmem:[#allocation3 + $0x1f88] sm:$0xff]
    %v1535 = vld [vmem:[#allocation3 + $0x1f90] sm:$0xff]
    %v1536 = vld [vmem:[#allocation3 + $0x1f98] sm:$0xff]
    %v1537 = vld [vmem:[#allocation3 + $0x1fa0] sm:$0xff]
    %v1538 = vld [vmem:[#allocation3 + $0x1fa8] sm:$0xff]
    %v1539 = vld [vmem:[#allocation3 + $0x1fb0] sm:$0xff]
    %v1540 = vld [vmem:[#allocation3 + $0x1fb8] sm:$0xff]
    %v1541 = vld [vmem:[#allocation3 + $0x1fc0] sm:$0xff]
    %v1542 = vld [vmem:[#allocation3 + $0x1fc8] sm:$0xff]
    %v1543 = vld [vmem:[#allocation3 + $0x1fd0] sm:$0xff]
    %v1544 = vld [vmem:[#allocation3 + $0x1fd8] sm:$0xff]
    %v1545 = vld [vmem:[#allocation3 + $0x1fe0] sm:$0xff]
    %v1546 = vld [vmem:[#allocation3 + $0x1fe8] sm:$0xff]
    %v1547 = vld [vmem:[#allocation3 + $0x1ff0] sm:$0xff]
    %v1548 = vld [vmem:[#allocation3 + $0x1ff8] sm:$0xff]
    %v2573 = vunpack.c.l.b16 %v525
    %v2574 = vunpack.c.h.b16 %v525
    %v2575 = vunpack.c.l.b16 %v526
    %v2576 = vunpack.c.h.b16 %v526
    %v2577 = vunpack.c.l.b16 %v527
    %v2578 = vunpack.c.h.b16 %v527
    %v2579 = vunpack.c.l.b16 %v528
    %v2580 = vunpack.c.h.b16 %v528
    %v2581 = vunpack.c.l.b16 %v529
    %v2582 = vunpack.c.h.b16 %v529
    %v2583 = vunpack.c.l.b16 %v530
    %v2584 = vunpack.c.h.b16 %v530
    %v2585 = vunpack.c.l.b16 %v531
    %v2586 = vunpack.c.h.b16 %v531
    %v2587 = vunpack.c.l.b16 %v532
    %v2588 = vunpack.c.h.b16 %v532
    %v2589 = vunpack.c.l.b16 %v533
    %v2590 = vunpack.c.h.b16 %v533
    %v2591 = vunpack.c.l.b16 %v534
    %v2592 = vunpack.c.h.b16 %v534
    %v2593 = vunpack.c.l.b16 %v535
    %v2594 = vunpack.c.h.b16 %v535
    %v2595 = vunpack.c.l.b16 %v536
    %v2596 = vunpack.c.h.b16 %v536
    %v2597 = vunpack.c.l.b16 %v537
    %v2598 = vunpack.c.h.b16 %v537
    %v2599 = vunpack.c.l.b16 %v538
    %v2600 = vunpack.c.h.b16 %v538
    %v2601 = vunpack.c.l.b16 %v539
    %v2602 = vunpack.c.h.b16 %v539
    %v2603 = vunpack.c.l.b16 %v540
    %v2604 = vunpack.c.h.b16 %v540
    %v2605 = vunpack.c.l.b16 %v541
    %v2606 = vunpack.c.h.b16 %v541
    %v2607 = vunpack.c.l.b16 %v542
    %v2608 = vunpack.c.h.b16 %v542
    %v2609 = vunpack.c.l.b16 %v543
    %v2610 = vunpack.c.h.b16 %v543
    %v2611 = vunpack.c.l.b16 %v544
    %v2612 = vunpack.c.h.b16 %v544
    %v2613 = vunpack.c.l.b16 %v545
    %v2614 = vunpack.c.h.b16 %v545
    %v2615 = vunpack.c.l.b16 %v546
    %v2616 = vunpack.c.h.b16 %v546
    %v2617 = vunpack.c.l.b16 %v547
    %v2618 = vunpack.c.h.b16 %v547
    %v2619 = vunpack.c.l.b16 %v548
    %v2620 = vunpack.c.h.b16 %v548
    %v2621 = vunpack.c.l.b16 %v549
    %v2622 = vunpack.c.h.b16 %v549
    %v2623 = vunpack.c.l.b16 %v550
    %v2624 = vunpack.c.h.b16 %v550
    %v2625 = vunpack.c.l.b16 %v551
    %v2626 = vunpack.c.h.b16 %v551
    %v2627 = vunpack.c.l.b16 %v552
    %v2628 = vunpack.c.h.b16 %v552
    %v2629 = vunpack.c.l.b16 %v553
    %v2630 = vunpack.c.h.b16 %v553
    %v2631 = vunpack.c.l.b16 %v554
    %v2632 = vunpack.c.h.b16 %v554
    %v2633 = vunpack.c.l.b16 %v555
    %v2634 = vunpack.c.h.b16 %v555
    %v2635 = vunpack.c.l.b16 %v556
    %v2636 = vunpack.c.h.b16 %v556
    %v2637 = vunpack.c.l.b16 %v557
    %v2638 = vunpack.c.h.b16 %v557
    %v2639 = vunpack.c.l.b16 %v558
    %v2640 = vunpack.c.h.b16 %v558
    %v2641 = vunpack.c.l.b16 %v559
    %v2642 = vunpack.c.h.b16 %v559
    %v2643 = vunpack.c.l.b16 %v560
    %v2644 = vunpack.c.h.b16 %v560
    %v2645 = vunpack.c.l.b16 %v561
    %v2646 = vunpack.c.h.b16 %v561
    %v2647 = vunpack.c.l.b16 %v562
    %v2648 = vunpack.c.h.b16 %v562
    %v2649 = vunpack.c.l.b16 %v563
    %v2650 = vunpack.c.h.b16 %v563
    %v2651 = vunpack.c.l.b16 %v564
    %v2652 = vunpack.c.h.b16 %v564
    %v2653 = vunpack.c.l.b16 %v565
    %v2654 = vunpack.c.h.b16 %v565
    %v2655 = vunpack.c.l.b16 %v566
    %v2656 = vunpack.c.h.b16 %v566
    %v2657 = vunpack.c.l.b16 %v567
    %v2658 = vunpack.c.h.b16 %v567
    %v2659 = vunpack.c.l.b16 %v568
    %v2660 = vunpack.c.h.b16 %v568
    %v2661 = vunpack.c.l.b16 %v569
    %v2662 = vunpack.c.h.b16 %v569
    %v2663 = vunpack.c.l.b16 %v570
    %v2664 = vunpack.c.h.b16 %v570
    %v2665 = vunpack.c.l.b16 %v571
    %v2666 = vunpack.c.h.b16 %v571
    %v2667 = vunpack.c.l.b16 %v572
    %v2668 = vunpack.c.h.b16 %v572
    %v2669 = vunpack.c.l.b16 %v573
    %v2670 = vunpack.c.h.b16 %v573
    %v2671 = vunpack.c.l.b16 %v574
    %v2672 = vunpack.c.h.b16 %v574
    %v2673 = vunpack.c.l.b16 %v575
    %v2674 = vunpack.c.h.b16 %v575
    %v2675 = vunpack.c.l.b16 %v576
    %v2676 = vunpack.c.h.b16 %v576
    %v2677 = vunpack.c.l.b16 %v577
    %v2678 = vunpack.c.h.b16 %v577
    %v2679 = vunpack.c.l.b16 %v578
    %v2680 = vunpack.c.h.b16 %v578
    %v2681 = vunpack.c.l.b16 %v579
    %v2682 = vunpack.c.h.b16 %v579
    %v2683 = vunpack.c.l.b16 %v580
    %v2684 = vunpack.c.h.b16 %v580
    %v2685 = vunpack.c.l.b16 %v581
    %v2686 = vunpack.c.h.b16 %v581
    %v2687 = vunpack.c.l.b16 %v582
    %v2688 = vunpack.c.h.b16 %v582
    %v2689 = vunpack.c.l.b16 %v583
    %v2690 = vunpack.c.h.b16 %v583
    %v2691 = vunpack.c.l.b16 %v584
    %v2692 = vunpack.c.h.b16 %v584
    %v2693 = vunpack.c.l.b16 %v585
    %v2694 = vunpack.c.h.b16 %v585
    %v2695 = vunpack.c.l.b16 %v586
    %v2696 = vunpack.c.h.b16 %v586
    %v2697 = vunpack.c.l.b16 %v587
    %v2698 = vunpack.c.h.b16 %v587
    %v2699 = vunpack.c.l.b16 %v588
    %v2700 = vunpack.c.h.b16 %v588
    %v2701 = vunpack.c.l.b16 %v589
    %v2702 = vunpack.c.h.b16 %v589
    %v2703 = vunpack.c.l.b16 %v590
    %v2704 = vunpack.c.h.b16 %v590
    %v2705 = vunpack.c.l.b16 %v591
    %v2706 = vunpack.c.h.b16 %v591
    %v2707 = vunpack.c.l.b16 %v592
    %v2708 = vunpack.c.h.b16 %v592
    %v2709 = vunpack.c.l.b16 %v593
    %v2710 = vunpack.c.h.b16 %v593
    %v2711 = vunpack.c.l.b16 %v594
    %v2712 = vunpack.c.h.b16 %v594
    %v2713 = vunpack.c.l.b16 %v595
    %v2714 = vunpack.c.h.b16 %v595
    %v2715 = vunpack.c.l.b16 %v596
    %v2716 = vunpack.c.h.b16 %v596
    %v2717 = vunpack.c.l.b16 %v597
    %v2718 = vunpack.c.h.b16 %v597
    %v2719 = vunpack.c.l.b16 %v598
    %v2720 = vunpack.c.h.b16 %v598
    %v2721 = vunpack.c.l.b16 %v599
    %v2722 = vunpack.c.h.b16 %v599
    %v2723 = vunpack.c.l.b16 %v600
    %v2724 = vunpack.c.h.b16 %v600
    %v2725 = vunpack.c.l.b16 %v601
    %v2726 = vunpack.c.h.b16 %v601
    %v2727 = vunpack.c.l.b16 %v602
    %v2728 = vunpack.c.h.b16 %v602
    %v2729 = vunpack.c.l.b16 %v603
    %v2730 = vunpack.c.h.b16 %v603
    %v2731 = vunpack.c.l.b16 %v604
    %v2732 = vunpack.c.h.b16 %v604
    %v2733 = vunpack.c.l.b16 %v605
    %v2734 = vunpack.c.h.b16 %v605
    %v2735 = vunpack.c.l.b16 %v606
    %v2736 = vunpack.c.h.b16 %v606
    %v2737 = vunpack.c.l.b16 %v607
    %v2738 = vunpack.c.h.b16 %v607
    %v2739 = vunpack.c.l.b16 %v608
    %v2740 = vunpack.c.h.b16 %v608
    %v2741 = vunpack.c.l.b16 %v609
    %v2742 = vunpack.c.h.b16 %v609
    %v2743 = vunpack.c.l.b16 %v610
    %v2744 = vunpack.c.h.b16 %v610
    %v2745 = vunpack.c.l.b16 %v611
    %v2746 = vunpack.c.h.b16 %v611
    %v2747 = vunpack.c.l.b16 %v612
    %v2748 = vunpack.c.h.b16 %v612
    %v2749 = vunpack.c.l.b16 %v613
    %v2750 = vunpack.c.h.b16 %v613
    %v2751 = vunpack.c.l.b16 %v614
    %v2752 = vunpack.c.h.b16 %v614
    %v2753 = vunpack.c.l.b16 %v615
    %v2754 = vunpack.c.h.b16 %v615
    %v2755 = vunpack.c.l.b16 %v616
    %v2756 = vunpack.c.h.b16 %v616
    %v2757 = vunpack.c.l.b16 %v617
    %v2758 = vunpack.c.h.b16 %v617
    %v2759 = vunpack.c.l.b16 %v618
    %v2760 = vunpack.c.h.b16 %v618
    %v2761 = vunpack.c.l.b16 %v619
    %v2762 = vunpack.c.h.b16 %v619
    %v2763 = vunpack.c.l.b16 %v620
    %v2764 = vunpack.c.h.b16 %v620
    %v2765 = vunpack.c.l.b16 %v621
    %v2766 = vunpack.c.h.b16 %v621
    %v2767 = vunpack.c.l.b16 %v622
    %v2768 = vunpack.c.h.b16 %v622
    %v2769 = vunpack.c.l.b16 %v623
    %v2770 = vunpack.c.h.b16 %v623
    %v2771 = vunpack.c.l.b16 %v624
    %v2772 = vunpack.c.h.b16 %v624
    %v2773 = vunpack.c.l.b16 %v625
    %v2774 = vunpack.c.h.b16 %v625
    %v2775 = vunpack.c.l.b16 %v626
    %v2776 = vunpack.c.h.b16 %v626
    %v2777 = vunpack.c.l.b16 %v627
    %v2778 = vunpack.c.h.b16 %v627
    %v2779 = vunpack.c.l.b16 %v628
    %v2780 = vunpack.c.h.b16 %v628
    %v2781 = vunpack.c.l.b16 %v629
    %v2782 = vunpack.c.h.b16 %v629
    %v2783 = vunpack.c.l.b16 %v630
    %v2784 = vunpack.c.h.b16 %v630
    %v2785 = vunpack.c.l.b16 %v631
    %v2786 = vunpack.c.h.b16 %v631
    %v2787 = vunpack.c.l.b16 %v632
    %v2788 = vunpack.c.h.b16 %v632
    %v2789 = vunpack.c.l.b16 %v633
    %v2790 = vunpack.c.h.b16 %v633
    %v2791 = vunpack.c.l.b16 %v634
    %v2792 = vunpack.c.h.b16 %v634
    %v2793 = vunpack.c.l.b16 %v635
    %v2794 = vunpack.c.h.b16 %v635
    %v2795 = vunpack.c.l.b16 %v636
    %v2796 = vunpack.c.h.b16 %v636
    %v2797 = vunpack.c.l.b16 %v637
    %v2798 = vunpack.c.h.b16 %v637
    %v2799 = vunpack.c.l.b16 %v638
    %v2800 = vunpack.c.h.b16 %v638
    %v2801 = vunpack.c.l.b16 %v639
    %v2802 = vunpack.c.h.b16 %v639
    %v2803 = vunpack.c.l.b16 %v640
    %v2804 = vunpack.c.h.b16 %v640
    %v2805 = vunpack.c.l.b16 %v641
    %v2806 = vunpack.c.h.b16 %v641
    %v2807 = vunpack.c.l.b16 %v642
    %v2808 = vunpack.c.h.b16 %v642
    %v2809 = vunpack.c.l.b16 %v643
    %v2810 = vunpack.c.h.b16 %v643
    %v2811 = vunpack.c.l.b16 %v644
    %v2812 = vunpack.c.h.b16 %v644
    %v2813 = vunpack.c.l.b16 %v645
    %v2814 = vunpack.c.h.b16 %v645
    %v2815 = vunpack.c.l.b16 %v646
    %v2816 = vunpack.c.h.b16 %v646
    %v2817 = vunpack.c.l.b16 %v647
    %v2818 = vunpack.c.h.b16 %v647
    %v2819 = vunpack.c.l.b16 %v648
    %v2820 = vunpack.c.h.b16 %v648
    %v2821 = vunpack.c.l.b16 %v649
    %v2822 = vunpack.c.h.b16 %v649
    %v2823 = vunpack.c.l.b16 %v650
    %v2824 = vunpack.c.h.b16 %v650
    %v2825 = vunpack.c.l.b16 %v651
    %v2826 = vunpack.c.h.b16 %v651
    %v2827 = vunpack.c.l.b16 %v652
    %v2828 = vunpack.c.h.b16 %v652
    %v2829 = vunpack.c.l.b16 %v653
    %v2830 = vunpack.c.h.b16 %v653
    %v2831 = vunpack.c.l.b16 %v654
    %v2832 = vunpack.c.h.b16 %v654
    %v2833 = vunpack.c.l.b16 %v655
    %v2834 = vunpack.c.h.b16 %v655
    %v2835 = vunpack.c.l.b16 %v656
    %v2836 = vunpack.c.h.b16 %v656
    %v2837 = vunpack.c.l.b16 %v657
    %v2838 = vunpack.c.h.b16 %v657
    %v2839 = vunpack.c.l.b16 %v658
    %v2840 = vunpack.c.h.b16 %v658
    %v2841 = vunpack.c.l.b16 %v659
    %v2842 = vunpack.c.h.b16 %v659
    %v2843 = vunpack.c.l.b16 %v660
    %v2844 = vunpack.c.h.b16 %v660
    %v2845 = vunpack.c.l.b16 %v661
    %v2846 = vunpack.c.h.b16 %v661
    %v2847 = vunpack.c.l.b16 %v662
    %v2848 = vunpack.c.h.b16 %v662
    %v2849 = vunpack.c.l.b16 %v663
    %v2850 = vunpack.c.h.b16 %v663
    %v2851 = vunpack.c.l.b16 %v664
    %v2852 = vunpack.c.h.b16 %v664
    %v2853 = vunpack.c.l.b16 %v665
    %v2854 = vunpack.c.h.b16 %v665
    %v2855 = vunpack.c.l.b16 %v666
    %v2856 = vunpack.c.h.b16 %v666
    %v2857 = vunpack.c.l.b16 %v667
    %v2858 = vunpack.c.h.b16 %v667
    %v2859 = vunpack.c.l.b16 %v668
    %v2860 = vunpack.c.h.b16 %v668
    %v2861 = vunpack.c.l.b16 %v669
    %v2862 = vunpack.c.h.b16 %v669
    %v2863 = vunpack.c.l.b16 %v670
    %v2864 = vunpack.c.h.b16 %v670
    %v2865 = vunpack.c.l.b16 %v671
    %v2866 = vunpack.c.h.b16 %v671
    %v2867 = vunpack.c.l.b16 %v672
    %v2868 = vunpack.c.h.b16 %v672
    %v2869 = vunpack.c.l.b16 %v673
    %v2870 = vunpack.c.h.b16 %v673
    %v2871 = vunpack.c.l.b16 %v674
    %v2872 = vunpack.c.h.b16 %v674
    %v2873 = vunpack.c.l.b16 %v675
    %v2874 = vunpack.c.h.b16 %v675
    %v2875 = vunpack.c.l.b16 %v676
    %v2876 = vunpack.c.h.b16 %v676
    %v2877 = vunpack.c.l.b16 %v677
    %v2878 = vunpack.c.h.b16 %v677
    %v2879 = vunpack.c.l.b16 %v678
    %v2880 = vunpack.c.h.b16 %v678
    %v2881 = vunpack.c.l.b16 %v679
    %v2882 = vunpack.c.h.b16 %v679
    %v2883 = vunpack.c.l.b16 %v680
    %v2884 = vunpack.c.h.b16 %v680
    %v2885 = vunpack.c.l.b16 %v681
    %v2886 = vunpack.c.h.b16 %v681
    %v2887 = vunpack.c.l.b16 %v682
    %v2888 = vunpack.c.h.b16 %v682
    %v2889 = vunpack.c.l.b16 %v683
    %v2890 = vunpack.c.h.b16 %v683
    %v2891 = vunpack.c.l.b16 %v684
    %v2892 = vunpack.c.h.b16 %v684
    %v2893 = vunpack.c.l.b16 %v685
    %v2894 = vunpack.c.h.b16 %v685
    %v2895 = vunpack.c.l.b16 %v686
    %v2896 = vunpack.c.h.b16 %v686
    %v2897 = vunpack.c.l.b16 %v687
    %v2898 = vunpack.c.h.b16 %v687
    %v2899 = vunpack.c.l.b16 %v688
    %v2900 = vunpack.c.h.b16 %v688
    %v2901 = vunpack.c.l.b16 %v689
    %v2902 = vunpack.c.h.b16 %v689
    %v2903 = vunpack.c.l.b16 %v690
    %v2904 = vunpack.c.h.b16 %v690
    %v2905 = vunpack.c.l.b16 %v691
    %v2906 = vunpack.c.h.b16 %v691
    %v2907 = vunpack.c.l.b16 %v692
    %v2908 = vunpack.c.h.b16 %v692
    %v2909 = vunpack.c.l.b16 %v693
    %v2910 = vunpack.c.h.b16 %v693
    %v2911 = vunpack.c.l.b16 %v694
    %v2912 = vunpack.c.h.b16 %v694
    %v2913 = vunpack.c.l.b16 %v695
    %v2914 = vunpack.c.h.b16 %v695
    %v2915 = vunpack.c.l.b16 %v696
    %v2916 = vunpack.c.h.b16 %v696
    %v2917 = vunpack.c.l.b16 %v697
    %v2918 = vunpack.c.h.b16 %v697
    %v2919 = vunpack.c.l.b16 %v698
    %v2920 = vunpack.c.h.b16 %v698
    %v2921 = vunpack.c.l.b16 %v699
    %v2922 = vunpack.c.h.b16 %v699
    %v2923 = vunpack.c.l.b16 %v700
    %v2924 = vunpack.c.h.b16 %v700
    %v2925 = vunpack.c.l.b16 %v701
    %v2926 = vunpack.c.h.b16 %v701
    %v2927 = vunpack.c.l.b16 %v702
    %v2928 = vunpack.c.h.b16 %v702
    %v2929 = vunpack.c.l.b16 %v703
    %v2930 = vunpack.c.h.b16 %v703
    %v2931 = vunpack.c.l.b16 %v704
    %v2932 = vunpack.c.h.b16 %v704
    %v2933 = vunpack.c.l.b16 %v705
    %v2934 = vunpack.c.h.b16 %v705
    %v2935 = vunpack.c.l.b16 %v706
    %v2936 = vunpack.c.h.b16 %v706
    %v2937 = vunpack.c.l.b16 %v707
    %v2938 = vunpack.c.h.b16 %v707
    %v2939 = vunpack.c.l.b16 %v708
    %v2940 = vunpack.c.h.b16 %v708
    %v2941 = vunpack.c.l.b16 %v709
    %v2942 = vunpack.c.h.b16 %v709
    %v2943 = vunpack.c.l.b16 %v710
    %v2944 = vunpack.c.h.b16 %v710
    %v2945 = vunpack.c.l.b16 %v711
    %v2946 = vunpack.c.h.b16 %v711
    %v2947 = vunpack.c.l.b16 %v712
    %v2948 = vunpack.c.h.b16 %v712
    %v2949 = vunpack.c.l.b16 %v713
    %v2950 = vunpack.c.h.b16 %v713
    %v2951 = vunpack.c.l.b16 %v714
    %v2952 = vunpack.c.h.b16 %v714
    %v2953 = vunpack.c.l.b16 %v715
    %v2954 = vunpack.c.h.b16 %v715
    %v2955 = vunpack.c.l.b16 %v716
    %v2956 = vunpack.c.h.b16 %v716
    %v2957 = vunpack.c.l.b16 %v717
    %v2958 = vunpack.c.h.b16 %v717
    %v2959 = vunpack.c.l.b16 %v718
    %v2960 = vunpack.c.h.b16 %v718
    %v2961 = vunpack.c.l.b16 %v719
    %v2962 = vunpack.c.h.b16 %v719
    %v2963 = vunpack.c.l.b16 %v720
    %v2964 = vunpack.c.h.b16 %v720
    %v2965 = vunpack.c.l.b16 %v721
    %v2966 = vunpack.c.h.b16 %v721
    %v2967 = vunpack.c.l.b16 %v722
    %v2968 = vunpack.c.h.b16 %v722
    %v2969 = vunpack.c.l.b16 %v723
    %v2970 = vunpack.c.h.b16 %v723
    %v2971 = vunpack.c.l.b16 %v724
    %v2972 = vunpack.c.h.b16 %v724
    %v2973 = vunpack.c.l.b16 %v725
    %v2974 = vunpack.c.h.b16 %v725
    %v2975 = vunpack.c.l.b16 %v726
    %v2976 = vunpack.c.h.b16 %v726
    %v2977 = vunpack.c.l.b16 %v727
    %v2978 = vunpack.c.h.b16 %v727
    %v2979 = vunpack.c.l.b16 %v728
    %v2980 = vunpack.c.h.b16 %v728
    %v2981 = vunpack.c.l.b16 %v729
    %v2982 = vunpack.c.h.b16 %v729
    %v2983 = vunpack.c.l.b16 %v730
    %v2984 = vunpack.c.h.b16 %v730
    %v2985 = vunpack.c.l.b16 %v731
    %v2986 = vunpack.c.h.b16 %v731
    %v2987 = vunpack.c.l.b16 %v732
    %v2988 = vunpack.c.h.b16 %v732
    %v2989 = vunpack.c.l.b16 %v733
    %v2990 = vunpack.c.h.b16 %v733
    %v2991 = vunpack.c.l.b16 %v734
    %v2992 = vunpack.c.h.b16 %v734
    %v2993 = vunpack.c.l.b16 %v735
    %v2994 = vunpack.c.h.b16 %v735
    %v2995 = vunpack.c.l.b16 %v736
    %v2996 = vunpack.c.h.b16 %v736
    %v2997 = vunpack.c.l.b16 %v737
    %v2998 = vunpack.c.h.b16 %v737
    %v2999 = vunpack.c.l.b16 %v738
    %v3000 = vunpack.c.h.b16 %v738
    %v3001 = vunpack.c.l.b16 %v739
    %v3002 = vunpack.c.h.b16 %v739
    %v3003 = vunpack.c.l.b16 %v740
    %v3004 = vunpack.c.h.b16 %v740
    %v3005 = vunpack.c.l.b16 %v741
    %v3006 = vunpack.c.h.b16 %v741
    %v3007 = vunpack.c.l.b16 %v742
    %v3008 = vunpack.c.h.b16 %v742
    %v3009 = vunpack.c.l.b16 %v743
    %v3010 = vunpack.c.h.b16 %v743
    %v3011 = vunpack.c.l.b16 %v744
    %v3012 = vunpack.c.h.b16 %v744
    %v3013 = vunpack.c.l.b16 %v745
    %v3014 = vunpack.c.h.b16 %v745
    %v3015 = vunpack.c.l.b16 %v746
    %v3016 = vunpack.c.h.b16 %v746
    %v3017 = vunpack.c.l.b16 %v747
    %v3018 = vunpack.c.h.b16 %v747
    %v3019 = vunpack.c.l.b16 %v748
    %v3020 = vunpack.c.h.b16 %v748
    %v3021 = vunpack.c.l.b16 %v749
    %v3022 = vunpack.c.h.b16 %v749
    %v3023 = vunpack.c.l.b16 %v750
    %v3024 = vunpack.c.h.b16 %v750
    %v3025 = vunpack.c.l.b16 %v751
    %v3026 = vunpack.c.h.b16 %v751
    %v3027 = vunpack.c.l.b16 %v752
    %v3028 = vunpack.c.h.b16 %v752
    %v3029 = vunpack.c.l.b16 %v753
    %v3030 = vunpack.c.h.b16 %v753
    %v3031 = vunpack.c.l.b16 %v754
    %v3032 = vunpack.c.h.b16 %v754
    %v3033 = vunpack.c.l.b16 %v755
    %v3034 = vunpack.c.h.b16 %v755
    %v3035 = vunpack.c.l.b16 %v756
    %v3036 = vunpack.c.h.b16 %v756
    %v3037 = vunpack.c.l.b16 %v757
    %v3038 = vunpack.c.h.b16 %v757
    %v3039 = vunpack.c.l.b16 %v758
    %v3040 = vunpack.c.h.b16 %v758
    %v3041 = vunpack.c.l.b16 %v759
    %v3042 = vunpack.c.h.b16 %v759
    %v3043 = vunpack.c.l.b16 %v760
    %v3044 = vunpack.c.h.b16 %v760
    %v3045 = vunpack.c.l.b16 %v761
    %v3046 = vunpack.c.h.b16 %v761
    %v3047 = vunpack.c.l.b16 %v762
    %v3048 = vunpack.c.h.b16 %v762
    %v3049 = vunpack.c.l.b16 %v763
    %v3050 = vunpack.c.h.b16 %v763
    %v3051 = vunpack.c.l.b16 %v764
    %v3052 = vunpack.c.h.b16 %v764
    %v3053 = vunpack.c.l.b16 %v765
    %v3054 = vunpack.c.h.b16 %v765
    %v3055 = vunpack.c.l.b16 %v766
    %v3056 = vunpack.c.h.b16 %v766
    %v3057 = vunpack.c.l.b16 %v767
    %v3058 = vunpack.c.h.b16 %v767
    %v3059 = vunpack.c.l.b16 %v768
    %v3060 = vunpack.c.h.b16 %v768
    %v3061 = vunpack.c.l.b16 %v769
    %v3062 = vunpack.c.h.b16 %v769
    %v3063 = vunpack.c.l.b16 %v770
    %v3064 = vunpack.c.h.b16 %v770
    %v3065 = vunpack.c.l.b16 %v771
    %v3066 = vunpack.c.h.b16 %v771
    %v3067 = vunpack.c.l.b16 %v772
    %v3068 = vunpack.c.h.b16 %v772
    %v3069 = vunpack.c.l.b16 %v773
    %v3070 = vunpack.c.h.b16 %v773
    %v3071 = vunpack.c.l.b16 %v774
    %v3072 = vunpack.c.h.b16 %v774
    %v3073 = vunpack.c.l.b16 %v775
    %v3074 = vunpack.c.h.b16 %v775
    %v3075 = vunpack.c.l.b16 %v776
    %v3076 = vunpack.c.h.b16 %v776
    %v3077 = vunpack.c.l.b16 %v777
    %v3078 = vunpack.c.h.b16 %v777
    %v3079 = vunpack.c.l.b16 %v778
    %v3080 = vunpack.c.h.b16 %v778
    %v3081 = vunpack.c.l.b16 %v779
    %v3082 = vunpack.c.h.b16 %v779
    %v3083 = vunpack.c.l.b16 %v780
    %v3084 = vunpack.c.h.b16 %v780
    %v3085 = vunpack.c.l.b16 %v781
    %v3086 = vunpack.c.h.b16 %v781
    %v3087 = vunpack.c.l.b16 %v782
    %v3088 = vunpack.c.h.b16 %v782
    %v3089 = vunpack.c.l.b16 %v783
    %v3090 = vunpack.c.h.b16 %v783
    %v3091 = vunpack.c.l.b16 %v784
    %v3092 = vunpack.c.h.b16 %v784
    %v3093 = vunpack.c.l.b16 %v785
    %v3094 = vunpack.c.h.b16 %v785
    %v3095 = vunpack.c.l.b16 %v786
    %v3096 = vunpack.c.h.b16 %v786
    %v3097 = vunpack.c.l.b16 %v787
    %v3098 = vunpack.c.h.b16 %v787
    %v3099 = vunpack.c.l.b16 %v788
    %v3100 = vunpack.c.h.b16 %v788
    %v3101 = vunpack.c.l.b16 %v789
    %v3102 = vunpack.c.h.b16 %v789
    %v3103 = vunpack.c.l.b16 %v790
    %v3104 = vunpack.c.h.b16 %v790
    %v3105 = vunpack.c.l.b16 %v791
    %v3106 = vunpack.c.h.b16 %v791
    %v3107 = vunpack.c.l.b16 %v792
    %v3108 = vunpack.c.h.b16 %v792
    %v3109 = vunpack.c.l.b16 %v793
    %v3110 = vunpack.c.h.b16 %v793
    %v3111 = vunpack.c.l.b16 %v794
    %v3112 = vunpack.c.h.b16 %v794
    %v3113 = vunpack.c.l.b16 %v795
    %v3114 = vunpack.c.h.b16 %v795
    %v3115 = vunpack.c.l.b16 %v796
    %v3116 = vunpack.c.h.b16 %v796
    %v3117 = vunpack.c.l.b16 %v797
    %v3118 = vunpack.c.h.b16 %v797
    %v3119 = vunpack.c.l.b16 %v798
    %v3120 = vunpack.c.h.b16 %v798
    %v3121 = vunpack.c.l.b16 %v799
    %v3122 = vunpack.c.h.b16 %v799
    %v3123 = vunpack.c.l.b16 %v800
    %v3124 = vunpack.c.h.b16 %v800
    %v3125 = vunpack.c.l.b16 %v801
    %v3126 = vunpack.c.h.b16 %v801
    %v3127 = vunpack.c.l.b16 %v802
    %v3128 = vunpack.c.h.b16 %v802
    %v3129 = vunpack.c.l.b16 %v803
    %v3130 = vunpack.c.h.b16 %v803
    %v3131 = vunpack.c.l.b16 %v804
    %v3132 = vunpack.c.h.b16 %v804
    %v3133 = vunpack.c.l.b16 %v805
    %v3134 = vunpack.c.h.b16 %v805
    %v3135 = vunpack.c.l.b16 %v806
    %v3136 = vunpack.c.h.b16 %v806
    %v3137 = vunpack.c.l.b16 %v807
    %v3138 = vunpack.c.h.b16 %v807
    %v3139 = vunpack.c.l.b16 %v808
    %v3140 = vunpack.c.h.b16 %v808
    %v3141 = vunpack.c.l.b16 %v809
    %v3142 = vunpack.c.h.b16 %v809
    %v3143 = vunpack.c.l.b16 %v810
    %v3144 = vunpack.c.h.b16 %v810
    %v3145 = vunpack.c.l.b16 %v811
    %v3146 = vunpack.c.h.b16 %v811
    %v3147 = vunpack.c.l.b16 %v812
    %v3148 = vunpack.c.h.b16 %v812
    %v3149 = vunpack.c.l.b16 %v813
    %v3150 = vunpack.c.h.b16 %v813
    %v3151 = vunpack.c.l.b16 %v814
    %v3152 = vunpack.c.h.b16 %v814
    %v3153 = vunpack.c.l.b16 %v815
    %v3154 = vunpack.c.h.b16 %v815
    %v3155 = vunpack.c.l.b16 %v816
    %v3156 = vunpack.c.h.b16 %v816
    %v3157 = vunpack.c.l.b16 %v817
    %v3158 = vunpack.c.h.b16 %v817
    %v3159 = vunpack.c.l.b16 %v818
    %v3160 = vunpack.c.h.b16 %v818
    %v3161 = vunpack.c.l.b16 %v819
    %v3162 = vunpack.c.h.b16 %v819
    %v3163 = vunpack.c.l.b16 %v820
    %v3164 = vunpack.c.h.b16 %v820
    %v3165 = vunpack.c.l.b16 %v821
    %v3166 = vunpack.c.h.b16 %v821
    %v3167 = vunpack.c.l.b16 %v822
    %v3168 = vunpack.c.h.b16 %v822
    %v3169 = vunpack.c.l.b16 %v823
    %v3170 = vunpack.c.h.b16 %v823
    %v3171 = vunpack.c.l.b16 %v824
    %v3172 = vunpack.c.h.b16 %v824
    %v3173 = vunpack.c.l.b16 %v825
    %v3174 = vunpack.c.h.b16 %v825
    %v3175 = vunpack.c.l.b16 %v826
    %v3176 = vunpack.c.h.b16 %v826
    %v3177 = vunpack.c.l.b16 %v827
    %v3178 = vunpack.c.h.b16 %v827
    %v3179 = vunpack.c.l.b16 %v828
    %v3180 = vunpack.c.h.b16 %v828
    %v3181 = vunpack.c.l.b16 %v829
    %v3182 = vunpack.c.h.b16 %v829
    %v3183 = vunpack.c.l.b16 %v830
    %v3184 = vunpack.c.h.b16 %v830
    %v3185 = vunpack.c.l.b16 %v831
    %v3186 = vunpack.c.h.b16 %v831
    %v3187 = vunpack.c.l.b16 %v832
    %v3188 = vunpack.c.h.b16 %v832
    %v3189 = vunpack.c.l.b16 %v833
    %v3190 = vunpack.c.h.b16 %v833
    %v3191 = vunpack.c.l.b16 %v834
    %v3192 = vunpack.c.h.b16 %v834
    %v3193 = vunpack.c.l.b16 %v835
    %v3194 = vunpack.c.h.b16 %v835
    %v3195 = vunpack.c.l.b16 %v836
    %v3196 = vunpack.c.h.b16 %v836
    %v3197 = vunpack.c.l.b16 %v837
    %v3198 = vunpack.c.h.b16 %v837
    %v3199 = vunpack.c.l.b16 %v838
    %v3200 = vunpack.c.h.b16 %v838
    %v3201 = vunpack.c.l.b16 %v839
    %v3202 = vunpack.c.h.b16 %v839
    %v3203 = vunpack.c.l.b16 %v840
    %v3204 = vunpack.c.h.b16 %v840
    %v3205 = vunpack.c.l.b16 %v841
    %v3206 = vunpack.c.h.b16 %v841
    %v3207 = vunpack.c.l.b16 %v842
    %v3208 = vunpack.c.h.b16 %v842
    %v3209 = vunpack.c.l.b16 %v843
    %v3210 = vunpack.c.h.b16 %v843
    %v3211 = vunpack.c.l.b16 %v844
    %v3212 = vunpack.c.h.b16 %v844
    %v3213 = vunpack.c.l.b16 %v845
    %v3214 = vunpack.c.h.b16 %v845
    %v3215 = vunpack.c.l.b16 %v846
    %v3216 = vunpack.c.h.b16 %v846
    %v3217 = vunpack.c.l.b16 %v847
    %v3218 = vunpack.c.h.b16 %v847
    %v3219 = vunpack.c.l.b16 %v848
    %v3220 = vunpack.c.h.b16 %v848
    %v3221 = vunpack.c.l.b16 %v849
    %v3222 = vunpack.c.h.b16 %v849
    %v3223 = vunpack.c.l.b16 %v850
    %v3224 = vunpack.c.h.b16 %v850
    %v3225 = vunpack.c.l.b16 %v851
    %v3226 = vunpack.c.h.b16 %v851
    %v3227 = vunpack.c.l.b16 %v852
    %v3228 = vunpack.c.h.b16 %v852
    %v3229 = vunpack.c.l.b16 %v853
    %v3230 = vunpack.c.h.b16 %v853
    %v3231 = vunpack.c.l.b16 %v854
    %v3232 = vunpack.c.h.b16 %v854
    %v3233 = vunpack.c.l.b16 %v855
    %v3234 = vunpack.c.h.b16 %v855
    %v3235 = vunpack.c.l.b16 %v856
    %v3236 = vunpack.c.h.b16 %v856
    %v3237 = vunpack.c.l.b16 %v857
    %v3238 = vunpack.c.h.b16 %v857
    %v3239 = vunpack.c.l.b16 %v858
    %v3240 = vunpack.c.h.b16 %v858
    %v3241 = vunpack.c.l.b16 %v859
    %v3242 = vunpack.c.h.b16 %v859
    %v3243 = vunpack.c.l.b16 %v860
    %v3244 = vunpack.c.h.b16 %v860
    %v3245 = vunpack.c.l.b16 %v861
    %v3246 = vunpack.c.h.b16 %v861
    %v3247 = vunpack.c.l.b16 %v862
    %v3248 = vunpack.c.h.b16 %v862
    %v3249 = vunpack.c.l.b16 %v863
    %v3250 = vunpack.c.h.b16 %v863
    %v3251 = vunpack.c.l.b16 %v864
    %v3252 = vunpack.c.h.b16 %v864
    %v3253 = vunpack.c.l.b16 %v865
    %v3254 = vunpack.c.h.b16 %v865
    %v3255 = vunpack.c.l.b16 %v866
    %v3256 = vunpack.c.h.b16 %v866
    %v3257 = vunpack.c.l.b16 %v867
    %v3258 = vunpack.c.h.b16 %v867
    %v3259 = vunpack.c.l.b16 %v868
    %v3260 = vunpack.c.h.b16 %v868
    %v3261 = vunpack.c.l.b16 %v869
    %v3262 = vunpack.c.h.b16 %v869
    %v3263 = vunpack.c.l.b16 %v870
    %v3264 = vunpack.c.h.b16 %v870
    %v3265 = vunpack.c.l.b16 %v871
    %v3266 = vunpack.c.h.b16 %v871
    %v3267 = vunpack.c.l.b16 %v872
    %v3268 = vunpack.c.h.b16 %v872
    %v3269 = vunpack.c.l.b16 %v873
    %v3270 = vunpack.c.h.b16 %v873
    %v3271 = vunpack.c.l.b16 %v874
    %v3272 = vunpack.c.h.b16 %v874
    %v3273 = vunpack.c.l.b16 %v875
    %v3274 = vunpack.c.h.b16 %v875
    %v3275 = vunpack.c.l.b16 %v876
    %v3276 = vunpack.c.h.b16 %v876
    %v3277 = vunpack.c.l.b16 %v877
    %v3278 = vunpack.c.h.b16 %v877
    %v3279 = vunpack.c.l.b16 %v878
    %v3280 = vunpack.c.h.b16 %v878
    %v3281 = vunpack.c.l.b16 %v879
    %v3282 = vunpack.c.h.b16 %v879
    %v3283 = vunpack.c.l.b16 %v880
    %v3284 = vunpack.c.h.b16 %v880
    %v3285 = vunpack.c.l.b16 %v881
    %v3286 = vunpack.c.h.b16 %v881
    %v3287 = vunpack.c.l.b16 %v882
    %v3288 = vunpack.c.h.b16 %v882
    %v3289 = vunpack.c.l.b16 %v883
    %v3290 = vunpack.c.h.b16 %v883
    %v3291 = vunpack.c.l.b16 %v884
    %v3292 = vunpack.c.h.b16 %v884
    %v3293 = vunpack.c.l.b16 %v885
    %v3294 = vunpack.c.h.b16 %v885
    %v3295 = vunpack.c.l.b16 %v886
    %v3296 = vunpack.c.h.b16 %v886
    %v3297 = vunpack.c.l.b16 %v887
    %v3298 = vunpack.c.h.b16 %v887
    %v3299 = vunpack.c.l.b16 %v888
    %v3300 = vunpack.c.h.b16 %v888
    %v3301 = vunpack.c.l.b16 %v889
    %v3302 = vunpack.c.h.b16 %v889
    %v3303 = vunpack.c.l.b16 %v890
    %v3304 = vunpack.c.h.b16 %v890
    %v3305 = vunpack.c.l.b16 %v891
    %v3306 = vunpack.c.h.b16 %v891
    %v3307 = vunpack.c.l.b16 %v892
    %v3308 = vunpack.c.h.b16 %v892
    %v3309 = vunpack.c.l.b16 %v893
    %v3310 = vunpack.c.h.b16 %v893
    %v3311 = vunpack.c.l.b16 %v894
    %v3312 = vunpack.c.h.b16 %v894
    %v3313 = vunpack.c.l.b16 %v895
    %v3314 = vunpack.c.h.b16 %v895
    %v3315 = vunpack.c.l.b16 %v896
    %v3316 = vunpack.c.h.b16 %v896
    %v3317 = vunpack.c.l.b16 %v897
    %v3318 = vunpack.c.h.b16 %v897
    %v3319 = vunpack.c.l.b16 %v898
    %v3320 = vunpack.c.h.b16 %v898
    %v3321 = vunpack.c.l.b16 %v899
    %v3322 = vunpack.c.h.b16 %v899
    %v3323 = vunpack.c.l.b16 %v900
    %v3324 = vunpack.c.h.b16 %v900
    %v3325 = vunpack.c.l.b16 %v901
    %v3326 = vunpack.c.h.b16 %v901
    %v3327 = vunpack.c.l.b16 %v902
    %v3328 = vunpack.c.h.b16 %v902
    %v3329 = vunpack.c.l.b16 %v903
    %v3330 = vunpack.c.h.b16 %v903
    %v3331 = vunpack.c.l.b16 %v904
    %v3332 = vunpack.c.h.b16 %v904
    %v3333 = vunpack.c.l.b16 %v905
    %v3334 = vunpack.c.h.b16 %v905
    %v3335 = vunpack.c.l.b16 %v906
    %v3336 = vunpack.c.h.b16 %v906
    %v3337 = vunpack.c.l.b16 %v907
    %v3338 = vunpack.c.h.b16 %v907
    %v3339 = vunpack.c.l.b16 %v908
    %v3340 = vunpack.c.h.b16 %v908
    %v3341 = vunpack.c.l.b16 %v909
    %v3342 = vunpack.c.h.b16 %v909
    %v3343 = vunpack.c.l.b16 %v910
    %v3344 = vunpack.c.h.b16 %v910
    %v3345 = vunpack.c.l.b16 %v911
    %v3346 = vunpack.c.h.b16 %v911
    %v3347 = vunpack.c.l.b16 %v912
    %v3348 = vunpack.c.h.b16 %v912
    %v3349 = vunpack.c.l.b16 %v913
    %v3350 = vunpack.c.h.b16 %v913
    %v3351 = vunpack.c.l.b16 %v914
    %v3352 = vunpack.c.h.b16 %v914
    %v3353 = vunpack.c.l.b16 %v915
    %v3354 = vunpack.c.h.b16 %v915
    %v3355 = vunpack.c.l.b16 %v916
    %v3356 = vunpack.c.h.b16 %v916
    %v3357 = vunpack.c.l.b16 %v917
    %v3358 = vunpack.c.h.b16 %v917
    %v3359 = vunpack.c.l.b16 %v918
    %v3360 = vunpack.c.h.b16 %v918
    %v3361 = vunpack.c.l.b16 %v919
    %v3362 = vunpack.c.h.b16 %v919
    %v3363 = vunpack.c.l.b16 %v920
    %v3364 = vunpack.c.h.b16 %v920
    %v3365 = vunpack.c.l.b16 %v921
    %v3366 = vunpack.c.h.b16 %v921
    %v3367 = vunpack.c.l.b16 %v922
    %v3368 = vunpack.c.h.b16 %v922
    %v3369 = vunpack.c.l.b16 %v923
    %v3370 = vunpack.c.h.b16 %v923
    %v3371 = vunpack.c.l.b16 %v924
    %v3372 = vunpack.c.h.b16 %v924
    %v3373 = vunpack.c.l.b16 %v925
    %v3374 = vunpack.c.h.b16 %v925
    %v3375 = vunpack.c.l.b16 %v926
    %v3376 = vunpack.c.h.b16 %v926
    %v3377 = vunpack.c.l.b16 %v927
    %v3378 = vunpack.c.h.b16 %v927
    %v3379 = vunpack.c.l.b16 %v928
    %v3380 = vunpack.c.h.b16 %v928
    %v3381 = vunpack.c.l.b16 %v929
    %v3382 = vunpack.c.h.b16 %v929
    %v3383 = vunpack.c.l.b16 %v930
    %v3384 = vunpack.c.h.b16 %v930
    %v3385 = vunpack.c.l.b16 %v931
    %v3386 = vunpack.c.h.b16 %v931
    %v3387 = vunpack.c.l.b16 %v932
    %v3388 = vunpack.c.h.b16 %v932
    %v3389 = vunpack.c.l.b16 %v933
    %v3390 = vunpack.c.h.b16 %v933
    %v3391 = vunpack.c.l.b16 %v934
    %v3392 = vunpack.c.h.b16 %v934
    %v3393 = vunpack.c.l.b16 %v935
    %v3394 = vunpack.c.h.b16 %v935
    %v3395 = vunpack.c.l.b16 %v936
    %v3396 = vunpack.c.h.b16 %v936
    %v3397 = vunpack.c.l.b16 %v937
    %v3398 = vunpack.c.h.b16 %v937
    %v3399 = vunpack.c.l.b16 %v938
    %v3400 = vunpack.c.h.b16 %v938
    %v3401 = vunpack.c.l.b16 %v939
    %v3402 = vunpack.c.h.b16 %v939
    %v3403 = vunpack.c.l.b16 %v940
    %v3404 = vunpack.c.h.b16 %v940
    %v3405 = vunpack.c.l.b16 %v941
    %v3406 = vunpack.c.h.b16 %v941
    %v3407 = vunpack.c.l.b16 %v942
    %v3408 = vunpack.c.h.b16 %v942
    %v3409 = vunpack.c.l.b16 %v943
    %v3410 = vunpack.c.h.b16 %v943
    %v3411 = vunpack.c.l.b16 %v944
    %v3412 = vunpack.c.h.b16 %v944
    %v3413 = vunpack.c.l.b16 %v945
    %v3414 = vunpack.c.h.b16 %v945
    %v3415 = vunpack.c.l.b16 %v946
    %v3416 = vunpack.c.h.b16 %v946
    %v3417 = vunpack.c.l.b16 %v947
    %v3418 = vunpack.c.h.b16 %v947
    %v3419 = vunpack.c.l.b16 %v948
    %v3420 = vunpack.c.h.b16 %v948
    %v3421 = vunpack.c.l.b16 %v949
    %v3422 = vunpack.c.h.b16 %v949
    %v3423 = vunpack.c.l.b16 %v950
    %v3424 = vunpack.c.h.b16 %v950
    %v3425 = vunpack.c.l.b16 %v951
    %v3426 = vunpack.c.h.b16 %v951
    %v3427 = vunpack.c.l.b16 %v952
    %v3428 = vunpack.c.h.b16 %v952
    %v3429 = vunpack.c.l.b16 %v953
    %v3430 = vunpack.c.h.b16 %v953
    %v3431 = vunpack.c.l.b16 %v954
    %v3432 = vunpack.c.h.b16 %v954
    %v3433 = vunpack.c.l.b16 %v955
    %v3434 = vunpack.c.h.b16 %v955
    %v3435 = vunpack.c.l.b16 %v956
    %v3436 = vunpack.c.h.b16 %v956
    %v3437 = vunpack.c.l.b16 %v957
    %v3438 = vunpack.c.h.b16 %v957
    %v3439 = vunpack.c.l.b16 %v958
    %v3440 = vunpack.c.h.b16 %v958
    %v3441 = vunpack.c.l.b16 %v959
    %v3442 = vunpack.c.h.b16 %v959
    %v3443 = vunpack.c.l.b16 %v960
    %v3444 = vunpack.c.h.b16 %v960
    %v3445 = vunpack.c.l.b16 %v961
    %v3446 = vunpack.c.h.b16 %v961
    %v3447 = vunpack.c.l.b16 %v962
    %v3448 = vunpack.c.h.b16 %v962
    %v3449 = vunpack.c.l.b16 %v963
    %v3450 = vunpack.c.h.b16 %v963
    %v3451 = vunpack.c.l.b16 %v964
    %v3452 = vunpack.c.h.b16 %v964
    %v3453 = vunpack.c.l.b16 %v965
    %v3454 = vunpack.c.h.b16 %v965
    %v3455 = vunpack.c.l.b16 %v966
    %v3456 = vunpack.c.h.b16 %v966
    %v3457 = vunpack.c.l.b16 %v967
    %v3458 = vunpack.c.h.b16 %v967
    %v3459 = vunpack.c.l.b16 %v968
    %v3460 = vunpack.c.h.b16 %v968
    %v3461 = vunpack.c.l.b16 %v969
    %v3462 = vunpack.c.h.b16 %v969
    %v3463 = vunpack.c.l.b16 %v970
    %v3464 = vunpack.c.h.b16 %v970
    %v3465 = vunpack.c.l.b16 %v971
    %v3466 = vunpack.c.h.b16 %v971
    %v3467 = vunpack.c.l.b16 %v972
    %v3468 = vunpack.c.h.b16 %v972
    %v3469 = vunpack.c.l.b16 %v973
    %v3470 = vunpack.c.h.b16 %v973
    %v3471 = vunpack.c.l.b16 %v974
    %v3472 = vunpack.c.h.b16 %v974
    %v3473 = vunpack.c.l.b16 %v975
    %v3474 = vunpack.c.h.b16 %v975
    %v3475 = vunpack.c.l.b16 %v976
    %v3476 = vunpack.c.h.b16 %v976
    %v3477 = vunpack.c.l.b16 %v977
    %v3478 = vunpack.c.h.b16 %v977
    %v3479 = vunpack.c.l.b16 %v978
    %v3480 = vunpack.c.h.b16 %v978
    %v3481 = vunpack.c.l.b16 %v979
    %v3482 = vunpack.c.h.b16 %v979
    %v3483 = vunpack.c.l.b16 %v980
    %v3484 = vunpack.c.h.b16 %v980
    %v3485 = vunpack.c.l.b16 %v981
    %v3486 = vunpack.c.h.b16 %v981
    %v3487 = vunpack.c.l.b16 %v982
    %v3488 = vunpack.c.h.b16 %v982
    %v3489 = vunpack.c.l.b16 %v983
    %v3490 = vunpack.c.h.b16 %v983
    %v3491 = vunpack.c.l.b16 %v984
    %v3492 = vunpack.c.h.b16 %v984
    %v3493 = vunpack.c.l.b16 %v985
    %v3494 = vunpack.c.h.b16 %v985
    %v3495 = vunpack.c.l.b16 %v986
    %v3496 = vunpack.c.h.b16 %v986
    %v3497 = vunpack.c.l.b16 %v987
    %v3498 = vunpack.c.h.b16 %v987
    %v3499 = vunpack.c.l.b16 %v988
    %v3500 = vunpack.c.h.b16 %v988
    %v3501 = vunpack.c.l.b16 %v989
    %v3502 = vunpack.c.h.b16 %v989
    %v3503 = vunpack.c.l.b16 %v990
    %v3504 = vunpack.c.h.b16 %v990
    %v3505 = vunpack.c.l.b16 %v991
    %v3506 = vunpack.c.h.b16 %v991
    %v3507 = vunpack.c.l.b16 %v992
    %v3508 = vunpack.c.h.b16 %v992
    %v3509 = vunpack.c.l.b16 %v993
    %v3510 = vunpack.c.h.b16 %v993
    %v3511 = vunpack.c.l.b16 %v994
    %v3512 = vunpack.c.h.b16 %v994
    %v3513 = vunpack.c.l.b16 %v995
    %v3514 = vunpack.c.h.b16 %v995
    %v3515 = vunpack.c.l.b16 %v996
    %v3516 = vunpack.c.h.b16 %v996
    %v3517 = vunpack.c.l.b16 %v997
    %v3518 = vunpack.c.h.b16 %v997
    %v3519 = vunpack.c.l.b16 %v998
    %v3520 = vunpack.c.h.b16 %v998
    %v3521 = vunpack.c.l.b16 %v999
    %v3522 = vunpack.c.h.b16 %v999
    %v3523 = vunpack.c.l.b16 %v1000
    %v3524 = vunpack.c.h.b16 %v1000
    %v3525 = vunpack.c.l.b16 %v1001
    %v3526 = vunpack.c.h.b16 %v1001
    %v3527 = vunpack.c.l.b16 %v1002
    %v3528 = vunpack.c.h.b16 %v1002
    %v3529 = vunpack.c.l.b16 %v1003
    %v3530 = vunpack.c.h.b16 %v1003
    %v3531 = vunpack.c.l.b16 %v1004
    %v3532 = vunpack.c.h.b16 %v1004
    %v3533 = vunpack.c.l.b16 %v1005
    %v3534 = vunpack.c.h.b16 %v1005
    %v3535 = vunpack.c.l.b16 %v1006
    %v3536 = vunpack.c.h.b16 %v1006
    %v3537 = vunpack.c.l.b16 %v1007
    %v3538 = vunpack.c.h.b16 %v1007
    %v3539 = vunpack.c.l.b16 %v1008
    %v3540 = vunpack.c.h.b16 %v1008
    %v3541 = vunpack.c.l.b16 %v1009
    %v3542 = vunpack.c.h.b16 %v1009
    %v3543 = vunpack.c.l.b16 %v1010
    %v3544 = vunpack.c.h.b16 %v1010
    %v3545 = vunpack.c.l.b16 %v1011
    %v3546 = vunpack.c.h.b16 %v1011
    %v3547 = vunpack.c.l.b16 %v1012
    %v3548 = vunpack.c.h.b16 %v1012
    %v3549 = vunpack.c.l.b16 %v1013
    %v3550 = vunpack.c.h.b16 %v1013
    %v3551 = vunpack.c.l.b16 %v1014
    %v3552 = vunpack.c.h.b16 %v1014
    %v3553 = vunpack.c.l.b16 %v1015
    %v3554 = vunpack.c.h.b16 %v1015
    %v3555 = vunpack.c.l.b16 %v1016
    %v3556 = vunpack.c.h.b16 %v1016
    %v3557 = vunpack.c.l.b16 %v1017
    %v3558 = vunpack.c.h.b16 %v1017
    %v3559 = vunpack.c.l.b16 %v1018
    %v3560 = vunpack.c.h.b16 %v1018
    %v3561 = vunpack.c.l.b16 %v1019
    %v3562 = vunpack.c.h.b16 %v1019
    %v3563 = vunpack.c.l.b16 %v1020
    %v3564 = vunpack.c.h.b16 %v1020
    %v3565 = vunpack.c.l.b16 %v1021
    %v3566 = vunpack.c.h.b16 %v1021
    %v3567 = vunpack.c.l.b16 %v1022
    %v3568 = vunpack.c.h.b16 %v1022
    %v3569 = vunpack.c.l.b16 %v1023
    %v3570 = vunpack.c.h.b16 %v1023
    %v3571 = vunpack.c.l.b16 %v1024
    %v3572 = vunpack.c.h.b16 %v1024
    %v3573 = vunpack.c.l.b16 %v1025
    %v3574 = vunpack.c.h.b16 %v1025
    %v3575 = vunpack.c.l.b16 %v1026
    %v3576 = vunpack.c.h.b16 %v1026
    %v3577 = vunpack.c.l.b16 %v1027
    %v3578 = vunpack.c.h.b16 %v1027
    %v3579 = vunpack.c.l.b16 %v1028
    %v3580 = vunpack.c.h.b16 %v1028
    %v3581 = vunpack.c.l.b16 %v1029
    %v3582 = vunpack.c.h.b16 %v1029
    %v3583 = vunpack.c.l.b16 %v1030
    %v3584 = vunpack.c.h.b16 %v1030
    %v3585 = vunpack.c.l.b16 %v1031
    %v3586 = vunpack.c.h.b16 %v1031
    %v3587 = vunpack.c.l.b16 %v1032
    %v3588 = vunpack.c.h.b16 %v1032
    %v3589 = vunpack.c.l.b16 %v1033
    %v3590 = vunpack.c.h.b16 %v1033
    %v3591 = vunpack.c.l.b16 %v1034
    %v3592 = vunpack.c.h.b16 %v1034
    %v3593 = vunpack.c.l.b16 %v1035
    %v3594 = vunpack.c.h.b16 %v1035
    %v3595 = vunpack.c.l.b16 %v1036
    %v3596 = vunpack.c.h.b16 %v1036
    %v3597 = vunpack.c.l.b16 %v1037
    %v3598 = vunpack.c.h.b16 %v1037
    %v3599 = vunpack.c.l.b16 %v1038
    %v3600 = vunpack.c.h.b16 %v1038
    %v3601 = vunpack.c.l.b16 %v1039
    %v3602 = vunpack.c.h.b16 %v1039
    %v3603 = vunpack.c.l.b16 %v1040
    %v3604 = vunpack.c.h.b16 %v1040
    %v3605 = vunpack.c.l.b16 %v1041
    %v3606 = vunpack.c.h.b16 %v1041
    %v3607 = vunpack.c.l.b16 %v1042
    %v3608 = vunpack.c.h.b16 %v1042
    %v3609 = vunpack.c.l.b16 %v1043
    %v3610 = vunpack.c.h.b16 %v1043
    %v3611 = vunpack.c.l.b16 %v1044
    %v3612 = vunpack.c.h.b16 %v1044
    %v3613 = vunpack.c.l.b16 %v1045
    %v3614 = vunpack.c.h.b16 %v1045
    %v3615 = vunpack.c.l.b16 %v1046
    %v3616 = vunpack.c.h.b16 %v1046
    %v3617 = vunpack.c.l.b16 %v1047
    %v3618 = vunpack.c.h.b16 %v1047
    %v3619 = vunpack.c.l.b16 %v1048
    %v3620 = vunpack.c.h.b16 %v1048
    %v3621 = vunpack.c.l.b16 %v1049
    %v3622 = vunpack.c.h.b16 %v1049
    %v3623 = vunpack.c.l.b16 %v1050
    %v3624 = vunpack.c.h.b16 %v1050
    %v3625 = vunpack.c.l.b16 %v1051
    %v3626 = vunpack.c.h.b16 %v1051
    %v3627 = vunpack.c.l.b16 %v1052
    %v3628 = vunpack.c.h.b16 %v1052
    %v3629 = vunpack.c.l.b16 %v1053
    %v3630 = vunpack.c.h.b16 %v1053
    %v3631 = vunpack.c.l.b16 %v1054
    %v3632 = vunpack.c.h.b16 %v1054
    %v3633 = vunpack.c.l.b16 %v1055
    %v3634 = vunpack.c.h.b16 %v1055
    %v3635 = vunpack.c.l.b16 %v1056
    %v3636 = vunpack.c.h.b16 %v1056
    %v3637 = vunpack.c.l.b16 %v1057
    %v3638 = vunpack.c.h.b16 %v1057
    %v3639 = vunpack.c.l.b16 %v1058
    %v3640 = vunpack.c.h.b16 %v1058
    %v3641 = vunpack.c.l.b16 %v1059
    %v3642 = vunpack.c.h.b16 %v1059
    %v3643 = vunpack.c.l.b16 %v1060
    %v3644 = vunpack.c.h.b16 %v1060
    %v3645 = vunpack.c.l.b16 %v1061
    %v3646 = vunpack.c.h.b16 %v1061
    %v3647 = vunpack.c.l.b16 %v1062
    %v3648 = vunpack.c.h.b16 %v1062
    %v3649 = vunpack.c.l.b16 %v1063
    %v3650 = vunpack.c.h.b16 %v1063
    %v3651 = vunpack.c.l.b16 %v1064
    %v3652 = vunpack.c.h.b16 %v1064
    %v3653 = vunpack.c.l.b16 %v1065
    %v3654 = vunpack.c.h.b16 %v1065
    %v3655 = vunpack.c.l.b16 %v1066
    %v3656 = vunpack.c.h.b16 %v1066
    %v3657 = vunpack.c.l.b16 %v1067
    %v3658 = vunpack.c.h.b16 %v1067
    %v3659 = vunpack.c.l.b16 %v1068
    %v3660 = vunpack.c.h.b16 %v1068
    %v3661 = vunpack.c.l.b16 %v1069
    %v3662 = vunpack.c.h.b16 %v1069
    %v3663 = vunpack.c.l.b16 %v1070
    %v3664 = vunpack.c.h.b16 %v1070
    %v3665 = vunpack.c.l.b16 %v1071
    %v3666 = vunpack.c.h.b16 %v1071
    %v3667 = vunpack.c.l.b16 %v1072
    %v3668 = vunpack.c.h.b16 %v1072
    %v3669 = vunpack.c.l.b16 %v1073
    %v3670 = vunpack.c.h.b16 %v1073
    %v3671 = vunpack.c.l.b16 %v1074
    %v3672 = vunpack.c.h.b16 %v1074
    %v3673 = vunpack.c.l.b16 %v1075
    %v3674 = vunpack.c.h.b16 %v1075
    %v3675 = vunpack.c.l.b16 %v1076
    %v3676 = vunpack.c.h.b16 %v1076
    %v3677 = vunpack.c.l.b16 %v1077
    %v3678 = vunpack.c.h.b16 %v1077
    %v3679 = vunpack.c.l.b16 %v1078
    %v3680 = vunpack.c.h.b16 %v1078
    %v3681 = vunpack.c.l.b16 %v1079
    %v3682 = vunpack.c.h.b16 %v1079
    %v3683 = vunpack.c.l.b16 %v1080
    %v3684 = vunpack.c.h.b16 %v1080
    %v3685 = vunpack.c.l.b16 %v1081
    %v3686 = vunpack.c.h.b16 %v1081
    %v3687 = vunpack.c.l.b16 %v1082
    %v3688 = vunpack.c.h.b16 %v1082
    %v3689 = vunpack.c.l.b16 %v1083
    %v3690 = vunpack.c.h.b16 %v1083
    %v3691 = vunpack.c.l.b16 %v1084
    %v3692 = vunpack.c.h.b16 %v1084
    %v3693 = vunpack.c.l.b16 %v1085
    %v3694 = vunpack.c.h.b16 %v1085
    %v3695 = vunpack.c.l.b16 %v1086
    %v3696 = vunpack.c.h.b16 %v1086
    %v3697 = vunpack.c.l.b16 %v1087
    %v3698 = vunpack.c.h.b16 %v1087
    %v3699 = vunpack.c.l.b16 %v1088
    %v3700 = vunpack.c.h.b16 %v1088
    %v3701 = vunpack.c.l.b16 %v1089
    %v3702 = vunpack.c.h.b16 %v1089
    %v3703 = vunpack.c.l.b16 %v1090
    %v3704 = vunpack.c.h.b16 %v1090
    %v3705 = vunpack.c.l.b16 %v1091
    %v3706 = vunpack.c.h.b16 %v1091
    %v3707 = vunpack.c.l.b16 %v1092
    %v3708 = vunpack.c.h.b16 %v1092
    %v3709 = vunpack.c.l.b16 %v1093
    %v3710 = vunpack.c.h.b16 %v1093
    %v3711 = vunpack.c.l.b16 %v1094
    %v3712 = vunpack.c.h.b16 %v1094
    %v3713 = vunpack.c.l.b16 %v1095
    %v3714 = vunpack.c.h.b16 %v1095
    %v3715 = vunpack.c.l.b16 %v1096
    %v3716 = vunpack.c.h.b16 %v1096
    %v3717 = vunpack.c.l.b16 %v1097
    %v3718 = vunpack.c.h.b16 %v1097
    %v3719 = vunpack.c.l.b16 %v1098
    %v3720 = vunpack.c.h.b16 %v1098
    %v3721 = vunpack.c.l.b16 %v1099
    %v3722 = vunpack.c.h.b16 %v1099
    %v3723 = vunpack.c.l.b16 %v1100
    %v3724 = vunpack.c.h.b16 %v1100
    %v3725 = vunpack.c.l.b16 %v1101
    %v3726 = vunpack.c.h.b16 %v1101
    %v3727 = vunpack.c.l.b16 %v1102
    %v3728 = vunpack.c.h.b16 %v1102
    %v3729 = vunpack.c.l.b16 %v1103
    %v3730 = vunpack.c.h.b16 %v1103
    %v3731 = vunpack.c.l.b16 %v1104
    %v3732 = vunpack.c.h.b16 %v1104
    %v3733 = vunpack.c.l.b16 %v1105
    %v3734 = vunpack.c.h.b16 %v1105
    %v3735 = vunpack.c.l.b16 %v1106
    %v3736 = vunpack.c.h.b16 %v1106
    %v3737 = vunpack.c.l.b16 %v1107
    %v3738 = vunpack.c.h.b16 %v1107
    %v3739 = vunpack.c.l.b16 %v1108
    %v3740 = vunpack.c.h.b16 %v1108
    %v3741 = vunpack.c.l.b16 %v1109
    %v3742 = vunpack.c.h.b16 %v1109
    %v3743 = vunpack.c.l.b16 %v1110
    %v3744 = vunpack.c.h.b16 %v1110
    %v3745 = vunpack.c.l.b16 %v1111
    %v3746 = vunpack.c.h.b16 %v1111
    %v3747 = vunpack.c.l.b16 %v1112
    %v3748 = vunpack.c.h.b16 %v1112
    %v3749 = vunpack.c.l.b16 %v1113
    %v3750 = vunpack.c.h.b16 %v1113
    %v3751 = vunpack.c.l.b16 %v1114
    %v3752 = vunpack.c.h.b16 %v1114
    %v3753 = vunpack.c.l.b16 %v1115
    %v3754 = vunpack.c.h.b16 %v1115
    %v3755 = vunpack.c.l.b16 %v1116
    %v3756 = vunpack.c.h.b16 %v1116
    %v3757 = vunpack.c.l.b16 %v1117
    %v3758 = vunpack.c.h.b16 %v1117
    %v3759 = vunpack.c.l.b16 %v1118
    %v3760 = vunpack.c.h.b16 %v1118
    %v3761 = vunpack.c.l.b16 %v1119
    %v3762 = vunpack.c.h.b16 %v1119
    %v3763 = vunpack.c.l.b16 %v1120
    %v3764 = vunpack.c.h.b16 %v1120
    %v3765 = vunpack.c.l.b16 %v1121
    %v3766 = vunpack.c.h.b16 %v1121
    %v3767 = vunpack.c.l.b16 %v1122
    %v3768 = vunpack.c.h.b16 %v1122
    %v3769 = vunpack.c.l.b16 %v1123
    %v3770 = vunpack.c.h.b16 %v1123
    %v3771 = vunpack.c.l.b16 %v1124
    %v3772 = vunpack.c.h.b16 %v1124
    %v3773 = vunpack.c.l.b16 %v1125
    %v3774 = vunpack.c.h.b16 %v1125
    %v3775 = vunpack.c.l.b16 %v1126
    %v3776 = vunpack.c.h.b16 %v1126
    %v3777 = vunpack.c.l.b16 %v1127
    %v3778 = vunpack.c.h.b16 %v1127
    %v3779 = vunpack.c.l.b16 %v1128
    %v3780 = vunpack.c.h.b16 %v1128
    %v3781 = vunpack.c.l.b16 %v1129
    %v3782 = vunpack.c.h.b16 %v1129
    %v3783 = vunpack.c.l.b16 %v1130
    %v3784 = vunpack.c.h.b16 %v1130
    %v3785 = vunpack.c.l.b16 %v1131
    %v3786 = vunpack.c.h.b16 %v1131
    %v3787 = vunpack.c.l.b16 %v1132
    %v3788 = vunpack.c.h.b16 %v1132
    %v3789 = vunpack.c.l.b16 %v1133
    %v3790 = vunpack.c.h.b16 %v1133
    %v3791 = vunpack.c.l.b16 %v1134
    %v3792 = vunpack.c.h.b16 %v1134
    %v3793 = vunpack.c.l.b16 %v1135
    %v3794 = vunpack.c.h.b16 %v1135
    %v3795 = vunpack.c.l.b16 %v1136
    %v3796 = vunpack.c.h.b16 %v1136
    %v3797 = vunpack.c.l.b16 %v1137
    %v3798 = vunpack.c.h.b16 %v1137
    %v3799 = vunpack.c.l.b16 %v1138
    %v3800 = vunpack.c.h.b16 %v1138
    %v3801 = vunpack.c.l.b16 %v1139
    %v3802 = vunpack.c.h.b16 %v1139
    %v3803 = vunpack.c.l.b16 %v1140
    %v3804 = vunpack.c.h.b16 %v1140
    %v3805 = vunpack.c.l.b16 %v1141
    %v3806 = vunpack.c.h.b16 %v1141
    %v3807 = vunpack.c.l.b16 %v1142
    %v3808 = vunpack.c.h.b16 %v1142
    %v3809 = vunpack.c.l.b16 %v1143
    %v3810 = vunpack.c.h.b16 %v1143
    %v3811 = vunpack.c.l.b16 %v1144
    %v3812 = vunpack.c.h.b16 %v1144
    %v3813 = vunpack.c.l.b16 %v1145
    %v3814 = vunpack.c.h.b16 %v1145
    %v3815 = vunpack.c.l.b16 %v1146
    %v3816 = vunpack.c.h.b16 %v1146
    %v3817 = vunpack.c.l.b16 %v1147
    %v3818 = vunpack.c.h.b16 %v1147
    %v3819 = vunpack.c.l.b16 %v1148
    %v3820 = vunpack.c.h.b16 %v1148
    %v3821 = vunpack.c.l.b16 %v1149
    %v3822 = vunpack.c.h.b16 %v1149
    %v3823 = vunpack.c.l.b16 %v1150
    %v3824 = vunpack.c.h.b16 %v1150
    %v3825 = vunpack.c.l.b16 %v1151
    %v3826 = vunpack.c.h.b16 %v1151
    %v3827 = vunpack.c.l.b16 %v1152
    %v3828 = vunpack.c.h.b16 %v1152
    %v3829 = vunpack.c.l.b16 %v1153
    %v3830 = vunpack.c.h.b16 %v1153
    %v3831 = vunpack.c.l.b16 %v1154
    %v3832 = vunpack.c.h.b16 %v1154
    %v3833 = vunpack.c.l.b16 %v1155
    %v3834 = vunpack.c.h.b16 %v1155
    %v3835 = vunpack.c.l.b16 %v1156
    %v3836 = vunpack.c.h.b16 %v1156
    %v3837 = vunpack.c.l.b16 %v1157
    %v3838 = vunpack.c.h.b16 %v1157
    %v3839 = vunpack.c.l.b16 %v1158
    %v3840 = vunpack.c.h.b16 %v1158
    %v3841 = vunpack.c.l.b16 %v1159
    %v3842 = vunpack.c.h.b16 %v1159
    %v3843 = vunpack.c.l.b16 %v1160
    %v3844 = vunpack.c.h.b16 %v1160
    %v3845 = vunpack.c.l.b16 %v1161
    %v3846 = vunpack.c.h.b16 %v1161
    %v3847 = vunpack.c.l.b16 %v1162
    %v3848 = vunpack.c.h.b16 %v1162
    %v3849 = vunpack.c.l.b16 %v1163
    %v3850 = vunpack.c.h.b16 %v1163
    %v3851 = vunpack.c.l.b16 %v1164
    %v3852 = vunpack.c.h.b16 %v1164
    %v3853 = vunpack.c.l.b16 %v1165
    %v3854 = vunpack.c.h.b16 %v1165
    %v3855 = vunpack.c.l.b16 %v1166
    %v3856 = vunpack.c.h.b16 %v1166
    %v3857 = vunpack.c.l.b16 %v1167
    %v3858 = vunpack.c.h.b16 %v1167
    %v3859 = vunpack.c.l.b16 %v1168
    %v3860 = vunpack.c.h.b16 %v1168
    %v3861 = vunpack.c.l.b16 %v1169
    %v3862 = vunpack.c.h.b16 %v1169
    %v3863 = vunpack.c.l.b16 %v1170
    %v3864 = vunpack.c.h.b16 %v1170
    %v3865 = vunpack.c.l.b16 %v1171
    %v3866 = vunpack.c.h.b16 %v1171
    %v3867 = vunpack.c.l.b16 %v1172
    %v3868 = vunpack.c.h.b16 %v1172
    %v3869 = vunpack.c.l.b16 %v1173
    %v3870 = vunpack.c.h.b16 %v1173
    %v3871 = vunpack.c.l.b16 %v1174
    %v3872 = vunpack.c.h.b16 %v1174
    %v3873 = vunpack.c.l.b16 %v1175
    %v3874 = vunpack.c.h.b16 %v1175
    %v3875 = vunpack.c.l.b16 %v1176
    %v3876 = vunpack.c.h.b16 %v1176
    %v3877 = vunpack.c.l.b16 %v1177
    %v3878 = vunpack.c.h.b16 %v1177
    %v3879 = vunpack.c.l.b16 %v1178
    %v3880 = vunpack.c.h.b16 %v1178
    %v3881 = vunpack.c.l.b16 %v1179
    %v3882 = vunpack.c.h.b16 %v1179
    %v3883 = vunpack.c.l.b16 %v1180
    %v3884 = vunpack.c.h.b16 %v1180
    %v3885 = vunpack.c.l.b16 %v1181
    %v3886 = vunpack.c.h.b16 %v1181
    %v3887 = vunpack.c.l.b16 %v1182
    %v3888 = vunpack.c.h.b16 %v1182
    %v3889 = vunpack.c.l.b16 %v1183
    %v3890 = vunpack.c.h.b16 %v1183
    %v3891 = vunpack.c.l.b16 %v1184
    %v3892 = vunpack.c.h.b16 %v1184
    %v3893 = vunpack.c.l.b16 %v1185
    %v3894 = vunpack.c.h.b16 %v1185
    %v3895 = vunpack.c.l.b16 %v1186
    %v3896 = vunpack.c.h.b16 %v1186
    %v3897 = vunpack.c.l.b16 %v1187
    %v3898 = vunpack.c.h.b16 %v1187
    %v3899 = vunpack.c.l.b16 %v1188
    %v3900 = vunpack.c.h.b16 %v1188
    %v3901 = vunpack.c.l.b16 %v1189
    %v3902 = vunpack.c.h.b16 %v1189
    %v3903 = vunpack.c.l.b16 %v1190
    %v3904 = vunpack.c.h.b16 %v1190
    %v3905 = vunpack.c.l.b16 %v1191
    %v3906 = vunpack.c.h.b16 %v1191
    %v3907 = vunpack.c.l.b16 %v1192
    %v3908 = vunpack.c.h.b16 %v1192
    %v3909 = vunpack.c.l.b16 %v1193
    %v3910 = vunpack.c.h.b16 %v1193
    %v3911 = vunpack.c.l.b16 %v1194
    %v3912 = vunpack.c.h.b16 %v1194
    %v3913 = vunpack.c.l.b16 %v1195
    %v3914 = vunpack.c.h.b16 %v1195
    %v3915 = vunpack.c.l.b16 %v1196
    %v3916 = vunpack.c.h.b16 %v1196
    %v3917 = vunpack.c.l.b16 %v1197
    %v3918 = vunpack.c.h.b16 %v1197
    %v3919 = vunpack.c.l.b16 %v1198
    %v3920 = vunpack.c.h.b16 %v1198
    %v3921 = vunpack.c.l.b16 %v1199
    %v3922 = vunpack.c.h.b16 %v1199
    %v3923 = vunpack.c.l.b16 %v1200
    %v3924 = vunpack.c.h.b16 %v1200
    %v3925 = vunpack.c.l.b16 %v1201
    %v3926 = vunpack.c.h.b16 %v1201
    %v3927 = vunpack.c.l.b16 %v1202
    %v3928 = vunpack.c.h.b16 %v1202
    %v3929 = vunpack.c.l.b16 %v1203
    %v3930 = vunpack.c.h.b16 %v1203
    %v3931 = vunpack.c.l.b16 %v1204
    %v3932 = vunpack.c.h.b16 %v1204
    %v3933 = vunpack.c.l.b16 %v1205
    %v3934 = vunpack.c.h.b16 %v1205
    %v3935 = vunpack.c.l.b16 %v1206
    %v3936 = vunpack.c.h.b16 %v1206
    %v3937 = vunpack.c.l.b16 %v1207
    %v3938 = vunpack.c.h.b16 %v1207
    %v3939 = vunpack.c.l.b16 %v1208
    %v3940 = vunpack.c.h.b16 %v1208
    %v3941 = vunpack.c.l.b16 %v1209
    %v3942 = vunpack.c.h.b16 %v1209
    %v3943 = vunpack.c.l.b16 %v1210
    %v3944 = vunpack.c.h.b16 %v1210
    %v3945 = vunpack.c.l.b16 %v1211
    %v3946 = vunpack.c.h.b16 %v1211
    %v3947 = vunpack.c.l.b16 %v1212
    %v3948 = vunpack.c.h.b16 %v1212
    %v3949 = vunpack.c.l.b16 %v1213
    %v3950 = vunpack.c.h.b16 %v1213
    %v3951 = vunpack.c.l.b16 %v1214
    %v3952 = vunpack.c.h.b16 %v1214
    %v3953 = vunpack.c.l.b16 %v1215
    %v3954 = vunpack.c.h.b16 %v1215
    %v3955 = vunpack.c.l.b16 %v1216
    %v3956 = vunpack.c.h.b16 %v1216
    %v3957 = vunpack.c.l.b16 %v1217
    %v3958 = vunpack.c.h.b16 %v1217
    %v3959 = vunpack.c.l.b16 %v1218
    %v3960 = vunpack.c.h.b16 %v1218
    %v3961 = vunpack.c.l.b16 %v1219
    %v3962 = vunpack.c.h.b16 %v1219
    %v3963 = vunpack.c.l.b16 %v1220
    %v3964 = vunpack.c.h.b16 %v1220
    %v3965 = vunpack.c.l.b16 %v1221
    %v3966 = vunpack.c.h.b16 %v1221
    %v3967 = vunpack.c.l.b16 %v1222
    %v3968 = vunpack.c.h.b16 %v1222
    %v3969 = vunpack.c.l.b16 %v1223
    %v3970 = vunpack.c.h.b16 %v1223
    %v3971 = vunpack.c.l.b16 %v1224
    %v3972 = vunpack.c.h.b16 %v1224
    %v3973 = vunpack.c.l.b16 %v1225
    %v3974 = vunpack.c.h.b16 %v1225
    %v3975 = vunpack.c.l.b16 %v1226
    %v3976 = vunpack.c.h.b16 %v1226
    %v3977 = vunpack.c.l.b16 %v1227
    %v3978 = vunpack.c.h.b16 %v1227
    %v3979 = vunpack.c.l.b16 %v1228
    %v3980 = vunpack.c.h.b16 %v1228
    %v3981 = vunpack.c.l.b16 %v1229
    %v3982 = vunpack.c.h.b16 %v1229
    %v3983 = vunpack.c.l.b16 %v1230
    %v3984 = vunpack.c.h.b16 %v1230
    %v3985 = vunpack.c.l.b16 %v1231
    %v3986 = vunpack.c.h.b16 %v1231
    %v3987 = vunpack.c.l.b16 %v1232
    %v3988 = vunpack.c.h.b16 %v1232
    %v3989 = vunpack.c.l.b16 %v1233
    %v3990 = vunpack.c.h.b16 %v1233
    %v3991 = vunpack.c.l.b16 %v1234
    %v3992 = vunpack.c.h.b16 %v1234
    %v3993 = vunpack.c.l.b16 %v1235
    %v3994 = vunpack.c.h.b16 %v1235
    %v3995 = vunpack.c.l.b16 %v1236
    %v3996 = vunpack.c.h.b16 %v1236
    %v3997 = vunpack.c.l.b16 %v1237
    %v3998 = vunpack.c.h.b16 %v1237
    %v3999 = vunpack.c.l.b16 %v1238
    %v4000 = vunpack.c.h.b16 %v1238
    %v4001 = vunpack.c.l.b16 %v1239
    %v4002 = vunpack.c.h.b16 %v1239
    %v4003 = vunpack.c.l.b16 %v1240
    %v4004 = vunpack.c.h.b16 %v1240
    %v4005 = vunpack.c.l.b16 %v1241
    %v4006 = vunpack.c.h.b16 %v1241
    %v4007 = vunpack.c.l.b16 %v1242
    %v4008 = vunpack.c.h.b16 %v1242
    %v4009 = vunpack.c.l.b16 %v1243
    %v4010 = vunpack.c.h.b16 %v1243
    %v4011 = vunpack.c.l.b16 %v1244
    %v4012 = vunpack.c.h.b16 %v1244
    %v4013 = vunpack.c.l.b16 %v1245
    %v4014 = vunpack.c.h.b16 %v1245
    %v4015 = vunpack.c.l.b16 %v1246
    %v4016 = vunpack.c.h.b16 %v1246
    %v4017 = vunpack.c.l.b16 %v1247
    %v4018 = vunpack.c.h.b16 %v1247
    %v4019 = vunpack.c.l.b16 %v1248
    %v4020 = vunpack.c.h.b16 %v1248
    %v4021 = vunpack.c.l.b16 %v1249
    %v4022 = vunpack.c.h.b16 %v1249
    %v4023 = vunpack.c.l.b16 %v1250
    %v4024 = vunpack.c.h.b16 %v1250
    %v4025 = vunpack.c.l.b16 %v1251
    %v4026 = vunpack.c.h.b16 %v1251
    %v4027 = vunpack.c.l.b16 %v1252
    %v4028 = vunpack.c.h.b16 %v1252
    %v4029 = vunpack.c.l.b16 %v1253
    %v4030 = vunpack.c.h.b16 %v1253
    %v4031 = vunpack.c.l.b16 %v1254
    %v4032 = vunpack.c.h.b16 %v1254
    %v4033 = vunpack.c.l.b16 %v1255
    %v4034 = vunpack.c.h.b16 %v1255
    %v4035 = vunpack.c.l.b16 %v1256
    %v4036 = vunpack.c.h.b16 %v1256
    %v4037 = vunpack.c.l.b16 %v1257
    %v4038 = vunpack.c.h.b16 %v1257
    %v4039 = vunpack.c.l.b16 %v1258
    %v4040 = vunpack.c.h.b16 %v1258
    %v4041 = vunpack.c.l.b16 %v1259
    %v4042 = vunpack.c.h.b16 %v1259
    %v4043 = vunpack.c.l.b16 %v1260
    %v4044 = vunpack.c.h.b16 %v1260
    %v4045 = vunpack.c.l.b16 %v1261
    %v4046 = vunpack.c.h.b16 %v1261
    %v4047 = vunpack.c.l.b16 %v1262
    %v4048 = vunpack.c.h.b16 %v1262
    %v4049 = vunpack.c.l.b16 %v1263
    %v4050 = vunpack.c.h.b16 %v1263
    %v4051 = vunpack.c.l.b16 %v1264
    %v4052 = vunpack.c.h.b16 %v1264
    %v4053 = vunpack.c.l.b16 %v1265
    %v4054 = vunpack.c.h.b16 %v1265
    %v4055 = vunpack.c.l.b16 %v1266
    %v4056 = vunpack.c.h.b16 %v1266
    %v4057 = vunpack.c.l.b16 %v1267
    %v4058 = vunpack.c.h.b16 %v1267
    %v4059 = vunpack.c.l.b16 %v1268
    %v4060 = vunpack.c.h.b16 %v1268
    %v4061 = vunpack.c.l.b16 %v1269
    %v4062 = vunpack.c.h.b16 %v1269
    %v4063 = vunpack.c.l.b16 %v1270
    %v4064 = vunpack.c.h.b16 %v1270
    %v4065 = vunpack.c.l.b16 %v1271
    %v4066 = vunpack.c.h.b16 %v1271
    %v4067 = vunpack.c.l.b16 %v1272
    %v4068 = vunpack.c.h.b16 %v1272
    %v4069 = vunpack.c.l.b16 %v1273
    %v4070 = vunpack.c.h.b16 %v1273
    %v4071 = vunpack.c.l.b16 %v1274
    %v4072 = vunpack.c.h.b16 %v1274
    %v4073 = vunpack.c.l.b16 %v1275
    %v4074 = vunpack.c.h.b16 %v1275
    %v4075 = vunpack.c.l.b16 %v1276
    %v4076 = vunpack.c.h.b16 %v1276
    %v4077 = vunpack.c.l.b16 %v1277
    %v4078 = vunpack.c.h.b16 %v1277
    %v4079 = vunpack.c.l.b16 %v1278
    %v4080 = vunpack.c.h.b16 %v1278
    %v4081 = vunpack.c.l.b16 %v1279
    %v4082 = vunpack.c.h.b16 %v1279
    %v4083 = vunpack.c.l.b16 %v1280
    %v4084 = vunpack.c.h.b16 %v1280
    %v4085 = vunpack.c.l.b16 %v1281
    %v4086 = vunpack.c.h.b16 %v1281
    %v4087 = vunpack.c.l.b16 %v1282
    %v4088 = vunpack.c.h.b16 %v1282
    %v4089 = vunpack.c.l.b16 %v1283
    %v4090 = vunpack.c.h.b16 %v1283
    %v4091 = vunpack.c.l.b16 %v1284
    %v4092 = vunpack.c.h.b16 %v1284
    %v4093 = vunpack.c.l.b16 %v1285
    %v4094 = vunpack.c.h.b16 %v1285
    %v4095 = vunpack.c.l.b16 %v1286
    %v4096 = vunpack.c.h.b16 %v1286
    %v4097 = vunpack.c.l.b16 %v1287
    %v4098 = vunpack.c.h.b16 %v1287
    %v4099 = vunpack.c.l.b16 %v1288
    %v4100 = vunpack.c.h.b16 %v1288
    %v4101 = vunpack.c.l.b16 %v1289
    %v4102 = vunpack.c.h.b16 %v1289
    %v4103 = vunpack.c.l.b16 %v1290
    %v4104 = vunpack.c.h.b16 %v1290
    %v4105 = vunpack.c.l.b16 %v1291
    %v4106 = vunpack.c.h.b16 %v1291
    %v4107 = vunpack.c.l.b16 %v1292
    %v4108 = vunpack.c.h.b16 %v1292
    %v4109 = vunpack.c.l.b16 %v1293
    %v4110 = vunpack.c.h.b16 %v1293
    %v4111 = vunpack.c.l.b16 %v1294
    %v4112 = vunpack.c.h.b16 %v1294
    %v4113 = vunpack.c.l.b16 %v1295
    %v4114 = vunpack.c.h.b16 %v1295
    %v4115 = vunpack.c.l.b16 %v1296
    %v4116 = vunpack.c.h.b16 %v1296
    %v4117 = vunpack.c.l.b16 %v1297
    %v4118 = vunpack.c.h.b16 %v1297
    %v4119 = vunpack.c.l.b16 %v1298
    %v4120 = vunpack.c.h.b16 %v1298
    %v4121 = vunpack.c.l.b16 %v1299
    %v4122 = vunpack.c.h.b16 %v1299
    %v4123 = vunpack.c.l.b16 %v1300
    %v4124 = vunpack.c.h.b16 %v1300
    %v4125 = vunpack.c.l.b16 %v1301
    %v4126 = vunpack.c.h.b16 %v1301
    %v4127 = vunpack.c.l.b16 %v1302
    %v4128 = vunpack.c.h.b16 %v1302
    %v4129 = vunpack.c.l.b16 %v1303
    %v4130 = vunpack.c.h.b16 %v1303
    %v4131 = vunpack.c.l.b16 %v1304
    %v4132 = vunpack.c.h.b16 %v1304
    %v4133 = vunpack.c.l.b16 %v1305
    %v4134 = vunpack.c.h.b16 %v1305
    %v4135 = vunpack.c.l.b16 %v1306
    %v4136 = vunpack.c.h.b16 %v1306
    %v4137 = vunpack.c.l.b16 %v1307
    %v4138 = vunpack.c.h.b16 %v1307
    %v4139 = vunpack.c.l.b16 %v1308
    %v4140 = vunpack.c.h.b16 %v1308
    %v4141 = vunpack.c.l.b16 %v1309
    %v4142 = vunpack.c.h.b16 %v1309
    %v4143 = vunpack.c.l.b16 %v1310
    %v4144 = vunpack.c.h.b16 %v1310
    %v4145 = vunpack.c.l.b16 %v1311
    %v4146 = vunpack.c.h.b16 %v1311
    %v4147 = vunpack.c.l.b16 %v1312
    %v4148 = vunpack.c.h.b16 %v1312
    %v4149 = vunpack.c.l.b16 %v1313
    %v4150 = vunpack.c.h.b16 %v1313
    %v4151 = vunpack.c.l.b16 %v1314
    %v4152 = vunpack.c.h.b16 %v1314
    %v4153 = vunpack.c.l.b16 %v1315
    %v4154 = vunpack.c.h.b16 %v1315
    %v4155 = vunpack.c.l.b16 %v1316
    %v4156 = vunpack.c.h.b16 %v1316
    %v4157 = vunpack.c.l.b16 %v1317
    %v4158 = vunpack.c.h.b16 %v1317
    %v4159 = vunpack.c.l.b16 %v1318
    %v4160 = vunpack.c.h.b16 %v1318
    %v4161 = vunpack.c.l.b16 %v1319
    %v4162 = vunpack.c.h.b16 %v1319
    %v4163 = vunpack.c.l.b16 %v1320
    %v4164 = vunpack.c.h.b16 %v1320
    %v4165 = vunpack.c.l.b16 %v1321
    %v4166 = vunpack.c.h.b16 %v1321
    %v4167 = vunpack.c.l.b16 %v1322
    %v4168 = vunpack.c.h.b16 %v1322
    %v4169 = vunpack.c.l.b16 %v1323
    %v4170 = vunpack.c.h.b16 %v1323
    %v4171 = vunpack.c.l.b16 %v1324
    %v4172 = vunpack.c.h.b16 %v1324
    %v4173 = vunpack.c.l.b16 %v1325
    %v4174 = vunpack.c.h.b16 %v1325
    %v4175 = vunpack.c.l.b16 %v1326
    %v4176 = vunpack.c.h.b16 %v1326
    %v4177 = vunpack.c.l.b16 %v1327
    %v4178 = vunpack.c.h.b16 %v1327
    %v4179 = vunpack.c.l.b16 %v1328
    %v4180 = vunpack.c.h.b16 %v1328
    %v4181 = vunpack.c.l.b16 %v1329
    %v4182 = vunpack.c.h.b16 %v1329
    %v4183 = vunpack.c.l.b16 %v1330
    %v4184 = vunpack.c.h.b16 %v1330
    %v4185 = vunpack.c.l.b16 %v1331
    %v4186 = vunpack.c.h.b16 %v1331
    %v4187 = vunpack.c.l.b16 %v1332
    %v4188 = vunpack.c.h.b16 %v1332
    %v4189 = vunpack.c.l.b16 %v1333
    %v4190 = vunpack.c.h.b16 %v1333
    %v4191 = vunpack.c.l.b16 %v1334
    %v4192 = vunpack.c.h.b16 %v1334
    %v4193 = vunpack.c.l.b16 %v1335
    %v4194 = vunpack.c.h.b16 %v1335
    %v4195 = vunpack.c.l.b16 %v1336
    %v4196 = vunpack.c.h.b16 %v1336
    %v4197 = vunpack.c.l.b16 %v1337
    %v4198 = vunpack.c.h.b16 %v1337
    %v4199 = vunpack.c.l.b16 %v1338
    %v4200 = vunpack.c.h.b16 %v1338
    %v4201 = vunpack.c.l.b16 %v1339
    %v4202 = vunpack.c.h.b16 %v1339
    %v4203 = vunpack.c.l.b16 %v1340
    %v4204 = vunpack.c.h.b16 %v1340
    %v4205 = vunpack.c.l.b16 %v1341
    %v4206 = vunpack.c.h.b16 %v1341
    %v4207 = vunpack.c.l.b16 %v1342
    %v4208 = vunpack.c.h.b16 %v1342
    %v4209 = vunpack.c.l.b16 %v1343
    %v4210 = vunpack.c.h.b16 %v1343
    %v4211 = vunpack.c.l.b16 %v1344
    %v4212 = vunpack.c.h.b16 %v1344
    %v4213 = vunpack.c.l.b16 %v1345
    %v4214 = vunpack.c.h.b16 %v1345
    %v4215 = vunpack.c.l.b16 %v1346
    %v4216 = vunpack.c.h.b16 %v1346
    %v4217 = vunpack.c.l.b16 %v1347
    %v4218 = vunpack.c.h.b16 %v1347
    %v4219 = vunpack.c.l.b16 %v1348
    %v4220 = vunpack.c.h.b16 %v1348
    %v4221 = vunpack.c.l.b16 %v1349
    %v4222 = vunpack.c.h.b16 %v1349
    %v4223 = vunpack.c.l.b16 %v1350
    %v4224 = vunpack.c.h.b16 %v1350
    %v4225 = vunpack.c.l.b16 %v1351
    %v4226 = vunpack.c.h.b16 %v1351
    %v4227 = vunpack.c.l.b16 %v1352
    %v4228 = vunpack.c.h.b16 %v1352
    %v4229 = vunpack.c.l.b16 %v1353
    %v4230 = vunpack.c.h.b16 %v1353
    %v4231 = vunpack.c.l.b16 %v1354
    %v4232 = vunpack.c.h.b16 %v1354
    %v4233 = vunpack.c.l.b16 %v1355
    %v4234 = vunpack.c.h.b16 %v1355
    %v4235 = vunpack.c.l.b16 %v1356
    %v4236 = vunpack.c.h.b16 %v1356
    %v4237 = vunpack.c.l.b16 %v1357
    %v4238 = vunpack.c.h.b16 %v1357
    %v4239 = vunpack.c.l.b16 %v1358
    %v4240 = vunpack.c.h.b16 %v1358
    %v4241 = vunpack.c.l.b16 %v1359
    %v4242 = vunpack.c.h.b16 %v1359
    %v4243 = vunpack.c.l.b16 %v1360
    %v4244 = vunpack.c.h.b16 %v1360
    %v4245 = vunpack.c.l.b16 %v1361
    %v4246 = vunpack.c.h.b16 %v1361
    %v4247 = vunpack.c.l.b16 %v1362
    %v4248 = vunpack.c.h.b16 %v1362
    %v4249 = vunpack.c.l.b16 %v1363
    %v4250 = vunpack.c.h.b16 %v1363
    %v4251 = vunpack.c.l.b16 %v1364
    %v4252 = vunpack.c.h.b16 %v1364
    %v4253 = vunpack.c.l.b16 %v1365
    %v4254 = vunpack.c.h.b16 %v1365
    %v4255 = vunpack.c.l.b16 %v1366
    %v4256 = vunpack.c.h.b16 %v1366
    %v4257 = vunpack.c.l.b16 %v1367
    %v4258 = vunpack.c.h.b16 %v1367
    %v4259 = vunpack.c.l.b16 %v1368
    %v4260 = vunpack.c.h.b16 %v1368
    %v4261 = vunpack.c.l.b16 %v1369
    %v4262 = vunpack.c.h.b16 %v1369
    %v4263 = vunpack.c.l.b16 %v1370
    %v4264 = vunpack.c.h.b16 %v1370
    %v4265 = vunpack.c.l.b16 %v1371
    %v4266 = vunpack.c.h.b16 %v1371
    %v4267 = vunpack.c.l.b16 %v1372
    %v4268 = vunpack.c.h.b16 %v1372
    %v4269 = vunpack.c.l.b16 %v1373
    %v4270 = vunpack.c.h.b16 %v1373
    %v4271 = vunpack.c.l.b16 %v1374
    %v4272 = vunpack.c.h.b16 %v1374
    %v4273 = vunpack.c.l.b16 %v1375
    %v4274 = vunpack.c.h.b16 %v1375
    %v4275 = vunpack.c.l.b16 %v1376
    %v4276 = vunpack.c.h.b16 %v1376
    %v4277 = vunpack.c.l.b16 %v1377
    %v4278 = vunpack.c.h.b16 %v1377
    %v4279 = vunpack.c.l.b16 %v1378
    %v4280 = vunpack.c.h.b16 %v1378
    %v4281 = vunpack.c.l.b16 %v1379
    %v4282 = vunpack.c.h.b16 %v1379
    %v4283 = vunpack.c.l.b16 %v1380
    %v4284 = vunpack.c.h.b16 %v1380
    %v4285 = vunpack.c.l.b16 %v1381
    %v4286 = vunpack.c.h.b16 %v1381
    %v4287 = vunpack.c.l.b16 %v1382
    %v4288 = vunpack.c.h.b16 %v1382
    %v4289 = vunpack.c.l.b16 %v1383
    %v4290 = vunpack.c.h.b16 %v1383
    %v4291 = vunpack.c.l.b16 %v1384
    %v4292 = vunpack.c.h.b16 %v1384
    %v4293 = vunpack.c.l.b16 %v1385
    %v4294 = vunpack.c.h.b16 %v1385
    %v4295 = vunpack.c.l.b16 %v1386
    %v4296 = vunpack.c.h.b16 %v1386
    %v4297 = vunpack.c.l.b16 %v1387
    %v4298 = vunpack.c.h.b16 %v1387
    %v4299 = vunpack.c.l.b16 %v1388
    %v4300 = vunpack.c.h.b16 %v1388
    %v4301 = vunpack.c.l.b16 %v1389
    %v4302 = vunpack.c.h.b16 %v1389
    %v4303 = vunpack.c.l.b16 %v1390
    %v4304 = vunpack.c.h.b16 %v1390
    %v4305 = vunpack.c.l.b16 %v1391
    %v4306 = vunpack.c.h.b16 %v1391
    %v4307 = vunpack.c.l.b16 %v1392
    %v4308 = vunpack.c.h.b16 %v1392
    %v4309 = vunpack.c.l.b16 %v1393
    %v4310 = vunpack.c.h.b16 %v1393
    %v4311 = vunpack.c.l.b16 %v1394
    %v4312 = vunpack.c.h.b16 %v1394
    %v4313 = vunpack.c.l.b16 %v1395
    %v4314 = vunpack.c.h.b16 %v1395
    %v4315 = vunpack.c.l.b16 %v1396
    %v4316 = vunpack.c.h.b16 %v1396
    %v4317 = vunpack.c.l.b16 %v1397
    %v4318 = vunpack.c.h.b16 %v1397
    %v4319 = vunpack.c.l.b16 %v1398
    %v4320 = vunpack.c.h.b16 %v1398
    %v4321 = vunpack.c.l.b16 %v1399
    %v4322 = vunpack.c.h.b16 %v1399
    %v4323 = vunpack.c.l.b16 %v1400
    %v4324 = vunpack.c.h.b16 %v1400
    %v4325 = vunpack.c.l.b16 %v1401
    %v4326 = vunpack.c.h.b16 %v1401
    %v4327 = vunpack.c.l.b16 %v1402
    %v4328 = vunpack.c.h.b16 %v1402
    %v4329 = vunpack.c.l.b16 %v1403
    %v4330 = vunpack.c.h.b16 %v1403
    %v4331 = vunpack.c.l.b16 %v1404
    %v4332 = vunpack.c.h.b16 %v1404
    %v4333 = vunpack.c.l.b16 %v1405
    %v4334 = vunpack.c.h.b16 %v1405
    %v4335 = vunpack.c.l.b16 %v1406
    %v4336 = vunpack.c.h.b16 %v1406
    %v4337 = vunpack.c.l.b16 %v1407
    %v4338 = vunpack.c.h.b16 %v1407
    %v4339 = vunpack.c.l.b16 %v1408
    %v4340 = vunpack.c.h.b16 %v1408
    %v4341 = vunpack.c.l.b16 %v1409
    %v4342 = vunpack.c.h.b16 %v1409
    %v4343 = vunpack.c.l.b16 %v1410
    %v4344 = vunpack.c.h.b16 %v1410
    %v4345 = vunpack.c.l.b16 %v1411
    %v4346 = vunpack.c.h.b16 %v1411
    %v4347 = vunpack.c.l.b16 %v1412
    %v4348 = vunpack.c.h.b16 %v1412
    %v4349 = vunpack.c.l.b16 %v1413
    %v4350 = vunpack.c.h.b16 %v1413
    %v4351 = vunpack.c.l.b16 %v1414
    %v4352 = vunpack.c.h.b16 %v1414
    %v4353 = vunpack.c.l.b16 %v1415
    %v4354 = vunpack.c.h.b16 %v1415
    %v4355 = vunpack.c.l.b16 %v1416
    %v4356 = vunpack.c.h.b16 %v1416
    %v4357 = vunpack.c.l.b16 %v1417
    %v4358 = vunpack.c.h.b16 %v1417
    %v4359 = vunpack.c.l.b16 %v1418
    %v4360 = vunpack.c.h.b16 %v1418
    %v4361 = vunpack.c.l.b16 %v1419
    %v4362 = vunpack.c.h.b16 %v1419
    %v4363 = vunpack.c.l.b16 %v1420
    %v4364 = vunpack.c.h.b16 %v1420
    %v4365 = vunpack.c.l.b16 %v1421
    %v4366 = vunpack.c.h.b16 %v1421
    %v4367 = vunpack.c.l.b16 %v1422
    %v4368 = vunpack.c.h.b16 %v1422
    %v4369 = vunpack.c.l.b16 %v1423
    %v4370 = vunpack.c.h.b16 %v1423
    %v4371 = vunpack.c.l.b16 %v1424
    %v4372 = vunpack.c.h.b16 %v1424
    %v4373 = vunpack.c.l.b16 %v1425
    %v4374 = vunpack.c.h.b16 %v1425
    %v4375 = vunpack.c.l.b16 %v1426
    %v4376 = vunpack.c.h.b16 %v1426
    %v4377 = vunpack.c.l.b16 %v1427
    %v4378 = vunpack.c.h.b16 %v1427
    %v4379 = vunpack.c.l.b16 %v1428
    %v4380 = vunpack.c.h.b16 %v1428
    %v4381 = vunpack.c.l.b16 %v1429
    %v4382 = vunpack.c.h.b16 %v1429
    %v4383 = vunpack.c.l.b16 %v1430
    %v4384 = vunpack.c.h.b16 %v1430
    %v4385 = vunpack.c.l.b16 %v1431
    %v4386 = vunpack.c.h.b16 %v1431
    %v4387 = vunpack.c.l.b16 %v1432
    %v4388 = vunpack.c.h.b16 %v1432
    %v4389 = vunpack.c.l.b16 %v1433
    %v4390 = vunpack.c.h.b16 %v1433
    %v4391 = vunpack.c.l.b16 %v1434
    %v4392 = vunpack.c.h.b16 %v1434
    %v4393 = vunpack.c.l.b16 %v1435
    %v4394 = vunpack.c.h.b16 %v1435
    %v4395 = vunpack.c.l.b16 %v1436
    %v4396 = vunpack.c.h.b16 %v1436
    %v4397 = vunpack.c.l.b16 %v1437
    %v4398 = vunpack.c.h.b16 %v1437
    %v4399 = vunpack.c.l.b16 %v1438
    %v4400 = vunpack.c.h.b16 %v1438
    %v4401 = vunpack.c.l.b16 %v1439
    %v4402 = vunpack.c.h.b16 %v1439
    %v4403 = vunpack.c.l.b16 %v1440
    %v4404 = vunpack.c.h.b16 %v1440
    %v4405 = vunpack.c.l.b16 %v1441
    %v4406 = vunpack.c.h.b16 %v1441
    %v4407 = vunpack.c.l.b16 %v1442
    %v4408 = vunpack.c.h.b16 %v1442
    %v4409 = vunpack.c.l.b16 %v1443
    %v4410 = vunpack.c.h.b16 %v1443
    %v4411 = vunpack.c.l.b16 %v1444
    %v4412 = vunpack.c.h.b16 %v1444
    %v4413 = vunpack.c.l.b16 %v1445
    %v4414 = vunpack.c.h.b16 %v1445
    %v4415 = vunpack.c.l.b16 %v1446
    %v4416 = vunpack.c.h.b16 %v1446
    %v4417 = vunpack.c.l.b16 %v1447
    %v4418 = vunpack.c.h.b16 %v1447
    %v4419 = vunpack.c.l.b16 %v1448
    %v4420 = vunpack.c.h.b16 %v1448
    %v4421 = vunpack.c.l.b16 %v1449
    %v4422 = vunpack.c.h.b16 %v1449
    %v4423 = vunpack.c.l.b16 %v1450
    %v4424 = vunpack.c.h.b16 %v1450
    %v4425 = vunpack.c.l.b16 %v1451
    %v4426 = vunpack.c.h.b16 %v1451
    %v4427 = vunpack.c.l.b16 %v1452
    %v4428 = vunpack.c.h.b16 %v1452
    %v4429 = vunpack.c.l.b16 %v1453
    %v4430 = vunpack.c.h.b16 %v1453
    %v4431 = vunpack.c.l.b16 %v1454
    %v4432 = vunpack.c.h.b16 %v1454
    %v4433 = vunpack.c.l.b16 %v1455
    %v4434 = vunpack.c.h.b16 %v1455
    %v4435 = vunpack.c.l.b16 %v1456
    %v4436 = vunpack.c.h.b16 %v1456
    %v4437 = vunpack.c.l.b16 %v1457
    %v4438 = vunpack.c.h.b16 %v1457
    %v4439 = vunpack.c.l.b16 %v1458
    %v4440 = vunpack.c.h.b16 %v1458
    %v4441 = vunpack.c.l.b16 %v1459
    %v4442 = vunpack.c.h.b16 %v1459
    %v4443 = vunpack.c.l.b16 %v1460
    %v4444 = vunpack.c.h.b16 %v1460
    %v4445 = vunpack.c.l.b16 %v1461
    %v4446 = vunpack.c.h.b16 %v1461
    %v4447 = vunpack.c.l.b16 %v1462
    %v4448 = vunpack.c.h.b16 %v1462
    %v4449 = vunpack.c.l.b16 %v1463
    %v4450 = vunpack.c.h.b16 %v1463
    %v4451 = vunpack.c.l.b16 %v1464
    %v4452 = vunpack.c.h.b16 %v1464
    %v4453 = vunpack.c.l.b16 %v1465
    %v4454 = vunpack.c.h.b16 %v1465
    %v4455 = vunpack.c.l.b16 %v1466
    %v4456 = vunpack.c.h.b16 %v1466
    %v4457 = vunpack.c.l.b16 %v1467
    %v4458 = vunpack.c.h.b16 %v1467
    %v4459 = vunpack.c.l.b16 %v1468
    %v4460 = vunpack.c.h.b16 %v1468
    %v4461 = vunpack.c.l.b16 %v1469
    %v4462 = vunpack.c.h.b16 %v1469
    %v4463 = vunpack.c.l.b16 %v1470
    %v4464 = vunpack.c.h.b16 %v1470
    %v4465 = vunpack.c.l.b16 %v1471
    %v4466 = vunpack.c.h.b16 %v1471
    %v4467 = vunpack.c.l.b16 %v1472
    %v4468 = vunpack.c.h.b16 %v1472
    %v4469 = vunpack.c.l.b16 %v1473
    %v4470 = vunpack.c.h.b16 %v1473
    %v4471 = vunpack.c.l.b16 %v1474
    %v4472 = vunpack.c.h.b16 %v1474
    %v4473 = vunpack.c.l.b16 %v1475
    %v4474 = vunpack.c.h.b16 %v1475
    %v4475 = vunpack.c.l.b16 %v1476
    %v4476 = vunpack.c.h.b16 %v1476
    %v4477 = vunpack.c.l.b16 %v1477
    %v4478 = vunpack.c.h.b16 %v1477
    %v4479 = vunpack.c.l.b16 %v1478
    %v4480 = vunpack.c.h.b16 %v1478
    %v4481 = vunpack.c.l.b16 %v1479
    %v4482 = vunpack.c.h.b16 %v1479
    %v4483 = vunpack.c.l.b16 %v1480
    %v4484 = vunpack.c.h.b16 %v1480
    %v4485 = vunpack.c.l.b16 %v1481
    %v4486 = vunpack.c.h.b16 %v1481
    %v4487 = vunpack.c.l.b16 %v1482
    %v4488 = vunpack.c.h.b16 %v1482
    %v4489 = vunpack.c.l.b16 %v1483
    %v4490 = vunpack.c.h.b16 %v1483
    %v4491 = vunpack.c.l.b16 %v1484
    %v4492 = vunpack.c.h.b16 %v1484
    %v4493 = vunpack.c.l.b16 %v1485
    %v4494 = vunpack.c.h.b16 %v1485
    %v4495 = vunpack.c.l.b16 %v1486
    %v4496 = vunpack.c.h.b16 %v1486
    %v4497 = vunpack.c.l.b16 %v1487
    %v4498 = vunpack.c.h.b16 %v1487
    %v4499 = vunpack.c.l.b16 %v1488
    %v4500 = vunpack.c.h.b16 %v1488
    %v4501 = vunpack.c.l.b16 %v1489
    %v4502 = vunpack.c.h.b16 %v1489
    %v4503 = vunpack.c.l.b16 %v1490
    %v4504 = vunpack.c.h.b16 %v1490
    %v4505 = vunpack.c.l.b16 %v1491
    %v4506 = vunpack.c.h.b16 %v1491
    %v4507 = vunpack.c.l.b16 %v1492
    %v4508 = vunpack.c.h.b16 %v1492
    %v4509 = vunpack.c.l.b16 %v1493
    %v4510 = vunpack.c.h.b16 %v1493
    %v4511 = vunpack.c.l.b16 %v1494
    %v4512 = vunpack.c.h.b16 %v1494
    %v4513 = vunpack.c.l.b16 %v1495
    %v4514 = vunpack.c.h.b16 %v1495
    %v4515 = vunpack.c.l.b16 %v1496
    %v4516 = vunpack.c.h.b16 %v1496
    %v4517 = vunpack.c.l.b16 %v1497
    %v4518 = vunpack.c.h.b16 %v1497
    %v4519 = vunpack.c.l.b16 %v1498
    %v4520 = vunpack.c.h.b16 %v1498
    %v4521 = vunpack.c.l.b16 %v1499
    %v4522 = vunpack.c.h.b16 %v1499
    %v4523 = vunpack.c.l.b16 %v1500
    %v4524 = vunpack.c.h.b16 %v1500
    %v4525 = vunpack.c.l.b16 %v1501
    %v4526 = vunpack.c.h.b16 %v1501
    %v4527 = vunpack.c.l.b16 %v1502
    %v4528 = vunpack.c.h.b16 %v1502
    %v4529 = vunpack.c.l.b16 %v1503
    %v4530 = vunpack.c.h.b16 %v1503
    %v4531 = vunpack.c.l.b16 %v1504
    %v4532 = vunpack.c.h.b16 %v1504
    %v4533 = vunpack.c.l.b16 %v1505
    %v4534 = vunpack.c.h.b16 %v1505
    %v4535 = vunpack.c.l.b16 %v1506
    %v4536 = vunpack.c.h.b16 %v1506
    %v4537 = vunpack.c.l.b16 %v1507
    %v4538 = vunpack.c.h.b16 %v1507
    %v4539 = vunpack.c.l.b16 %v1508
    %v4540 = vunpack.c.h.b16 %v1508
    %v4541 = vunpack.c.l.b16 %v1509
    %v4542 = vunpack.c.h.b16 %v1509
    %v4543 = vunpack.c.l.b16 %v1510
    %v4544 = vunpack.c.h.b16 %v1510
    %v4545 = vunpack.c.l.b16 %v1511
    %v4546 = vunpack.c.h.b16 %v1511
    %v4547 = vunpack.c.l.b16 %v1512
    %v4548 = vunpack.c.h.b16 %v1512
    %v4549 = vunpack.c.l.b16 %v1513
    %v4550 = vunpack.c.h.b16 %v1513
    %v4551 = vunpack.c.l.b16 %v1514
    %v4552 = vunpack.c.h.b16 %v1514
    %v4553 = vunpack.c.l.b16 %v1515
    %v4554 = vunpack.c.h.b16 %v1515
    %v4555 = vunpack.c.l.b16 %v1516
    %v4556 = vunpack.c.h.b16 %v1516
    %v4557 = vunpack.c.l.b16 %v1517
    %v4558 = vunpack.c.h.b16 %v1517
    %v4559 = vunpack.c.l.b16 %v1518
    %v4560 = vunpack.c.h.b16 %v1518
    %v4561 = vunpack.c.l.b16 %v1519
    %v4562 = vunpack.c.h.b16 %v1519
    %v4563 = vunpack.c.l.b16 %v1520
    %v4564 = vunpack.c.h.b16 %v1520
    %v4565 = vunpack.c.l.b16 %v1521
    %v4566 = vunpack.c.h.b16 %v1521
    %v4567 = vunpack.c.l.b16 %v1522
    %v4568 = vunpack.c.h.b16 %v1522
    %v4569 = vunpack.c.l.b16 %v1523
    %v4570 = vunpack.c.h.b16 %v1523
    %v4571 = vunpack.c.l.b16 %v1524
    %v4572 = vunpack.c.h.b16 %v1524
    %v4573 = vunpack.c.l.b16 %v1525
    %v4574 = vunpack.c.h.b16 %v1525
    %v4575 = vunpack.c.l.b16 %v1526
    %v4576 = vunpack.c.h.b16 %v1526
    %v4577 = vunpack.c.l.b16 %v1527
    %v4578 = vunpack.c.h.b16 %v1527
    %v4579 = vunpack.c.l.b16 %v1528
    %v4580 = vunpack.c.h.b16 %v1528
    %v4581 = vunpack.c.l.b16 %v1529
    %v4582 = vunpack.c.h.b16 %v1529
    %v4583 = vunpack.c.l.b16 %v1530
    %v4584 = vunpack.c.h.b16 %v1530
    %v4585 = vunpack.c.l.b16 %v1531
    %v4586 = vunpack.c.h.b16 %v1531
    %v4587 = vunpack.c.l.b16 %v1532
    %v4588 = vunpack.c.h.b16 %v1532
    %v4589 = vunpack.c.l.b16 %v1533
    %v4590 = vunpack.c.h.b16 %v1533
    %v4591 = vunpack.c.l.b16 %v1534
    %v4592 = vunpack.c.h.b16 %v1534
    %v4593 = vunpack.c.l.b16 %v1535
    %v4594 = vunpack.c.h.b16 %v1535
    %v4595 = vunpack.c.l.b16 %v1536
    %v4596 = vunpack.c.h.b16 %v1536
    %v4597 = vunpack.c.l.b16 %v1537
    %v4598 = vunpack.c.h.b16 %v1537
    %v4599 = vunpack.c.l.b16 %v1538
    %v4600 = vunpack.c.h.b16 %v1538
    %v4601 = vunpack.c.l.b16 %v1539
    %v4602 = vunpack.c.h.b16 %v1539
    %v4603 = vunpack.c.l.b16 %v1540
    %v4604 = vunpack.c.h.b16 %v1540
    %v4605 = vunpack.c.l.b16 %v1541
    %v4606 = vunpack.c.h.b16 %v1541
    %v4607 = vunpack.c.l.b16 %v1542
    %v4608 = vunpack.c.h.b16 %v1542
    %v4609 = vunpack.c.l.b16 %v1543
    %v4610 = vunpack.c.h.b16 %v1543
    %v4611 = vunpack.c.l.b16 %v1544
    %v4612 = vunpack.c.h.b16 %v1544
    %v4613 = vunpack.c.l.b16 %v1545
    %v4614 = vunpack.c.h.b16 %v1545
    %v4615 = vunpack.c.l.b16 %v1546
    %v4616 = vunpack.c.h.b16 %v1546
    %v4617 = vunpack.c.l.b16 %v1547
    %v4618 = vunpack.c.h.b16 %v1547
    %v4619 = vunpack.c.l.b16 %v1548
    %v4620 = vunpack.c.h.b16 %v1548
    %v4621 = vpack.c.b16 %v2581, %v2573
    %v4622 = vpack.c.b16 %v2582, %v2574
    %v4623 = vpack.c.b16 %v2583, %v2575
    %v4624 = vpack.c.b16 %v2584, %v2576
    %v4625 = vpack.c.b16 %v2585, %v2577
    %v4626 = vpack.c.b16 %v2586, %v2578
    %v4627 = vpack.c.b16 %v2587, %v2579
    %v4628 = vpack.c.b16 %v2588, %v2580
    %v4629 = vpack.c.b16 %v2597, %v2589
    %v4630 = vpack.c.b16 %v2598, %v2590
    %v4631 = vpack.c.b16 %v2599, %v2591
    %v4632 = vpack.c.b16 %v2600, %v2592
    %v4633 = vpack.c.b16 %v2601, %v2593
    %v4634 = vpack.c.b16 %v2602, %v2594
    %v4635 = vpack.c.b16 %v2603, %v2595
    %v4636 = vpack.c.b16 %v2604, %v2596
    %v4637 = vpack.c.b16 %v2613, %v2605
    %v4638 = vpack.c.b16 %v2614, %v2606
    %v4639 = vpack.c.b16 %v2615, %v2607
    %v4640 = vpack.c.b16 %v2616, %v2608
    %v4641 = vpack.c.b16 %v2617, %v2609
    %v4642 = vpack.c.b16 %v2618, %v2610
    %v4643 = vpack.c.b16 %v2619, %v2611
    %v4644 = vpack.c.b16 %v2620, %v2612
    %v4645 = vpack.c.b16 %v2629, %v2621
    %v4646 = vpack.c.b16 %v2630, %v2622
    %v4647 = vpack.c.b16 %v2631, %v2623
    %v4648 = vpack.c.b16 %v2632, %v2624
    %v4649 = vpack.c.b16 %v2633, %v2625
    %v4650 = vpack.c.b16 %v2634, %v2626
    %v4651 = vpack.c.b16 %v2635, %v2627
    %v4652 = vpack.c.b16 %v2636, %v2628
    %v4653 = vpack.c.b16 %v2645, %v2637
    %v4654 = vpack.c.b16 %v2646, %v2638
    %v4655 = vpack.c.b16 %v2647, %v2639
    %v4656 = vpack.c.b16 %v2648, %v2640
    %v4657 = vpack.c.b16 %v2649, %v2641
    %v4658 = vpack.c.b16 %v2650, %v2642
    %v4659 = vpack.c.b16 %v2651, %v2643
    %v4660 = vpack.c.b16 %v2652, %v2644
    %v4661 = vpack.c.b16 %v2661, %v2653
    %v4662 = vpack.c.b16 %v2662, %v2654
    %v4663 = vpack.c.b16 %v2663, %v2655
    %v4664 = vpack.c.b16 %v2664, %v2656
    %v4665 = vpack.c.b16 %v2665, %v2657
    %v4666 = vpack.c.b16 %v2666, %v2658
    %v4667 = vpack.c.b16 %v2667, %v2659
    %v4668 = vpack.c.b16 %v2668, %v2660
    %v4669 = vpack.c.b16 %v2677, %v2669
    %v4670 = vpack.c.b16 %v2678, %v2670
    %v4671 = vpack.c.b16 %v2679, %v2671
    %v4672 = vpack.c.b16 %v2680, %v2672
    %v4673 = vpack.c.b16 %v2681, %v2673
    %v4674 = vpack.c.b16 %v2682, %v2674
    %v4675 = vpack.c.b16 %v2683, %v2675
    %v4676 = vpack.c.b16 %v2684, %v2676
    %v4677 = vpack.c.b16 %v2693, %v2685
    %v4678 = vpack.c.b16 %v2694, %v2686
    %v4679 = vpack.c.b16 %v2695, %v2687
    %v4680 = vpack.c.b16 %v2696, %v2688
    %v4681 = vpack.c.b16 %v2697, %v2689
    %v4682 = vpack.c.b16 %v2698, %v2690
    %v4683 = vpack.c.b16 %v2699, %v2691
    %v4684 = vpack.c.b16 %v2700, %v2692
    %v4685 = vpack.c.b16 %v2709, %v2701
    %v4686 = vpack.c.b16 %v2710, %v2702
    %v4687 = vpack.c.b16 %v2711, %v2703
    %v4688 = vpack.c.b16 %v2712, %v2704
    %v4689 = vpack.c.b16 %v2713, %v2705
    %v4690 = vpack.c.b16 %v2714, %v2706
    %v4691 = vpack.c.b16 %v2715, %v2707
    %v4692 = vpack.c.b16 %v2716, %v2708
    %v4693 = vpack.c.b16 %v2725, %v2717
    %v4694 = vpack.c.b16 %v2726, %v2718
    %v4695 = vpack.c.b16 %v2727, %v2719
    %v4696 = vpack.c.b16 %v2728, %v2720
    %v4697 = vpack.c.b16 %v2729, %v2721
    %v4698 = vpack.c.b16 %v2730, %v2722
    %v4699 = vpack.c.b16 %v2731, %v2723
    %v4700 = vpack.c.b16 %v2732, %v2724
    %v4701 = vpack.c.b16 %v2741, %v2733
    %v4702 = vpack.c.b16 %v2742, %v2734
    %v4703 = vpack.c.b16 %v2743, %v2735
    %v4704 = vpack.c.b16 %v2744, %v2736
    %v4705 = vpack.c.b16 %v2745, %v2737
    %v4706 = vpack.c.b16 %v2746, %v2738
    %v4707 = vpack.c.b16 %v2747, %v2739
    %v4708 = vpack.c.b16 %v2748, %v2740
    %v4709 = vpack.c.b16 %v2757, %v2749
    %v4710 = vpack.c.b16 %v2758, %v2750
    %v4711 = vpack.c.b16 %v2759, %v2751
    %v4712 = vpack.c.b16 %v2760, %v2752
    %v4713 = vpack.c.b16 %v2761, %v2753
    %v4714 = vpack.c.b16 %v2762, %v2754
    %v4715 = vpack.c.b16 %v2763, %v2755
    %v4716 = vpack.c.b16 %v2764, %v2756
    %v4717 = vpack.c.b16 %v2773, %v2765
    %v4718 = vpack.c.b16 %v2774, %v2766
    %v4719 = vpack.c.b16 %v2775, %v2767
    %v4720 = vpack.c.b16 %v2776, %v2768
    %v4721 = vpack.c.b16 %v2777, %v2769
    %v4722 = vpack.c.b16 %v2778, %v2770
    %v4723 = vpack.c.b16 %v2779, %v2771
    %v4724 = vpack.c.b16 %v2780, %v2772
    %v4725 = vpack.c.b16 %v2789, %v2781
    %v4726 = vpack.c.b16 %v2790, %v2782
    %v4727 = vpack.c.b16 %v2791, %v2783
    %v4728 = vpack.c.b16 %v2792, %v2784
    %v4729 = vpack.c.b16 %v2793, %v2785
    %v4730 = vpack.c.b16 %v2794, %v2786
    %v4731 = vpack.c.b16 %v2795, %v2787
    %v4732 = vpack.c.b16 %v2796, %v2788
    %v4733 = vpack.c.b16 %v2805, %v2797
    %v4734 = vpack.c.b16 %v2806, %v2798
    %v4735 = vpack.c.b16 %v2807, %v2799
    %v4736 = vpack.c.b16 %v2808, %v2800
    %v4737 = vpack.c.b16 %v2809, %v2801
    %v4738 = vpack.c.b16 %v2810, %v2802
    %v4739 = vpack.c.b16 %v2811, %v2803
    %v4740 = vpack.c.b16 %v2812, %v2804
    %v4741 = vpack.c.b16 %v2821, %v2813
    %v4742 = vpack.c.b16 %v2822, %v2814
    %v4743 = vpack.c.b16 %v2823, %v2815
    %v4744 = vpack.c.b16 %v2824, %v2816
    %v4745 = vpack.c.b16 %v2825, %v2817
    %v4746 = vpack.c.b16 %v2826, %v2818
    %v4747 = vpack.c.b16 %v2827, %v2819
    %v4748 = vpack.c.b16 %v2828, %v2820
    %v4749 = vpack.c.b16 %v2837, %v2829
    %v4750 = vpack.c.b16 %v2838, %v2830
    %v4751 = vpack.c.b16 %v2839, %v2831
    %v4752 = vpack.c.b16 %v2840, %v2832
    %v4753 = vpack.c.b16 %v2841, %v2833
    %v4754 = vpack.c.b16 %v2842, %v2834
    %v4755 = vpack.c.b16 %v2843, %v2835
    %v4756 = vpack.c.b16 %v2844, %v2836
    %v4757 = vpack.c.b16 %v2853, %v2845
    %v4758 = vpack.c.b16 %v2854, %v2846
    %v4759 = vpack.c.b16 %v2855, %v2847
    %v4760 = vpack.c.b16 %v2856, %v2848
    %v4761 = vpack.c.b16 %v2857, %v2849
    %v4762 = vpack.c.b16 %v2858, %v2850
    %v4763 = vpack.c.b16 %v2859, %v2851
    %v4764 = vpack.c.b16 %v2860, %v2852
    %v4765 = vpack.c.b16 %v2869, %v2861
    %v4766 = vpack.c.b16 %v2870, %v2862
    %v4767 = vpack.c.b16 %v2871, %v2863
    %v4768 = vpack.c.b16 %v2872, %v2864
    %v4769 = vpack.c.b16 %v2873, %v2865
    %v4770 = vpack.c.b16 %v2874, %v2866
    %v4771 = vpack.c.b16 %v2875, %v2867
    %v4772 = vpack.c.b16 %v2876, %v2868
    %v4773 = vpack.c.b16 %v2885, %v2877
    %v4774 = vpack.c.b16 %v2886, %v2878
    %v4775 = vpack.c.b16 %v2887, %v2879
    %v4776 = vpack.c.b16 %v2888, %v2880
    %v4777 = vpack.c.b16 %v2889, %v2881
    %v4778 = vpack.c.b16 %v2890, %v2882
    %v4779 = vpack.c.b16 %v2891, %v2883
    %v4780 = vpack.c.b16 %v2892, %v2884
    %v4781 = vpack.c.b16 %v2901, %v2893
    %v4782 = vpack.c.b16 %v2902, %v2894
    %v4783 = vpack.c.b16 %v2903, %v2895
    %v4784 = vpack.c.b16 %v2904, %v2896
    %v4785 = vpack.c.b16 %v2905, %v2897
    %v4786 = vpack.c.b16 %v2906, %v2898
    %v4787 = vpack.c.b16 %v2907, %v2899
    %v4788 = vpack.c.b16 %v2908, %v2900
    %v4789 = vpack.c.b16 %v2917, %v2909
    %v4790 = vpack.c.b16 %v2918, %v2910
    %v4791 = vpack.c.b16 %v2919, %v2911
    %v4792 = vpack.c.b16 %v2920, %v2912
    %v4793 = vpack.c.b16 %v2921, %v2913
    %v4794 = vpack.c.b16 %v2922, %v2914
    %v4795 = vpack.c.b16 %v2923, %v2915
    %v4796 = vpack.c.b16 %v2924, %v2916
    %v4797 = vpack.c.b16 %v2933, %v2925
    %v4798 = vpack.c.b16 %v2934, %v2926
    %v4799 = vpack.c.b16 %v2935, %v2927
    %v4800 = vpack.c.b16 %v2936, %v2928
    %v4801 = vpack.c.b16 %v2937, %v2929
    %v4802 = vpack.c.b16 %v2938, %v2930
    %v4803 = vpack.c.b16 %v2939, %v2931
    %v4804 = vpack.c.b16 %v2940, %v2932
    %v4805 = vpack.c.b16 %v2949, %v2941
    %v4806 = vpack.c.b16 %v2950, %v2942
    %v4807 = vpack.c.b16 %v2951, %v2943
    %v4808 = vpack.c.b16 %v2952, %v2944
    %v4809 = vpack.c.b16 %v2953, %v2945
    %v4810 = vpack.c.b16 %v2954, %v2946
    %v4811 = vpack.c.b16 %v2955, %v2947
    %v4812 = vpack.c.b16 %v2956, %v2948
    %v4813 = vpack.c.b16 %v2965, %v2957
    %v4814 = vpack.c.b16 %v2966, %v2958
    %v4815 = vpack.c.b16 %v2967, %v2959
    %v4816 = vpack.c.b16 %v2968, %v2960
    %v4817 = vpack.c.b16 %v2969, %v2961
    %v4818 = vpack.c.b16 %v2970, %v2962
    %v4819 = vpack.c.b16 %v2971, %v2963
    %v4820 = vpack.c.b16 %v2972, %v2964
    %v4821 = vpack.c.b16 %v2981, %v2973
    %v4822 = vpack.c.b16 %v2982, %v2974
    %v4823 = vpack.c.b16 %v2983, %v2975
    %v4824 = vpack.c.b16 %v2984, %v2976
    %v4825 = vpack.c.b16 %v2985, %v2977
    %v4826 = vpack.c.b16 %v2986, %v2978
    %v4827 = vpack.c.b16 %v2987, %v2979
    %v4828 = vpack.c.b16 %v2988, %v2980
    %v4829 = vpack.c.b16 %v2997, %v2989
    %v4830 = vpack.c.b16 %v2998, %v2990
    %v4831 = vpack.c.b16 %v2999, %v2991
    %v4832 = vpack.c.b16 %v3000, %v2992
    %v4833 = vpack.c.b16 %v3001, %v2993
    %v4834 = vpack.c.b16 %v3002, %v2994
    %v4835 = vpack.c.b16 %v3003, %v2995
    %v4836 = vpack.c.b16 %v3004, %v2996
    %v4837 = vpack.c.b16 %v3013, %v3005
    %v4838 = vpack.c.b16 %v3014, %v3006
    %v4839 = vpack.c.b16 %v3015, %v3007
    %v4840 = vpack.c.b16 %v3016, %v3008
    %v4841 = vpack.c.b16 %v3017, %v3009
    %v4842 = vpack.c.b16 %v3018, %v3010
    %v4843 = vpack.c.b16 %v3019, %v3011
    %v4844 = vpack.c.b16 %v3020, %v3012
    %v4845 = vpack.c.b16 %v3029, %v3021
    %v4846 = vpack.c.b16 %v3030, %v3022
    %v4847 = vpack.c.b16 %v3031, %v3023
    %v4848 = vpack.c.b16 %v3032, %v3024
    %v4849 = vpack.c.b16 %v3033, %v3025
    %v4850 = vpack.c.b16 %v3034, %v3026
    %v4851 = vpack.c.b16 %v3035, %v3027
    %v4852 = vpack.c.b16 %v3036, %v3028
    %v4853 = vpack.c.b16 %v3045, %v3037
    %v4854 = vpack.c.b16 %v3046, %v3038
    %v4855 = vpack.c.b16 %v3047, %v3039
    %v4856 = vpack.c.b16 %v3048, %v3040
    %v4857 = vpack.c.b16 %v3049, %v3041
    %v4858 = vpack.c.b16 %v3050, %v3042
    %v4859 = vpack.c.b16 %v3051, %v3043
    %v4860 = vpack.c.b16 %v3052, %v3044
    %v4861 = vpack.c.b16 %v3061, %v3053
    %v4862 = vpack.c.b16 %v3062, %v3054
    %v4863 = vpack.c.b16 %v3063, %v3055
    %v4864 = vpack.c.b16 %v3064, %v3056
    %v4865 = vpack.c.b16 %v3065, %v3057
    %v4866 = vpack.c.b16 %v3066, %v3058
    %v4867 = vpack.c.b16 %v3067, %v3059
    %v4868 = vpack.c.b16 %v3068, %v3060
    %v4869 = vpack.c.b16 %v3077, %v3069
    %v4870 = vpack.c.b16 %v3078, %v3070
    %v4871 = vpack.c.b16 %v3079, %v3071
    %v4872 = vpack.c.b16 %v3080, %v3072
    %v4873 = vpack.c.b16 %v3081, %v3073
    %v4874 = vpack.c.b16 %v3082, %v3074
    %v4875 = vpack.c.b16 %v3083, %v3075
    %v4876 = vpack.c.b16 %v3084, %v3076
    %v4877 = vpack.c.b16 %v3093, %v3085
    %v4878 = vpack.c.b16 %v3094, %v3086
    %v4879 = vpack.c.b16 %v3095, %v3087
    %v4880 = vpack.c.b16 %v3096, %v3088
    %v4881 = vpack.c.b16 %v3097, %v3089
    %v4882 = vpack.c.b16 %v3098, %v3090
    %v4883 = vpack.c.b16 %v3099, %v3091
    %v4884 = vpack.c.b16 %v3100, %v3092
    %v4885 = vpack.c.b16 %v3109, %v3101
    %v4886 = vpack.c.b16 %v3110, %v3102
    %v4887 = vpack.c.b16 %v3111, %v3103
    %v4888 = vpack.c.b16 %v3112, %v3104
    %v4889 = vpack.c.b16 %v3113, %v3105
    %v4890 = vpack.c.b16 %v3114, %v3106
    %v4891 = vpack.c.b16 %v3115, %v3107
    %v4892 = vpack.c.b16 %v3116, %v3108
    %v4893 = vpack.c.b16 %v3125, %v3117
    %v4894 = vpack.c.b16 %v3126, %v3118
    %v4895 = vpack.c.b16 %v3127, %v3119
    %v4896 = vpack.c.b16 %v3128, %v3120
    %v4897 = vpack.c.b16 %v3129, %v3121
    %v4898 = vpack.c.b16 %v3130, %v3122
    %v4899 = vpack.c.b16 %v3131, %v3123
    %v4900 = vpack.c.b16 %v3132, %v3124
    %v4901 = vpack.c.b16 %v3141, %v3133
    %v4902 = vpack.c.b16 %v3142, %v3134
    %v4903 = vpack.c.b16 %v3143, %v3135
    %v4904 = vpack.c.b16 %v3144, %v3136
    %v4905 = vpack.c.b16 %v3145, %v3137
    %v4906 = vpack.c.b16 %v3146, %v3138
    %v4907 = vpack.c.b16 %v3147, %v3139
    %v4908 = vpack.c.b16 %v3148, %v3140
    %v4909 = vpack.c.b16 %v3157, %v3149
    %v4910 = vpack.c.b16 %v3158, %v3150
    %v4911 = vpack.c.b16 %v3159, %v3151
    %v4912 = vpack.c.b16 %v3160, %v3152
    %v4913 = vpack.c.b16 %v3161, %v3153
    %v4914 = vpack.c.b16 %v3162, %v3154
    %v4915 = vpack.c.b16 %v3163, %v3155
    %v4916 = vpack.c.b16 %v3164, %v3156
    %v4917 = vpack.c.b16 %v3173, %v3165
    %v4918 = vpack.c.b16 %v3174, %v3166
    %v4919 = vpack.c.b16 %v3175, %v3167
    %v4920 = vpack.c.b16 %v3176, %v3168
    %v4921 = vpack.c.b16 %v3177, %v3169
    %v4922 = vpack.c.b16 %v3178, %v3170
    %v4923 = vpack.c.b16 %v3179, %v3171
    %v4924 = vpack.c.b16 %v3180, %v3172
    %v4925 = vpack.c.b16 %v3189, %v3181
    %v4926 = vpack.c.b16 %v3190, %v3182
    %v4927 = vpack.c.b16 %v3191, %v3183
    %v4928 = vpack.c.b16 %v3192, %v3184
    %v4929 = vpack.c.b16 %v3193, %v3185
    %v4930 = vpack.c.b16 %v3194, %v3186
    %v4931 = vpack.c.b16 %v3195, %v3187
    %v4932 = vpack.c.b16 %v3196, %v3188
    %v4933 = vpack.c.b16 %v3205, %v3197
    %v4934 = vpack.c.b16 %v3206, %v3198
    %v4935 = vpack.c.b16 %v3207, %v3199
    %v4936 = vpack.c.b16 %v3208, %v3200
    %v4937 = vpack.c.b16 %v3209, %v3201
    %v4938 = vpack.c.b16 %v3210, %v3202
    %v4939 = vpack.c.b16 %v3211, %v3203
    %v4940 = vpack.c.b16 %v3212, %v3204
    %v4941 = vpack.c.b16 %v3221, %v3213
    %v4942 = vpack.c.b16 %v3222, %v3214
    %v4943 = vpack.c.b16 %v3223, %v3215
    %v4944 = vpack.c.b16 %v3224, %v3216
    %v4945 = vpack.c.b16 %v3225, %v3217
    %v4946 = vpack.c.b16 %v3226, %v3218
    %v4947 = vpack.c.b16 %v3227, %v3219
    %v4948 = vpack.c.b16 %v3228, %v3220
    %v4949 = vpack.c.b16 %v3237, %v3229
    %v4950 = vpack.c.b16 %v3238, %v3230
    %v4951 = vpack.c.b16 %v3239, %v3231
    %v4952 = vpack.c.b16 %v3240, %v3232
    %v4953 = vpack.c.b16 %v3241, %v3233
    %v4954 = vpack.c.b16 %v3242, %v3234
    %v4955 = vpack.c.b16 %v3243, %v3235
    %v4956 = vpack.c.b16 %v3244, %v3236
    %v4957 = vpack.c.b16 %v3253, %v3245
    %v4958 = vpack.c.b16 %v3254, %v3246
    %v4959 = vpack.c.b16 %v3255, %v3247
    %v4960 = vpack.c.b16 %v3256, %v3248
    %v4961 = vpack.c.b16 %v3257, %v3249
    %v4962 = vpack.c.b16 %v3258, %v3250
    %v4963 = vpack.c.b16 %v3259, %v3251
    %v4964 = vpack.c.b16 %v3260, %v3252
    %v4965 = vpack.c.b16 %v3269, %v3261
    %v4966 = vpack.c.b16 %v3270, %v3262
    %v4967 = vpack.c.b16 %v3271, %v3263
    %v4968 = vpack.c.b16 %v3272, %v3264
    %v4969 = vpack.c.b16 %v3273, %v3265
    %v4970 = vpack.c.b16 %v3274, %v3266
    %v4971 = vpack.c.b16 %v3275, %v3267
    %v4972 = vpack.c.b16 %v3276, %v3268
    %v4973 = vpack.c.b16 %v3285, %v3277
    %v4974 = vpack.c.b16 %v3286, %v3278
    %v4975 = vpack.c.b16 %v3287, %v3279
    %v4976 = vpack.c.b16 %v3288, %v3280
    %v4977 = vpack.c.b16 %v3289, %v3281
    %v4978 = vpack.c.b16 %v3290, %v3282
    %v4979 = vpack.c.b16 %v3291, %v3283
    %v4980 = vpack.c.b16 %v3292, %v3284
    %v4981 = vpack.c.b16 %v3301, %v3293
    %v4982 = vpack.c.b16 %v3302, %v3294
    %v4983 = vpack.c.b16 %v3303, %v3295
    %v4984 = vpack.c.b16 %v3304, %v3296
    %v4985 = vpack.c.b16 %v3305, %v3297
    %v4986 = vpack.c.b16 %v3306, %v3298
    %v4987 = vpack.c.b16 %v3307, %v3299
    %v4988 = vpack.c.b16 %v3308, %v3300
    %v4989 = vpack.c.b16 %v3317, %v3309
    %v4990 = vpack.c.b16 %v3318, %v3310
    %v4991 = vpack.c.b16 %v3319, %v3311
    %v4992 = vpack.c.b16 %v3320, %v3312
    %v4993 = vpack.c.b16 %v3321, %v3313
    %v4994 = vpack.c.b16 %v3322, %v3314
    %v4995 = vpack.c.b16 %v3323, %v3315
    %v4996 = vpack.c.b16 %v3324, %v3316
    %v4997 = vpack.c.b16 %v3333, %v3325
    %v4998 = vpack.c.b16 %v3334, %v3326
    %v4999 = vpack.c.b16 %v3335, %v3327
    %v5000 = vpack.c.b16 %v3336, %v3328
    %v5001 = vpack.c.b16 %v3337, %v3329
    %v5002 = vpack.c.b16 %v3338, %v3330
    %v5003 = vpack.c.b16 %v3339, %v3331
    %v5004 = vpack.c.b16 %v3340, %v3332
    %v5005 = vpack.c.b16 %v3349, %v3341
    %v5006 = vpack.c.b16 %v3350, %v3342
    %v5007 = vpack.c.b16 %v3351, %v3343
    %v5008 = vpack.c.b16 %v3352, %v3344
    %v5009 = vpack.c.b16 %v3353, %v3345
    %v5010 = vpack.c.b16 %v3354, %v3346
    %v5011 = vpack.c.b16 %v3355, %v3347
    %v5012 = vpack.c.b16 %v3356, %v3348
    %v5013 = vpack.c.b16 %v3365, %v3357
    %v5014 = vpack.c.b16 %v3366, %v3358
    %v5015 = vpack.c.b16 %v3367, %v3359
    %v5016 = vpack.c.b16 %v3368, %v3360
    %v5017 = vpack.c.b16 %v3369, %v3361
    %v5018 = vpack.c.b16 %v3370, %v3362
    %v5019 = vpack.c.b16 %v3371, %v3363
    %v5020 = vpack.c.b16 %v3372, %v3364
    %v5021 = vpack.c.b16 %v3381, %v3373
    %v5022 = vpack.c.b16 %v3382, %v3374
    %v5023 = vpack.c.b16 %v3383, %v3375
    %v5024 = vpack.c.b16 %v3384, %v3376
    %v5025 = vpack.c.b16 %v3385, %v3377
    %v5026 = vpack.c.b16 %v3386, %v3378
    %v5027 = vpack.c.b16 %v3387, %v3379
    %v5028 = vpack.c.b16 %v3388, %v3380
    %v5029 = vpack.c.b16 %v3397, %v3389
    %v5030 = vpack.c.b16 %v3398, %v3390
    %v5031 = vpack.c.b16 %v3399, %v3391
    %v5032 = vpack.c.b16 %v3400, %v3392
    %v5033 = vpack.c.b16 %v3401, %v3393
    %v5034 = vpack.c.b16 %v3402, %v3394
    %v5035 = vpack.c.b16 %v3403, %v3395
    %v5036 = vpack.c.b16 %v3404, %v3396
    %v5037 = vpack.c.b16 %v3413, %v3405
    %v5038 = vpack.c.b16 %v3414, %v3406
    %v5039 = vpack.c.b16 %v3415, %v3407
    %v5040 = vpack.c.b16 %v3416, %v3408
    %v5041 = vpack.c.b16 %v3417, %v3409
    %v5042 = vpack.c.b16 %v3418, %v3410
    %v5043 = vpack.c.b16 %v3419, %v3411
    %v5044 = vpack.c.b16 %v3420, %v3412
    %v5045 = vpack.c.b16 %v3429, %v3421
    %v5046 = vpack.c.b16 %v3430, %v3422
    %v5047 = vpack.c.b16 %v3431, %v3423
    %v5048 = vpack.c.b16 %v3432, %v3424
    %v5049 = vpack.c.b16 %v3433, %v3425
    %v5050 = vpack.c.b16 %v3434, %v3426
    %v5051 = vpack.c.b16 %v3435, %v3427
    %v5052 = vpack.c.b16 %v3436, %v3428
    %v5053 = vpack.c.b16 %v3445, %v3437
    %v5054 = vpack.c.b16 %v3446, %v3438
    %v5055 = vpack.c.b16 %v3447, %v3439
    %v5056 = vpack.c.b16 %v3448, %v3440
    %v5057 = vpack.c.b16 %v3449, %v3441
    %v5058 = vpack.c.b16 %v3450, %v3442
    %v5059 = vpack.c.b16 %v3451, %v3443
    %v5060 = vpack.c.b16 %v3452, %v3444
    %v5061 = vpack.c.b16 %v3461, %v3453
    %v5062 = vpack.c.b16 %v3462, %v3454
    %v5063 = vpack.c.b16 %v3463, %v3455
    %v5064 = vpack.c.b16 %v3464, %v3456
    %v5065 = vpack.c.b16 %v3465, %v3457
    %v5066 = vpack.c.b16 %v3466, %v3458
    %v5067 = vpack.c.b16 %v3467, %v3459
    %v5068 = vpack.c.b16 %v3468, %v3460
    %v5069 = vpack.c.b16 %v3477, %v3469
    %v5070 = vpack.c.b16 %v3478, %v3470
    %v5071 = vpack.c.b16 %v3479, %v3471
    %v5072 = vpack.c.b16 %v3480, %v3472
    %v5073 = vpack.c.b16 %v3481, %v3473
    %v5074 = vpack.c.b16 %v3482, %v3474
    %v5075 = vpack.c.b16 %v3483, %v3475
    %v5076 = vpack.c.b16 %v3484, %v3476
    %v5077 = vpack.c.b16 %v3493, %v3485
    %v5078 = vpack.c.b16 %v3494, %v3486
    %v5079 = vpack.c.b16 %v3495, %v3487
    %v5080 = vpack.c.b16 %v3496, %v3488
    %v5081 = vpack.c.b16 %v3497, %v3489
    %v5082 = vpack.c.b16 %v3498, %v3490
    %v5083 = vpack.c.b16 %v3499, %v3491
    %v5084 = vpack.c.b16 %v3500, %v3492
    %v5085 = vpack.c.b16 %v3509, %v3501
    %v5086 = vpack.c.b16 %v3510, %v3502
    %v5087 = vpack.c.b16 %v3511, %v3503
    %v5088 = vpack.c.b16 %v3512, %v3504
    %v5089 = vpack.c.b16 %v3513, %v3505
    %v5090 = vpack.c.b16 %v3514, %v3506
    %v5091 = vpack.c.b16 %v3515, %v3507
    %v5092 = vpack.c.b16 %v3516, %v3508
    %v5093 = vpack.c.b16 %v3525, %v3517
    %v5094 = vpack.c.b16 %v3526, %v3518
    %v5095 = vpack.c.b16 %v3527, %v3519
    %v5096 = vpack.c.b16 %v3528, %v3520
    %v5097 = vpack.c.b16 %v3529, %v3521
    %v5098 = vpack.c.b16 %v3530, %v3522
    %v5099 = vpack.c.b16 %v3531, %v3523
    %v5100 = vpack.c.b16 %v3532, %v3524
    %v5101 = vpack.c.b16 %v3541, %v3533
    %v5102 = vpack.c.b16 %v3542, %v3534
    %v5103 = vpack.c.b16 %v3543, %v3535
    %v5104 = vpack.c.b16 %v3544, %v3536
    %v5105 = vpack.c.b16 %v3545, %v3537
    %v5106 = vpack.c.b16 %v3546, %v3538
    %v5107 = vpack.c.b16 %v3547, %v3539
    %v5108 = vpack.c.b16 %v3548, %v3540
    %v5109 = vpack.c.b16 %v3557, %v3549
    %v5110 = vpack.c.b16 %v3558, %v3550
    %v5111 = vpack.c.b16 %v3559, %v3551
    %v5112 = vpack.c.b16 %v3560, %v3552
    %v5113 = vpack.c.b16 %v3561, %v3553
    %v5114 = vpack.c.b16 %v3562, %v3554
    %v5115 = vpack.c.b16 %v3563, %v3555
    %v5116 = vpack.c.b16 %v3564, %v3556
    %v5117 = vpack.c.b16 %v3573, %v3565
    %v5118 = vpack.c.b16 %v3574, %v3566
    %v5119 = vpack.c.b16 %v3575, %v3567
    %v5120 = vpack.c.b16 %v3576, %v3568
    %v5121 = vpack.c.b16 %v3577, %v3569
    %v5122 = vpack.c.b16 %v3578, %v3570
    %v5123 = vpack.c.b16 %v3579, %v3571
    %v5124 = vpack.c.b16 %v3580, %v3572
    %v5125 = vpack.c.b16 %v3589, %v3581
    %v5126 = vpack.c.b16 %v3590, %v3582
    %v5127 = vpack.c.b16 %v3591, %v3583
    %v5128 = vpack.c.b16 %v3592, %v3584
    %v5129 = vpack.c.b16 %v3593, %v3585
    %v5130 = vpack.c.b16 %v3594, %v3586
    %v5131 = vpack.c.b16 %v3595, %v3587
    %v5132 = vpack.c.b16 %v3596, %v3588
    %v5133 = vpack.c.b16 %v3605, %v3597
    %v5134 = vpack.c.b16 %v3606, %v3598
    %v5135 = vpack.c.b16 %v3607, %v3599
    %v5136 = vpack.c.b16 %v3608, %v3600
    %v5137 = vpack.c.b16 %v3609, %v3601
    %v5138 = vpack.c.b16 %v3610, %v3602
    %v5139 = vpack.c.b16 %v3611, %v3603
    %v5140 = vpack.c.b16 %v3612, %v3604
    %v5141 = vpack.c.b16 %v3621, %v3613
    %v5142 = vpack.c.b16 %v3622, %v3614
    %v5143 = vpack.c.b16 %v3623, %v3615
    %v5144 = vpack.c.b16 %v3624, %v3616
    %v5145 = vpack.c.b16 %v3625, %v3617
    %v5146 = vpack.c.b16 %v3626, %v3618
    %v5147 = vpack.c.b16 %v3627, %v3619
    %v5148 = vpack.c.b16 %v3628, %v3620
    %v5149 = vpack.c.b16 %v3637, %v3629
    %v5150 = vpack.c.b16 %v3638, %v3630
    %v5151 = vpack.c.b16 %v3639, %v3631
    %v5152 = vpack.c.b16 %v3640, %v3632
    %v5153 = vpack.c.b16 %v3641, %v3633
    %v5154 = vpack.c.b16 %v3642, %v3634
    %v5155 = vpack.c.b16 %v3643, %v3635
    %v5156 = vpack.c.b16 %v3644, %v3636
    %v5157 = vpack.c.b16 %v3653, %v3645
    %v5158 = vpack.c.b16 %v3654, %v3646
    %v5159 = vpack.c.b16 %v3655, %v3647
    %v5160 = vpack.c.b16 %v3656, %v3648
    %v5161 = vpack.c.b16 %v3657, %v3649
    %v5162 = vpack.c.b16 %v3658, %v3650
    %v5163 = vpack.c.b16 %v3659, %v3651
    %v5164 = vpack.c.b16 %v3660, %v3652
    %v5165 = vpack.c.b16 %v3669, %v3661
    %v5166 = vpack.c.b16 %v3670, %v3662
    %v5167 = vpack.c.b16 %v3671, %v3663
    %v5168 = vpack.c.b16 %v3672, %v3664
    %v5169 = vpack.c.b16 %v3673, %v3665
    %v5170 = vpack.c.b16 %v3674, %v3666
    %v5171 = vpack.c.b16 %v3675, %v3667
    %v5172 = vpack.c.b16 %v3676, %v3668
    %v5173 = vpack.c.b16 %v3685, %v3677
    %v5174 = vpack.c.b16 %v3686, %v3678
    %v5175 = vpack.c.b16 %v3687, %v3679
    %v5176 = vpack.c.b16 %v3688, %v3680
    %v5177 = vpack.c.b16 %v3689, %v3681
    %v5178 = vpack.c.b16 %v3690, %v3682
    %v5179 = vpack.c.b16 %v3691, %v3683
    %v5180 = vpack.c.b16 %v3692, %v3684
    %v5181 = vpack.c.b16 %v3701, %v3693
    %v5182 = vpack.c.b16 %v3702, %v3694
    %v5183 = vpack.c.b16 %v3703, %v3695
    %v5184 = vpack.c.b16 %v3704, %v3696
    %v5185 = vpack.c.b16 %v3705, %v3697
    %v5186 = vpack.c.b16 %v3706, %v3698
    %v5187 = vpack.c.b16 %v3707, %v3699
    %v5188 = vpack.c.b16 %v3708, %v3700
    %v5189 = vpack.c.b16 %v3717, %v3709
    %v5190 = vpack.c.b16 %v3718, %v3710
    %v5191 = vpack.c.b16 %v3719, %v3711
    %v5192 = vpack.c.b16 %v3720, %v3712
    %v5193 = vpack.c.b16 %v3721, %v3713
    %v5194 = vpack.c.b16 %v3722, %v3714
    %v5195 = vpack.c.b16 %v3723, %v3715
    %v5196 = vpack.c.b16 %v3724, %v3716
    %v5197 = vpack.c.b16 %v3733, %v3725
    %v5198 = vpack.c.b16 %v3734, %v3726
    %v5199 = vpack.c.b16 %v3735, %v3727
    %v5200 = vpack.c.b16 %v3736, %v3728
    %v5201 = vpack.c.b16 %v3737, %v3729
    %v5202 = vpack.c.b16 %v3738, %v3730
    %v5203 = vpack.c.b16 %v3739, %v3731
    %v5204 = vpack.c.b16 %v3740, %v3732
    %v5205 = vpack.c.b16 %v3749, %v3741
    %v5206 = vpack.c.b16 %v3750, %v3742
    %v5207 = vpack.c.b16 %v3751, %v3743
    %v5208 = vpack.c.b16 %v3752, %v3744
    %v5209 = vpack.c.b16 %v3753, %v3745
    %v5210 = vpack.c.b16 %v3754, %v3746
    %v5211 = vpack.c.b16 %v3755, %v3747
    %v5212 = vpack.c.b16 %v3756, %v3748
    %v5213 = vpack.c.b16 %v3765, %v3757
    %v5214 = vpack.c.b16 %v3766, %v3758
    %v5215 = vpack.c.b16 %v3767, %v3759
    %v5216 = vpack.c.b16 %v3768, %v3760
    %v5217 = vpack.c.b16 %v3769, %v3761
    %v5218 = vpack.c.b16 %v3770, %v3762
    %v5219 = vpack.c.b16 %v3771, %v3763
    %v5220 = vpack.c.b16 %v3772, %v3764
    %v5221 = vpack.c.b16 %v3781, %v3773
    %v5222 = vpack.c.b16 %v3782, %v3774
    %v5223 = vpack.c.b16 %v3783, %v3775
    %v5224 = vpack.c.b16 %v3784, %v3776
    %v5225 = vpack.c.b16 %v3785, %v3777
    %v5226 = vpack.c.b16 %v3786, %v3778
    %v5227 = vpack.c.b16 %v3787, %v3779
    %v5228 = vpack.c.b16 %v3788, %v3780
    %v5229 = vpack.c.b16 %v3797, %v3789
    %v5230 = vpack.c.b16 %v3798, %v3790
    %v5231 = vpack.c.b16 %v3799, %v3791
    %v5232 = vpack.c.b16 %v3800, %v3792
    %v5233 = vpack.c.b16 %v3801, %v3793
    %v5234 = vpack.c.b16 %v3802, %v3794
    %v5235 = vpack.c.b16 %v3803, %v3795
    %v5236 = vpack.c.b16 %v3804, %v3796
    %v5237 = vpack.c.b16 %v3813, %v3805
    %v5238 = vpack.c.b16 %v3814, %v3806
    %v5239 = vpack.c.b16 %v3815, %v3807
    %v5240 = vpack.c.b16 %v3816, %v3808
    %v5241 = vpack.c.b16 %v3817, %v3809
    %v5242 = vpack.c.b16 %v3818, %v3810
    %v5243 = vpack.c.b16 %v3819, %v3811
    %v5244 = vpack.c.b16 %v3820, %v3812
    %v5245 = vpack.c.b16 %v3829, %v3821
    %v5246 = vpack.c.b16 %v3830, %v3822
    %v5247 = vpack.c.b16 %v3831, %v3823
    %v5248 = vpack.c.b16 %v3832, %v3824
    %v5249 = vpack.c.b16 %v3833, %v3825
    %v5250 = vpack.c.b16 %v3834, %v3826
    %v5251 = vpack.c.b16 %v3835, %v3827
    %v5252 = vpack.c.b16 %v3836, %v3828
    %v5253 = vpack.c.b16 %v3845, %v3837
    %v5254 = vpack.c.b16 %v3846, %v3838
    %v5255 = vpack.c.b16 %v3847, %v3839
    %v5256 = vpack.c.b16 %v3848, %v3840
    %v5257 = vpack.c.b16 %v3849, %v3841
    %v5258 = vpack.c.b16 %v3850, %v3842
    %v5259 = vpack.c.b16 %v3851, %v3843
    %v5260 = vpack.c.b16 %v3852, %v3844
    %v5261 = vpack.c.b16 %v3861, %v3853
    %v5262 = vpack.c.b16 %v3862, %v3854
    %v5263 = vpack.c.b16 %v3863, %v3855
    %v5264 = vpack.c.b16 %v3864, %v3856
    %v5265 = vpack.c.b16 %v3865, %v3857
    %v5266 = vpack.c.b16 %v3866, %v3858
    %v5267 = vpack.c.b16 %v3867, %v3859
    %v5268 = vpack.c.b16 %v3868, %v3860
    %v5269 = vpack.c.b16 %v3877, %v3869
    %v5270 = vpack.c.b16 %v3878, %v3870
    %v5271 = vpack.c.b16 %v3879, %v3871
    %v5272 = vpack.c.b16 %v3880, %v3872
    %v5273 = vpack.c.b16 %v3881, %v3873
    %v5274 = vpack.c.b16 %v3882, %v3874
    %v5275 = vpack.c.b16 %v3883, %v3875
    %v5276 = vpack.c.b16 %v3884, %v3876
    %v5277 = vpack.c.b16 %v3893, %v3885
    %v5278 = vpack.c.b16 %v3894, %v3886
    %v5279 = vpack.c.b16 %v3895, %v3887
    %v5280 = vpack.c.b16 %v3896, %v3888
    %v5281 = vpack.c.b16 %v3897, %v3889
    %v5282 = vpack.c.b16 %v3898, %v3890
    %v5283 = vpack.c.b16 %v3899, %v3891
    %v5284 = vpack.c.b16 %v3900, %v3892
    %v5285 = vpack.c.b16 %v3909, %v3901
    %v5286 = vpack.c.b16 %v3910, %v3902
    %v5287 = vpack.c.b16 %v3911, %v3903
    %v5288 = vpack.c.b16 %v3912, %v3904
    %v5289 = vpack.c.b16 %v3913, %v3905
    %v5290 = vpack.c.b16 %v3914, %v3906
    %v5291 = vpack.c.b16 %v3915, %v3907
    %v5292 = vpack.c.b16 %v3916, %v3908
    %v5293 = vpack.c.b16 %v3925, %v3917
    %v5294 = vpack.c.b16 %v3926, %v3918
    %v5295 = vpack.c.b16 %v3927, %v3919
    %v5296 = vpack.c.b16 %v3928, %v3920
    %v5297 = vpack.c.b16 %v3929, %v3921
    %v5298 = vpack.c.b16 %v3930, %v3922
    %v5299 = vpack.c.b16 %v3931, %v3923
    %v5300 = vpack.c.b16 %v3932, %v3924
    %v5301 = vpack.c.b16 %v3941, %v3933
    %v5302 = vpack.c.b16 %v3942, %v3934
    %v5303 = vpack.c.b16 %v3943, %v3935
    %v5304 = vpack.c.b16 %v3944, %v3936
    %v5305 = vpack.c.b16 %v3945, %v3937
    %v5306 = vpack.c.b16 %v3946, %v3938
    %v5307 = vpack.c.b16 %v3947, %v3939
    %v5308 = vpack.c.b16 %v3948, %v3940
    %v5309 = vpack.c.b16 %v3957, %v3949
    %v5310 = vpack.c.b16 %v3958, %v3950
    %v5311 = vpack.c.b16 %v3959, %v3951
    %v5312 = vpack.c.b16 %v3960, %v3952
    %v5313 = vpack.c.b16 %v3961, %v3953
    %v5314 = vpack.c.b16 %v3962, %v3954
    %v5315 = vpack.c.b16 %v3963, %v3955
    %v5316 = vpack.c.b16 %v3964, %v3956
    %v5317 = vpack.c.b16 %v3973, %v3965
    %v5318 = vpack.c.b16 %v3974, %v3966
    %v5319 = vpack.c.b16 %v3975, %v3967
    %v5320 = vpack.c.b16 %v3976, %v3968
    %v5321 = vpack.c.b16 %v3977, %v3969
    %v5322 = vpack.c.b16 %v3978, %v3970
    %v5323 = vpack.c.b16 %v3979, %v3971
    %v5324 = vpack.c.b16 %v3980, %v3972
    %v5325 = vpack.c.b16 %v3989, %v3981
    %v5326 = vpack.c.b16 %v3990, %v3982
    %v5327 = vpack.c.b16 %v3991, %v3983
    %v5328 = vpack.c.b16 %v3992, %v3984
    %v5329 = vpack.c.b16 %v3993, %v3985
    %v5330 = vpack.c.b16 %v3994, %v3986
    %v5331 = vpack.c.b16 %v3995, %v3987
    %v5332 = vpack.c.b16 %v3996, %v3988
    %v5333 = vpack.c.b16 %v4005, %v3997
    %v5334 = vpack.c.b16 %v4006, %v3998
    %v5335 = vpack.c.b16 %v4007, %v3999
    %v5336 = vpack.c.b16 %v4008, %v4000
    %v5337 = vpack.c.b16 %v4009, %v4001
    %v5338 = vpack.c.b16 %v4010, %v4002
    %v5339 = vpack.c.b16 %v4011, %v4003
    %v5340 = vpack.c.b16 %v4012, %v4004
    %v5341 = vpack.c.b16 %v4021, %v4013
    %v5342 = vpack.c.b16 %v4022, %v4014
    %v5343 = vpack.c.b16 %v4023, %v4015
    %v5344 = vpack.c.b16 %v4024, %v4016
    %v5345 = vpack.c.b16 %v4025, %v4017
    %v5346 = vpack.c.b16 %v4026, %v4018
    %v5347 = vpack.c.b16 %v4027, %v4019
    %v5348 = vpack.c.b16 %v4028, %v4020
    %v5349 = vpack.c.b16 %v4037, %v4029
    %v5350 = vpack.c.b16 %v4038, %v4030
    %v5351 = vpack.c.b16 %v4039, %v4031
    %v5352 = vpack.c.b16 %v4040, %v4032
    %v5353 = vpack.c.b16 %v4041, %v4033
    %v5354 = vpack.c.b16 %v4042, %v4034
    %v5355 = vpack.c.b16 %v4043, %v4035
    %v5356 = vpack.c.b16 %v4044, %v4036
    %v5357 = vpack.c.b16 %v4053, %v4045
    %v5358 = vpack.c.b16 %v4054, %v4046
    %v5359 = vpack.c.b16 %v4055, %v4047
    %v5360 = vpack.c.b16 %v4056, %v4048
    %v5361 = vpack.c.b16 %v4057, %v4049
    %v5362 = vpack.c.b16 %v4058, %v4050
    %v5363 = vpack.c.b16 %v4059, %v4051
    %v5364 = vpack.c.b16 %v4060, %v4052
    %v5365 = vpack.c.b16 %v4069, %v4061
    %v5366 = vpack.c.b16 %v4070, %v4062
    %v5367 = vpack.c.b16 %v4071, %v4063
    %v5368 = vpack.c.b16 %v4072, %v4064
    %v5369 = vpack.c.b16 %v4073, %v4065
    %v5370 = vpack.c.b16 %v4074, %v4066
    %v5371 = vpack.c.b16 %v4075, %v4067
    %v5372 = vpack.c.b16 %v4076, %v4068
    %v5373 = vpack.c.b16 %v4085, %v4077
    %v5374 = vpack.c.b16 %v4086, %v4078
    %v5375 = vpack.c.b16 %v4087, %v4079
    %v5376 = vpack.c.b16 %v4088, %v4080
    %v5377 = vpack.c.b16 %v4089, %v4081
    %v5378 = vpack.c.b16 %v4090, %v4082
    %v5379 = vpack.c.b16 %v4091, %v4083
    %v5380 = vpack.c.b16 %v4092, %v4084
    %v5381 = vpack.c.b16 %v4101, %v4093
    %v5382 = vpack.c.b16 %v4102, %v4094
    %v5383 = vpack.c.b16 %v4103, %v4095
    %v5384 = vpack.c.b16 %v4104, %v4096
    %v5385 = vpack.c.b16 %v4105, %v4097
    %v5386 = vpack.c.b16 %v4106, %v4098
    %v5387 = vpack.c.b16 %v4107, %v4099
    %v5388 = vpack.c.b16 %v4108, %v4100
    %v5389 = vpack.c.b16 %v4117, %v4109
    %v5390 = vpack.c.b16 %v4118, %v4110
    %v5391 = vpack.c.b16 %v4119, %v4111
    %v5392 = vpack.c.b16 %v4120, %v4112
    %v5393 = vpack.c.b16 %v4121, %v4113
    %v5394 = vpack.c.b16 %v4122, %v4114
    %v5395 = vpack.c.b16 %v4123, %v4115
    %v5396 = vpack.c.b16 %v4124, %v4116
    %v5397 = vpack.c.b16 %v4133, %v4125
    %v5398 = vpack.c.b16 %v4134, %v4126
    %v5399 = vpack.c.b16 %v4135, %v4127
    %v5400 = vpack.c.b16 %v4136, %v4128
    %v5401 = vpack.c.b16 %v4137, %v4129
    %v5402 = vpack.c.b16 %v4138, %v4130
    %v5403 = vpack.c.b16 %v4139, %v4131
    %v5404 = vpack.c.b16 %v4140, %v4132
    %v5405 = vpack.c.b16 %v4149, %v4141
    %v5406 = vpack.c.b16 %v4150, %v4142
    %v5407 = vpack.c.b16 %v4151, %v4143
    %v5408 = vpack.c.b16 %v4152, %v4144
    %v5409 = vpack.c.b16 %v4153, %v4145
    %v5410 = vpack.c.b16 %v4154, %v4146
    %v5411 = vpack.c.b16 %v4155, %v4147
    %v5412 = vpack.c.b16 %v4156, %v4148
    %v5413 = vpack.c.b16 %v4165, %v4157
    %v5414 = vpack.c.b16 %v4166, %v4158
    %v5415 = vpack.c.b16 %v4167, %v4159
    %v5416 = vpack.c.b16 %v4168, %v4160
    %v5417 = vpack.c.b16 %v4169, %v4161
    %v5418 = vpack.c.b16 %v4170, %v4162
    %v5419 = vpack.c.b16 %v4171, %v4163
    %v5420 = vpack.c.b16 %v4172, %v4164
    %v5421 = vpack.c.b16 %v4181, %v4173
    %v5422 = vpack.c.b16 %v4182, %v4174
    %v5423 = vpack.c.b16 %v4183, %v4175
    %v5424 = vpack.c.b16 %v4184, %v4176
    %v5425 = vpack.c.b16 %v4185, %v4177
    %v5426 = vpack.c.b16 %v4186, %v4178
    %v5427 = vpack.c.b16 %v4187, %v4179
    %v5428 = vpack.c.b16 %v4188, %v4180
    %v5429 = vpack.c.b16 %v4197, %v4189
    %v5430 = vpack.c.b16 %v4198, %v4190
    %v5431 = vpack.c.b16 %v4199, %v4191
    %v5432 = vpack.c.b16 %v4200, %v4192
    %v5433 = vpack.c.b16 %v4201, %v4193
    %v5434 = vpack.c.b16 %v4202, %v4194
    %v5435 = vpack.c.b16 %v4203, %v4195
    %v5436 = vpack.c.b16 %v4204, %v4196
    %v5437 = vpack.c.b16 %v4213, %v4205
    %v5438 = vpack.c.b16 %v4214, %v4206
    %v5439 = vpack.c.b16 %v4215, %v4207
    %v5440 = vpack.c.b16 %v4216, %v4208
    %v5441 = vpack.c.b16 %v4217, %v4209
    %v5442 = vpack.c.b16 %v4218, %v4210
    %v5443 = vpack.c.b16 %v4219, %v4211
    %v5444 = vpack.c.b16 %v4220, %v4212
    %v5445 = vpack.c.b16 %v4229, %v4221
    %v5446 = vpack.c.b16 %v4230, %v4222
    %v5447 = vpack.c.b16 %v4231, %v4223
    %v5448 = vpack.c.b16 %v4232, %v4224
    %v5449 = vpack.c.b16 %v4233, %v4225
    %v5450 = vpack.c.b16 %v4234, %v4226
    %v5451 = vpack.c.b16 %v4235, %v4227
    %v5452 = vpack.c.b16 %v4236, %v4228
    %v5453 = vpack.c.b16 %v4245, %v4237
    %v5454 = vpack.c.b16 %v4246, %v4238
    %v5455 = vpack.c.b16 %v4247, %v4239
    %v5456 = vpack.c.b16 %v4248, %v4240
    %v5457 = vpack.c.b16 %v4249, %v4241
    %v5458 = vpack.c.b16 %v4250, %v4242
    %v5459 = vpack.c.b16 %v4251, %v4243
    %v5460 = vpack.c.b16 %v4252, %v4244
    %v5461 = vpack.c.b16 %v4261, %v4253
    %v5462 = vpack.c.b16 %v4262, %v4254
    %v5463 = vpack.c.b16 %v4263, %v4255
    %v5464 = vpack.c.b16 %v4264, %v4256
    %v5465 = vpack.c.b16 %v4265, %v4257
    %v5466 = vpack.c.b16 %v4266, %v4258
    %v5467 = vpack.c.b16 %v4267, %v4259
    %v5468 = vpack.c.b16 %v4268, %v4260
    %v5469 = vpack.c.b16 %v4277, %v4269
    %v5470 = vpack.c.b16 %v4278, %v4270
    %v5471 = vpack.c.b16 %v4279, %v4271
    %v5472 = vpack.c.b16 %v4280, %v4272
    %v5473 = vpack.c.b16 %v4281, %v4273
    %v5474 = vpack.c.b16 %v4282, %v4274
    %v5475 = vpack.c.b16 %v4283, %v4275
    %v5476 = vpack.c.b16 %v4284, %v4276
    %v5477 = vpack.c.b16 %v4293, %v4285
    %v5478 = vpack.c.b16 %v4294, %v4286
    %v5479 = vpack.c.b16 %v4295, %v4287
    %v5480 = vpack.c.b16 %v4296, %v4288
    %v5481 = vpack.c.b16 %v4297, %v4289
    %v5482 = vpack.c.b16 %v4298, %v4290
    %v5483 = vpack.c.b16 %v4299, %v4291
    %v5484 = vpack.c.b16 %v4300, %v4292
    %v5485 = vpack.c.b16 %v4309, %v4301
    %v5486 = vpack.c.b16 %v4310, %v4302
    %v5487 = vpack.c.b16 %v4311, %v4303
    %v5488 = vpack.c.b16 %v4312, %v4304
    %v5489 = vpack.c.b16 %v4313, %v4305
    %v5490 = vpack.c.b16 %v4314, %v4306
    %v5491 = vpack.c.b16 %v4315, %v4307
    %v5492 = vpack.c.b16 %v4316, %v4308
    %v5493 = vpack.c.b16 %v4325, %v4317
    %v5494 = vpack.c.b16 %v4326, %v4318
    %v5495 = vpack.c.b16 %v4327, %v4319
    %v5496 = vpack.c.b16 %v4328, %v4320
    %v5497 = vpack.c.b16 %v4329, %v4321
    %v5498 = vpack.c.b16 %v4330, %v4322
    %v5499 = vpack.c.b16 %v4331, %v4323
    %v5500 = vpack.c.b16 %v4332, %v4324
    %v5501 = vpack.c.b16 %v4341, %v4333
    %v5502 = vpack.c.b16 %v4342, %v4334
    %v5503 = vpack.c.b16 %v4343, %v4335
    %v5504 = vpack.c.b16 %v4344, %v4336
    %v5505 = vpack.c.b16 %v4345, %v4337
    %v5506 = vpack.c.b16 %v4346, %v4338
    %v5507 = vpack.c.b16 %v4347, %v4339
    %v5508 = vpack.c.b16 %v4348, %v4340
    %v5509 = vpack.c.b16 %v4357, %v4349
    %v5510 = vpack.c.b16 %v4358, %v4350
    %v5511 = vpack.c.b16 %v4359, %v4351
    %v5512 = vpack.c.b16 %v4360, %v4352
    %v5513 = vpack.c.b16 %v4361, %v4353
    %v5514 = vpack.c.b16 %v4362, %v4354
    %v5515 = vpack.c.b16 %v4363, %v4355
    %v5516 = vpack.c.b16 %v4364, %v4356
    %v5517 = vpack.c.b16 %v4373, %v4365
    %v5518 = vpack.c.b16 %v4374, %v4366
    %v5519 = vpack.c.b16 %v4375, %v4367
    %v5520 = vpack.c.b16 %v4376, %v4368
    %v5521 = vpack.c.b16 %v4377, %v4369
    %v5522 = vpack.c.b16 %v4378, %v4370
    %v5523 = vpack.c.b16 %v4379, %v4371
    %v5524 = vpack.c.b16 %v4380, %v4372
    %v5525 = vpack.c.b16 %v4389, %v4381
    %v5526 = vpack.c.b16 %v4390, %v4382
    %v5527 = vpack.c.b16 %v4391, %v4383
    %v5528 = vpack.c.b16 %v4392, %v4384
    %v5529 = vpack.c.b16 %v4393, %v4385
    %v5530 = vpack.c.b16 %v4394, %v4386
    %v5531 = vpack.c.b16 %v4395, %v4387
    %v5532 = vpack.c.b16 %v4396, %v4388
    %v5533 = vpack.c.b16 %v4405, %v4397
    %v5534 = vpack.c.b16 %v4406, %v4398
    %v5535 = vpack.c.b16 %v4407, %v4399
    %v5536 = vpack.c.b16 %v4408, %v4400
    %v5537 = vpack.c.b16 %v4409, %v4401
    %v5538 = vpack.c.b16 %v4410, %v4402
    %v5539 = vpack.c.b16 %v4411, %v4403
    %v5540 = vpack.c.b16 %v4412, %v4404
    %v5541 = vpack.c.b16 %v4421, %v4413
    %v5542 = vpack.c.b16 %v4422, %v4414
    %v5543 = vpack.c.b16 %v4423, %v4415
    %v5544 = vpack.c.b16 %v4424, %v4416
    %v5545 = vpack.c.b16 %v4425, %v4417
    %v5546 = vpack.c.b16 %v4426, %v4418
    %v5547 = vpack.c.b16 %v4427, %v4419
    %v5548 = vpack.c.b16 %v4428, %v4420
    %v5549 = vpack.c.b16 %v4437, %v4429
    %v5550 = vpack.c.b16 %v4438, %v4430
    %v5551 = vpack.c.b16 %v4439, %v4431
    %v5552 = vpack.c.b16 %v4440, %v4432
    %v5553 = vpack.c.b16 %v4441, %v4433
    %v5554 = vpack.c.b16 %v4442, %v4434
    %v5555 = vpack.c.b16 %v4443, %v4435
    %v5556 = vpack.c.b16 %v4444, %v4436
    %v5557 = vpack.c.b16 %v4453, %v4445
    %v5558 = vpack.c.b16 %v4454, %v4446
    %v5559 = vpack.c.b16 %v4455, %v4447
    %v5560 = vpack.c.b16 %v4456, %v4448
    %v5561 = vpack.c.b16 %v4457, %v4449
    %v5562 = vpack.c.b16 %v4458, %v4450
    %v5563 = vpack.c.b16 %v4459, %v4451
    %v5564 = vpack.c.b16 %v4460, %v4452
    %v5565 = vpack.c.b16 %v4469, %v4461
    %v5566 = vpack.c.b16 %v4470, %v4462
    %v5567 = vpack.c.b16 %v4471, %v4463
    %v5568 = vpack.c.b16 %v4472, %v4464
    %v5569 = vpack.c.b16 %v4473, %v4465
    %v5570 = vpack.c.b16 %v4474, %v4466
    %v5571 = vpack.c.b16 %v4475, %v4467
    %v5572 = vpack.c.b16 %v4476, %v4468
    %v5573 = vpack.c.b16 %v4485, %v4477
    %v5574 = vpack.c.b16 %v4486, %v4478
    %v5575 = vpack.c.b16 %v4487, %v4479
    %v5576 = vpack.c.b16 %v4488, %v4480
    %v5577 = vpack.c.b16 %v4489, %v4481
    %v5578 = vpack.c.b16 %v4490, %v4482
    %v5579 = vpack.c.b16 %v4491, %v4483
    %v5580 = vpack.c.b16 %v4492, %v4484
    %v5581 = vpack.c.b16 %v4501, %v4493
    %v5582 = vpack.c.b16 %v4502, %v4494
    %v5583 = vpack.c.b16 %v4503, %v4495
    %v5584 = vpack.c.b16 %v4504, %v4496
    %v5585 = vpack.c.b16 %v4505, %v4497
    %v5586 = vpack.c.b16 %v4506, %v4498
    %v5587 = vpack.c.b16 %v4507, %v4499
    %v5588 = vpack.c.b16 %v4508, %v4500
    %v5589 = vpack.c.b16 %v4517, %v4509
    %v5590 = vpack.c.b16 %v4518, %v4510
    %v5591 = vpack.c.b16 %v4519, %v4511
    %v5592 = vpack.c.b16 %v4520, %v4512
    %v5593 = vpack.c.b16 %v4521, %v4513
    %v5594 = vpack.c.b16 %v4522, %v4514
    %v5595 = vpack.c.b16 %v4523, %v4515
    %v5596 = vpack.c.b16 %v4524, %v4516
    %v5597 = vpack.c.b16 %v4533, %v4525
    %v5598 = vpack.c.b16 %v4534, %v4526
    %v5599 = vpack.c.b16 %v4535, %v4527
    %v5600 = vpack.c.b16 %v4536, %v4528
    %v5601 = vpack.c.b16 %v4537, %v4529
    %v5602 = vpack.c.b16 %v4538, %v4530
    %v5603 = vpack.c.b16 %v4539, %v4531
    %v5604 = vpack.c.b16 %v4540, %v4532
    %v5605 = vpack.c.b16 %v4549, %v4541
    %v5606 = vpack.c.b16 %v4550, %v4542
    %v5607 = vpack.c.b16 %v4551, %v4543
    %v5608 = vpack.c.b16 %v4552, %v4544
    %v5609 = vpack.c.b16 %v4553, %v4545
    %v5610 = vpack.c.b16 %v4554, %v4546
    %v5611 = vpack.c.b16 %v4555, %v4547
    %v5612 = vpack.c.b16 %v4556, %v4548
    %v5613 = vpack.c.b16 %v4565, %v4557
    %v5614 = vpack.c.b16 %v4566, %v4558
    %v5615 = vpack.c.b16 %v4567, %v4559
    %v5616 = vpack.c.b16 %v4568, %v4560
    %v5617 = vpack.c.b16 %v4569, %v4561
    %v5618 = vpack.c.b16 %v4570, %v4562
    %v5619 = vpack.c.b16 %v4571, %v4563
    %v5620 = vpack.c.b16 %v4572, %v4564
    %v5621 = vpack.c.b16 %v4581, %v4573
    %v5622 = vpack.c.b16 %v4582, %v4574
    %v5623 = vpack.c.b16 %v4583, %v4575
    %v5624 = vpack.c.b16 %v4584, %v4576
    %v5625 = vpack.c.b16 %v4585, %v4577
    %v5626 = vpack.c.b16 %v4586, %v4578
    %v5627 = vpack.c.b16 %v4587, %v4579
    %v5628 = vpack.c.b16 %v4588, %v4580
    %v5629 = vpack.c.b16 %v4597, %v4589
    %v5630 = vpack.c.b16 %v4598, %v4590
    %v5631 = vpack.c.b16 %v4599, %v4591
    %v5632 = vpack.c.b16 %v4600, %v4592
    %v5633 = vpack.c.b16 %v4601, %v4593
    %v5634 = vpack.c.b16 %v4602, %v4594
    %v5635 = vpack.c.b16 %v4603, %v4595
    %v5636 = vpack.c.b16 %v4604, %v4596
    %v5637 = vpack.c.b16 %v4613, %v4605
    %v5638 = vpack.c.b16 %v4614, %v4606
    %v5639 = vpack.c.b16 %v4615, %v4607
    %v5640 = vpack.c.b16 %v4616, %v4608
    %v5641 = vpack.c.b16 %v4617, %v4609
    %v5642 = vpack.c.b16 %v4618, %v4610
    %v5643 = vpack.c.b16 %v4619, %v4611
    %v5644 = vpack.c.b16 %v4620, %v4612
    %6669 = vmatprep.subr.bf16.mxu0 %v4678
    %6670 = vmatpush1.bf16.msra.mxu0 %v4677
    %6671 = vmatprep.subr.bf16.mxu0 %v4670
    %6672 = vmatpush1.bf16.msra.mxu0 %v4669
    %6673 = vmatprep.subr.bf16.mxu0 %v4662
    %6674 = vmatpush1.bf16.msra.mxu0 %v4661
    %6675 = vmatprep.subr.bf16.mxu0 %v4654
    %6676 = vmatpush1.bf16.msra.mxu0 %v4653
    %6677 = vmatprep.subr.bf16.mxu0 %v4646
    %6678 = vmatpush1.bf16.msra.mxu0 %v4645
    %6679 = vmatprep.subr.bf16.mxu0 %v4638
    %6680 = vmatpush1.bf16.msra.mxu0 %v4637
    %6681 = vmatprep.subr.bf16.mxu0 %v4630
    %6682 = vmatpush1.bf16.msra.mxu0 %v4629
    %6683 = vmatprep.subr.bf16.mxu0 %v4622
    %6684 = vmatpush1.bf16.msra.mxu0 %v4621
    %6685 = vmatprep.subr.bf16.mxu0 %v4742
    %6686 = vmatpush2.bf16.msra.mxu0 %v4741
    %6687 = vmatprep.subr.bf16.mxu0 %v4734
    %6688 = vmatpush2.bf16.msra.mxu0 %v4733
    %6689 = vmatprep.subr.bf16.mxu0 %v4726
    %6690 = vmatpush2.bf16.msra.mxu0 %v4725
    %6691 = vmatprep.subr.bf16.mxu0 %v4718
    %6692 = vmatpush2.bf16.msra.mxu0 %v4717
    %6693 = vmatprep.subr.bf16.mxu0 %v4710
    %6694 = vmatpush2.bf16.msra.mxu0 %v4709
    %6695 = vmatprep.subr.bf16.mxu0 %v4702
    %6696 = vmatpush2.bf16.msra.mxu0 %v4701
    %6697 = vmatprep.subr.bf16.mxu0 %v4694
    %6698 = vmatpush2.bf16.msra.mxu0 %v4693
    %6699 = vmatprep.subr.bf16.mxu0 %v4686
    %6700 = vmatpush2.bf16.msra.mxu0 %v4685
    %6701 = vmatprep.mubr.bf16.mxu0 %v508
    %6702 = vmatmul.mubr.bf16.gmra.mxu0 %v507
    %v6703 = vpop.f32.mrf.mxu0
    %v6704 = vadd.f32 0.0, %v6703
    %v6705 = vpop.f32.mrf.mxu0
    %v6706 = vadd.f32 0.0, %v6705
    %v6707 = vpop.f32.mrf.mxu0
    %v6708 = vpop.f32.mrf.mxu0
    %6709 = vdwg.mxu0
    %6710 = vmatprep.subr.bf16.mxu0 %v4806
    %6711 = vmatpush1.bf16.msra.mxu0 %v4805
    %6712 = vmatprep.subr.bf16.mxu0 %v4798
    %6713 = vmatpush1.bf16.msra.mxu0 %v4797
    %6714 = vmatprep.subr.bf16.mxu0 %v4790
    %6715 = vmatpush1.bf16.msra.mxu0 %v4789
    %6716 = vmatprep.subr.bf16.mxu0 %v4782
    %6717 = vmatpush1.bf16.msra.mxu0 %v4781
    %6718 = vmatprep.subr.bf16.mxu0 %v4774
    %6719 = vmatpush1.bf16.msra.mxu0 %v4773
    %6720 = vmatprep.subr.bf16.mxu0 %v4766
    %6721 = vmatpush1.bf16.msra.mxu0 %v4765
    %6722 = vmatprep.subr.bf16.mxu0 %v4758
    %6723 = vmatpush1.bf16.msra.mxu0 %v4757
    %6724 = vmatprep.subr.bf16.mxu0 %v4750
    %6725 = vmatpush1.bf16.msra.mxu0 %v4749
    %6726 = vmatprep.subr.bf16.mxu0 %v4870
    %6727 = vmatpush2.bf16.msra.mxu0 %v4869
    %6728 = vmatprep.subr.bf16.mxu0 %v4862
    %6729 = vmatpush2.bf16.msra.mxu0 %v4861
    %6730 = vmatprep.subr.bf16.mxu0 %v4854
    %6731 = vmatpush2.bf16.msra.mxu0 %v4853
    %6732 = vmatprep.subr.bf16.mxu0 %v4846
    %6733 = vmatpush2.bf16.msra.mxu0 %v4845
    %6734 = vmatprep.subr.bf16.mxu0 %v4838
    %6735 = vmatpush2.bf16.msra.mxu0 %v4837
    %6736 = vmatprep.subr.bf16.mxu0 %v4830
    %6737 = vmatpush2.bf16.msra.mxu0 %v4829
    %6738 = vmatprep.subr.bf16.mxu0 %v4822
    %6739 = vmatpush2.bf16.msra.mxu0 %v4821
    %6740 = vmatprep.subr.bf16.mxu0 %v4814
    %6741 = vmatpush2.bf16.msra.mxu0 %v4813
    %6742 = vmatprep.mubr.bf16.mxu0 %v510
    %6743 = vmatmul.mubr.bf16.gmra.mxu0 %v509
    %v6744 = vpop.f32.mrf.mxu0
    %v6745 = vadd.f32 %v6704, %v6744
    %v6746 = vpop.f32.mrf.mxu0
    %v6747 = vadd.f32 %v6706, %v6746
    %v6748 = vpop.f32.mrf.mxu0
    %v6749 = vpop.f32.mrf.mxu0
    %6750 = vdwg.mxu0
    %6751 = vmatprep.subr.bf16.mxu0 %v4934
    %6752 = vmatpush1.bf16.msra.mxu0 %v4933
    %6753 = vmatprep.subr.bf16.mxu0 %v4926
    %6754 = vmatpush1.bf16.msra.mxu0 %v4925
    %6755 = vmatprep.subr.bf16.mxu0 %v4918
    %6756 = vmatpush1.bf16.msra.mxu0 %v4917
    %6757 = vmatprep.subr.bf16.mxu0 %v4910
    %6758 = vmatpush1.bf16.msra.mxu0 %v4909
    %6759 = vmatprep.subr.bf16.mxu0 %v4902
    %6760 = vmatpush1.bf16.msra.mxu0 %v4901
    %6761 = vmatprep.subr.bf16.mxu0 %v4894
    %6762 = vmatpush1.bf16.msra.mxu0 %v4893
    %6763 = vmatprep.subr.bf16.mxu0 %v4886
    %6764 = vmatpush1.bf16.msra.mxu0 %v4885
    %6765 = vmatprep.subr.bf16.mxu0 %v4878
    %6766 = vmatpush1.bf16.msra.mxu0 %v4877
    %6767 = vmatprep.subr.bf16.mxu0 %v4998
    %6768 = vmatpush2.bf16.msra.mxu0 %v4997
    %6769 = vmatprep.subr.bf16.mxu0 %v4990
    %6770 = vmatpush2.bf16.msra.mxu0 %v4989
    %6771 = vmatprep.subr.bf16.mxu0 %v4982
    %6772 = vmatpush2.bf16.msra.mxu0 %v4981
    %6773 = vmatprep.subr.bf16.mxu0 %v4974
    %6774 = vmatpush2.bf16.msra.mxu0 %v4973
    %6775 = vmatprep.subr.bf16.mxu0 %v4966
    %6776 = vmatpush2.bf16.msra.mxu0 %v4965
    %6777 = vmatprep.subr.bf16.mxu0 %v4958
    %6778 = vmatpush2.bf16.msra.mxu0 %v4957
    %6779 = vmatprep.subr.bf16.mxu0 %v4950
    %6780 = vmatpush2.bf16.msra.mxu0 %v4949
    %6781 = vmatprep.subr.bf16.mxu0 %v4942
    %6782 = vmatpush2.bf16.msra.mxu0 %v4941
    %6783 = vmatprep.mubr.bf16.mxu0 %v512
    %6784 = vmatmul.mubr.bf16.gmra.mxu0 %v511
    %v6785 = vpop.f32.mrf.mxu0
    %v6786 = vadd.f32 %v6745, %v6785
    %v6787 = vpop.f32.mrf.mxu0
    %v6788 = vadd.f32 %v6747, %v6787
    %v6789 = vpop.f32.mrf.mxu0
    %v6790 = vpop.f32.mrf.mxu0
    %6791 = vdwg.mxu0
    %6792 = vmatprep.subr.bf16.mxu0 %v5062
    %6793 = vmatpush1.bf16.msra.mxu0 %v5061
    %6794 = vmatprep.subr.bf16.mxu0 %v5054
    %6795 = vmatpush1.bf16.msra.mxu0 %v5053
    %6796 = vmatprep.subr.bf16.mxu0 %v5046
    %6797 = vmatpush1.bf16.msra.mxu0 %v5045
    %6798 = vmatprep.subr.bf16.mxu0 %v5038
    %6799 = vmatpush1.bf16.msra.mxu0 %v5037
    %6800 = vmatprep.subr.bf16.mxu0 %v5030
    %6801 = vmatpush1.bf16.msra.mxu0 %v5029
    %6802 = vmatprep.subr.bf16.mxu0 %v5022
    %6803 = vmatpush1.bf16.msra.mxu0 %v5021
    %6804 = vmatprep.subr.bf16.mxu0 %v5014
    %6805 = vmatpush1.bf16.msra.mxu0 %v5013
    %6806 = vmatprep.subr.bf16.mxu0 %v5006
    %6807 = vmatpush1.bf16.msra.mxu0 %v5005
    %6808 = vmatprep.subr.bf16.mxu0 %v5126
    %6809 = vmatpush2.bf16.msra.mxu0 %v5125
    %6810 = vmatprep.subr.bf16.mxu0 %v5118
    %6811 = vmatpush2.bf16.msra.mxu0 %v5117
    %6812 = vmatprep.subr.bf16.mxu0 %v5110
    %6813 = vmatpush2.bf16.msra.mxu0 %v5109
    %6814 = vmatprep.subr.bf16.mxu0 %v5102
    %6815 = vmatpush2.bf16.msra.mxu0 %v5101
    %6816 = vmatprep.subr.bf16.mxu0 %v5094
    %6817 = vmatpush2.bf16.msra.mxu0 %v5093
    %6818 = vmatprep.subr.bf16.mxu0 %v5086
    %6819 = vmatpush2.bf16.msra.mxu0 %v5085
    %6820 = vmatprep.subr.bf16.mxu0 %v5078
    %6821 = vmatpush2.bf16.msra.mxu0 %v5077
    %6822 = vmatprep.subr.bf16.mxu0 %v5070
    %6823 = vmatpush2.bf16.msra.mxu0 %v5069
    %6824 = vmatprep.mubr.bf16.mxu0 %v514
    %6825 = vmatmul.mubr.bf16.gmra.mxu0 %v513
    %v6826 = vpop.f32.mrf.mxu0
    %v6827 = vadd.f32 %v6786, %v6826
    %v6828 = vpop.f32.mrf.mxu0
    %v6829 = vadd.f32 %v6788, %v6828
    %v6830 = vpop.f32.mrf.mxu0
    %v6831 = vpop.f32.mrf.mxu0
    %6832 = vdwg.mxu0
    %6833 = vmatprep.subr.bf16.mxu0 %v5190
    %6834 = vmatpush1.bf16.msra.mxu0 %v5189
    %6835 = vmatprep.subr.bf16.mxu0 %v5182
    %6836 = vmatpush1.bf16.msra.mxu0 %v5181
    %6837 = vmatprep.subr.bf16.mxu0 %v5174
    %6838 = vmatpush1.bf16.msra.mxu0 %v5173
    %6839 = vmatprep.subr.bf16.mxu0 %v5166
    %6840 = vmatpush1.bf16.msra.mxu0 %v5165
    %6841 = vmatprep.subr.bf16.mxu0 %v5158
    %6842 = vmatpush1.bf16.msra.mxu0 %v5157
    %6843 = vmatprep.subr.bf16.mxu0 %v5150
    %6844 = vmatpush1.bf16.msra.mxu0 %v5149
    %6845 = vmatprep.subr.bf16.mxu0 %v5142
    %6846 = vmatpush1.bf16.msra.mxu0 %v5141
    %6847 = vmatprep.subr.bf16.mxu0 %v5134
    %6848 = vmatpush1.bf16.msra.mxu0 %v5133
    %6849 = vmatprep.subr.bf16.mxu0 %v5254
    %6850 = vmatpush2.bf16.msra.mxu0 %v5253
    %6851 = vmatprep.subr.bf16.mxu0 %v5246
    %6852 = vmatpush2.bf16.msra.mxu0 %v5245
    %6853 = vmatprep.subr.bf16.mxu0 %v5238
    %6854 = vmatpush2.bf16.msra.mxu0 %v5237
    %6855 = vmatprep.subr.bf16.mxu0 %v5230
    %6856 = vmatpush2.bf16.msra.mxu0 %v5229
    %6857 = vmatprep.subr.bf16.mxu0 %v5222
    %6858 = vmatpush2.bf16.msra.mxu0 %v5221
    %6859 = vmatprep.subr.bf16.mxu0 %v5214
    %6860 = vmatpush2.bf16.msra.mxu0 %v5213
    %6861 = vmatprep.subr.bf16.mxu0 %v5206
    %6862 = vmatpush2.bf16.msra.mxu0 %v5205
    %6863 = vmatprep.subr.bf16.mxu0 %v5198
    %6864 = vmatpush2.bf16.msra.mxu0 %v5197
    %6865 = vmatprep.mubr.bf16.mxu0 %v516
    %6866 = vmatmul.mubr.bf16.gmra.mxu0 %v515
    %v6867 = vpop.f32.mrf.mxu0
    %v6868 = vadd.f32 %v6827, %v6867
    %v6869 = vpop.f32.mrf.mxu0
    %v6870 = vadd.f32 %v6829, %v6869
    %v6871 = vpop.f32.mrf.mxu0
    %v6872 = vpop.f32.mrf.mxu0
    %6873 = vdwg.mxu0
    %6874 = vmatprep.subr.bf16.mxu0 %v5318
    %6875 = vmatpush1.bf16.msra.mxu0 %v5317
    %6876 = vmatprep.subr.bf16.mxu0 %v5310
    %6877 = vmatpush1.bf16.msra.mxu0 %v5309
    %6878 = vmatprep.subr.bf16.mxu0 %v5302
    %6879 = vmatpush1.bf16.msra.mxu0 %v5301
    %6880 = vmatprep.subr.bf16.mxu0 %v5294
    %6881 = vmatpush1.bf16.msra.mxu0 %v5293
    %6882 = vmatprep.subr.bf16.mxu0 %v5286
    %6883 = vmatpush1.bf16.msra.mxu0 %v5285
    %6884 = vmatprep.subr.bf16.mxu0 %v5278
    %6885 = vmatpush1.bf16.msra.mxu0 %v5277
    %6886 = vmatprep.subr.bf16.mxu0 %v5270
    %6887 = vmatpush1.bf16.msra.mxu0 %v5269
    %6888 = vmatprep.subr.bf16.mxu0 %v5262
    %6889 = vmatpush1.bf16.msra.mxu0 %v5261
    %6890 = vmatprep.subr.bf16.mxu0 %v5382
    %6891 = vmatpush2.bf16.msra.mxu0 %v5381
    %6892 = vmatprep.subr.bf16.mxu0 %v5374
    %6893 = vmatpush2.bf16.msra.mxu0 %v5373
    %6894 = vmatprep.subr.bf16.mxu0 %v5366
    %6895 = vmatpush2.bf16.msra.mxu0 %v5365
    %6896 = vmatprep.subr.bf16.mxu0 %v5358
    %6897 = vmatpush2.bf16.msra.mxu0 %v5357
    %6898 = vmatprep.subr.bf16.mxu0 %v5350
    %6899 = vmatpush2.bf16.msra.mxu0 %v5349
    %6900 = vmatprep.subr.bf16.mxu0 %v5342
    %6901 = vmatpush2.bf16.msra.mxu0 %v5341
    %6902 = vmatprep.subr.bf16.mxu0 %v5334
    %6903 = vmatpush2.bf16.msra.mxu0 %v5333
    %6904 = vmatprep.subr.bf16.mxu0 %v5326
    %6905 = vmatpush2.bf16.msra.mxu0 %v5325
    %6906 = vmatprep.mubr.bf16.mxu0 %v518
    %6907 = vmatmul.mubr.bf16.gmra.mxu0 %v517
    %v6908 = vpop.f32.mrf.mxu0
    %v6909 = vadd.f32 %v6868, %v6908
    %v6910 = vpop.f32.mrf.mxu0
    %v6911 = vadd.f32 %v6870, %v6910
    %v6912 = vpop.f32.mrf.mxu0
    %v6913 = vpop.f32.mrf.mxu0
    %6914 = vdwg.mxu0
    %6915 = vmatprep.subr.bf16.mxu0 %v5446
    %6916 = vmatpush1.bf16.msra.mxu0 %v5445
    %6917 = vmatprep.subr.bf16.mxu0 %v5438
    %6918 = vmatpush1.bf16.msra.mxu0 %v5437
    %6919 = vmatprep.subr.bf16.mxu0 %v5430
    %6920 = vmatpush1.bf16.msra.mxu0 %v5429
    %6921 = vmatprep.subr.bf16.mxu0 %v5422
    %6922 = vmatpush1.bf16.msra.mxu0 %v5421
    %6923 = vmatprep.subr.bf16.mxu0 %v5414
    %6924 = vmatpush1.bf16.msra.mxu0 %v5413
    %6925 = vmatprep.subr.bf16.mxu0 %v5406
    %6926 = vmatpush1.bf16.msra.mxu0 %v5405
    %6927 = vmatprep.subr.bf16.mxu0 %v5398
    %6928 = vmatpush1.bf16.msra.mxu0 %v5397
    %6929 = vmatprep.subr.bf16.mxu0 %v5390
    %6930 = vmatpush1.bf16.msra.mxu0 %v5389
    %6931 = vmatprep.subr.bf16.mxu0 %v5510
    %6932 = vmatpush2.bf16.msra.mxu0 %v5509
    %6933 = vmatprep.subr.bf16.mxu0 %v5502
    %6934 = vmatpush2.bf16.msra.mxu0 %v5501
    %6935 = vmatprep.subr.bf16.mxu0 %v5494
    %6936 = vmatpush2.bf16.msra.mxu0 %v5493
    %6937 = vmatprep.subr.bf16.mxu0 %v5486
    %6938 = vmatpush2.bf16.msra.mxu0 %v5485
    %6939 = vmatprep.subr.bf16.mxu0 %v5478
    %6940 = vmatpush2.bf16.msra.mxu0 %v5477
    %6941 = vmatprep.subr.bf16.mxu0 %v5470
    %6942 = vmatpush2.bf16.msra.mxu0 %v5469
    %6943 = vmatprep.subr.bf16.mxu0 %v5462
    %6944 = vmatpush2.bf16.msra.mxu0 %v5461
    %6945 = vmatprep.subr.bf16.mxu0 %v5454
    %6946 = vmatpush2.bf16.msra.mxu0 %v5453
    %6947 = vmatprep.mubr.bf16.mxu0 %v520
    %6948 = vmatmul.mubr.bf16.gmra.mxu0 %v519
    %v6949 = vpop.f32.mrf.mxu0
    %v6950 = vadd.f32 %v6909, %v6949
    %v6951 = vpop.f32.mrf.mxu0
    %v6952 = vadd.f32 %v6911, %v6951
    %v6953 = vpop.f32.mrf.mxu0
    %v6954 = vpop.f32.mrf.mxu0
    %6955 = vdwg.mxu0
    %6956 = vmatprep.subr.bf16.mxu0 %v5574
    %6957 = vmatpush1.bf16.msra.mxu0 %v5573
    %6958 = vmatprep.subr.bf16.mxu0 %v5566
    %6959 = vmatpush1.bf16.msra.mxu0 %v5565
    %6960 = vmatprep.subr.bf16.mxu0 %v5558
    %6961 = vmatpush1.bf16.msra.mxu0 %v5557
    %6962 = vmatprep.subr.bf16.mxu0 %v5550
    %6963 = vmatpush1.bf16.msra.mxu0 %v5549
    %6964 = vmatprep.subr.bf16.mxu0 %v5542
    %6965 = vmatpush1.bf16.msra.mxu0 %v5541
    %6966 = vmatprep.subr.bf16.mxu0 %v5534
    %6967 = vmatpush1.bf16.msra.mxu0 %v5533
    %6968 = vmatprep.subr.bf16.mxu0 %v5526
    %6969 = vmatpush1.bf16.msra.mxu0 %v5525
    %6970 = vmatprep.subr.bf16.mxu0 %v5518
    %6971 = vmatpush1.bf16.msra.mxu0 %v5517
    %6972 = vmatprep.subr.bf16.mxu0 %v5638
    %6973 = vmatpush2.bf16.msra.mxu0 %v5637
    %6974 = vmatprep.subr.bf16.mxu0 %v5630
    %6975 = vmatpush2.bf16.msra.mxu0 %v5629
    %6976 = vmatprep.subr.bf16.mxu0 %v5622
    %6977 = vmatpush2.bf16.msra.mxu0 %v5621
    %6978 = vmatprep.subr.bf16.mxu0 %v5614
    %6979 = vmatpush2.bf16.msra.mxu0 %v5613
    %6980 = vmatprep.subr.bf16.mxu0 %v5606
    %6981 = vmatpush2.bf16.msra.mxu0 %v5605
    %6982 = vmatprep.subr.bf16.mxu0 %v5598
    %6983 = vmatpush2.bf16.msra.mxu0 %v5597
    %6984 = vmatprep.subr.bf16.mxu0 %v5590
    %6985 = vmatpush2.bf16.msra.mxu0 %v5589
    %6986 = vmatprep.subr.bf16.mxu0 %v5582
    %6987 = vmatpush2.bf16.msra.mxu0 %v5581
    %6988 = vmatprep.mubr.bf16.mxu0 %v522
    %6989 = vmatmul.mubr.bf16.gmra.mxu0 %v521
    %v6990 = vpop.f32.mrf.mxu0
    %v6991 = vadd.f32 %v6950, %v6990
    %v6992 = vpop.f32.mrf.mxu0
    %v6993 = vadd.f32 %v6952, %v6992
    %v6994 = vpop.f32.mrf.mxu0
    %v6995 = vpop.f32.mrf.mxu0
    %6996 = vdwg.mxu0
    %6997 = vmatprep.subr.bf16.mxu0 %v4680
    %6998 = vmatpush1.bf16.msra.mxu0 %v4679
    %6999 = vmatprep.subr.bf16.mxu0 %v4672
    %7000 = vmatpush1.bf16.msra.mxu0 %v4671
    %7001 = vmatprep.subr.bf16.mxu0 %v4664
    %7002 = vmatpush1.bf16.msra.mxu0 %v4663
    %7003 = vmatprep.subr.bf16.mxu0 %v4656
    %7004 = vmatpush1.bf16.msra.mxu0 %v4655
    %7005 = vmatprep.subr.bf16.mxu0 %v4648
    %7006 = vmatpush1.bf16.msra.mxu0 %v4647
    %7007 = vmatprep.subr.bf16.mxu0 %v4640
    %7008 = vmatpush1.bf16.msra.mxu0 %v4639
    %7009 = vmatprep.subr.bf16.mxu0 %v4632
    %7010 = vmatpush1.bf16.msra.mxu0 %v4631
    %7011 = vmatprep.subr.bf16.mxu0 %v4624
    %7012 = vmatpush1.bf16.msra.mxu0 %v4623
    %7013 = vmatprep.subr.bf16.mxu0 %v4744
    %7014 = vmatpush2.bf16.msra.mxu0 %v4743
    %7015 = vmatprep.subr.bf16.mxu0 %v4736
    %7016 = vmatpush2.bf16.msra.mxu0 %v4735
    %7017 = vmatprep.subr.bf16.mxu0 %v4728
    %7018 = vmatpush2.bf16.msra.mxu0 %v4727
    %7019 = vmatprep.subr.bf16.mxu0 %v4720
    %7020 = vmatpush2.bf16.msra.mxu0 %v4719
    %7021 = vmatprep.subr.bf16.mxu0 %v4712
    %7022 = vmatpush2.bf16.msra.mxu0 %v4711
    %7023 = vmatprep.subr.bf16.mxu0 %v4704
    %7024 = vmatpush2.bf16.msra.mxu0 %v4703
    %7025 = vmatprep.subr.bf16.mxu0 %v4696
    %7026 = vmatpush2.bf16.msra.mxu0 %v4695
    %7027 = vmatprep.subr.bf16.mxu0 %v4688
    %7028 = vmatpush2.bf16.msra.mxu0 %v4687
    %7029 = vmatprep.mubr.bf16.mxu0 %v508
    %7030 = vmatmul.mubr.bf16.gmra.mxu0 %v507
    %v7031 = vpop.f32.mrf.mxu0
    %v7032 = vadd.f32 0.0, %v7031
    %v7033 = vpop.f32.mrf.mxu0
    %v7034 = vadd.f32 0.0, %v7033
    %v7035 = vpop.f32.mrf.mxu0
    %v7036 = vpop.f32.mrf.mxu0
    %7037 = vdwg.mxu0
    %7038 = vmatprep.subr.bf16.mxu0 %v4808
    %7039 = vmatpush1.bf16.msra.mxu0 %v4807
    %7040 = vmatprep.subr.bf16.mxu0 %v4800
    %7041 = vmatpush1.bf16.msra.mxu0 %v4799
    %7042 = vmatprep.subr.bf16.mxu0 %v4792
    %7043 = vmatpush1.bf16.msra.mxu0 %v4791
    %7044 = vmatprep.subr.bf16.mxu0 %v4784
    %7045 = vmatpush1.bf16.msra.mxu0 %v4783
    %7046 = vmatprep.subr.bf16.mxu0 %v4776
    %7047 = vmatpush1.bf16.msra.mxu0 %v4775
    %7048 = vmatprep.subr.bf16.mxu0 %v4768
    %7049 = vmatpush1.bf16.msra.mxu0 %v4767
    %7050 = vmatprep.subr.bf16.mxu0 %v4760
    %7051 = vmatpush1.bf16.msra.mxu0 %v4759
    %7052 = vmatprep.subr.bf16.mxu0 %v4752
    %7053 = vmatpush1.bf16.msra.mxu0 %v4751
    %7054 = vmatprep.subr.bf16.mxu0 %v4872
    %7055 = vmatpush2.bf16.msra.mxu0 %v4871
    %7056 = vmatprep.subr.bf16.mxu0 %v4864
    %7057 = vmatpush2.bf16.msra.mxu0 %v4863
    %7058 = vmatprep.subr.bf16.mxu0 %v4856
    %7059 = vmatpush2.bf16.msra.mxu0 %v4855
    %7060 = vmatprep.subr.bf16.mxu0 %v4848
    %7061 = vmatpush2.bf16.msra.mxu0 %v4847
    %7062 = vmatprep.subr.bf16.mxu0 %v4840
    %7063 = vmatpush2.bf16.msra.mxu0 %v4839
    %7064 = vmatprep.subr.bf16.mxu0 %v4832
    %7065 = vmatpush2.bf16.msra.mxu0 %v4831
    %7066 = vmatprep.subr.bf16.mxu0 %v4824
    %7067 = vmatpush2.bf16.msra.mxu0 %v4823
    %7068 = vmatprep.subr.bf16.mxu0 %v4816
    %7069 = vmatpush2.bf16.msra.mxu0 %v4815
    %7070 = vmatprep.mubr.bf16.mxu0 %v510
    %7071 = vmatmul.mubr.bf16.gmra.mxu0 %v509
    %v7072 = vpop.f32.mrf.mxu0
    %v7073 = vadd.f32 %v7032, %v7072
    %v7074 = vpop.f32.mrf.mxu0
    %v7075 = vadd.f32 %v7034, %v7074
    %v7076 = vpop.f32.mrf.mxu0
    %v7077 = vpop.f32.mrf.mxu0
    %7078 = vdwg.mxu0
    %7079 = vmatprep.subr.bf16.mxu0 %v4936
    %7080 = vmatpush1.bf16.msra.mxu0 %v4935
    %7081 = vmatprep.subr.bf16.mxu0 %v4928
    %7082 = vmatpush1.bf16.msra.mxu0 %v4927
    %7083 = vmatprep.subr.bf16.mxu0 %v4920
    %7084 = vmatpush1.bf16.msra.mxu0 %v4919
    %7085 = vmatprep.subr.bf16.mxu0 %v4912
    %7086 = vmatpush1.bf16.msra.mxu0 %v4911
    %7087 = vmatprep.subr.bf16.mxu0 %v4904
    %7088 = vmatpush1.bf16.msra.mxu0 %v4903
    %7089 = vmatprep.subr.bf16.mxu0 %v4896
    %7090 = vmatpush1.bf16.msra.mxu0 %v4895
    %7091 = vmatprep.subr.bf16.mxu0 %v4888
    %7092 = vmatpush1.bf16.msra.mxu0 %v4887
    %7093 = vmatprep.subr.bf16.mxu0 %v4880
    %7094 = vmatpush1.bf16.msra.mxu0 %v4879
    %7095 = vmatprep.subr.bf16.mxu0 %v5000
    %7096 = vmatpush2.bf16.msra.mxu0 %v4999
    %7097 = vmatprep.subr.bf16.mxu0 %v4992
    %7098 = vmatpush2.bf16.msra.mxu0 %v4991
    %7099 = vmatprep.subr.bf16.mxu0 %v4984
    %7100 = vmatpush2.bf16.msra.mxu0 %v4983
    %7101 = vmatprep.subr.bf16.mxu0 %v4976
    %7102 = vmatpush2.bf16.msra.mxu0 %v4975
    %7103 = vmatprep.subr.bf16.mxu0 %v4968
    %7104 = vmatpush2.bf16.msra.mxu0 %v4967
    %7105 = vmatprep.subr.bf16.mxu0 %v4960
    %7106 = vmatpush2.bf16.msra.mxu0 %v4959
    %7107 = vmatprep.subr.bf16.mxu0 %v4952
    %7108 = vmatpush2.bf16.msra.mxu0 %v4951
    %7109 = vmatprep.subr.bf16.mxu0 %v4944
    %7110 = vmatpush2.bf16.msra.mxu0 %v4943
    %7111 = vmatprep.mubr.bf16.mxu0 %v512
    %7112 = vmatmul.mubr.bf16.gmra.mxu0 %v511
    %v7113 = vpop.f32.mrf.mxu0
    %v7114 = vadd.f32 %v7073, %v7113
    %v7115 = vpop.f32.mrf.mxu0
    %v7116 = vadd.f32 %v7075, %v7115
    %v7117 = vpop.f32.mrf.mxu0
    %v7118 = vpop.f32.mrf.mxu0
    %7119 = vdwg.mxu0
    %7120 = vmatprep.subr.bf16.mxu0 %v5064
    %7121 = vmatpush1.bf16.msra.mxu0 %v5063
    %7122 = vmatprep.subr.bf16.mxu0 %v5056
    %7123 = vmatpush1.bf16.msra.mxu0 %v5055
    %7124 = vmatprep.subr.bf16.mxu0 %v5048
    %7125 = vmatpush1.bf16.msra.mxu0 %v5047
    %7126 = vmatprep.subr.bf16.mxu0 %v5040
    %7127 = vmatpush1.bf16.msra.mxu0 %v5039
    %7128 = vmatprep.subr.bf16.mxu0 %v5032
    %7129 = vmatpush1.bf16.msra.mxu0 %v5031
    %7130 = vmatprep.subr.bf16.mxu0 %v5024
    %7131 = vmatpush1.bf16.msra.mxu0 %v5023
    %7132 = vmatprep.subr.bf16.mxu0 %v5016
    %7133 = vmatpush1.bf16.msra.mxu0 %v5015
    %7134 = vmatprep.subr.bf16.mxu0 %v5008
    %7135 = vmatpush1.bf16.msra.mxu0 %v5007
    %7136 = vmatprep.subr.bf16.mxu0 %v5128
    %7137 = vmatpush2.bf16.msra.mxu0 %v5127
    %7138 = vmatprep.subr.bf16.mxu0 %v5120
    %7139 = vmatpush2.bf16.msra.mxu0 %v5119
    %7140 = vmatprep.subr.bf16.mxu0 %v5112
    %7141 = vmatpush2.bf16.msra.mxu0 %v5111
    %7142 = vmatprep.subr.bf16.mxu0 %v5104
    %7143 = vmatpush2.bf16.msra.mxu0 %v5103
    %7144 = vmatprep.subr.bf16.mxu0 %v5096
    %7145 = vmatpush2.bf16.msra.mxu0 %v5095
    %7146 = vmatprep.subr.bf16.mxu0 %v5088
    %7147 = vmatpush2.bf16.msra.mxu0 %v5087
    %7148 = vmatprep.subr.bf16.mxu0 %v5080
    %7149 = vmatpush2.bf16.msra.mxu0 %v5079
    %7150 = vmatprep.subr.bf16.mxu0 %v5072
    %7151 = vmatpush2.bf16.msra.mxu0 %v5071
    %7152 = vmatprep.mubr.bf16.mxu0 %v514
    %7153 = vmatmul.mubr.bf16.gmra.mxu0 %v513
    %v7154 = vpop.f32.mrf.mxu0
    %v7155 = vadd.f32 %v7114, %v7154
    %v7156 = vpop.f32.mrf.mxu0
    %v7157 = vadd.f32 %v7116, %v7156
    %v7158 = vpop.f32.mrf.mxu0
    %v7159 = vpop.f32.mrf.mxu0
    %7160 = vdwg.mxu0
    %7161 = vmatprep.subr.bf16.mxu0 %v5192
    %7162 = vmatpush1.bf16.msra.mxu0 %v5191
    %7163 = vmatprep.subr.bf16.mxu0 %v5184
    %7164 = vmatpush1.bf16.msra.mxu0 %v5183
    %7165 = vmatprep.subr.bf16.mxu0 %v5176
    %7166 = vmatpush1.bf16.msra.mxu0 %v5175
    %7167 = vmatprep.subr.bf16.mxu0 %v5168
    %7168 = vmatpush1.bf16.msra.mxu0 %v5167
    %7169 = vmatprep.subr.bf16.mxu0 %v5160
    %7170 = vmatpush1.bf16.msra.mxu0 %v5159
    %7171 = vmatprep.subr.bf16.mxu0 %v5152
    %7172 = vmatpush1.bf16.msra.mxu0 %v5151
    %7173 = vmatprep.subr.bf16.mxu0 %v5144
    %7174 = vmatpush1.bf16.msra.mxu0 %v5143
    %7175 = vmatprep.subr.bf16.mxu0 %v5136
    %7176 = vmatpush1.bf16.msra.mxu0 %v5135
    %7177 = vmatprep.subr.bf16.mxu0 %v5256
    %7178 = vmatpush2.bf16.msra.mxu0 %v5255
    %7179 = vmatprep.subr.bf16.mxu0 %v5248
    %7180 = vmatpush2.bf16.msra.mxu0 %v5247
    %7181 = vmatprep.subr.bf16.mxu0 %v5240
    %7182 = vmatpush2.bf16.msra.mxu0 %v5239
    %7183 = vmatprep.subr.bf16.mxu0 %v5232
    %7184 = vmatpush2.bf16.msra.mxu0 %v5231
    %7185 = vmatprep.subr.bf16.mxu0 %v5224
    %7186 = vmatpush2.bf16.msra.mxu0 %v5223
    %7187 = vmatprep.subr.bf16.mxu0 %v5216
    %7188 = vmatpush2.bf16.msra.mxu0 %v5215
    %7189 = vmatprep.subr.bf16.mxu0 %v5208
    %7190 = vmatpush2.bf16.msra.mxu0 %v5207
    %7191 = vmatprep.subr.bf16.mxu0 %v5200
    %7192 = vmatpush2.bf16.msra.mxu0 %v5199
    %7193 = vmatprep.mubr.bf16.mxu0 %v516
    %7194 = vmatmul.mubr.bf16.gmra.mxu0 %v515
    %v7195 = vpop.f32.mrf.mxu0
    %v7196 = vadd.f32 %v7155, %v7195
    %v7197 = vpop.f32.mrf.mxu0
    %v7198 = vadd.f32 %v7157, %v7197
    %v7199 = vpop.f32.mrf.mxu0
    %v7200 = vpop.f32.mrf.mxu0
    %7201 = vdwg.mxu0
    %7202 = vmatprep.subr.bf16.mxu0 %v5320
    %7203 = vmatpush1.bf16.msra.mxu0 %v5319
    %7204 = vmatprep.subr.bf16.mxu0 %v5312
    %7205 = vmatpush1.bf16.msra.mxu0 %v5311
    %7206 = vmatprep.subr.bf16.mxu0 %v5304
    %7207 = vmatpush1.bf16.msra.mxu0 %v5303
    %7208 = vmatprep.subr.bf16.mxu0 %v5296
    %7209 = vmatpush1.bf16.msra.mxu0 %v5295
    %7210 = vmatprep.subr.bf16.mxu0 %v5288
    %7211 = vmatpush1.bf16.msra.mxu0 %v5287
    %7212 = vmatprep.subr.bf16.mxu0 %v5280
    %7213 = vmatpush1.bf16.msra.mxu0 %v5279
    %7214 = vmatprep.subr.bf16.mxu0 %v5272
    %7215 = vmatpush1.bf16.msra.mxu0 %v5271
    %7216 = vmatprep.subr.bf16.mxu0 %v5264
    %7217 = vmatpush1.bf16.msra.mxu0 %v5263
    %7218 = vmatprep.subr.bf16.mxu0 %v5384
    %7219 = vmatpush2.bf16.msra.mxu0 %v5383
    %7220 = vmatprep.subr.bf16.mxu0 %v5376
    %7221 = vmatpush2.bf16.msra.mxu0 %v5375
    %7222 = vmatprep.subr.bf16.mxu0 %v5368
    %7223 = vmatpush2.bf16.msra.mxu0 %v5367
    %7224 = vmatprep.subr.bf16.mxu0 %v5360
    %7225 = vmatpush2.bf16.msra.mxu0 %v5359
    %7226 = vmatprep.subr.bf16.mxu0 %v5352
    %7227 = vmatpush2.bf16.msra.mxu0 %v5351
    %7228 = vmatprep.subr.bf16.mxu0 %v5344
    %7229 = vmatpush2.bf16.msra.mxu0 %v5343
    %7230 = vmatprep.subr.bf16.mxu0 %v5336
    %7231 = vmatpush2.bf16.msra.mxu0 %v5335
    %7232 = vmatprep.subr.bf16.mxu0 %v5328
    %7233 = vmatpush2.bf16.msra.mxu0 %v5327
    %7234 = vmatprep.mubr.bf16.mxu0 %v518
    %7235 = vmatmul.mubr.bf16.gmra.mxu0 %v517
    %v7236 = vpop.f32.mrf.mxu0
    %v7237 = vadd.f32 %v7196, %v7236
    %v7238 = vpop.f32.mrf.mxu0
    %v7239 = vadd.f32 %v7198, %v7238
    %v7240 = vpop.f32.mrf.mxu0
    %v7241 = vpop.f32.mrf.mxu0
    %7242 = vdwg.mxu0
    %7243 = vmatprep.subr.bf16.mxu0 %v5448
    %7244 = vmatpush1.bf16.msra.mxu0 %v5447
    %7245 = vmatprep.subr.bf16.mxu0 %v5440
    %7246 = vmatpush1.bf16.msra.mxu0 %v5439
    %7247 = vmatprep.subr.bf16.mxu0 %v5432
    %7248 = vmatpush1.bf16.msra.mxu0 %v5431
    %7249 = vmatprep.subr.bf16.mxu0 %v5424
    %7250 = vmatpush1.bf16.msra.mxu0 %v5423
    %7251 = vmatprep.subr.bf16.mxu0 %v5416
    %7252 = vmatpush1.bf16.msra.mxu0 %v5415
    %7253 = vmatprep.subr.bf16.mxu0 %v5408
    %7254 = vmatpush1.bf16.msra.mxu0 %v5407
    %7255 = vmatprep.subr.bf16.mxu0 %v5400
    %7256 = vmatpush1.bf16.msra.mxu0 %v5399
    %7257 = vmatprep.subr.bf16.mxu0 %v5392
    %7258 = vmatpush1.bf16.msra.mxu0 %v5391
    %7259 = vmatprep.subr.bf16.mxu0 %v5512
    %7260 = vmatpush2.bf16.msra.mxu0 %v5511
    %7261 = vmatprep.subr.bf16.mxu0 %v5504
    %7262 = vmatpush2.bf16.msra.mxu0 %v5503
    %7263 = vmatprep.subr.bf16.mxu0 %v5496
    %7264 = vmatpush2.bf16.msra.mxu0 %v5495
    %7265 = vmatprep.subr.bf16.mxu0 %v5488
    %7266 = vmatpush2.bf16.msra.mxu0 %v5487
    %7267 = vmatprep.subr.bf16.mxu0 %v5480
    %7268 = vmatpush2.bf16.msra.mxu0 %v5479
    %7269 = vmatprep.subr.bf16.mxu0 %v5472
    %7270 = vmatpush2.bf16.msra.mxu0 %v5471
    %7271 = vmatprep.subr.bf16.mxu0 %v5464
    %7272 = vmatpush2.bf16.msra.mxu0 %v5463
    %7273 = vmatprep.subr.bf16.mxu0 %v5456
    %7274 = vmatpush2.bf16.msra.mxu0 %v5455
    %7275 = vmatprep.mubr.bf16.mxu0 %v520
    %7276 = vmatmul.mubr.bf16.gmra.mxu0 %v519
    %v7277 = vpop.f32.mrf.mxu0
    %v7278 = vadd.f32 %v7237, %v7277
    %v7279 = vpop.f32.mrf.mxu0
    %v7280 = vadd.f32 %v7239, %v7279
    %v7281 = vpop.f32.mrf.mxu0
    %v7282 = vpop.f32.mrf.mxu0
    %7283 = vdwg.mxu0
    %7284 = vmatprep.subr.bf16.mxu0 %v5576
    %7285 = vmatpush1.bf16.msra.mxu0 %v5575
    %7286 = vmatprep.subr.bf16.mxu0 %v5568
    %7287 = vmatpush1.bf16.msra.mxu0 %v5567
    %7288 = vmatprep.subr.bf16.mxu0 %v5560
    %7289 = vmatpush1.bf16.msra.mxu0 %v5559
    %7290 = vmatprep.subr.bf16.mxu0 %v5552
    %7291 = vmatpush1.bf16.msra.mxu0 %v5551
    %7292 = vmatprep.subr.bf16.mxu0 %v5544
    %7293 = vmatpush1.bf16.msra.mxu0 %v5543
    %7294 = vmatprep.subr.bf16.mxu0 %v5536
    %7295 = vmatpush1.bf16.msra.mxu0 %v5535
    %7296 = vmatprep.subr.bf16.mxu0 %v5528
    %7297 = vmatpush1.bf16.msra.mxu0 %v5527
    %7298 = vmatprep.subr.bf16.mxu0 %v5520
    %7299 = vmatpush1.bf16.msra.mxu0 %v5519
    %7300 = vmatprep.subr.bf16.mxu0 %v5640
    %7301 = vmatpush2.bf16.msra.mxu0 %v5639
    %7302 = vmatprep.subr.bf16.mxu0 %v5632
    %7303 = vmatpush2.bf16.msra.mxu0 %v5631
    %7304 = vmatprep.subr.bf16.mxu0 %v5624
    %7305 = vmatpush2.bf16.msra.mxu0 %v5623
    %7306 = vmatprep.subr.bf16.mxu0 %v5616
    %7307 = vmatpush2.bf16.msra.mxu0 %v5615
    %7308 = vmatprep.subr.bf16.mxu0 %v5608
    %7309 = vmatpush2.bf16.msra.mxu0 %v5607
    %7310 = vmatprep.subr.bf16.mxu0 %v5600
    %7311 = vmatpush2.bf16.msra.mxu0 %v5599
    %7312 = vmatprep.subr.bf16.mxu0 %v5592
    %7313 = vmatpush2.bf16.msra.mxu0 %v5591
    %7314 = vmatprep.subr.bf16.mxu0 %v5584
    %7315 = vmatpush2.bf16.msra.mxu0 %v5583
    %7316 = vmatprep.mubr.bf16.mxu0 %v522
    %7317 = vmatmul.mubr.bf16.gmra.mxu0 %v521
    %v7318 = vpop.f32.mrf.mxu0
    %v7319 = vadd.f32 %v7278, %v7318
    %v7320 = vpop.f32.mrf.mxu0
    %v7321 = vadd.f32 %v7280, %v7320
    %v7322 = vpop.f32.mrf.mxu0
    %v7323 = vpop.f32.mrf.mxu0
    %7324 = vdwg.mxu0
    %7325 = vmatprep.subr.bf16.mxu0 %v4682
    %7326 = vmatpush1.bf16.msra.mxu0 %v4681
    %7327 = vmatprep.subr.bf16.mxu0 %v4674
    %7328 = vmatpush1.bf16.msra.mxu0 %v4673
    %7329 = vmatprep.subr.bf16.mxu0 %v4666
    %7330 = vmatpush1.bf16.msra.mxu0 %v4665
    %7331 = vmatprep.subr.bf16.mxu0 %v4658
    %7332 = vmatpush1.bf16.msra.mxu0 %v4657
    %7333 = vmatprep.subr.bf16.mxu0 %v4650
    %7334 = vmatpush1.bf16.msra.mxu0 %v4649
    %7335 = vmatprep.subr.bf16.mxu0 %v4642
    %7336 = vmatpush1.bf16.msra.mxu0 %v4641
    %7337 = vmatprep.subr.bf16.mxu0 %v4634
    %7338 = vmatpush1.bf16.msra.mxu0 %v4633
    %7339 = vmatprep.subr.bf16.mxu0 %v4626
    %7340 = vmatpush1.bf16.msra.mxu0 %v4625
    %7341 = vmatprep.subr.bf16.mxu0 %v4746
    %7342 = vmatpush2.bf16.msra.mxu0 %v4745
    %7343 = vmatprep.subr.bf16.mxu0 %v4738
    %7344 = vmatpush2.bf16.msra.mxu0 %v4737
    %7345 = vmatprep.subr.bf16.mxu0 %v4730
    %7346 = vmatpush2.bf16.msra.mxu0 %v4729
    %7347 = vmatprep.subr.bf16.mxu0 %v4722
    %7348 = vmatpush2.bf16.msra.mxu0 %v4721
    %7349 = vmatprep.subr.bf16.mxu0 %v4714
    %7350 = vmatpush2.bf16.msra.mxu0 %v4713
    %7351 = vmatprep.subr.bf16.mxu0 %v4706
    %7352 = vmatpush2.bf16.msra.mxu0 %v4705
    %7353 = vmatprep.subr.bf16.mxu0 %v4698
    %7354 = vmatpush2.bf16.msra.mxu0 %v4697
    %7355 = vmatprep.subr.bf16.mxu0 %v4690
    %7356 = vmatpush2.bf16.msra.mxu0 %v4689
    %7357 = vmatprep.mubr.bf16.mxu0 %v508
    %7358 = vmatmul.mubr.bf16.gmra.mxu0 %v507
    %v7359 = vpop.f32.mrf.mxu0
    %v7360 = vadd.f32 0.0, %v7359
    %v7361 = vpop.f32.mrf.mxu0
    %v7362 = vadd.f32 0.0, %v7361
    %v7363 = vpop.f32.mrf.mxu0
    %v7364 = vpop.f32.mrf.mxu0
    %7365 = vdwg.mxu0
    %7366 = vmatprep.subr.bf16.mxu0 %v4810
    %7367 = vmatpush1.bf16.msra.mxu0 %v4809
    %7368 = vmatprep.subr.bf16.mxu0 %v4802
    %7369 = vmatpush1.bf16.msra.mxu0 %v4801
    %7370 = vmatprep.subr.bf16.mxu0 %v4794
    %7371 = vmatpush1.bf16.msra.mxu0 %v4793
    %7372 = vmatprep.subr.bf16.mxu0 %v4786
    %7373 = vmatpush1.bf16.msra.mxu0 %v4785
    %7374 = vmatprep.subr.bf16.mxu0 %v4778
    %7375 = vmatpush1.bf16.msra.mxu0 %v4777
    %7376 = vmatprep.subr.bf16.mxu0 %v4770
    %7377 = vmatpush1.bf16.msra.mxu0 %v4769
    %7378 = vmatprep.subr.bf16.mxu0 %v4762
    %7379 = vmatpush1.bf16.msra.mxu0 %v4761
    %7380 = vmatprep.subr.bf16.mxu0 %v4754
    %7381 = vmatpush1.bf16.msra.mxu0 %v4753
    %7382 = vmatprep.subr.bf16.mxu0 %v4874
    %7383 = vmatpush2.bf16.msra.mxu0 %v4873
    %7384 = vmatprep.subr.bf16.mxu0 %v4866
    %7385 = vmatpush2.bf16.msra.mxu0 %v4865
    %7386 = vmatprep.subr.bf16.mxu0 %v4858
    %7387 = vmatpush2.bf16.msra.mxu0 %v4857
    %7388 = vmatprep.subr.bf16.mxu0 %v4850
    %7389 = vmatpush2.bf16.msra.mxu0 %v4849
    %7390 = vmatprep.subr.bf16.mxu0 %v4842
    %7391 = vmatpush2.bf16.msra.mxu0 %v4841
    %7392 = vmatprep.subr.bf16.mxu0 %v4834
    %7393 = vmatpush2.bf16.msra.mxu0 %v4833
    %7394 = vmatprep.subr.bf16.mxu0 %v4826
    %7395 = vmatpush2.bf16.msra.mxu0 %v4825
    %7396 = vmatprep.subr.bf16.mxu0 %v4818
    %7397 = vmatpush2.bf16.msra.mxu0 %v4817
    %7398 = vmatprep.mubr.bf16.mxu0 %v510
    %7399 = vmatmul.mubr.bf16.gmra.mxu0 %v509
    %v7400 = vpop.f32.mrf.mxu0
    %v7401 = vadd.f32 %v7360, %v7400
    %v7402 = vpop.f32.mrf.mxu0
    %v7403 = vadd.f32 %v7362, %v7402
    %v7404 = vpop.f32.mrf.mxu0
    %v7405 = vpop.f32.mrf.mxu0
    %7406 = vdwg.mxu0
    %7407 = vmatprep.subr.bf16.mxu0 %v4938
    %7408 = vmatpush1.bf16.msra.mxu0 %v4937
    %7409 = vmatprep.subr.bf16.mxu0 %v4930
    %7410 = vmatpush1.bf16.msra.mxu0 %v4929
    %7411 = vmatprep.subr.bf16.mxu0 %v4922
    %7412 = vmatpush1.bf16.msra.mxu0 %v4921
    %7413 = vmatprep.subr.bf16.mxu0 %v4914
    %7414 = vmatpush1.bf16.msra.mxu0 %v4913
    %7415 = vmatprep.subr.bf16.mxu0 %v4906
    %7416 = vmatpush1.bf16.msra.mxu0 %v4905
    %7417 = vmatprep.subr.bf16.mxu0 %v4898
    %7418 = vmatpush1.bf16.msra.mxu0 %v4897
    %7419 = vmatprep.subr.bf16.mxu0 %v4890
    %7420 = vmatpush1.bf16.msra.mxu0 %v4889
    %7421 = vmatprep.subr.bf16.mxu0 %v4882
    %7422 = vmatpush1.bf16.msra.mxu0 %v4881
    %7423 = vmatprep.subr.bf16.mxu0 %v5002
    %7424 = vmatpush2.bf16.msra.mxu0 %v5001
    %7425 = vmatprep.subr.bf16.mxu0 %v4994
    %7426 = vmatpush2.bf16.msra.mxu0 %v4993
    %7427 = vmatprep.subr.bf16.mxu0 %v4986
    %7428 = vmatpush2.bf16.msra.mxu0 %v4985
    %7429 = vmatprep.subr.bf16.mxu0 %v4978
    %7430 = vmatpush2.bf16.msra.mxu0 %v4977
    %7431 = vmatprep.subr.bf16.mxu0 %v4970
    %7432 = vmatpush2.bf16.msra.mxu0 %v4969
    %7433 = vmatprep.subr.bf16.mxu0 %v4962
    %7434 = vmatpush2.bf16.msra.mxu0 %v4961
    %7435 = vmatprep.subr.bf16.mxu0 %v4954
    %7436 = vmatpush2.bf16.msra.mxu0 %v4953
    %7437 = vmatprep.subr.bf16.mxu0 %v4946
    %7438 = vmatpush2.bf16.msra.mxu0 %v4945
    %7439 = vmatprep.mubr.bf16.mxu0 %v512
    %7440 = vmatmul.mubr.bf16.gmra.mxu0 %v511
    %v7441 = vpop.f32.mrf.mxu0
    %v7442 = vadd.f32 %v7401, %v7441
    %v7443 = vpop.f32.mrf.mxu0
    %v7444 = vadd.f32 %v7403, %v7443
    %v7445 = vpop.f32.mrf.mxu0
    %v7446 = vpop.f32.mrf.mxu0
    %7447 = vdwg.mxu0
    %7448 = vmatprep.subr.bf16.mxu0 %v5066
    %7449 = vmatpush1.bf16.msra.mxu0 %v5065
    %7450 = vmatprep.subr.bf16.mxu0 %v5058
    %7451 = vmatpush1.bf16.msra.mxu0 %v5057
    %7452 = vmatprep.subr.bf16.mxu0 %v5050
    %7453 = vmatpush1.bf16.msra.mxu0 %v5049
    %7454 = vmatprep.subr.bf16.mxu0 %v5042
    %7455 = vmatpush1.bf16.msra.mxu0 %v5041
    %7456 = vmatprep.subr.bf16.mxu0 %v5034
    %7457 = vmatpush1.bf16.msra.mxu0 %v5033
    %7458 = vmatprep.subr.bf16.mxu0 %v5026
    %7459 = vmatpush1.bf16.msra.mxu0 %v5025
    %7460 = vmatprep.subr.bf16.mxu0 %v5018
    %7461 = vmatpush1.bf16.msra.mxu0 %v5017
    %7462 = vmatprep.subr.bf16.mxu0 %v5010
    %7463 = vmatpush1.bf16.msra.mxu0 %v5009
    %7464 = vmatprep.subr.bf16.mxu0 %v5130
    %7465 = vmatpush2.bf16.msra.mxu0 %v5129
    %7466 = vmatprep.subr.bf16.mxu0 %v5122
    %7467 = vmatpush2.bf16.msra.mxu0 %v5121
    %7468 = vmatprep.subr.bf16.mxu0 %v5114
    %7469 = vmatpush2.bf16.msra.mxu0 %v5113
    %7470 = vmatprep.subr.bf16.mxu0 %v5106
    %7471 = vmatpush2.bf16.msra.mxu0 %v5105
    %7472 = vmatprep.subr.bf16.mxu0 %v5098
    %7473 = vmatpush2.bf16.msra.mxu0 %v5097
    %7474 = vmatprep.subr.bf16.mxu0 %v5090
    %7475 = vmatpush2.bf16.msra.mxu0 %v5089
    %7476 = vmatprep.subr.bf16.mxu0 %v5082
    %7477 = vmatpush2.bf16.msra.mxu0 %v5081
    %7478 = vmatprep.subr.bf16.mxu0 %v5074
    %7479 = vmatpush2.bf16.msra.mxu0 %v5073
    %7480 = vmatprep.mubr.bf16.mxu0 %v514
    %7481 = vmatmul.mubr.bf16.gmra.mxu0 %v513
    %v7482 = vpop.f32.mrf.mxu0
    %v7483 = vadd.f32 %v7442, %v7482
    %v7484 = vpop.f32.mrf.mxu0
    %v7485 = vadd.f32 %v7444, %v7484
    %v7486 = vpop.f32.mrf.mxu0
    %v7487 = vpop.f32.mrf.mxu0
    %7488 = vdwg.mxu0
    %7489 = vmatprep.subr.bf16.mxu0 %v5194
    %7490 = vmatpush1.bf16.msra.mxu0 %v5193
    %7491 = vmatprep.subr.bf16.mxu0 %v5186
    %7492 = vmatpush1.bf16.msra.mxu0 %v5185
    %7493 = vmatprep.subr.bf16.mxu0 %v5178
    %7494 = vmatpush1.bf16.msra.mxu0 %v5177
    %7495 = vmatprep.subr.bf16.mxu0 %v5170
    %7496 = vmatpush1.bf16.msra.mxu0 %v5169
    %7497 = vmatprep.subr.bf16.mxu0 %v5162
    %7498 = vmatpush1.bf16.msra.mxu0 %v5161
    %7499 = vmatprep.subr.bf16.mxu0 %v5154
    %7500 = vmatpush1.bf16.msra.mxu0 %v5153
    %7501 = vmatprep.subr.bf16.mxu0 %v5146
    %7502 = vmatpush1.bf16.msra.mxu0 %v5145
    %7503 = vmatprep.subr.bf16.mxu0 %v5138
    %7504 = vmatpush1.bf16.msra.mxu0 %v5137
    %7505 = vmatprep.subr.bf16.mxu0 %v5258
    %7506 = vmatpush2.bf16.msra.mxu0 %v5257
    %7507 = vmatprep.subr.bf16.mxu0 %v5250
    %7508 = vmatpush2.bf16.msra.mxu0 %v5249
    %7509 = vmatprep.subr.bf16.mxu0 %v5242
    %7510 = vmatpush2.bf16.msra.mxu0 %v5241
    %7511 = vmatprep.subr.bf16.mxu0 %v5234
    %7512 = vmatpush2.bf16.msra.mxu0 %v5233
    %7513 = vmatprep.subr.bf16.mxu0 %v5226
    %7514 = vmatpush2.bf16.msra.mxu0 %v5225
    %7515 = vmatprep.subr.bf16.mxu0 %v5218
    %7516 = vmatpush2.bf16.msra.mxu0 %v5217
    %7517 = vmatprep.subr.bf16.mxu0 %v5210
    %7518 = vmatpush2.bf16.msra.mxu0 %v5209
    %7519 = vmatprep.subr.bf16.mxu0 %v5202
    %7520 = vmatpush2.bf16.msra.mxu0 %v5201
    %7521 = vmatprep.mubr.bf16.mxu0 %v516
    %7522 = vmatmul.mubr.bf16.gmra.mxu0 %v515
    %v7523 = vpop.f32.mrf.mxu0
    %v7524 = vadd.f32 %v7483, %v7523
    %v7525 = vpop.f32.mrf.mxu0
    %v7526 = vadd.f32 %v7485, %v7525
    %v7527 = vpop.f32.mrf.mxu0
    %v7528 = vpop.f32.mrf.mxu0
    %7529 = vdwg.mxu0
    %7530 = vmatprep.subr.bf16.mxu0 %v5322
    %7531 = vmatpush1.bf16.msra.mxu0 %v5321
    %7532 = vmatprep.subr.bf16.mxu0 %v5314
    %7533 = vmatpush1.bf16.msra.mxu0 %v5313
    %7534 = vmatprep.subr.bf16.mxu0 %v5306
    %7535 = vmatpush1.bf16.msra.mxu0 %v5305
    %7536 = vmatprep.subr.bf16.mxu0 %v5298
    %7537 = vmatpush1.bf16.msra.mxu0 %v5297
    %7538 = vmatprep.subr.bf16.mxu0 %v5290
    %7539 = vmatpush1.bf16.msra.mxu0 %v5289
    %7540 = vmatprep.subr.bf16.mxu0 %v5282
    %7541 = vmatpush1.bf16.msra.mxu0 %v5281
    %7542 = vmatprep.subr.bf16.mxu0 %v5274
    %7543 = vmatpush1.bf16.msra.mxu0 %v5273
    %7544 = vmatprep.subr.bf16.mxu0 %v5266
    %7545 = vmatpush1.bf16.msra.mxu0 %v5265
    %7546 = vmatprep.subr.bf16.mxu0 %v5386
    %7547 = vmatpush2.bf16.msra.mxu0 %v5385
    %7548 = vmatprep.subr.bf16.mxu0 %v5378
    %7549 = vmatpush2.bf16.msra.mxu0 %v5377
    %7550 = vmatprep.subr.bf16.mxu0 %v5370
    %7551 = vmatpush2.bf16.msra.mxu0 %v5369
    %7552 = vmatprep.subr.bf16.mxu0 %v5362
    %7553 = vmatpush2.bf16.msra.mxu0 %v5361
    %7554 = vmatprep.subr.bf16.mxu0 %v5354
    %7555 = vmatpush2.bf16.msra.mxu0 %v5353
    %7556 = vmatprep.subr.bf16.mxu0 %v5346
    %7557 = vmatpush2.bf16.msra.mxu0 %v5345
    %7558 = vmatprep.subr.bf16.mxu0 %v5338
    %7559 = vmatpush2.bf16.msra.mxu0 %v5337
    %7560 = vmatprep.subr.bf16.mxu0 %v5330
    %7561 = vmatpush2.bf16.msra.mxu0 %v5329
    %7562 = vmatprep.mubr.bf16.mxu0 %v518
    %7563 = vmatmul.mubr.bf16.gmra.mxu0 %v517
    %v7564 = vpop.f32.mrf.mxu0
    %v7565 = vadd.f32 %v7524, %v7564
    %v7566 = vpop.f32.mrf.mxu0
    %v7567 = vadd.f32 %v7526, %v7566
    %v7568 = vpop.f32.mrf.mxu0
    %v7569 = vpop.f32.mrf.mxu0
    %7570 = vdwg.mxu0
    %7571 = vmatprep.subr.bf16.mxu0 %v5450
    %7572 = vmatpush1.bf16.msra.mxu0 %v5449
    %7573 = vmatprep.subr.bf16.mxu0 %v5442
    %7574 = vmatpush1.bf16.msra.mxu0 %v5441
    %7575 = vmatprep.subr.bf16.mxu0 %v5434
    %7576 = vmatpush1.bf16.msra.mxu0 %v5433
    %7577 = vmatprep.subr.bf16.mxu0 %v5426
    %7578 = vmatpush1.bf16.msra.mxu0 %v5425
    %7579 = vmatprep.subr.bf16.mxu0 %v5418
    %7580 = vmatpush1.bf16.msra.mxu0 %v5417
    %7581 = vmatprep.subr.bf16.mxu0 %v5410
    %7582 = vmatpush1.bf16.msra.mxu0 %v5409
    %7583 = vmatprep.subr.bf16.mxu0 %v5402
    %7584 = vmatpush1.bf16.msra.mxu0 %v5401
    %7585 = vmatprep.subr.bf16.mxu0 %v5394
    %7586 = vmatpush1.bf16.msra.mxu0 %v5393
    %7587 = vmatprep.subr.bf16.mxu0 %v5514
    %7588 = vmatpush2.bf16.msra.mxu0 %v5513
    %7589 = vmatprep.subr.bf16.mxu0 %v5506
    %7590 = vmatpush2.bf16.msra.mxu0 %v5505
    %7591 = vmatprep.subr.bf16.mxu0 %v5498
    %7592 = vmatpush2.bf16.msra.mxu0 %v5497
    %7593 = vmatprep.subr.bf16.mxu0 %v5490
    %7594 = vmatpush2.bf16.msra.mxu0 %v5489
    %7595 = vmatprep.subr.bf16.mxu0 %v5482
    %7596 = vmatpush2.bf16.msra.mxu0 %v5481
    %7597 = vmatprep.subr.bf16.mxu0 %v5474
    %7598 = vmatpush2.bf16.msra.mxu0 %v5473
    %7599 = vmatprep.subr.bf16.mxu0 %v5466
    %7600 = vmatpush2.bf16.msra.mxu0 %v5465
    %7601 = vmatprep.subr.bf16.mxu0 %v5458
    %7602 = vmatpush2.bf16.msra.mxu0 %v5457
    %7603 = vmatprep.mubr.bf16.mxu0 %v520
    %7604 = vmatmul.mubr.bf16.gmra.mxu0 %v519
    %v7605 = vpop.f32.mrf.mxu0
    %v7606 = vadd.f32 %v7565, %v7605
    %v7607 = vpop.f32.mrf.mxu0
    %v7608 = vadd.f32 %v7567, %v7607
    %v7609 = vpop.f32.mrf.mxu0
    %v7610 = vpop.f32.mrf.mxu0
    %7611 = vdwg.mxu0
    %7612 = vmatprep.subr.bf16.mxu0 %v5578
    %7613 = vmatpush1.bf16.msra.mxu0 %v5577
    %7614 = vmatprep.subr.bf16.mxu0 %v5570
    %7615 = vmatpush1.bf16.msra.mxu0 %v5569
    %7616 = vmatprep.subr.bf16.mxu0 %v5562
    %7617 = vmatpush1.bf16.msra.mxu0 %v5561
    %7618 = vmatprep.subr.bf16.mxu0 %v5554
    %7619 = vmatpush1.bf16.msra.mxu0 %v5553
    %7620 = vmatprep.subr.bf16.mxu0 %v5546
    %7621 = vmatpush1.bf16.msra.mxu0 %v5545
    %7622 = vmatprep.subr.bf16.mxu0 %v5538
    %7623 = vmatpush1.bf16.msra.mxu0 %v5537
    %7624 = vmatprep.subr.bf16.mxu0 %v5530
    %7625 = vmatpush1.bf16.msra.mxu0 %v5529
    %7626 = vmatprep.subr.bf16.mxu0 %v5522
    %7627 = vmatpush1.bf16.msra.mxu0 %v5521
    %7628 = vmatprep.subr.bf16.mxu0 %v5642
    %7629 = vmatpush2.bf16.msra.mxu0 %v5641
    %7630 = vmatprep.subr.bf16.mxu0 %v5634
    %7631 = vmatpush2.bf16.msra.mxu0 %v5633
    %7632 = vmatprep.subr.bf16.mxu0 %v5626
    %7633 = vmatpush2.bf16.msra.mxu0 %v5625
    %7634 = vmatprep.subr.bf16.mxu0 %v5618
    %7635 = vmatpush2.bf16.msra.mxu0 %v5617
    %7636 = vmatprep.subr.bf16.mxu0 %v5610
    %7637 = vmatpush2.bf16.msra.mxu0 %v5609
    %7638 = vmatprep.subr.bf16.mxu0 %v5602
    %7639 = vmatpush2.bf16.msra.mxu0 %v5601
    %7640 = vmatprep.subr.bf16.mxu0 %v5594
    %7641 = vmatpush2.bf16.msra.mxu0 %v5593
    %7642 = vmatprep.subr.bf16.mxu0 %v5586
    %7643 = vmatpush2.bf16.msra.mxu0 %v5585
    %7644 = vmatprep.mubr.bf16.mxu0 %v522
    %7645 = vmatmul.mubr.bf16.gmra.mxu0 %v521
    %v7646 = vpop.f32.mrf.mxu0
    %v7647 = vadd.f32 %v7606, %v7646
    %v7648 = vpop.f32.mrf.mxu0
    %v7649 = vadd.f32 %v7608, %v7648
    %v7650 = vpop.f32.mrf.mxu0
    %v7651 = vpop.f32.mrf.mxu0
    %7652 = vdwg.mxu0
    %7653 = vmatprep.subr.bf16.mxu0 %v4684
    %7654 = vmatpush1.bf16.msra.mxu0 %v4683
    %7655 = vmatprep.subr.bf16.mxu0 %v4676
    %7656 = vmatpush1.bf16.msra.mxu0 %v4675
    %7657 = vmatprep.subr.bf16.mxu0 %v4668
    %7658 = vmatpush1.bf16.msra.mxu0 %v4667
    %7659 = vmatprep.subr.bf16.mxu0 %v4660
    %7660 = vmatpush1.bf16.msra.mxu0 %v4659
    %7661 = vmatprep.subr.bf16.mxu0 %v4652
    %7662 = vmatpush1.bf16.msra.mxu0 %v4651
    %7663 = vmatprep.subr.bf16.mxu0 %v4644
    %7664 = vmatpush1.bf16.msra.mxu0 %v4643
    %7665 = vmatprep.subr.bf16.mxu0 %v4636
    %7666 = vmatpush1.bf16.msra.mxu0 %v4635
    %7667 = vmatprep.subr.bf16.mxu0 %v4628
    %7668 = vmatpush1.bf16.msra.mxu0 %v4627
    %7669 = vmatprep.subr.bf16.mxu0 %v4748
    %7670 = vmatpush2.bf16.msra.mxu0 %v4747
    %7671 = vmatprep.subr.bf16.mxu0 %v4740
    %7672 = vmatpush2.bf16.msra.mxu0 %v4739
    %7673 = vmatprep.subr.bf16.mxu0 %v4732
    %7674 = vmatpush2.bf16.msra.mxu0 %v4731
    %7675 = vmatprep.subr.bf16.mxu0 %v4724
    %7676 = vmatpush2.bf16.msra.mxu0 %v4723
    %7677 = vmatprep.subr.bf16.mxu0 %v4716
    %7678 = vmatpush2.bf16.msra.mxu0 %v4715
    %7679 = vmatprep.subr.bf16.mxu0 %v4708
    %7680 = vmatpush2.bf16.msra.mxu0 %v4707
    %7681 = vmatprep.subr.bf16.mxu0 %v4700
    %7682 = vmatpush2.bf16.msra.mxu0 %v4699
    %7683 = vmatprep.subr.bf16.mxu0 %v4692
    %7684 = vmatpush2.bf16.msra.mxu0 %v4691
    %7685 = vmatprep.mubr.bf16.mxu0 %v508
    %7686 = vmatmul.mubr.bf16.gmra.mxu0 %v507
    %v7687 = vpop.f32.mrf.mxu0
    %v7688 = vadd.f32 0.0, %v7687
    %v7689 = vpop.f32.mrf.mxu0
    %v7690 = vadd.f32 0.0, %v7689
    %v7691 = vpop.f32.mrf.mxu0
    %v7692 = vpop.f32.mrf.mxu0
    %7693 = vdwg.mxu0
    %7694 = vmatprep.subr.bf16.mxu0 %v4812
    %7695 = vmatpush1.bf16.msra.mxu0 %v4811
    %7696 = vmatprep.subr.bf16.mxu0 %v4804
    %7697 = vmatpush1.bf16.msra.mxu0 %v4803
    %7698 = vmatprep.subr.bf16.mxu0 %v4796
    %7699 = vmatpush1.bf16.msra.mxu0 %v4795
    %7700 = vmatprep.subr.bf16.mxu0 %v4788
    %7701 = vmatpush1.bf16.msra.mxu0 %v4787
    %7702 = vmatprep.subr.bf16.mxu0 %v4780
    %7703 = vmatpush1.bf16.msra.mxu0 %v4779
    %7704 = vmatprep.subr.bf16.mxu0 %v4772
    %7705 = vmatpush1.bf16.msra.mxu0 %v4771
    %7706 = vmatprep.subr.bf16.mxu0 %v4764
    %7707 = vmatpush1.bf16.msra.mxu0 %v4763
    %7708 = vmatprep.subr.bf16.mxu0 %v4756
    %7709 = vmatpush1.bf16.msra.mxu0 %v4755
    %7710 = vmatprep.subr.bf16.mxu0 %v4876
    %7711 = vmatpush2.bf16.msra.mxu0 %v4875
    %7712 = vmatprep.subr.bf16.mxu0 %v4868
    %7713 = vmatpush2.bf16.msra.mxu0 %v4867
    %7714 = vmatprep.subr.bf16.mxu0 %v4860
    %7715 = vmatpush2.bf16.msra.mxu0 %v4859
    %7716 = vmatprep.subr.bf16.mxu0 %v4852
    %7717 = vmatpush2.bf16.msra.mxu0 %v4851
    %7718 = vmatprep.subr.bf16.mxu0 %v4844
    %7719 = vmatpush2.bf16.msra.mxu0 %v4843
    %7720 = vmatprep.subr.bf16.mxu0 %v4836
    %7721 = vmatpush2.bf16.msra.mxu0 %v4835
    %7722 = vmatprep.subr.bf16.mxu0 %v4828
    %7723 = vmatpush2.bf16.msra.mxu0 %v4827
    %7724 = vmatprep.subr.bf16.mxu0 %v4820
    %7725 = vmatpush2.bf16.msra.mxu0 %v4819
    %7726 = vmatprep.mubr.bf16.mxu0 %v510
    %7727 = vmatmul.mubr.bf16.gmra.mxu0 %v509
    %v7728 = vpop.f32.mrf.mxu0
    %v7729 = vadd.f32 %v7688, %v7728
    %v7730 = vpop.f32.mrf.mxu0
    %v7731 = vadd.f32 %v7690, %v7730
    %v7732 = vpop.f32.mrf.mxu0
    %v7733 = vpop.f32.mrf.mxu0
    %7734 = vdwg.mxu0
    %7735 = vmatprep.subr.bf16.mxu0 %v4940
    %7736 = vmatpush1.bf16.msra.mxu0 %v4939
    %7737 = vmatprep.subr.bf16.mxu0 %v4932
    %7738 = vmatpush1.bf16.msra.mxu0 %v4931
    %7739 = vmatprep.subr.bf16.mxu0 %v4924
    %7740 = vmatpush1.bf16.msra.mxu0 %v4923
    %7741 = vmatprep.subr.bf16.mxu0 %v4916
    %7742 = vmatpush1.bf16.msra.mxu0 %v4915
    %7743 = vmatprep.subr.bf16.mxu0 %v4908
    %7744 = vmatpush1.bf16.msra.mxu0 %v4907
    %7745 = vmatprep.subr.bf16.mxu0 %v4900
    %7746 = vmatpush1.bf16.msra.mxu0 %v4899
    %7747 = vmatprep.subr.bf16.mxu0 %v4892
    %7748 = vmatpush1.bf16.msra.mxu0 %v4891
    %7749 = vmatprep.subr.bf16.mxu0 %v4884
    %7750 = vmatpush1.bf16.msra.mxu0 %v4883
    %7751 = vmatprep.subr.bf16.mxu0 %v5004
    %7752 = vmatpush2.bf16.msra.mxu0 %v5003
    %7753 = vmatprep.subr.bf16.mxu0 %v4996
    %7754 = vmatpush2.bf16.msra.mxu0 %v4995
    %7755 = vmatprep.subr.bf16.mxu0 %v4988
    %7756 = vmatpush2.bf16.msra.mxu0 %v4987
    %7757 = vmatprep.subr.bf16.mxu0 %v4980
    %7758 = vmatpush2.bf16.msra.mxu0 %v4979
    %7759 = vmatprep.subr.bf16.mxu0 %v4972
    %7760 = vmatpush2.bf16.msra.mxu0 %v4971
    %7761 = vmatprep.subr.bf16.mxu0 %v4964
    %7762 = vmatpush2.bf16.msra.mxu0 %v4963
    %7763 = vmatprep.subr.bf16.mxu0 %v4956
    %7764 = vmatpush2.bf16.msra.mxu0 %v4955
    %7765 = vmatprep.subr.bf16.mxu0 %v4948
    %7766 = vmatpush2.bf16.msra.mxu0 %v4947
    %7767 = vmatprep.mubr.bf16.mxu0 %v512
    %7768 = vmatmul.mubr.bf16.gmra.mxu0 %v511
    %v7769 = vpop.f32.mrf.mxu0
    %v7770 = vadd.f32 %v7729, %v7769
    %v7771 = vpop.f32.mrf.mxu0
    %v7772 = vadd.f32 %v7731, %v7771
    %v7773 = vpop.f32.mrf.mxu0
    %v7774 = vpop.f32.mrf.mxu0
    %7775 = vdwg.mxu0
    %7776 = vmatprep.subr.bf16.mxu0 %v5068
    %7777 = vmatpush1.bf16.msra.mxu0 %v5067
    %7778 = vmatprep.subr.bf16.mxu0 %v5060
    %7779 = vmatpush1.bf16.msra.mxu0 %v5059
    %7780 = vmatprep.subr.bf16.mxu0 %v5052
    %7781 = vmatpush1.bf16.msra.mxu0 %v5051
    %7782 = vmatprep.subr.bf16.mxu0 %v5044
    %7783 = vmatpush1.bf16.msra.mxu0 %v5043
    %7784 = vmatprep.subr.bf16.mxu0 %v5036
    %7785 = vmatpush1.bf16.msra.mxu0 %v5035
    %7786 = vmatprep.subr.bf16.mxu0 %v5028
    %7787 = vmatpush1.bf16.msra.mxu0 %v5027
    %7788 = vmatprep.subr.bf16.mxu0 %v5020
    %7789 = vmatpush1.bf16.msra.mxu0 %v5019
    %7790 = vmatprep.subr.bf16.mxu0 %v5012
    %7791 = vmatpush1.bf16.msra.mxu0 %v5011
    %7792 = vmatprep.subr.bf16.mxu0 %v5132
    %7793 = vmatpush2.bf16.msra.mxu0 %v5131
    %7794 = vmatprep.subr.bf16.mxu0 %v5124
    %7795 = vmatpush2.bf16.msra.mxu0 %v5123
    %7796 = vmatprep.subr.bf16.mxu0 %v5116
    %7797 = vmatpush2.bf16.msra.mxu0 %v5115
    %7798 = vmatprep.subr.bf16.mxu0 %v5108
    %7799 = vmatpush2.bf16.msra.mxu0 %v5107
    %7800 = vmatprep.subr.bf16.mxu0 %v5100
    %7801 = vmatpush2.bf16.msra.mxu0 %v5099
    %7802 = vmatprep.subr.bf16.mxu0 %v5092
    %7803 = vmatpush2.bf16.msra.mxu0 %v5091
    %7804 = vmatprep.subr.bf16.mxu0 %v5084
    %7805 = vmatpush2.bf16.msra.mxu0 %v5083
    %7806 = vmatprep.subr.bf16.mxu0 %v5076
    %7807 = vmatpush2.bf16.msra.mxu0 %v5075
    %7808 = vmatprep.mubr.bf16.mxu0 %v514
    %7809 = vmatmul.mubr.bf16.gmra.mxu0 %v513
    %v7810 = vpop.f32.mrf.mxu0
    %v7811 = vadd.f32 %v7770, %v7810
    %v7812 = vpop.f32.mrf.mxu0
    %v7813 = vadd.f32 %v7772, %v7812
    %v7814 = vpop.f32.mrf.mxu0
    %v7815 = vpop.f32.mrf.mxu0
    %7816 = vdwg.mxu0
    %7817 = vmatprep.subr.bf16.mxu0 %v5196
    %7818 = vmatpush1.bf16.msra.mxu0 %v5195
    %7819 = vmatprep.subr.bf16.mxu0 %v5188
    %7820 = vmatpush1.bf16.msra.mxu0 %v5187
    %7821 = vmatprep.subr.bf16.mxu0 %v5180
    %7822 = vmatpush1.bf16.msra.mxu0 %v5179
    %7823 = vmatprep.subr.bf16.mxu0 %v5172
    %7824 = vmatpush1.bf16.msra.mxu0 %v5171
    %7825 = vmatprep.subr.bf16.mxu0 %v5164
    %7826 = vmatpush1.bf16.msra.mxu0 %v5163
    %7827 = vmatprep.subr.bf16.mxu0 %v5156
    %7828 = vmatpush1.bf16.msra.mxu0 %v5155
    %7829 = vmatprep.subr.bf16.mxu0 %v5148
    %7830 = vmatpush1.bf16.msra.mxu0 %v5147
    %7831 = vmatprep.subr.bf16.mxu0 %v5140
    %7832 = vmatpush1.bf16.msra.mxu0 %v5139
    %7833 = vmatprep.subr.bf16.mxu0 %v5260
    %7834 = vmatpush2.bf16.msra.mxu0 %v5259
    %7835 = vmatprep.subr.bf16.mxu0 %v5252
    %7836 = vmatpush2.bf16.msra.mxu0 %v5251
    %7837 = vmatprep.subr.bf16.mxu0 %v5244
    %7838 = vmatpush2.bf16.msra.mxu0 %v5243
    %7839 = vmatprep.subr.bf16.mxu0 %v5236
    %7840 = vmatpush2.bf16.msra.mxu0 %v5235
    %7841 = vmatprep.subr.bf16.mxu0 %v5228
    %7842 = vmatpush2.bf16.msra.mxu0 %v5227
    %7843 = vmatprep.subr.bf16.mxu0 %v5220
    %7844 = vmatpush2.bf16.msra.mxu0 %v5219
    %7845 = vmatprep.subr.bf16.mxu0 %v5212
    %7846 = vmatpush2.bf16.msra.mxu0 %v5211
    %7847 = vmatprep.subr.bf16.mxu0 %v5204
    %7848 = vmatpush2.bf16.msra.mxu0 %v5203
    %7849 = vmatprep.mubr.bf16.mxu0 %v516
    %7850 = vmatmul.mubr.bf16.gmra.mxu0 %v515
    %v7851 = vpop.f32.mrf.mxu0
    %v7852 = vadd.f32 %v7811, %v7851
    %v7853 = vpop.f32.mrf.mxu0
    %v7854 = vadd.f32 %v7813, %v7853
    %v7855 = vpop.f32.mrf.mxu0
    %v7856 = vpop.f32.mrf.mxu0
    %7857 = vdwg.mxu0
    %7858 = vmatprep.subr.bf16.mxu0 %v5324
    %7859 = vmatpush1.bf16.msra.mxu0 %v5323
    %7860 = vmatprep.subr.bf16.mxu0 %v5316
    %7861 = vmatpush1.bf16.msra.mxu0 %v5315
    %7862 = vmatprep.subr.bf16.mxu0 %v5308
    %7863 = vmatpush1.bf16.msra.mxu0 %v5307
    %7864 = vmatprep.subr.bf16.mxu0 %v5300
    %7865 = vmatpush1.bf16.msra.mxu0 %v5299
    %7866 = vmatprep.subr.bf16.mxu0 %v5292
    %7867 = vmatpush1.bf16.msra.mxu0 %v5291
    %7868 = vmatprep.subr.bf16.mxu0 %v5284
    %7869 = vmatpush1.bf16.msra.mxu0 %v5283
    %7870 = vmatprep.subr.bf16.mxu0 %v5276
    %7871 = vmatpush1.bf16.msra.mxu0 %v5275
    %7872 = vmatprep.subr.bf16.mxu0 %v5268
    %7873 = vmatpush1.bf16.msra.mxu0 %v5267
    %7874 = vmatprep.subr.bf16.mxu0 %v5388
    %7875 = vmatpush2.bf16.msra.mxu0 %v5387
    %7876 = vmatprep.subr.bf16.mxu0 %v5380
    %7877 = vmatpush2.bf16.msra.mxu0 %v5379
    %7878 = vmatprep.subr.bf16.mxu0 %v5372
    %7879 = vmatpush2.bf16.msra.mxu0 %v5371
    %7880 = vmatprep.subr.bf16.mxu0 %v5364
    %7881 = vmatpush2.bf16.msra.mxu0 %v5363
    %7882 = vmatprep.subr.bf16.mxu0 %v5356
    %7883 = vmatpush2.bf16.msra.mxu0 %v5355
    %7884 = vmatprep.subr.bf16.mxu0 %v5348
    %7885 = vmatpush2.bf16.msra.mxu0 %v5347
    %7886 = vmatprep.subr.bf16.mxu0 %v5340
    %7887 = vmatpush2.bf16.msra.mxu0 %v5339
    %7888 = vmatprep.subr.bf16.mxu0 %v5332
    %7889 = vmatpush2.bf16.msra.mxu0 %v5331
    %7890 = vmatprep.mubr.bf16.mxu0 %v518
    %7891 = vmatmul.mubr.bf16.gmra.mxu0 %v517
    %v7892 = vpop.f32.mrf.mxu0
    %v7893 = vadd.f32 %v7852, %v7892
    %v7894 = vpop.f32.mrf.mxu0
    %v7895 = vadd.f32 %v7854, %v7894
    %v7896 = vpop.f32.mrf.mxu0
    %v7897 = vpop.f32.mrf.mxu0
    %7898 = vdwg.mxu0
    %7899 = vmatprep.subr.bf16.mxu0 %v5452
    %7900 = vmatpush1.bf16.msra.mxu0 %v5451
    %7901 = vmatprep.subr.bf16.mxu0 %v5444
    %7902 = vmatpush1.bf16.msra.mxu0 %v5443
    %7903 = vmatprep.subr.bf16.mxu0 %v5436
    %7904 = vmatpush1.bf16.msra.mxu0 %v5435
    %7905 = vmatprep.subr.bf16.mxu0 %v5428
    %7906 = vmatpush1.bf16.msra.mxu0 %v5427
    %7907 = vmatprep.subr.bf16.mxu0 %v5420
    %7908 = vmatpush1.bf16.msra.mxu0 %v5419
    %7909 = vmatprep.subr.bf16.mxu0 %v5412
    %7910 = vmatpush1.bf16.msra.mxu0 %v5411
    %7911 = vmatprep.subr.bf16.mxu0 %v5404
    %7912 = vmatpush1.bf16.msra.mxu0 %v5403
    %7913 = vmatprep.subr.bf16.mxu0 %v5396
    %7914 = vmatpush1.bf16.msra.mxu0 %v5395
    %7915 = vmatprep.subr.bf16.mxu0 %v5516
    %7916 = vmatpush2.bf16.msra.mxu0 %v5515
    %7917 = vmatprep.subr.bf16.mxu0 %v5508
    %7918 = vmatpush2.bf16.msra.mxu0 %v5507
    %7919 = vmatprep.subr.bf16.mxu0 %v5500
    %7920 = vmatpush2.bf16.msra.mxu0 %v5499
    %7921 = vmatprep.subr.bf16.mxu0 %v5492
    %7922 = vmatpush2.bf16.msra.mxu0 %v5491
    %7923 = vmatprep.subr.bf16.mxu0 %v5484
    %7924 = vmatpush2.bf16.msra.mxu0 %v5483
    %7925 = vmatprep.subr.bf16.mxu0 %v5476
    %7926 = vmatpush2.bf16.msra.mxu0 %v5475
    %7927 = vmatprep.subr.bf16.mxu0 %v5468
    %7928 = vmatpush2.bf16.msra.mxu0 %v5467
    %7929 = vmatprep.subr.bf16.mxu0 %v5460
    %7930 = vmatpush2.bf16.msra.mxu0 %v5459
    %7931 = vmatprep.mubr.bf16.mxu0 %v520
    %7932 = vmatmul.mubr.bf16.gmra.mxu0 %v519
    %v7933 = vpop.f32.mrf.mxu0
    %v7934 = vadd.f32 %v7893, %v7933
    %v7935 = vpop.f32.mrf.mxu0
    %v7936 = vadd.f32 %v7895, %v7935
    %v7937 = vpop.f32.mrf.mxu0
    %v7938 = vpop.f32.mrf.mxu0
    %7939 = vdwg.mxu0
    %7940 = vmatprep.subr.bf16.mxu0 %v5580
    %7941 = vmatpush1.bf16.msra.mxu0 %v5579
    %7942 = vmatprep.subr.bf16.mxu0 %v5572
    %7943 = vmatpush1.bf16.msra.mxu0 %v5571
    %7944 = vmatprep.subr.bf16.mxu0 %v5564
    %7945 = vmatpush1.bf16.msra.mxu0 %v5563
    %7946 = vmatprep.subr.bf16.mxu0 %v5556
    %7947 = vmatpush1.bf16.msra.mxu0 %v5555
    %7948 = vmatprep.subr.bf16.mxu0 %v5548
    %7949 = vmatpush1.bf16.msra.mxu0 %v5547
    %7950 = vmatprep.subr.bf16.mxu0 %v5540
    %7951 = vmatpush1.bf16.msra.mxu0 %v5539
    %7952 = vmatprep.subr.bf16.mxu0 %v5532
    %7953 = vmatpush1.bf16.msra.mxu0 %v5531
    %7954 = vmatprep.subr.bf16.mxu0 %v5524
    %7955 = vmatpush1.bf16.msra.mxu0 %v5523
    %7956 = vmatprep.subr.bf16.mxu0 %v5644
    %7957 = vmatpush2.bf16.msra.mxu0 %v5643
    %7958 = vmatprep.subr.bf16.mxu0 %v5636
    %7959 = vmatpush2.bf16.msra.mxu0 %v5635
    %7960 = vmatprep.subr.bf16.mxu0 %v5628
    %7961 = vmatpush2.bf16.msra.mxu0 %v5627
    %7962 = vmatprep.subr.bf16.mxu0 %v5620
    %7963 = vmatpush2.bf16.msra.mxu0 %v5619
    %7964 = vmatprep.subr.bf16.mxu0 %v5612
    %7965 = vmatpush2.bf16.msra.mxu0 %v5611
    %7966 = vmatprep.subr.bf16.mxu0 %v5604
    %7967 = vmatpush2.bf16.msra.mxu0 %v5603
    %7968 = vmatprep.subr.bf16.mxu0 %v5596
    %7969 = vmatpush2.bf16.msra.mxu0 %v5595
    %7970 = vmatprep.subr.bf16.mxu0 %v5588
    %7971 = vmatpush2.bf16.msra.mxu0 %v5587
    %7972 = vmatprep.mubr.bf16.mxu0 %v522
    %7973 = vmatmul.mubr.bf16.gmra.mxu0 %v521
    %v7974 = vpop.f32.mrf.mxu0
    %v7975 = vadd.f32 %v7934, %v7974
    %v7976 = vpop.f32.mrf.mxu0
    %v7977 = vadd.f32 %v7936, %v7976
    %v7978 = vpop.f32.mrf.mxu0
    %v7979 = vpop.f32.mrf.mxu0
    %7980 = vdwg.mxu0
    %v7989 = vcombine.low %v6991, %v6993
    %v7990 = vcombine.low %v7319, %v7321
    %v7992 = vunpack.c.l.s4 1983009808
    %v7993 = vunpack.c.0.s8 %v7992
    %v7994 = vlaneseq
    %v7995 = vshrl.u32 %v7994, 7
    %v7996 = vsub.s32 %v7993, %v7995
    %v7997 = vrot.slane %v7989, %v7996
    %v7999 = vunpack.c.l.s4 1983009808
    %v8000 = vunpack.c.0.s8 %v7999
    %v8001 = vlaneseq
    %v8002 = vshrl.u32 %v8001, 7
    %v8003 = vsub.s32 %v8000, %v8002
    %v8004 = vrot.slane %v7990, %v8003
    %v8005 = vcombine.low %v7997, %v8004
    %v8006 = vcombine.low %v7647, %v7649
    %v8007 = vcombine.low %v7975, %v7977
    %v8009 = vunpack.c.l.s4 1983009808
    %v8010 = vunpack.c.0.s8 %v8009
    %v8011 = vlaneseq
    %v8012 = vshrl.u32 %v8011, 7
    %v8013 = vsub.s32 %v8010, %v8012
    %v8014 = vrot.slane %v8006, %v8013
    %v8016 = vunpack.c.l.s4 1983009808
    %v8017 = vunpack.c.0.s8 %v8016
    %v8018 = vlaneseq
    %v8019 = vshrl.u32 %v8018, 7
    %v8020 = vsub.s32 %v8017, %v8019
    %v8021 = vrot.slane %v8007, %v8020
    %v8022 = vcombine.low %v8014, %v8021
    %v8025 = vadd.f32 %v523, %v8005
    %v8026 = vadd.f32 %v524, %v8022
    %8027 = vst [vmem:[#allocation2] sm:$0xff] %v8025
    %8028 = vst [vmem:[#allocation2 + $0x8] sm:$0xff] %v8026
    // Predicated region
    $region66: #{discriminator_forward.5} parent=1 // pred_check
      %p8029 = pneg %p107
    $region67: #{discriminator_forward.5} parent=1 // pred_check_branch
      %8031 = sbr.rel (%p8029) target = $region69
    $region68: #{discriminator_forward.5} parent=1 // pred_region
      %v8032 = vld [vmem:[#allocation2] sm:$0xff]
      %v8033 = vld [vmem:[#allocation2 + $0x8] sm:$0xff]
      %v8034 = vld [vmem:[#allocation5] sm:$0xff]
      %v8036 = vlaneseq
      %v8037 = vshrl.u32 %v8036, 7
      %v8038 = vsub.s32 0, %v8037
      %v8039 = vrot.slane %v8034, %v8038
      %v8040 = vlaneseq
      %v8041 = vshrl.u32 %v8040, 7
      %v8042 = vsub.s32 1, %v8041
      %v8043 = vrot.slane %v8034, %v8042
      %v8044 = vlaneseq
      %v8045 = vshrl.u32 %v8044, 7
      %v8046 = vsub.s32 2, %v8045
      %v8047 = vrot.slane %v8034, %v8046
      %v8048 = vlaneseq
      %v8049 = vshrl.u32 %v8048, 7
      %v8050 = vsub.s32 3, %v8049
      %v8051 = vrot.slane %v8034, %v8050
      %v8052 = vlaneseq
      %v8053 = vshrl.u32 %v8052, 7
      %v8054 = vsub.s32 4, %v8053
      %v8055 = vrot.slane %v8034, %v8054
      %v8056 = vlaneseq
      %v8057 = vshrl.u32 %v8056, 7
      %v8058 = vsub.s32 5, %v8057
      %v8059 = vrot.slane %v8034, %v8058
      %v8060 = vlaneseq
      %v8061 = vshrl.u32 %v8060, 7
      %v8062 = vsub.s32 6, %v8061
      %v8063 = vrot.slane %v8034, %v8062
      %v8064 = vlaneseq
      %v8065 = vshrl.u32 %v8064, 7
      %v8066 = vsub.s32 7, %v8065
      %v8067 = vrot.slane %v8034, %v8066
      %v8068 = vcombine.low %v8039, %v8043
      %v8069 = vcombine.low %v8047, %v8051
      %v8071 = vunpack.c.l.s4 1983009808
      %v8072 = vunpack.c.0.s8 %v8071
      %v8073 = vlaneseq
      %v8074 = vshrl.u32 %v8073, 7
      %v8075 = vsub.s32 %v8072, %v8074
      %v8076 = vrot.slane %v8068, %v8075
      %v8078 = vunpack.c.l.s4 1983009808
      %v8079 = vunpack.c.0.s8 %v8078
      %v8080 = vlaneseq
      %v8081 = vshrl.u32 %v8080, 7
      %v8082 = vsub.s32 %v8079, %v8081
      %v8083 = vrot.slane %v8069, %v8082
      %v8084 = vcombine.low %v8076, %v8083
      %v8085 = vcombine.low %v8055, %v8059
      %v8086 = vcombine.low %v8063, %v8067
      %v8088 = vunpack.c.l.s4 1983009808
      %v8089 = vunpack.c.0.s8 %v8088
      %v8090 = vlaneseq
      %v8091 = vshrl.u32 %v8090, 7
      %v8092 = vsub.s32 %v8089, %v8091
      %v8093 = vrot.slane %v8085, %v8092
      %v8095 = vunpack.c.l.s4 1983009808
      %v8096 = vunpack.c.0.s8 %v8095
      %v8097 = vlaneseq
      %v8098 = vshrl.u32 %v8097, 7
      %v8099 = vsub.s32 %v8096, %v8098
      %v8100 = vrot.slane %v8086, %v8099
      %v8101 = vcombine.low %v8093, %v8100
      %v8104 = vadd.f32 %v8032, %v8084
      %v8105 = vadd.f32 %v8033, %v8101
      %v8108 = vcombine.high %v8104, %v8104
      %v8110 = vunpack.c.l.s4 1983009808
      %v8111 = vunpack.c.0.s8 %v8110
      %v8112 = vlaneseq
      %v8113 = vshrl.u32 %v8112, 7
      %v8114 = vsub.s32 %v8111, %v8113
      %v8115 = vrot.slane %v8104, %v8114
      %v8117 = vunpack.c.l.s4 1983009808
      %v8118 = vunpack.c.0.s8 %v8117
      %v8119 = vlaneseq
      %v8120 = vshrl.u32 %v8119, 7
      %v8121 = vsub.s32 %v8118, %v8120
      %v8122 = vrot.slane %v8108, %v8121
      %v8123 = vcombine.high %v8115, %v8115
      %v8124 = vcombine.high %v8122, %v8122
      %v8125 = vcombine.high %v8105, %v8105
      %v8127 = vunpack.c.l.s4 1983009808
      %v8128 = vunpack.c.0.s8 %v8127
      %v8129 = vlaneseq
      %v8130 = vshrl.u32 %v8129, 7
      %v8131 = vsub.s32 %v8128, %v8130
      %v8132 = vrot.slane %v8105, %v8131
      %v8134 = vunpack.c.l.s4 1983009808
      %v8135 = vunpack.c.0.s8 %v8134
      %v8136 = vlaneseq
      %v8137 = vshrl.u32 %v8136, 7
      %v8138 = vsub.s32 %v8135, %v8137
      %v8139 = vrot.slane %v8125, %v8138
      %v8140 = vcombine.high %v8132, %v8132
      %v8141 = vcombine.high %v8139, %v8139
      %vm8150 = vcmask 1041408
      %v8151 = vsel %vm8150, %v8115, 0.0
      %v8152 = vrot.slane %v8151, 4
      %v8153 = vadd.f32 %v8151, %v8152
      %v8154 = vrot.slane %v8153, 2
      %v8155 = vadd.f32 %v8153, %v8154
      %v8156 = vrot.slane %v8155, 1
      %v8157 = vadd.f32 %v8155, %v8156
      %v8158 = vsel %vm8150, %v8123, 0.0
      %v8159 = vrot.slane %v8158, 4
      %v8160 = vadd.f32 %v8158, %v8159
      %v8161 = vrot.slane %v8160, 2
      %v8162 = vadd.f32 %v8160, %v8161
      %v8163 = vrot.slane %v8162, 1
      %v8164 = vadd.f32 %v8162, %v8163
      %v8165 = vsel %vm8150, %v8122, 0.0
      %v8166 = vrot.slane %v8165, 4
      %v8167 = vadd.f32 %v8165, %v8166
      %v8168 = vrot.slane %v8167, 2
      %v8169 = vadd.f32 %v8167, %v8168
      %v8170 = vrot.slane %v8169, 1
      %v8171 = vadd.f32 %v8169, %v8170
      %v8172 = vsel %vm8150, %v8124, 0.0
      %v8173 = vrot.slane %v8172, 4
      %v8174 = vadd.f32 %v8172, %v8173
      %v8175 = vrot.slane %v8174, 2
      %v8176 = vadd.f32 %v8174, %v8175
      %v8177 = vrot.slane %v8176, 1
      %v8178 = vadd.f32 %v8176, %v8177
      %v8179 = vsel %vm8150, %v8132, 0.0
      %v8180 = vrot.slane %v8179, 4
      %v8181 = vadd.f32 %v8179, %v8180
      %v8182 = vrot.slane %v8181, 2
      %v8183 = vadd.f32 %v8181, %v8182
      %v8184 = vrot.slane %v8183, 1
      %v8185 = vadd.f32 %v8183, %v8184
      %v8186 = vsel %vm8150, %v8140, 0.0
      %v8187 = vrot.slane %v8186, 4
      %v8188 = vadd.f32 %v8186, %v8187
      %v8189 = vrot.slane %v8188, 2
      %v8190 = vadd.f32 %v8188, %v8189
      %v8191 = vrot.slane %v8190, 1
      %v8192 = vadd.f32 %v8190, %v8191
      %v8193 = vsel %vm8150, %v8139, 0.0
      %v8194 = vrot.slane %v8193, 4
      %v8195 = vadd.f32 %v8193, %v8194
      %v8196 = vrot.slane %v8195, 2
      %v8197 = vadd.f32 %v8195, %v8196
      %v8198 = vrot.slane %v8197, 1
      %v8199 = vadd.f32 %v8197, %v8198
      %v8200 = vsel %vm8150, %v8141, 0.0
      %v8201 = vrot.slane %v8200, 4
      %v8202 = vadd.f32 %v8200, %v8201
      %v8203 = vrot.slane %v8202, 2
      %v8204 = vadd.f32 %v8202, %v8203
      %v8205 = vrot.slane %v8204, 1
      %v8206 = vadd.f32 %v8204, %v8205
      %v8207 = vrcp.pop 2.0
      %v8208 = vmul.f32 %v8157, %v8207
      %v8209 = vmul.f32 %v8164, %v8207
      %v8210 = vmul.f32 %v8171, %v8207
      %v8211 = vmul.f32 %v8178, %v8207
      %v8212 = vmul.f32 %v8185, %v8207
      %v8213 = vmul.f32 %v8192, %v8207
      %v8214 = vmul.f32 %v8199, %v8207
      %v8215 = vmul.f32 %v8206, %v8207
      %v8216 = vmul.f32 %v8104, %v8104
      %v8217 = vmul.f32 %v8105, %v8105
      %v8220 = vcombine.high %v8216, %v8216
      %v8222 = vunpack.c.l.s4 1983009808
      %v8223 = vunpack.c.0.s8 %v8222
      %v8224 = vlaneseq
      %v8225 = vshrl.u32 %v8224, 7
      %v8226 = vsub.s32 %v8223, %v8225
      %v8227 = vrot.slane %v8216, %v8226
      %v8229 = vunpack.c.l.s4 1983009808
      %v8230 = vunpack.c.0.s8 %v8229
      %v8231 = vlaneseq
      %v8232 = vshrl.u32 %v8231, 7
      %v8233 = vsub.s32 %v8230, %v8232
      %v8234 = vrot.slane %v8220, %v8233
      %v8235 = vcombine.high %v8227, %v8227
      %v8236 = vcombine.high %v8234, %v8234
      %v8237 = vcombine.high %v8217, %v8217
      %v8239 = vunpack.c.l.s4 1983009808
      %v8240 = vunpack.c.0.s8 %v8239
      %v8241 = vlaneseq
      %v8242 = vshrl.u32 %v8241, 7
      %v8243 = vsub.s32 %v8240, %v8242
      %v8244 = vrot.slane %v8217, %v8243
      %v8246 = vunpack.c.l.s4 1983009808
      %v8247 = vunpack.c.0.s8 %v8246
      %v8248 = vlaneseq
      %v8249 = vshrl.u32 %v8248, 7
      %v8250 = vsub.s32 %v8247, %v8249
      %v8251 = vrot.slane %v8237, %v8250
      %v8252 = vcombine.high %v8244, %v8244
      %v8253 = vcombine.high %v8251, %v8251
      %v8262 = vsel %vm8150, %v8227, 0.0
      %v8263 = vrot.slane %v8262, 4
      %v8264 = vadd.f32 %v8262, %v8263
      %v8265 = vrot.slane %v8264, 2
      %v8266 = vadd.f32 %v8264, %v8265
      %v8267 = vrot.slane %v8266, 1
      %v8268 = vadd.f32 %v8266, %v8267
      %v8269 = vsel %vm8150, %v8235, 0.0
      %v8270 = vrot.slane %v8269, 4
      %v8271 = vadd.f32 %v8269, %v8270
      %v8272 = vrot.slane %v8271, 2
      %v8273 = vadd.f32 %v8271, %v8272
      %v8274 = vrot.slane %v8273, 1
      %v8275 = vadd.f32 %v8273, %v8274
      %v8276 = vsel %vm8150, %v8234, 0.0
      %v8277 = vrot.slane %v8276, 4
      %v8278 = vadd.f32 %v8276, %v8277
      %v8279 = vrot.slane %v8278, 2
      %v8280 = vadd.f32 %v8278, %v8279
      %v8281 = vrot.slane %v8280, 1
      %v8282 = vadd.f32 %v8280, %v8281
      %v8283 = vsel %vm8150, %v8236, 0.0
      %v8284 = vrot.slane %v8283, 4
      %v8285 = vadd.f32 %v8283, %v8284
      %v8286 = vrot.slane %v8285, 2
      %v8287 = vadd.f32 %v8285, %v8286
      %v8288 = vrot.slane %v8287, 1
      %v8289 = vadd.f32 %v8287, %v8288
      %v8290 = vsel %vm8150, %v8244, 0.0
      %v8291 = vrot.slane %v8290, 4
      %v8292 = vadd.f32 %v8290, %v8291
      %v8293 = vrot.slane %v8292, 2
      %v8294 = vadd.f32 %v8292, %v8293
      %v8295 = vrot.slane %v8294, 1
      %v8296 = vadd.f32 %v8294, %v8295
      %v8297 = vsel %vm8150, %v8252, 0.0
      %v8298 = vrot.slane %v8297, 4
      %v8299 = vadd.f32 %v8297, %v8298
      %v8300 = vrot.slane %v8299, 2
      %v8301 = vadd.f32 %v8299, %v8300
      %v8302 = vrot.slane %v8301, 1
      %v8303 = vadd.f32 %v8301, %v8302
      %v8304 = vsel %vm8150, %v8251, 0.0
      %v8305 = vrot.slane %v8304, 4
      %v8306 = vadd.f32 %v8304, %v8305
      %v8307 = vrot.slane %v8306, 2
      %v8308 = vadd.f32 %v8306, %v8307
      %v8309 = vrot.slane %v8308, 1
      %v8310 = vadd.f32 %v8308, %v8309
      %v8311 = vsel %vm8150, %v8253, 0.0
      %v8312 = vrot.slane %v8311, 4
      %v8313 = vadd.f32 %v8311, %v8312
      %v8314 = vrot.slane %v8313, 2
      %v8315 = vadd.f32 %v8313, %v8314
      %v8316 = vrot.slane %v8315, 1
      %v8317 = vadd.f32 %v8315, %v8316
      %v8318 = vmul.f32 %v8268, %v8207
      %v8319 = vmul.f32 %v8275, %v8207
      %v8320 = vmul.f32 %v8282, %v8207
      %v8321 = vmul.f32 %v8289, %v8207
      %v8322 = vmul.f32 %v8296, %v8207
      %v8323 = vmul.f32 %v8303, %v8207
      %v8324 = vmul.f32 %v8310, %v8207
      %v8325 = vmul.f32 %v8317, %v8207
      %v8326 = vmul.f32 %v8208, %v8208
      %v8327 = vmul.f32 %v8209, %v8209
      %v8328 = vmul.f32 %v8210, %v8210
      %v8329 = vmul.f32 %v8211, %v8211
      %v8330 = vmul.f32 %v8212, %v8212
      %v8331 = vmul.f32 %v8213, %v8213
      %v8332 = vmul.f32 %v8214, %v8214
      %v8333 = vmul.f32 %v8215, %v8215
      %v8334 = vsub.f32 %v8318, %v8326
      %v8335 = vsub.f32 %v8319, %v8327
      %v8336 = vsub.f32 %v8320, %v8328
      %v8337 = vsub.f32 %v8321, %v8329
      %v8338 = vsub.f32 %v8322, %v8330
      %v8339 = vsub.f32 %v8323, %v8331
      %v8340 = vsub.f32 %v8324, %v8332
      %v8341 = vsub.f32 %v8325, %v8333
      %v8342 = vmax.f32 %v8334, 0.0
      %v8343 = vmax.f32 %v8335, 0.0
      %v8344 = vmax.f32 %v8336, 0.0
      %v8345 = vmax.f32 %v8337, 0.0
      %v8346 = vmax.f32 %v8338, 0.0
      %v8347 = vmax.f32 %v8339, 0.0
      %v8348 = vmax.f32 %v8340, 0.0
      %v8349 = vmax.f32 %v8341, 0.0
      %v8350 = vadd.f32 %v8342, 1e-05
      %v8351 = vadd.f32 %v8343, 1e-05
      %v8352 = vadd.f32 %v8344, 1e-05
      %v8353 = vadd.f32 %v8345, 1e-05
      %v8354 = vadd.f32 %v8346, 1e-05
      %v8355 = vadd.f32 %v8347, 1e-05
      %v8356 = vadd.f32 %v8348, 1e-05
      %v8357 = vadd.f32 %v8349, 1e-05
      %v8358 = vrsqrt.pop %v8350
      %v8359 = vrsqrt.pop %v8351
      %v8360 = vrsqrt.pop %v8352
      %v8361 = vrsqrt.pop %v8353
      %v8362 = vrsqrt.pop %v8354
      %v8363 = vrsqrt.pop %v8355
      %v8364 = vrsqrt.pop %v8356
      %v8365 = vrsqrt.pop %v8357
      %v8374 = vcombine.low %v8208, %v8209
      %v8375 = vcombine.low %v8210, %v8211
      %v8377 = vunpack.c.l.s4 1983009808
      %v8378 = vunpack.c.0.s8 %v8377
      %v8379 = vlaneseq
      %v8380 = vshrl.u32 %v8379, 7
      %v8381 = vsub.s32 %v8378, %v8380
      %v8382 = vrot.slane %v8374, %v8381
      %v8384 = vunpack.c.l.s4 1983009808
      %v8385 = vunpack.c.0.s8 %v8384
      %v8386 = vlaneseq
      %v8387 = vshrl.u32 %v8386, 7
      %v8388 = vsub.s32 %v8385, %v8387
      %v8389 = vrot.slane %v8375, %v8388
      %v8390 = vcombine.low %v8382, %v8389
      %v8391 = vcombine.low %v8212, %v8213
      %v8392 = vcombine.low %v8214, %v8215
      %v8394 = vunpack.c.l.s4 1983009808
      %v8395 = vunpack.c.0.s8 %v8394
      %v8396 = vlaneseq
      %v8397 = vshrl.u32 %v8396, 7
      %v8398 = vsub.s32 %v8395, %v8397
      %v8399 = vrot.slane %v8391, %v8398
      %v8401 = vunpack.c.l.s4 1983009808
      %v8402 = vunpack.c.0.s8 %v8401
      %v8403 = vlaneseq
      %v8404 = vshrl.u32 %v8403, 7
      %v8405 = vsub.s32 %v8402, %v8404
      %v8406 = vrot.slane %v8392, %v8405
      %v8407 = vcombine.low %v8399, %v8406
      %v8410 = vsub.f32 %v8104, %v8390
      %v8411 = vsub.f32 %v8105, %v8407
      %v8412 = vld [vmem:[#allocation7] sm:$0xff]
      %v8421 = vcombine.low %v8358, %v8359
      %v8422 = vcombine.low %v8360, %v8361
      %v8423 = vcombine.low %v8362, %v8363
      %v8424 = vcombine.low %v8364, %v8365
      %v8426 = vunpack.c.l.s4 1966171168
      %v8427 = vunpack.c.0.s8 %v8426
      %v8428 = vlaneseq
      %v8429 = vshrl.u32 %v8428, 7
      %v8430 = vsub.s32 %v8427, %v8429
      %v8431 = vrot.slane %v8421, %v8430
      %v8433 = vunpack.c.l.s4 1966171168
      %v8434 = vunpack.c.0.s8 %v8433
      %v8435 = vlaneseq
      %v8436 = vshrl.u32 %v8435, 7
      %v8437 = vsub.s32 %v8434, %v8436
      %v8438 = vrot.slane %v8422, %v8437
      %v8440 = vunpack.c.l.s4 1966171168
      %v8441 = vunpack.c.0.s8 %v8440
      %v8442 = vlaneseq
      %v8443 = vshrl.u32 %v8442, 7
      %v8444 = vsub.s32 %v8441, %v8443
      %v8445 = vrot.slane %v8423, %v8444
      %v8447 = vunpack.c.l.s4 1966171168
      %v8448 = vunpack.c.0.s8 %v8447
      %v8449 = vlaneseq
      %v8450 = vshrl.u32 %v8449, 7
      %v8451 = vsub.s32 %v8448, %v8450
      %v8452 = vrot.slane %v8424, %v8451
      %v8453 = vcombine.low %v8431, %v8438
      %v8454 = vcombine.low %v8445, %v8452
      %v8456 = vunpack.c.l.s4 1966171168
      %v8457 = vunpack.c.0.s8 %v8456
      %v8458 = vlaneseq
      %v8459 = vshrl.u32 %v8458, 7
      %v8460 = vsub.s32 %v8457, %v8459
      %v8461 = vrot.slane %v8453, %v8460
      %v8463 = vunpack.c.l.s4 1966171168
      %v8464 = vunpack.c.0.s8 %v8463
      %v8465 = vlaneseq
      %v8466 = vshrl.u32 %v8465, 7
      %v8467 = vsub.s32 %v8464, %v8466
      %v8468 = vrot.slane %v8454, %v8467
      %v8469 = vcombine.low %v8461, %v8468
      %v8471 = vmul.f32 %v8412, %v8469
      %v8473 = vlaneseq
      %v8474 = vshrl.u32 %v8473, 7
      %v8475 = vsub.s32 0, %v8474
      %v8476 = vrot.slane %v8471, %v8475
      %v8477 = vlaneseq
      %v8478 = vshrl.u32 %v8477, 7
      %v8479 = vsub.s32 1, %v8478
      %v8480 = vrot.slane %v8471, %v8479
      %v8481 = vlaneseq
      %v8482 = vshrl.u32 %v8481, 7
      %v8483 = vsub.s32 2, %v8482
      %v8484 = vrot.slane %v8471, %v8483
      %v8485 = vlaneseq
      %v8486 = vshrl.u32 %v8485, 7
      %v8487 = vsub.s32 3, %v8486
      %v8488 = vrot.slane %v8471, %v8487
      %v8489 = vlaneseq
      %v8490 = vshrl.u32 %v8489, 7
      %v8491 = vsub.s32 4, %v8490
      %v8492 = vrot.slane %v8471, %v8491
      %v8493 = vlaneseq
      %v8494 = vshrl.u32 %v8493, 7
      %v8495 = vsub.s32 5, %v8494
      %v8496 = vrot.slane %v8471, %v8495
      %v8497 = vlaneseq
      %v8498 = vshrl.u32 %v8497, 7
      %v8499 = vsub.s32 6, %v8498
      %v8500 = vrot.slane %v8471, %v8499
      %v8501 = vlaneseq
      %v8502 = vshrl.u32 %v8501, 7
      %v8503 = vsub.s32 7, %v8502
      %v8504 = vrot.slane %v8471, %v8503
      %v8505 = vcombine.low %v8476, %v8480
      %v8506 = vcombine.low %v8484, %v8488
      %v8508 = vunpack.c.l.s4 1983009808
      %v8509 = vunpack.c.0.s8 %v8508
      %v8510 = vlaneseq
      %v8511 = vshrl.u32 %v8510, 7
      %v8512 = vsub.s32 %v8509, %v8511
      %v8513 = vrot.slane %v8505, %v8512
      %v8515 = vunpack.c.l.s4 1983009808
      %v8516 = vunpack.c.0.s8 %v8515
      %v8517 = vlaneseq
      %v8518 = vshrl.u32 %v8517, 7
      %v8519 = vsub.s32 %v8516, %v8518
      %v8520 = vrot.slane %v8506, %v8519
      %v8521 = vcombine.low %v8513, %v8520
      %v8522 = vcombine.low %v8492, %v8496
      %v8523 = vcombine.low %v8500, %v8504
      %v8525 = vunpack.c.l.s4 1983009808
      %v8526 = vunpack.c.0.s8 %v8525
      %v8527 = vlaneseq
      %v8528 = vshrl.u32 %v8527, 7
      %v8529 = vsub.s32 %v8526, %v8528
      %v8530 = vrot.slane %v8522, %v8529
      %v8532 = vunpack.c.l.s4 1983009808
      %v8533 = vunpack.c.0.s8 %v8532
      %v8534 = vlaneseq
      %v8535 = vshrl.u32 %v8534, 7
      %v8536 = vsub.s32 %v8533, %v8535
      %v8537 = vrot.slane %v8523, %v8536
      %v8538 = vcombine.low %v8530, %v8537
      %v8541 = vmul.f32 %v8410, %v8521
      %v8542 = vmul.f32 %v8411, %v8538
      %v8543 = vld [vmem:[#allocation8] sm:$0xff]
      %v8545 = vlaneseq
      %v8546 = vshrl.u32 %v8545, 7
      %v8547 = vsub.s32 0, %v8546
      %v8548 = vrot.slane %v8543, %v8547
      %v8549 = vlaneseq
      %v8550 = vshrl.u32 %v8549, 7
      %v8551 = vsub.s32 1, %v8550
      %v8552 = vrot.slane %v8543, %v8551
      %v8553 = vlaneseq
      %v8554 = vshrl.u32 %v8553, 7
      %v8555 = vsub.s32 2, %v8554
      %v8556 = vrot.slane %v8543, %v8555
      %v8557 = vlaneseq
      %v8558 = vshrl.u32 %v8557, 7
      %v8559 = vsub.s32 3, %v8558
      %v8560 = vrot.slane %v8543, %v8559
      %v8561 = vlaneseq
      %v8562 = vshrl.u32 %v8561, 7
      %v8563 = vsub.s32 4, %v8562
      %v8564 = vrot.slane %v8543, %v8563
      %v8565 = vlaneseq
      %v8566 = vshrl.u32 %v8565, 7
      %v8567 = vsub.s32 5, %v8566
      %v8568 = vrot.slane %v8543, %v8567
      %v8569 = vlaneseq
      %v8570 = vshrl.u32 %v8569, 7
      %v8571 = vsub.s32 6, %v8570
      %v8572 = vrot.slane %v8543, %v8571
      %v8573 = vlaneseq
      %v8574 = vshrl.u32 %v8573, 7
      %v8575 = vsub.s32 7, %v8574
      %v8576 = vrot.slane %v8543, %v8575
      %v8577 = vcombine.low %v8548, %v8552
      %v8578 = vcombine.low %v8556, %v8560
      %v8580 = vunpack.c.l.s4 1983009808
      %v8581 = vunpack.c.0.s8 %v8580
      %v8582 = vlaneseq
      %v8583 = vshrl.u32 %v8582, 7
      %v8584 = vsub.s32 %v8581, %v8583
      %v8585 = vrot.slane %v8577, %v8584
      %v8587 = vunpack.c.l.s4 1983009808
      %v8588 = vunpack.c.0.s8 %v8587
      %v8589 = vlaneseq
      %v8590 = vshrl.u32 %v8589, 7
      %v8591 = vsub.s32 %v8588, %v8590
      %v8592 = vrot.slane %v8578, %v8591
      %v8593 = vcombine.low %v8585, %v8592
      %v8594 = vcombine.low %v8564, %v8568
      %v8595 = vcombine.low %v8572, %v8576
      %v8597 = vunpack.c.l.s4 1983009808
      %v8598 = vunpack.c.0.s8 %v8597
      %v8599 = vlaneseq
      %v8600 = vshrl.u32 %v8599, 7
      %v8601 = vsub.s32 %v8598, %v8600
      %v8602 = vrot.slane %v8594, %v8601
      %v8604 = vunpack.c.l.s4 1983009808
      %v8605 = vunpack.c.0.s8 %v8604
      %v8606 = vlaneseq
      %v8607 = vshrl.u32 %v8606, 7
      %v8608 = vsub.s32 %v8605, %v8607
      %v8609 = vrot.slane %v8595, %v8608
      %v8610 = vcombine.low %v8602, %v8609
      %v8613 = vadd.f32 %v8541, %v8593
      %v8614 = vadd.f32 %v8542, %v8610
      %vm8615 = vcmp.gt.f32.partialorder %v8613, 0.0
      %vm8616 = vcmp.gt.f32.partialorder %v8614, 0.0
      %v8617 = vmul.f32 %v8613, 0.2
      %v8618 = vmul.f32 %v8614, 0.2
      %v8619 = vsel %vm8615, %v8613, %v8617
      %v8620 = vsel %vm8616, %v8614, %v8618
      %v8623 = vcombine.high %v8619, %v8619
      %v8625 = vunpack.c.l.s4 1983009808
      %v8626 = vunpack.c.0.s8 %v8625
      %v8627 = vlaneseq
      %v8628 = vshrl.u32 %v8627, 7
      %v8629 = vsub.s32 %v8626, %v8628
      %v8630 = vrot.slane %v8619, %v8629
      %v8632 = vunpack.c.l.s4 1983009808
      %v8633 = vunpack.c.0.s8 %v8632
      %v8634 = vlaneseq
      %v8635 = vshrl.u32 %v8634, 7
      %v8636 = vsub.s32 %v8633, %v8635
      %v8637 = vrot.slane %v8623, %v8636
      %v8638 = vcombine.high %v8630, %v8630
      %v8639 = vcombine.high %v8637, %v8637
      %v8640 = vcombine.high %v8620, %v8620
      %v8642 = vunpack.c.l.s4 1983009808
      %v8643 = vunpack.c.0.s8 %v8642
      %v8644 = vlaneseq
      %v8645 = vshrl.u32 %v8644, 7
      %v8646 = vsub.s32 %v8643, %v8645
      %v8647 = vrot.slane %v8620, %v8646
      %v8649 = vunpack.c.l.s4 1983009808
      %v8650 = vunpack.c.0.s8 %v8649
      %v8651 = vlaneseq
      %v8652 = vshrl.u32 %v8651, 7
      %v8653 = vsub.s32 %v8650, %v8652
      %v8654 = vrot.slane %v8640, %v8653
      %v8655 = vcombine.high %v8647, %v8647
      %v8656 = vcombine.high %v8654, %v8654
      %v8665 = vpack.c.bf16 %v8630, %v8630
      %v8666 = vpack.c.bf16 %v8638, %v8638
      %v8667 = vpack.c.bf16 %v8637, %v8637
      %v8668 = vpack.c.bf16 %v8639, %v8639
      %v8669 = vpack.c.bf16 %v8647, %v8647
      %v8670 = vpack.c.bf16 %v8655, %v8655
      %v8671 = vpack.c.bf16 %v8654, %v8654
      %v8672 = vpack.c.bf16 %v8656, %v8656
      %v8673 = vld [vmem:[#allocation10] sm:$0xf]
      %v8674 = vld [vmem:[#allocation10 + $0x4] sm:$0xf]
      %v8675 = vld [vmem:[#allocation10 + $0x8] sm:$0xf]
      %v8676 = vld [vmem:[#allocation10 + $0xc] sm:$0xf]
      %v8677 = vld [vmem:[#allocation10 + $0x10] sm:$0xf]
      %v8678 = vld [vmem:[#allocation10 + $0x14] sm:$0xf]
      %v8679 = vld [vmem:[#allocation10 + $0x18] sm:$0xf]
      %v8680 = vld [vmem:[#allocation10 + $0x1c] sm:$0xf]
      %v8681 = vld [vmem:[#allocation10 + $0x20] sm:$0xf]
      %v8682 = vld [vmem:[#allocation10 + $0x24] sm:$0xf]
      %v8683 = vld [vmem:[#allocation10 + $0x28] sm:$0xf]
      %v8684 = vld [vmem:[#allocation10 + $0x2c] sm:$0xf]
      %v8685 = vld [vmem:[#allocation10 + $0x30] sm:$0xf]
      %v8686 = vld [vmem:[#allocation10 + $0x34] sm:$0xf]
      %v8687 = vld [vmem:[#allocation10 + $0x38] sm:$0xf]
      %v8688 = vld [vmem:[#allocation10 + $0x3c] sm:$0xf]
      %v8689 = vld [vmem:[#allocation10 + $0x40] sm:$0xf]
      %v8690 = vld [vmem:[#allocation10 + $0x44] sm:$0xf]
      %v8691 = vld [vmem:[#allocation10 + $0x48] sm:$0xf]
      %v8692 = vld [vmem:[#allocation10 + $0x4c] sm:$0xf]
      %v8693 = vld [vmem:[#allocation10 + $0x50] sm:$0xf]
      %v8694 = vld [vmem:[#allocation10 + $0x54] sm:$0xf]
      %v8695 = vld [vmem:[#allocation10 + $0x58] sm:$0xf]
      %v8696 = vld [vmem:[#allocation10 + $0x5c] sm:$0xf]
      %v8697 = vld [vmem:[#allocation10 + $0x60] sm:$0xf]
      %v8698 = vld [vmem:[#allocation10 + $0x64] sm:$0xf]
      %v8699 = vld [vmem:[#allocation10 + $0x68] sm:$0xf]
      %v8700 = vld [vmem:[#allocation10 + $0x6c] sm:$0xf]
      %v8701 = vld [vmem:[#allocation10 + $0x70] sm:$0xf]
      %v8702 = vld [vmem:[#allocation10 + $0x74] sm:$0xf]
      %v8703 = vld [vmem:[#allocation10 + $0x78] sm:$0xf]
      %v8704 = vld [vmem:[#allocation10 + $0x7c] sm:$0xf]
      %v8705 = vld [vmem:[#allocation10 + $0x80] sm:$0xf]
      %v8706 = vld [vmem:[#allocation10 + $0x84] sm:$0xf]
      %v8707 = vld [vmem:[#allocation10 + $0x88] sm:$0xf]
      %v8708 = vld [vmem:[#allocation10 + $0x8c] sm:$0xf]
      %v8709 = vld [vmem:[#allocation10 + $0x90] sm:$0xf]
      %v8710 = vld [vmem:[#allocation10 + $0x94] sm:$0xf]
      %v8711 = vld [vmem:[#allocation10 + $0x98] sm:$0xf]
      %v8712 = vld [vmem:[#allocation10 + $0x9c] sm:$0xf]
      %v8713 = vld [vmem:[#allocation10 + $0xa0] sm:$0xf]
      %v8714 = vld [vmem:[#allocation10 + $0xa4] sm:$0xf]
      %v8715 = vld [vmem:[#allocation10 + $0xa8] sm:$0xf]
      %v8716 = vld [vmem:[#allocation10 + $0xac] sm:$0xf]
      %v8717 = vld [vmem:[#allocation10 + $0xb0] sm:$0xf]
      %v8718 = vld [vmem:[#allocation10 + $0xb4] sm:$0xf]
      %v8719 = vld [vmem:[#allocation10 + $0xb8] sm:$0xf]
      %v8720 = vld [vmem:[#allocation10 + $0xbc] sm:$0xf]
      %v8721 = vld [vmem:[#allocation10 + $0xc0] sm:$0xf]
      %v8722 = vld [vmem:[#allocation10 + $0xc4] sm:$0xf]
      %v8723 = vld [vmem:[#allocation10 + $0xc8] sm:$0xf]
      %v8724 = vld [vmem:[#allocation10 + $0xcc] sm:$0xf]
      %v8725 = vld [vmem:[#allocation10 + $0xd0] sm:$0xf]
      %v8726 = vld [vmem:[#allocation10 + $0xd4] sm:$0xf]
      %v8727 = vld [vmem:[#allocation10 + $0xd8] sm:$0xf]
      %v8728 = vld [vmem:[#allocation10 + $0xdc] sm:$0xf]
      %v8729 = vld [vmem:[#allocation10 + $0xe0] sm:$0xf]
      %v8730 = vld [vmem:[#allocation10 + $0xe4] sm:$0xf]
      %v8731 = vld [vmem:[#allocation10 + $0xe8] sm:$0xf]
      %v8732 = vld [vmem:[#allocation10 + $0xec] sm:$0xf]
      %v8733 = vld [vmem:[#allocation10 + $0xf0] sm:$0xf]
      %v8734 = vld [vmem:[#allocation10 + $0xf4] sm:$0xf]
      %v8735 = vld [vmem:[#allocation10 + $0xf8] sm:$0xf]
      %v8736 = vld [vmem:[#allocation10 + $0xfc] sm:$0xf]
      %v8737 = vld [vmem:[#allocation10 + $0x100] sm:$0xf]
      %v8738 = vld [vmem:[#allocation10 + $0x104] sm:$0xf]
      %v8739 = vld [vmem:[#allocation10 + $0x108] sm:$0xf]
      %v8740 = vld [vmem:[#allocation10 + $0x10c] sm:$0xf]
      %v8741 = vld [vmem:[#allocation10 + $0x110] sm:$0xf]
      %v8742 = vld [vmem:[#allocation10 + $0x114] sm:$0xf]
      %v8743 = vld [vmem:[#allocation10 + $0x118] sm:$0xf]
      %v8744 = vld [vmem:[#allocation10 + $0x11c] sm:$0xf]
      %v8745 = vld [vmem:[#allocation10 + $0x120] sm:$0xf]
      %v8746 = vld [vmem:[#allocation10 + $0x124] sm:$0xf]
      %v8747 = vld [vmem:[#allocation10 + $0x128] sm:$0xf]
      %v8748 = vld [vmem:[#allocation10 + $0x12c] sm:$0xf]
      %v8749 = vld [vmem:[#allocation10 + $0x130] sm:$0xf]
      %v8750 = vld [vmem:[#allocation10 + $0x134] sm:$0xf]
      %v8751 = vld [vmem:[#allocation10 + $0x138] sm:$0xf]
      %v8752 = vld [vmem:[#allocation10 + $0x13c] sm:$0xf]
      %v8753 = vld [vmem:[#allocation10 + $0x140] sm:$0xf]
      %v8754 = vld [vmem:[#allocation10 + $0x144] sm:$0xf]
      %v8755 = vld [vmem:[#allocation10 + $0x148] sm:$0xf]
      %v8756 = vld [vmem:[#allocation10 + $0x14c] sm:$0xf]
      %v8757 = vld [vmem:[#allocation10 + $0x150] sm:$0xf]
      %v8758 = vld [vmem:[#allocation10 + $0x154] sm:$0xf]
      %v8759 = vld [vmem:[#allocation10 + $0x158] sm:$0xf]
      %v8760 = vld [vmem:[#allocation10 + $0x15c] sm:$0xf]
      %v8761 = vld [vmem:[#allocation10 + $0x160] sm:$0xf]
      %v8762 = vld [vmem:[#allocation10 + $0x164] sm:$0xf]
      %v8763 = vld [vmem:[#allocation10 + $0x168] sm:$0xf]
      %v8764 = vld [vmem:[#allocation10 + $0x16c] sm:$0xf]
      %v8765 = vld [vmem:[#allocation10 + $0x170] sm:$0xf]
      %v8766 = vld [vmem:[#allocation10 + $0x174] sm:$0xf]
      %v8767 = vld [vmem:[#allocation10 + $0x178] sm:$0xf]
      %v8768 = vld [vmem:[#allocation10 + $0x17c] sm:$0xf]
      %v8769 = vld [vmem:[#allocation10 + $0x180] sm:$0xf]
      %v8770 = vld [vmem:[#allocation10 + $0x184] sm:$0xf]
      %v8771 = vld [vmem:[#allocation10 + $0x188] sm:$0xf]
      %v8772 = vld [vmem:[#allocation10 + $0x18c] sm:$0xf]
      %v8773 = vld [vmem:[#allocation10 + $0x190] sm:$0xf]
      %v8774 = vld [vmem:[#allocation10 + $0x194] sm:$0xf]
      %v8775 = vld [vmem:[#allocation10 + $0x198] sm:$0xf]
      %v8776 = vld [vmem:[#allocation10 + $0x19c] sm:$0xf]
      %v8777 = vld [vmem:[#allocation10 + $0x1a0] sm:$0xf]
      %v8778 = vld [vmem:[#allocation10 + $0x1a4] sm:$0xf]
      %v8779 = vld [vmem:[#allocation10 + $0x1a8] sm:$0xf]
      %v8780 = vld [vmem:[#allocation10 + $0x1ac] sm:$0xf]
      %v8781 = vld [vmem:[#allocation10 + $0x1b0] sm:$0xf]
      %v8782 = vld [vmem:[#allocation10 + $0x1b4] sm:$0xf]
      %v8783 = vld [vmem:[#allocation10 + $0x1b8] sm:$0xf]
      %v8784 = vld [vmem:[#allocation10 + $0x1bc] sm:$0xf]
      %v8785 = vld [vmem:[#allocation10 + $0x1c0] sm:$0xf]
      %v8786 = vld [vmem:[#allocation10 + $0x1c4] sm:$0xf]
      %v8787 = vld [vmem:[#allocation10 + $0x1c8] sm:$0xf]
      %v8788 = vld [vmem:[#allocation10 + $0x1cc] sm:$0xf]
      %v8789 = vld [vmem:[#allocation10 + $0x1d0] sm:$0xf]
      %v8790 = vld [vmem:[#allocation10 + $0x1d4] sm:$0xf]
      %v8791 = vld [vmem:[#allocation10 + $0x1d8] sm:$0xf]
      %v8792 = vld [vmem:[#allocation10 + $0x1dc] sm:$0xf]
      %v8793 = vld [vmem:[#allocation10 + $0x1e0] sm:$0xf]
      %v8794 = vld [vmem:[#allocation10 + $0x1e4] sm:$0xf]
      %v8795 = vld [vmem:[#allocation10 + $0x1e8] sm:$0xf]
      %v8796 = vld [vmem:[#allocation10 + $0x1ec] sm:$0xf]
      %v8797 = vld [vmem:[#allocation10 + $0x1f0] sm:$0xf]
      %v8798 = vld [vmem:[#allocation10 + $0x1f4] sm:$0xf]
      %v8799 = vld [vmem:[#allocation10 + $0x1f8] sm:$0xf]
      %v8800 = vld [vmem:[#allocation10 + $0x1fc] sm:$0xf]
      %v8801 = vld [vmem:[#allocation11] sm:$0x1]
      %v8803 = vlaneseq
      %v8804 = vshrl.u32 %v8803, 7
      %v8805 = vsub.s32 0, %v8804
      %v8806 = vrot.slane %v8801, %v8805
      %v8936 = vunpack.c.l.b16 %v8673
      %v8937 = vunpack.c.l.b16 %v8674
      %v8938 = vunpack.c.l.b16 %v8675
      %v8939 = vunpack.c.l.b16 %v8676
      %v8940 = vunpack.c.l.b16 %v8677
      %v8941 = vunpack.c.l.b16 %v8678
      %v8942 = vunpack.c.l.b16 %v8679
      %v8943 = vunpack.c.l.b16 %v8680
      %v8944 = vunpack.c.l.b16 %v8681
      %v8945 = vunpack.c.l.b16 %v8682
      %v8946 = vunpack.c.l.b16 %v8683
      %v8947 = vunpack.c.l.b16 %v8684
      %v8948 = vunpack.c.l.b16 %v8685
      %v8949 = vunpack.c.l.b16 %v8686
      %v8950 = vunpack.c.l.b16 %v8687
      %v8951 = vunpack.c.l.b16 %v8688
      %v8952 = vunpack.c.l.b16 %v8689
      %v8953 = vunpack.c.l.b16 %v8690
      %v8954 = vunpack.c.l.b16 %v8691
      %v8955 = vunpack.c.l.b16 %v8692
      %v8956 = vunpack.c.l.b16 %v8693
      %v8957 = vunpack.c.l.b16 %v8694
      %v8958 = vunpack.c.l.b16 %v8695
      %v8959 = vunpack.c.l.b16 %v8696
      %v8960 = vunpack.c.l.b16 %v8697
      %v8961 = vunpack.c.l.b16 %v8698
      %v8962 = vunpack.c.l.b16 %v8699
      %v8963 = vunpack.c.l.b16 %v8700
      %v8964 = vunpack.c.l.b16 %v8701
      %v8965 = vunpack.c.l.b16 %v8702
      %v8966 = vunpack.c.l.b16 %v8703
      %v8967 = vunpack.c.l.b16 %v8704
      %v8968 = vunpack.c.l.b16 %v8705
      %v8969 = vunpack.c.l.b16 %v8706
      %v8970 = vunpack.c.l.b16 %v8707
      %v8971 = vunpack.c.l.b16 %v8708
      %v8972 = vunpack.c.l.b16 %v8709
      %v8973 = vunpack.c.l.b16 %v8710
      %v8974 = vunpack.c.l.b16 %v8711
      %v8975 = vunpack.c.l.b16 %v8712
      %v8976 = vunpack.c.l.b16 %v8713
      %v8977 = vunpack.c.l.b16 %v8714
      %v8978 = vunpack.c.l.b16 %v8715
      %v8979 = vunpack.c.l.b16 %v8716
      %v8980 = vunpack.c.l.b16 %v8717
      %v8981 = vunpack.c.l.b16 %v8718
      %v8982 = vunpack.c.l.b16 %v8719
      %v8983 = vunpack.c.l.b16 %v8720
      %v8984 = vunpack.c.l.b16 %v8721
      %v8985 = vunpack.c.l.b16 %v8722
      %v8986 = vunpack.c.l.b16 %v8723
      %v8987 = vunpack.c.l.b16 %v8724
      %v8988 = vunpack.c.l.b16 %v8725
      %v8989 = vunpack.c.l.b16 %v8726
      %v8990 = vunpack.c.l.b16 %v8727
      %v8991 = vunpack.c.l.b16 %v8728
      %v8992 = vunpack.c.l.b16 %v8729
      %v8993 = vunpack.c.l.b16 %v8730
      %v8994 = vunpack.c.l.b16 %v8731
      %v8995 = vunpack.c.l.b16 %v8732
      %v8996 = vunpack.c.l.b16 %v8733
      %v8997 = vunpack.c.l.b16 %v8734
      %v8998 = vunpack.c.l.b16 %v8735
      %v8999 = vunpack.c.l.b16 %v8736
      %v9000 = vunpack.c.l.b16 %v8737
      %v9001 = vunpack.c.l.b16 %v8738
      %v9002 = vunpack.c.l.b16 %v8739
      %v9003 = vunpack.c.l.b16 %v8740
      %v9004 = vunpack.c.l.b16 %v8741
      %v9005 = vunpack.c.l.b16 %v8742
      %v9006 = vunpack.c.l.b16 %v8743
      %v9007 = vunpack.c.l.b16 %v8744
      %v9008 = vunpack.c.l.b16 %v8745
      %v9009 = vunpack.c.l.b16 %v8746
      %v9010 = vunpack.c.l.b16 %v8747
      %v9011 = vunpack.c.l.b16 %v8748
      %v9012 = vunpack.c.l.b16 %v8749
      %v9013 = vunpack.c.l.b16 %v8750
      %v9014 = vunpack.c.l.b16 %v8751
      %v9015 = vunpack.c.l.b16 %v8752
      %v9016 = vunpack.c.l.b16 %v8753
      %v9017 = vunpack.c.l.b16 %v8754
      %v9018 = vunpack.c.l.b16 %v8755
      %v9019 = vunpack.c.l.b16 %v8756
      %v9020 = vunpack.c.l.b16 %v8757
      %v9021 = vunpack.c.l.b16 %v8758
      %v9022 = vunpack.c.l.b16 %v8759
      %v9023 = vunpack.c.l.b16 %v8760
      %v9024 = vunpack.c.l.b16 %v8761
      %v9025 = vunpack.c.l.b16 %v8762
      %v9026 = vunpack.c.l.b16 %v8763
      %v9027 = vunpack.c.l.b16 %v8764
      %v9028 = vunpack.c.l.b16 %v8765
      %v9029 = vunpack.c.l.b16 %v8766
      %v9030 = vunpack.c.l.b16 %v8767
      %v9031 = vunpack.c.l.b16 %v8768
      %v9032 = vunpack.c.l.b16 %v8769
      %v9033 = vunpack.c.l.b16 %v8770
      %v9034 = vunpack.c.l.b16 %v8771
      %v9035 = vunpack.c.l.b16 %v8772
      %v9036 = vunpack.c.l.b16 %v8773
      %v9037 = vunpack.c.l.b16 %v8774
      %v9038 = vunpack.c.l.b16 %v8775
      %v9039 = vunpack.c.l.b16 %v8776
      %v9040 = vunpack.c.l.b16 %v8777
      %v9041 = vunpack.c.l.b16 %v8778
      %v9042 = vunpack.c.l.b16 %v8779
      %v9043 = vunpack.c.l.b16 %v8780
      %v9044 = vunpack.c.l.b16 %v8781
      %v9045 = vunpack.c.l.b16 %v8782
      %v9046 = vunpack.c.l.b16 %v8783
      %v9047 = vunpack.c.l.b16 %v8784
      %v9048 = vunpack.c.l.b16 %v8785
      %v9049 = vunpack.c.l.b16 %v8786
      %v9050 = vunpack.c.l.b16 %v8787
      %v9051 = vunpack.c.l.b16 %v8788
      %v9052 = vunpack.c.l.b16 %v8789
      %v9053 = vunpack.c.l.b16 %v8790
      %v9054 = vunpack.c.l.b16 %v8791
      %v9055 = vunpack.c.l.b16 %v8792
      %v9056 = vunpack.c.l.b16 %v8793
      %v9057 = vunpack.c.l.b16 %v8794
      %v9058 = vunpack.c.l.b16 %v8795
      %v9059 = vunpack.c.l.b16 %v8796
      %v9060 = vunpack.c.l.b16 %v8797
      %v9061 = vunpack.c.l.b16 %v8798
      %v9062 = vunpack.c.l.b16 %v8799
      %v9063 = vunpack.c.l.b16 %v8800
      %v9064 = vpack.c.b16 %v8937, %v8936
      %v9065 = vpack.c.b16 %v8939, %v8938
      %v9066 = vpack.c.b16 %v8941, %v8940
      %v9067 = vpack.c.b16 %v8943, %v8942
      %v9068 = vpack.c.b16 %v8945, %v8944
      %v9069 = vpack.c.b16 %v8947, %v8946
      %v9070 = vpack.c.b16 %v8949, %v8948
      %v9071 = vpack.c.b16 %v8951, %v8950
      %v9072 = vpack.c.b16 %v8953, %v8952
      %v9073 = vpack.c.b16 %v8955, %v8954
      %v9074 = vpack.c.b16 %v8957, %v8956
      %v9075 = vpack.c.b16 %v8959, %v8958
      %v9076 = vpack.c.b16 %v8961, %v8960
      %v9077 = vpack.c.b16 %v8963, %v8962
      %v9078 = vpack.c.b16 %v8965, %v8964
      %v9079 = vpack.c.b16 %v8967, %v8966
      %v9080 = vpack.c.b16 %v8969, %v8968
      %v9081 = vpack.c.b16 %v8971, %v8970
      %v9082 = vpack.c.b16 %v8973, %v8972
      %v9083 = vpack.c.b16 %v8975, %v8974
      %v9084 = vpack.c.b16 %v8977, %v8976
      %v9085 = vpack.c.b16 %v8979, %v8978
      %v9086 = vpack.c.b16 %v8981, %v8980
      %v9087 = vpack.c.b16 %v8983, %v8982
      %v9088 = vpack.c.b16 %v8985, %v8984
      %v9089 = vpack.c.b16 %v8987, %v8986
      %v9090 = vpack.c.b16 %v8989, %v8988
      %v9091 = vpack.c.b16 %v8991, %v8990
      %v9092 = vpack.c.b16 %v8993, %v8992
      %v9093 = vpack.c.b16 %v8995, %v8994
      %v9094 = vpack.c.b16 %v8997, %v8996
      %v9095 = vpack.c.b16 %v8999, %v8998
      %v9096 = vpack.c.b16 %v9001, %v9000
      %v9097 = vpack.c.b16 %v9003, %v9002
      %v9098 = vpack.c.b16 %v9005, %v9004
      %v9099 = vpack.c.b16 %v9007, %v9006
      %v9100 = vpack.c.b16 %v9009, %v9008
      %v9101 = vpack.c.b16 %v9011, %v9010
      %v9102 = vpack.c.b16 %v9013, %v9012
      %v9103 = vpack.c.b16 %v9015, %v9014
      %v9104 = vpack.c.b16 %v9017, %v9016
      %v9105 = vpack.c.b16 %v9019, %v9018
      %v9106 = vpack.c.b16 %v9021, %v9020
      %v9107 = vpack.c.b16 %v9023, %v9022
      %v9108 = vpack.c.b16 %v9025, %v9024
      %v9109 = vpack.c.b16 %v9027, %v9026
      %v9110 = vpack.c.b16 %v9029, %v9028
      %v9111 = vpack.c.b16 %v9031, %v9030
      %v9112 = vpack.c.b16 %v9033, %v9032
      %v9113 = vpack.c.b16 %v9035, %v9034
      %v9114 = vpack.c.b16 %v9037, %v9036
      %v9115 = vpack.c.b16 %v9039, %v9038
      %v9116 = vpack.c.b16 %v9041, %v9040
      %v9117 = vpack.c.b16 %v9043, %v9042
      %v9118 = vpack.c.b16 %v9045, %v9044
      %v9119 = vpack.c.b16 %v9047, %v9046
      %v9120 = vpack.c.b16 %v9049, %v9048
      %v9121 = vpack.c.b16 %v9051, %v9050
      %v9122 = vpack.c.b16 %v9053, %v9052
      %v9123 = vpack.c.b16 %v9055, %v9054
      %v9124 = vpack.c.b16 %v9057, %v9056
      %v9125 = vpack.c.b16 %v9059, %v9058
      %v9126 = vpack.c.b16 %v9061, %v9060
      %v9127 = vpack.c.b16 %v9063, %v9062
      %9192 = vmatprep.subr.bf16.mxu0 0
      %9193 = vmatpush1.bf16.msra.mxu0 %v9071
      %9194 = vmatprep.subr.bf16.mxu0 0
      %9195 = vmatpush1.bf16.msra.mxu0 %v9070
      %9196 = vmatprep.subr.bf16.mxu0 0
      %9197 = vmatpush1.bf16.msra.mxu0 %v9069
      %9198 = vmatprep.subr.bf16.mxu0 0
      %9199 = vmatpush1.bf16.msra.mxu0 %v9068
      %9200 = vmatprep.subr.bf16.mxu0 0
      %9201 = vmatpush1.bf16.msra.mxu0 %v9067
      %9202 = vmatprep.subr.bf16.mxu0 0
      %9203 = vmatpush1.bf16.msra.mxu0 %v9066
      %9204 = vmatprep.subr.bf16.mxu0 0
      %9205 = vmatpush1.bf16.msra.mxu0 %v9065
      %9206 = vmatprep.subr.bf16.mxu0 0
      %9207 = vmatpush1.bf16.msra.mxu0 %v9064
      %9208 = vmatprep.subr.bf16.mxu0 0
      %9209 = vmatpush2.bf16.msra.mxu0 %v9079
      %9210 = vmatprep.subr.bf16.mxu0 0
      %9211 = vmatpush2.bf16.msra.mxu0 %v9078
      %9212 = vmatprep.subr.bf16.mxu0 0
      %9213 = vmatpush2.bf16.msra.mxu0 %v9077
      %9214 = vmatprep.subr.bf16.mxu0 0
      %9215 = vmatpush2.bf16.msra.mxu0 %v9076
      %9216 = vmatprep.subr.bf16.mxu0 0
      %9217 = vmatpush2.bf16.msra.mxu0 %v9075
      %9218 = vmatprep.subr.bf16.mxu0 0
      %9219 = vmatpush2.bf16.msra.mxu0 %v9074
      %9220 = vmatprep.subr.bf16.mxu0 0
      %9221 = vmatpush2.bf16.msra.mxu0 %v9073
      %9222 = vmatprep.subr.bf16.mxu0 0
      %9223 = vmatpush2.bf16.msra.mxu0 %v9072
      %9224 = vmatprep.mubr.bf16.mxu0 %v8666
      %9225 = vmatmul.mubr.bf16.gmra.mxu0 %v8665
      %v9226 = vpop.f32.mrf.mxu0
      %v9227 = vadd.f32 %v8806, %v9226
      %v9228 = vpop.f32.mrf.mxu0
      %v9229 = vpop.f32.mrf.mxu0
      %v9230 = vpop.f32.mrf.mxu0
      %9231 = vdwg.mxu0
      %9232 = vmatprep.subr.bf16.mxu0 0
      %9233 = vmatpush1.bf16.msra.mxu0 %v9087
      %9234 = vmatprep.subr.bf16.mxu0 0
      %9235 = vmatpush1.bf16.msra.mxu0 %v9086
      %9236 = vmatprep.subr.bf16.mxu0 0
      %9237 = vmatpush1.bf16.msra.mxu0 %v9085
      %9238 = vmatprep.subr.bf16.mxu0 0
      %9239 = vmatpush1.bf16.msra.mxu0 %v9084
      %9240 = vmatprep.subr.bf16.mxu0 0
      %9241 = vmatpush1.bf16.msra.mxu0 %v9083
      %9242 = vmatprep.subr.bf16.mxu0 0
      %9243 = vmatpush1.bf16.msra.mxu0 %v9082
      %9244 = vmatprep.subr.bf16.mxu0 0
      %9245 = vmatpush1.bf16.msra.mxu0 %v9081
      %9246 = vmatprep.subr.bf16.mxu0 0
      %9247 = vmatpush1.bf16.msra.mxu0 %v9080
      %9248 = vmatprep.subr.bf16.mxu0 0
      %9249 = vmatpush2.bf16.msra.mxu0 %v9095
      %9250 = vmatprep.subr.bf16.mxu0 0
      %9251 = vmatpush2.bf16.msra.mxu0 %v9094
      %9252 = vmatprep.subr.bf16.mxu0 0
      %9253 = vmatpush2.bf16.msra.mxu0 %v9093
      %9254 = vmatprep.subr.bf16.mxu0 0
      %9255 = vmatpush2.bf16.msra.mxu0 %v9092
      %9256 = vmatprep.subr.bf16.mxu0 0
      %9257 = vmatpush2.bf16.msra.mxu0 %v9091
      %9258 = vmatprep.subr.bf16.mxu0 0
      %9259 = vmatpush2.bf16.msra.mxu0 %v9090
      %9260 = vmatprep.subr.bf16.mxu0 0
      %9261 = vmatpush2.bf16.msra.mxu0 %v9089
      %9262 = vmatprep.subr.bf16.mxu0 0
      %9263 = vmatpush2.bf16.msra.mxu0 %v9088
      %9264 = vmatprep.mubr.bf16.mxu0 %v8668
      %9265 = vmatmul.mubr.bf16.gmra.mxu0 %v8667
      %v9266 = vpop.f32.mrf.mxu0
      %v9267 = vadd.f32 %v9227, %v9266
      %v9268 = vpop.f32.mrf.mxu0
      %v9269 = vpop.f32.mrf.mxu0
      %v9270 = vpop.f32.mrf.mxu0
      %9271 = vdwg.mxu0
      %9272 = vmatprep.subr.bf16.mxu0 0
      %9273 = vmatpush1.bf16.msra.mxu0 %v9103
      %9274 = vmatprep.subr.bf16.mxu0 0
      %9275 = vmatpush1.bf16.msra.mxu0 %v9102
      %9276 = vmatprep.subr.bf16.mxu0 0
      %9277 = vmatpush1.bf16.msra.mxu0 %v9101
      %9278 = vmatprep.subr.bf16.mxu0 0
      %9279 = vmatpush1.bf16.msra.mxu0 %v9100
      %9280 = vmatprep.subr.bf16.mxu0 0
      %9281 = vmatpush1.bf16.msra.mxu0 %v9099
      %9282 = vmatprep.subr.bf16.mxu0 0
      %9283 = vmatpush1.bf16.msra.mxu0 %v9098
      %9284 = vmatprep.subr.bf16.mxu0 0
      %9285 = vmatpush1.bf16.msra.mxu0 %v9097
      %9286 = vmatprep.subr.bf16.mxu0 0
      %9287 = vmatpush1.bf16.msra.mxu0 %v9096
      %9288 = vmatprep.subr.bf16.mxu0 0
      %9289 = vmatpush2.bf16.msra.mxu0 %v9111
      %9290 = vmatprep.subr.bf16.mxu0 0
      %9291 = vmatpush2.bf16.msra.mxu0 %v9110
      %9292 = vmatprep.subr.bf16.mxu0 0
      %9293 = vmatpush2.bf16.msra.mxu0 %v9109
      %9294 = vmatprep.subr.bf16.mxu0 0
      %9295 = vmatpush2.bf16.msra.mxu0 %v9108
      %9296 = vmatprep.subr.bf16.mxu0 0
      %9297 = vmatpush2.bf16.msra.mxu0 %v9107
      %9298 = vmatprep.subr.bf16.mxu0 0
      %9299 = vmatpush2.bf16.msra.mxu0 %v9106
      %9300 = vmatprep.subr.bf16.mxu0 0
      %9301 = vmatpush2.bf16.msra.mxu0 %v9105
      %9302 = vmatprep.subr.bf16.mxu0 0
      %9303 = vmatpush2.bf16.msra.mxu0 %v9104
      %9304 = vmatprep.mubr.bf16.mxu0 %v8670
      %9305 = vmatmul.mubr.bf16.gmra.mxu0 %v8669
      %v9306 = vpop.f32.mrf.mxu0
      %v9307 = vadd.f32 %v9267, %v9306
      %v9308 = vpop.f32.mrf.mxu0
      %v9309 = vpop.f32.mrf.mxu0
      %v9310 = vpop.f32.mrf.mxu0
      %9311 = vdwg.mxu0
      %9312 = vmatprep.subr.bf16.mxu0 0
      %9313 = vmatpush1.bf16.msra.mxu0 %v9119
      %9314 = vmatprep.subr.bf16.mxu0 0
      %9315 = vmatpush1.bf16.msra.mxu0 %v9118
      %9316 = vmatprep.subr.bf16.mxu0 0
      %9317 = vmatpush1.bf16.msra.mxu0 %v9117
      %9318 = vmatprep.subr.bf16.mxu0 0
      %9319 = vmatpush1.bf16.msra.mxu0 %v9116
      %9320 = vmatprep.subr.bf16.mxu0 0
      %9321 = vmatpush1.bf16.msra.mxu0 %v9115
      %9322 = vmatprep.subr.bf16.mxu0 0
      %9323 = vmatpush1.bf16.msra.mxu0 %v9114
      %9324 = vmatprep.subr.bf16.mxu0 0
      %9325 = vmatpush1.bf16.msra.mxu0 %v9113
      %9326 = vmatprep.subr.bf16.mxu0 0
      %9327 = vmatpush1.bf16.msra.mxu0 %v9112
      %9328 = vmatprep.subr.bf16.mxu0 0
      %9329 = vmatpush2.bf16.msra.mxu0 %v9127
      %9330 = vmatprep.subr.bf16.mxu0 0
      %9331 = vmatpush2.bf16.msra.mxu0 %v9126
      %9332 = vmatprep.subr.bf16.mxu0 0
      %9333 = vmatpush2.bf16.msra.mxu0 %v9125
      %9334 = vmatprep.subr.bf16.mxu0 0
      %9335 = vmatpush2.bf16.msra.mxu0 %v9124
      %9336 = vmatprep.subr.bf16.mxu0 0
      %9337 = vmatpush2.bf16.msra.mxu0 %v9123
      %9338 = vmatprep.subr.bf16.mxu0 0
      %9339 = vmatpush2.bf16.msra.mxu0 %v9122
      %9340 = vmatprep.subr.bf16.mxu0 0
      %9341 = vmatpush2.bf16.msra.mxu0 %v9121
      %9342 = vmatprep.subr.bf16.mxu0 0
      %9343 = vmatpush2.bf16.msra.mxu0 %v9120
      %9344 = vmatprep.mubr.bf16.mxu0 %v8672
      %9345 = vmatmul.mubr.bf16.gmra.mxu0 %v8671
      %v9346 = vpop.f32.mrf.mxu0
      %v9347 = vadd.f32 %v9307, %v9346
      %v9348 = vpop.f32.mrf.mxu0
      %v9349 = vpop.f32.mrf.mxu0
      %v9350 = vpop.f32.mrf.mxu0
      %9351 = vdwg.mxu0
      %v9352 = vsub.f32 0.0, %v9347
      %v9353 = vmul.f32 %v9352, 1.442695
      %v9354 = vpow.pop %v9353
      %v9355 = vadd.f32 %v9354, 1.0
      %v9356 = vrcp.pop %v9355
      %v9357 = vmul.f32 1.0, %v9356
      %9358 = vst [vmem:[%s9] sm:$0x3] %v9357
    $region69: #{discriminator_forward.5} parent=1 // pred_fallthru
      _
    // Predicated region
    $region70: #{discriminator_forward.5} parent=1 // pred_check
      _
    $region71: #{discriminator_forward.5} parent=1 // pred_check_branch
      %9360 = sbr.rel (0) target = $region73
    $region72: #{discriminator_forward.5} parent=1 // pred_region
      _
    $region73: #{discriminator_forward.5} parent=1 // pred_fallthru
      _
    // Predicated region
    $region74: #{discriminator_forward.5} parent=1 // pred_check
      _
    $region75: #{discriminator_forward.5} parent=1 // pred_check_branch
      %9362 = sbr.rel (0) target = $region77
    $region76: #{discriminator_forward.5} parent=1 // pred_region
      _
    $region77: #{discriminator_forward.5} parent=1 // pred_fallthru
      _
    %9363 = vsyncpa [#allocation4], 1
    %9364 = vsyncpa [#allocation6], 1
    %9365 = vsyncpa [#allocation9], 1
    %9366 = vsyncpa [#allocation12], 1

</llo_original>
